<compile_context>
chip_gen: v6e
topology: v6e:2x2x1
jax: 0.10.0
libtpu: 0.0.40
codegen_flags: <defaults>
</compile_context>

<pallas_src>
import jax
import jax.numpy as jnp
from jax.experimental import pallas as pl
from jax.experimental.pallas import tpu as pltpu

EPS = 1e-5  # nn.GroupNorm default eps


def _odefunc_kernel(x_ref, gmat_ref,
                    g1_ref, be1_ref, w1_ref, bm1_ref,
                    g2_ref, be2_ref, w2_ref, bm2_ref,
                    g3_ref, be3_ref,
                    o_ref, hp_ref):
    nb, H, W, C = x_ref.shape
    HW = H * W
    gmat = gmat_ref[...]                       # (C, C) group-average matrix

    # Persistent padded conv-input scratch.  The 1-pixel border must be zero;
    # the interior is rewritten before every use.  Re-zero once per grid step
    # (cheap, and megacore-safe unlike a program_id==0 one-time init).
    hp_ref[...] = jnp.zeros_like(hp_ref)

    def group_norm(h3, gamma, beta):           # h3: (nb, HW, C) -> (nb, HW, C)
        s1 = jnp.sum(h3, axis=1)                                       # (nb, C)
        mean = jnp.dot(s1, gmat, preferred_element_type=jnp.float32)   # group mean
        d = h3 - mean[:, None, :]
        s2 = jnp.sum(d * d, axis=1)                                    # (nb, C)
        var = jnp.dot(s2, gmat, preferred_element_type=jnp.float32)    # group var
        scale = jax.lax.rsqrt(var + EPS)[:, None, :] * gamma           # (nb, 1, C)
        return d * scale + beta                                        # fused FMA

    def conv3x3(h3, w_taps, bias_map):         # h3: (nb, HW, C) -> (nb, HW, C)
        hp_ref[:, 1:H + 1, 1:W + 1, :] = h3.reshape(nb, H, W, C)
        hp = hp_ref[...]                       # (nb, H+2, W+2, C), border = 0
        acc = jnp.zeros((nb * HW, C), jnp.float32)
        for k in range(9):                     # static unroll over 3x3 taps
            dy, dx = divmod(k, 3)
            patch = hp[:, dy:dy + H, dx:dx + W, :].reshape(nb * HW, C)
            acc = acc + jnp.dot(patch, w_taps[k],
                                preferred_element_type=jnp.float32)
        # bias_map already contains conv bias + folded t-channel contribution.
        return acc.reshape(nb, HW, C) + bias_map

    h = x_ref[...].astype(jnp.float32).reshape(nb, HW, C)
    h = group_norm(h, g1_ref[...], be1_ref[...])
    h = jnp.maximum(h, 0.0)
    h = conv3x3(h, w1_ref[...], bm1_ref[...])
    h = group_norm(h, g2_ref[...], be2_ref[...])
    h = jnp.maximum(h, 0.0)
    h = conv3x3(h, w2_ref[...], bm2_ref[...])
    h = group_norm(h, g3_ref[...], be3_ref[...])
    o_ref[...] = h.reshape(nb, H, W, C).astype(o_ref.dtype)


def _pick_block_batch(n, per_sample_bytes, budget_bytes):
    """Largest divisor of n whose per-step working set fits the VMEM budget,
    preferring >=2 grid steps (keeps both v7x TensorCores busy)."""
    divs = [d for d in range(1, n + 1) if n % d == 0]
    fitting = [d for d in divs if d * per_sample_bytes <= budget_bytes] or [1]
    nb = max(fitting)
    if n // nb < 2:
        two_step = [d for d in fitting if n // d >= 2]
        if two_step:
            nb = max(two_step)
    return nb


def odefunc_forward(t, x_nchw, params, *, vmem_budget_bytes=8 * 1024 * 1024):
    """Pallas implementation of ODEfunc.forward(t, x) for NCHW input x."""
    N, C, H, W = x_nchw.shape
    G = min(32, C)
    if C % G != 0:
        raise ValueError(f"GroupNorm requires C % min(32, C) == 0, got C={C}")
    Cg = C // G

    x_nhwc = jnp.transpose(x_nchw, (0, 2, 3, 1))             # (N, H, W, C)
    t32 = jnp.asarray(t, jnp.float32)

    # (C, C): gmat[i, j] = 1/(Cg*H*W) iff channels i, j share a group.
    ch = jnp.arange(C)
    same = (ch[:, None] // Cg) == (ch[None, :] // Cg)
    gmat = same.astype(jnp.float32) / float(Cg * H * W)

    def conv_taps(w_oihw):
        # OIHW (Cout, C+1, 3, 3) -> (9, C, Cout), t-channel (cin=0) dropped.
        w_img = w_oihw[:, 1:, :, :].astype(jnp.float32)
        return jnp.transpose(w_img, (2, 3, 1, 0)).reshape(9, C, C)

    def t_bias_map(w_oihw, b):
        # Contribution of the constant-t channel (zero-padded at the border)
        # to every output pixel, folded with the conv bias -> (H*W, C).
        wt = w_oihw[:, 0, :, :].astype(jnp.float32)          # (Cout, 3, 3)
        taps = jnp.arange(3)
        ys = jnp.arange(H)[:, None] + taps[None, :]          # padded row index
        xs = jnp.arange(W)[:, None] + taps[None, :]          # padded col index
        rm = ((ys >= 1) & (ys <= H)).astype(jnp.float32)     # (H, 3)
        cm = ((xs >= 1) & (xs <= W)).astype(jnp.float32)     # (W, 3)
        tb = t32 * jnp.einsum('yi,xj,cij->yxc', rm, cm, wt)  # (H, W, C)
        return (tb + b.astype(jnp.float32)[None, None, :]).reshape(H * W, C)

    g1 = params['g1'].astype(jnp.float32).reshape(1, C)
    be1 = params['be1'].astype(jnp.float32).reshape(1, C)
    g2 = params['g2'].astype(jnp.float32).reshape(1, C)
    be2 = params['be2'].astype(jnp.float32).reshape(1, C)
    g3 = params['g3'].astype(jnp.float32).reshape(1, C)
    be3 = params['be3'].astype(jnp.float32).reshape(1, C)
    w1k = conv_taps(params['w1']); bm1 = t_bias_map(params['w1'], params['b1'])
    w2k = conv_taps(params['w2']); bm2 = t_bias_map(params['w2'], params['b2'])

    # Per-step sample batch, sized against a conservative VMEM working-set
    # estimate (double-buffered IO + padded scratch + intermediates).
    per_sample_bytes = 4 * H * W * C * 19 + 4 * (H + 2) * (W + 2) * C
    nb = _pick_block_batch(N, per_sample_bytes, vmem_budget_bytes)
    grid = (N // nb,)

    def full_spec(a):
        nd = a.ndim
        return pl.BlockSpec(a.shape, lambda n, _nd=nd: (0,) * _nd)

    out_nhwc = pl.pallas_call(
        _odefunc_kernel,
        out_shape=jax.ShapeDtypeStruct((N, H, W, C), x_nchw.dtype),
        grid=grid,
        in_specs=[
            pl.BlockSpec((nb, H, W, C), lambda n: (n, 0, 0, 0)),   # x block
            full_spec(gmat),
            full_spec(g1), full_spec(be1), full_spec(w1k), full_spec(bm1),
            full_spec(g2), full_spec(be2), full_spec(w2k), full_spec(bm2),
            full_spec(g3), full_spec(be3),
        ],
        out_specs=pl.BlockSpec((nb, H, W, C), lambda n: (n, 0, 0, 0)),
        scratch_shapes=[pltpu.VMEM((nb, H + 2, W + 2, C), jnp.float32)],
        compiler_params=pltpu.CompilerParams(
            dimension_semantics=("parallel",),
            vmem_limit_bytes=32 * 1024 * 1024),
    )(x_nhwc, gmat, g1, be1, w1k, bm1, g2, be2, w2k, bm2, g3, be3)

    return jnp.transpose(out_nhwc, (0, 3, 1, 2))             # back to NCHW


def _ref_forward(t, x, params):
    """Pure-JAX reference matching the PyTorch ODEfunc forward."""
    C = x.shape[1]
    G = min(32, C)

    def gn(h, gamma, beta):
        N, C_, H, W = h.shape
        hr = h.reshape(N, G, (C_ // G) * H * W)
        mean = hr.mean(axis=-1, keepdims=True)
        var = ((hr - mean) ** 2).mean(axis=-1, keepdims=True)
        hn = ((hr - mean) / jnp.sqrt(var + EPS)).reshape(N, C_, H, W)
        return hn * gamma.reshape(1, C_, 1, 1) + beta.reshape(1, C_, 1, 1)

    def cc(h, w, b):
        N, C_, H, W = h.shape
        tt = jnp.full((N, 1, H, W), t, h.dtype)
        ht = jnp.concatenate([tt, h], axis=1)
        y = jax.lax.conv_general_dilated(
            ht, w, window_strides=(1, 1), padding=((1, 1), (1, 1)),
            dimension_numbers=('NCHW', 'OIHW', 'NCHW'))
        return y + b.reshape(1, -1, 1, 1)

    h = jnp.maximum(gn(x, params['g1'], params['be1']), 0.0)
    h = cc(h, params['w1'], params['b1'])
    h = jnp.maximum(gn(h, params['g2'], params['be2']), 0.0)
    h = cc(h, params['w2'], params['b2'])
    return gn(h, params['g3'], params['be3'])


if __name__ == "__main__":
    N, C, H, W = 2, 4, 16, 16          # dim = 4
    key = jax.random.PRNGKey(0)
    ks = jax.random.split(key, 12)

    x = jax.random.normal(ks[0], (N, C, H, W), jnp.float32)
    t = jnp.float32(0.5)

    params = {
        'g1': 1.0 + 0.1 * jax.random.normal(ks[1], (C,), jnp.float32),
        'be1': 0.1 * jax.random.normal(ks[2], (C,), jnp.float32),
        'w1': 0.2 * jax.random.normal(ks[3], (C, C + 1, 3, 3), jnp.float32),
        'b1': 0.1 * jax.random.normal(ks[4], (C,), jnp.float32),
        'g2': 1.0 + 0.1 * jax.random.normal(ks[5], (C,), jnp.float32),
        'be2': 0.1 * jax.random.normal(ks[6], (C,), jnp.float32),
        'w2': 0.2 * jax.random.normal(ks[7], (C, C + 1, 3, 3), jnp.float32),
        'b2': 0.1 * jax.random.normal(ks[8], (C,), jnp.float32),
        'g3': 1.0 + 0.1 * jax.random.normal(ks[9], (C,), jnp.float32),
        'be3': 0.1 * jax.random.normal(ks[10], (C,), jnp.float32),
    }

    out = odefunc_forward(t, x, params)
    out = jax.block_until_ready(out)

    ref = _ref_forward(t, x, params)
    assert out.shape == ref.shape == (N, C, H, W)
    max_err = float(jnp.max(jnp.abs(out - ref)))
    assert max_err < 1e-2, f"max abs error vs reference: {max_err}"

    print("KERNEL_OK")
</pallas_src>

<mosaic_0001>
module attributes {stable_mosaic.version = 11 : i64} {
  func.func @_odefunc_kernel(%arg0: i32, %arg1: memref<1x16x16x4xf32, #tpu.memory_space<vmem>>, %arg2: memref<4x4xf32, #tpu.memory_space<vmem>>, %arg3: memref<1x4xf32, #tpu.memory_space<vmem>>, %arg4: memref<1x4xf32, #tpu.memory_space<vmem>>, %arg5: memref<9x4x4xf32, #tpu.memory_space<vmem>>, %arg6: memref<256x4xf32, #tpu.memory_space<vmem>>, %arg7: memref<1x4xf32, #tpu.memory_space<vmem>>, %arg8: memref<1x4xf32, #tpu.memory_space<vmem>>, %arg9: memref<9x4x4xf32, #tpu.memory_space<vmem>>, %arg10: memref<256x4xf32, #tpu.memory_space<vmem>>, %arg11: memref<1x4xf32, #tpu.memory_space<vmem>>, %arg12: memref<1x4xf32, #tpu.memory_space<vmem>>, %arg13: memref<1x16x16x4xf32, #tpu.memory_space<vmem>>, %arg14: memref<1x18x18x4xf32, #tpu.memory_space<vmem>>) attributes {dimension_semantics = [#tpu.dimension_semantics<parallel>], iteration_bounds = array<i64: 2>, scalar_prefetch = 0 : i64, scratch_operands = 1 : i64, tpu.core_type = #tpu.core_type<tc>, window_params = [{transform_indices = @transform_0, window_bounds = array<i64: 1, 16, 16, 4>}, {pipeline_mode = #tpu.pipeline_mode<synchronous>, transform_indices = @transform_1, window_bounds = array<i64: 4, 4>}, {pipeline_mode = #tpu.pipeline_mode<synchronous>, transform_indices = @transform_2, window_bounds = array<i64: 1, 4>}, {pipeline_mode = #tpu.pipeline_mode<synchronous>, transform_indices = @transform_3, window_bounds = array<i64: 1, 4>}, {pipeline_mode = #tpu.pipeline_mode<synchronous>, transform_indices = @transform_4, window_bounds = array<i64: 9, 4, 4>}, {pipeline_mode = #tpu.pipeline_mode<synchronous>, transform_indices = @transform_5, window_bounds = array<i64: 256, 4>}, {pipeline_mode = #tpu.pipeline_mode<synchronous>, transform_indices = @transform_6, window_bounds = array<i64: 1, 4>}, {pipeline_mode = #tpu.pipeline_mode<synchronous>, transform_indices = @transform_7, window_bounds = array<i64: 1, 4>}, {pipeline_mode = #tpu.pipeline_mode<synchronous>, transform_indices = @transform_8, window_bounds = array<i64: 9, 4, 4>}, {pipeline_mode = #tpu.pipeline_mode<synchronous>, transform_indices = @transform_9, window_bounds = array<i64: 256, 4>}, {pipeline_mode = #tpu.pipeline_mode<synchronous>, transform_indices = @transform_10, window_bounds = array<i64: 1, 4>}, {pipeline_mode = #tpu.pipeline_mode<synchronous>, transform_indices = @transform_11, window_bounds = array<i64: 1, 4>}, {transform_indices = @transform_12, window_bounds = array<i64: 1, 16, 16, 4>}]} {
    %c0 = arith.constant 0 : index
    %c0_0 = arith.constant 0 : index
    %0 = vector.load %arg2[%c0, %c0_0] : memref<4x4xf32, #tpu.memory_space<vmem>>, vector<4x4xf32>
    %cst = arith.constant 0.000000e+00 : f32
    %1 = vector.broadcast %cst : f32 to vector<1x18x18x4xf32>
    %c0_1 = arith.constant 0 : index
    %c0_2 = arith.constant 0 : index
    %c0_3 = arith.constant 0 : index
    %c0_4 = arith.constant 0 : index
    %2 = vector.load %arg14[%c0_1, %c0_2, %c0_3, %c0_4] : memref<1x18x18x4xf32, #tpu.memory_space<vmem>>, vector<1x18x18x4xf32>
    tpu.vector_store %arg14[%c0_1, %c0_2, %c0_3, %c0_4], %1 {strides = array<i32>} : memref<1x18x18x4xf32, #tpu.memory_space<vmem>>, vector<1x18x18x4xf32>,
    %c0_5 = arith.constant 0 : index
    %c0_6 = arith.constant 0 : index
    %c0_7 = arith.constant 0 : index
    %c0_8 = arith.constant 0 : index
    %3 = vector.load %arg1[%c0_5, %c0_6, %c0_7, %c0_8] : memref<1x16x16x4xf32, #tpu.memory_space<vmem>>, vector<1x16x16x4xf32>
    %4 = vector.shape_cast %3 : vector<1x16x16x4xf32> to vector<1x256x4xf32>
    %c0_9 = arith.constant 0 : index
    %c0_10 = arith.constant 0 : index
    %5 = vector.load %arg3[%c0_9, %c0_10] : memref<1x4xf32, #tpu.memory_space<vmem>>, vector<1x4xf32>
    %c0_11 = arith.constant 0 : index
    %c0_12 = arith.constant 0 : index
    %6 = vector.load %arg4[%c0_11, %c0_12] : memref<1x4xf32, #tpu.memory_space<vmem>>, vector<1x4xf32>
    %cst_13 = arith.constant dense<0.000000e+00> : vector<1x4xf32>
    %7 = vector.multi_reduction <add>, %4, %cst_13 [1] : vector<1x256x4xf32> to vector<1x4xf32>
    %cst_14 = arith.constant dense<0.000000e+00> : vector<1x4xf32>
    %8 = tpu.matmul %7, %0, %cst_14 {dimension_numbers = #tpu.dot_dimension_numbers<[1], [0], [0], [1], [0, 0, 1, 1], [], []>} : vector<1x4xf32>, vector<4x4xf32>, vector<1x4xf32> -> vector<1x4xf32>
    %9 = vector.shape_cast %8 : vector<1x4xf32> to vector<1x1x4xf32>
    %10 = vector.broadcast %9 : vector<1x1x4xf32> to vector<1x256x4xf32>
    %11 = arith.subf %4, %10 : vector<1x256x4xf32>
    %12 = arith.mulf %11, %11 : vector<1x256x4xf32>
    %cst_15 = arith.constant dense<0.000000e+00> : vector<1x4xf32>
    %13 = vector.multi_reduction <add>, %12, %cst_15 [1] : vector<1x256x4xf32> to vector<1x4xf32>
    %cst_16 = arith.constant dense<0.000000e+00> : vector<1x4xf32>
    %14 = tpu.matmul %13, %0, %cst_16 {dimension_numbers = #tpu.dot_dimension_numbers<[1], [0], [0], [1], [0, 0, 1, 1], [], []>} : vector<1x4xf32>, vector<4x4xf32>, vector<1x4xf32> -> vector<1x4xf32>
    %cst_17 = arith.constant 9.99999974E-6 : f32
    %15 = vector.broadcast %cst_17 : f32 to vector<1x4xf32>
    %16 = arith.addf %14, %15 : vector<1x4xf32>
    %17 = math.rsqrt %16 : vector<1x4xf32>
    %18 = vector.shape_cast %17 : vector<1x4xf32> to vector<1x1x4xf32>
    %19 = vector.shape_cast %5 : vector<1x4xf32> to vector<1x1x4xf32>
    %20 = arith.mulf %18, %19 : vector<1x1x4xf32>
    %21 = vector.broadcast %20 : vector<1x1x4xf32> to vector<1x256x4xf32>
    %22 = arith.mulf %11, %21 : vector<1x256x4xf32>
    %23 = vector.shape_cast %6 : vector<1x4xf32> to vector<1x1x4xf32>
    %24 = vector.broadcast %23 : vector<1x1x4xf32> to vector<1x256x4xf32>
    %25 = arith.addf %22, %24 : vector<1x256x4xf32>
    %cst_18 = arith.constant 0.000000e+00 : f32
    %26 = vector.broadcast %cst_18 : f32 to vector<1x256x4xf32>
    %27 = arith.maximumf %25, %26 : vector<1x256x4xf32>
    %c0_19 = arith.constant 0 : index
    %c0_20 = arith.constant 0 : index
    %c0_21 = arith.constant 0 : index
    %28 = vector.load %arg5[%c0_19, %c0_20, %c0_21] : memref<9x4x4xf32, #tpu.memory_space<vmem>>, vector<9x4x4xf32>
    %c0_22 = arith.constant 0 : index
    %c0_23 = arith.constant 0 : index
    %29 = vector.load %arg6[%c0_22, %c0_23] : memref<256x4xf32, #tpu.memory_space<vmem>>, vector<256x4xf32>
    %30 = vector.shape_cast %27 : vector<1x256x4xf32> to vector<1x16x16x4xf32>
    %c0_24 = arith.constant 0 : index
    %c1 = arith.constant 1 : index
    %c1_25 = arith.constant 1 : index
    %c0_26 = arith.constant 0 : index
    %31 = vector.load %arg14[%c0_24, %c1, %c1_25, %c0_26] : memref<1x18x18x4xf32, #tpu.memory_space<vmem>>, vector<1x16x16x4xf32>
    tpu.vector_store %arg14[%c0_24, %c1, %c1_25, %c0_26], %30 {strides = array<i32>} : memref<1x18x18x4xf32, #tpu.memory_space<vmem>>, vector<1x16x16x4xf32>,
    %c0_27 = arith.constant 0 : index
    %c0_28 = arith.constant 0 : index
    %c0_29 = arith.constant 0 : index
    %c0_30 = arith.constant 0 : index
    %32 = vector.load %arg14[%c0_27, %c0_28, %c0_29, %c0_30] : memref<1x18x18x4xf32, #tpu.memory_space<vmem>>, vector<1x18x18x4xf32>
    %cst_31 = arith.constant 0.000000e+00 : f32
    %33 = vector.broadcast %cst_31 : f32 to vector<256x4xf32>
    %34 = vector.extract_strided_slice %32 {offsets = [0, 0, 0, 0], sizes = [1, 16, 16, 4], strides = [1, 1, 1, 1]} : vector<1x18x18x4xf32> to vector<1x16x16x4xf32>
    %35 = vector.shape_cast %34 : vector<1x16x16x4xf32> to vector<256x4xf32>
    %36 = vector.extract_strided_slice %28 {offsets = [0, 0, 0], sizes = [1, 4, 4], strides = [1, 1, 1]} : vector<9x4x4xf32> to vector<1x4x4xf32>
    %37 = vector.shape_cast %36 : vector<1x4x4xf32> to vector<4x4xf32>
    %cst_32 = arith.constant dense<0.000000e+00> : vector<256x4xf32>
    %38 = tpu.matmul %35, %37, %cst_32 {dimension_numbers = #tpu.dot_dimension_numbers<[1], [0], [0], [1], [0, 0, 1, 1], [], []>} : vector<256x4xf32>, vector<4x4xf32>, vector<256x4xf32> -> vector<256x4xf32>
    %39 = arith.addf %33, %38 : vector<256x4xf32>
    %40 = vector.extract_strided_slice %32 {offsets = [0, 0, 1, 0], sizes = [1, 16, 16, 4], strides = [1, 1, 1, 1]} : vector<1x18x18x4xf32> to vector<1x16x16x4xf32>
    %41 = vector.shape_cast %40 : vector<1x16x16x4xf32> to vector<256x4xf32>
    %42 = vector.extract_strided_slice %28 {offsets = [1, 0, 0], sizes = [1, 4, 4], strides = [1, 1, 1]} : vector<9x4x4xf32> to vector<1x4x4xf32>
    %43 = vector.shape_cast %42 : vector<1x4x4xf32> to vector<4x4xf32>
    %cst_33 = arith.constant dense<0.000000e+00> : vector<256x4xf32>
    %44 = tpu.matmul %41, %43, %cst_33 {dimension_numbers = #tpu.dot_dimension_numbers<[1], [0], [0], [1], [0, 0, 1, 1], [], []>} : vector<256x4xf32>, vector<4x4xf32>, vector<256x4xf32> -> vector<256x4xf32>
    %45 = arith.addf %39, %44 : vector<256x4xf32>
    %46 = vector.extract_strided_slice %32 {offsets = [0, 0, 2, 0], sizes = [1, 16, 16, 4], strides = [1, 1, 1, 1]} : vector<1x18x18x4xf32> to vector<1x16x16x4xf32>
    %47 = vector.shape_cast %46 : vector<1x16x16x4xf32> to vector<256x4xf32>
    %48 = vector.extract_strided_slice %28 {offsets = [2, 0, 0], sizes = [1, 4, 4], strides = [1, 1, 1]} : vector<9x4x4xf32> to vector<1x4x4xf32>
    %49 = vector.shape_cast %48 : vector<1x4x4xf32> to vector<4x4xf32>
    %cst_34 = arith.constant dense<0.000000e+00> : vector<256x4xf32>
    %50 = tpu.matmul %47, %49, %cst_34 {dimension_numbers = #tpu.dot_dimension_numbers<[1], [0], [0], [1], [0, 0, 1, 1], [], []>} : vector<256x4xf32>, vector<4x4xf32>, vector<256x4xf32> -> vector<256x4xf32>
    %51 = arith.addf %45, %50 : vector<256x4xf32>
    %52 = vector.extract_strided_slice %32 {offsets = [0, 1, 0, 0], sizes = [1, 16, 16, 4], strides = [1, 1, 1, 1]} : vector<1x18x18x4xf32> to vector<1x16x16x4xf32>
    %53 = vector.shape_cast %52 : vector<1x16x16x4xf32> to vector<256x4xf32>
    %54 = vector.extract_strided_slice %28 {offsets = [3, 0, 0], sizes = [1, 4, 4], strides = [1, 1, 1]} : vector<9x4x4xf32> to vector<1x4x4xf32>
    %55 = vector.shape_cast %54 : vector<1x4x4xf32> to vector<4x4xf32>
    %cst_35 = arith.constant dense<0.000000e+00> : vector<256x4xf32>
    %56 = tpu.matmul %53, %55, %cst_35 {dimension_numbers = #tpu.dot_dimension_numbers<[1], [0], [0], [1], [0, 0, 1, 1], [], []>} : vector<256x4xf32>, vector<4x4xf32>, vector<256x4xf32> -> vector<256x4xf32>
    %57 = arith.addf %51, %56 : vector<256x4xf32>
    %58 = vector.extract_strided_slice %32 {offsets = [0, 1, 1, 0], sizes = [1, 16, 16, 4], strides = [1, 1, 1, 1]} : vector<1x18x18x4xf32> to vector<1x16x16x4xf32>
    %59 = vector.shape_cast %58 : vector<1x16x16x4xf32> to vector<256x4xf32>
    %60 = vector.extract_strided_slice %28 {offsets = [4, 0, 0], sizes = [1, 4, 4], strides = [1, 1, 1]} : vector<9x4x4xf32> to vector<1x4x4xf32>
    %61 = vector.shape_cast %60 : vector<1x4x4xf32> to vector<4x4xf32>
    %cst_36 = arith.constant dense<0.000000e+00> : vector<256x4xf32>
    %62 = tpu.matmul %59, %61, %cst_36 {dimension_numbers = #tpu.dot_dimension_numbers<[1], [0], [0], [1], [0, 0, 1, 1], [], []>} : vector<256x4xf32>, vector<4x4xf32>, vector<256x4xf32> -> vector<256x4xf32>
    %63 = arith.addf %57, %62 : vector<256x4xf32>
    %64 = vector.extract_strided_slice %32 {offsets = [0, 1, 2, 0], sizes = [1, 16, 16, 4], strides = [1, 1, 1, 1]} : vector<1x18x18x4xf32> to vector<1x16x16x4xf32>
    %65 = vector.shape_cast %64 : vector<1x16x16x4xf32> to vector<256x4xf32>
    %66 = vector.extract_strided_slice %28 {offsets = [5, 0, 0], sizes = [1, 4, 4], strides = [1, 1, 1]} : vector<9x4x4xf32> to vector<1x4x4xf32>
    %67 = vector.shape_cast %66 : vector<1x4x4xf32> to vector<4x4xf32>
    %cst_37 = arith.constant dense<0.000000e+00> : vector<256x4xf32>
    %68 = tpu.matmul %65, %67, %cst_37 {dimension_numbers = #tpu.dot_dimension_numbers<[1], [0], [0], [1], [0, 0, 1, 1], [], []>} : vector<256x4xf32>, vector<4x4xf32>, vector<256x4xf32> -> vector<256x4xf32>
    %69 = arith.addf %63, %68 : vector<256x4xf32>
    %70 = vector.extract_strided_slice %32 {offsets = [0, 2, 0, 0], sizes = [1, 16, 16, 4], strides = [1, 1, 1, 1]} : vector<1x18x18x4xf32> to vector<1x16x16x4xf32>
    %71 = vector.shape_cast %70 : vector<1x16x16x4xf32> to vector<256x4xf32>
    %72 = vector.extract_strided_slice %28 {offsets = [6, 0, 0], sizes = [1, 4, 4], strides = [1, 1, 1]} : vector<9x4x4xf32> to vector<1x4x4xf32>
    %73 = vector.shape_cast %72 : vector<1x4x4xf32> to vector<4x4xf32>
    %cst_38 = arith.constant dense<0.000000e+00> : vector<256x4xf32>
    %74 = tpu.matmul %71, %73, %cst_38 {dimension_numbers = #tpu.dot_dimension_numbers<[1], [0], [0], [1], [0, 0, 1, 1], [], []>} : vector<256x4xf32>, vector<4x4xf32>, vector<256x4xf32> -> vector<256x4xf32>
    %75 = arith.addf %69, %74 : vector<256x4xf32>
    %76 = vector.extract_strided_slice %32 {offsets = [0, 2, 1, 0], sizes = [1, 16, 16, 4], strides = [1, 1, 1, 1]} : vector<1x18x18x4xf32> to vector<1x16x16x4xf32>
    %77 = vector.shape_cast %76 : vector<1x16x16x4xf32> to vector<256x4xf32>
    %78 = vector.extract_strided_slice %28 {offsets = [7, 0, 0], sizes = [1, 4, 4], strides = [1, 1, 1]} : vector<9x4x4xf32> to vector<1x4x4xf32>
    %79 = vector.shape_cast %78 : vector<1x4x4xf32> to vector<4x4xf32>
    %cst_39 = arith.constant dense<0.000000e+00> : vector<256x4xf32>
    %80 = tpu.matmul %77, %79, %cst_39 {dimension_numbers = #tpu.dot_dimension_numbers<[1], [0], [0], [1], [0, 0, 1, 1], [], []>} : vector<256x4xf32>, vector<4x4xf32>, vector<256x4xf32> -> vector<256x4xf32>
    %81 = arith.addf %75, %80 : vector<256x4xf32>
    %82 = vector.extract_strided_slice %32 {offsets = [0, 2, 2, 0], sizes = [1, 16, 16, 4], strides = [1, 1, 1, 1]} : vector<1x18x18x4xf32> to vector<1x16x16x4xf32>
    %83 = vector.shape_cast %82 : vector<1x16x16x4xf32> to vector<256x4xf32>
    %84 = vector.extract_strided_slice %28 {offsets = [8, 0, 0], sizes = [1, 4, 4], strides = [1, 1, 1]} : vector<9x4x4xf32> to vector<1x4x4xf32>
    %85 = vector.shape_cast %84 : vector<1x4x4xf32> to vector<4x4xf32>
    %cst_40 = arith.constant dense<0.000000e+00> : vector<256x4xf32>
    %86 = tpu.matmul %83, %85, %cst_40 {dimension_numbers = #tpu.dot_dimension_numbers<[1], [0], [0], [1], [0, 0, 1, 1], [], []>} : vector<256x4xf32>, vector<4x4xf32>, vector<256x4xf32> -> vector<256x4xf32>
    %87 = arith.addf %81, %86 : vector<256x4xf32>
    %88 = vector.shape_cast %87 : vector<256x4xf32> to vector<1x256x4xf32>
    %89 = vector.shape_cast %29 : vector<256x4xf32> to vector<1x256x4xf32>
    %90 = arith.addf %88, %89 : vector<1x256x4xf32>
    %c0_41 = arith.constant 0 : index
    %c0_42 = arith.constant 0 : index
    %91 = vector.load %arg7[%c0_41, %c0_42] : memref<1x4xf32, #tpu.memory_space<vmem>>, vector<1x4xf32>
    %c0_43 = arith.constant 0 : index
    %c0_44 = arith.constant 0 : index
    %92 = vector.load %arg8[%c0_43, %c0_44] : memref<1x4xf32, #tpu.memory_space<vmem>>, vector<1x4xf32>
    %cst_45 = arith.constant dense<0.000000e+00> : vector<1x4xf32>
    %93 = vector.multi_reduction <add>, %90, %cst_45 [1] : vector<1x256x4xf32> to vector<1x4xf32>
    %cst_46 = arith.constant dense<0.000000e+00> : vector<1x4xf32>
    %94 = tpu.matmul %93, %0, %cst_46 {dimension_numbers = #tpu.dot_dimension_numbers<[1], [0], [0], [1], [0, 0, 1, 1], [], []>} : vector<1x4xf32>, vector<4x4xf32>, vector<1x4xf32> -> vector<1x4xf32>
    %95 = vector.shape_cast %94 : vector<1x4xf32> to vector<1x1x4xf32>
    %96 = vector.broadcast %95 : vector<1x1x4xf32> to vector<1x256x4xf32>
    %97 = arith.subf %90, %96 : vector<1x256x4xf32>
    %98 = arith.mulf %97, %97 : vector<1x256x4xf32>
    %cst_47 = arith.constant dense<0.000000e+00> : vector<1x4xf32>
    %99 = vector.multi_reduction <add>, %98, %cst_47 [1] : vector<1x256x4xf32> to vector<1x4xf32>
    %cst_48 = arith.constant dense<0.000000e+00> : vector<1x4xf32>
    %100 = tpu.matmul %99, %0, %cst_48 {dimension_numbers = #tpu.dot_dimension_numbers<[1], [0], [0], [1], [0, 0, 1, 1], [], []>} : vector<1x4xf32>, vector<4x4xf32>, vector<1x4xf32> -> vector<1x4xf32>
    %cst_49 = arith.constant 9.99999974E-6 : f32
    %101 = vector.broadcast %cst_49 : f32 to vector<1x4xf32>
    %102 = arith.addf %100, %101 : vector<1x4xf32>
    %103 = math.rsqrt %102 : vector<1x4xf32>
    %104 = vector.shape_cast %103 : vector<1x4xf32> to vector<1x1x4xf32>
    %105 = vector.shape_cast %91 : vector<1x4xf32> to vector<1x1x4xf32>
    %106 = arith.mulf %104, %105 : vector<1x1x4xf32>
    %107 = vector.broadcast %106 : vector<1x1x4xf32> to vector<1x256x4xf32>
    %108 = arith.mulf %97, %107 : vector<1x256x4xf32>
    %109 = vector.shape_cast %92 : vector<1x4xf32> to vector<1x1x4xf32>
    %110 = vector.broadcast %109 : vector<1x1x4xf32> to vector<1x256x4xf32>
    %111 = arith.addf %108, %110 : vector<1x256x4xf32>
    %cst_50 = arith.constant 0.000000e+00 : f32
    %112 = vector.broadcast %cst_50 : f32 to vector<1x256x4xf32>
    %113 = arith.maximumf %111, %112 : vector<1x256x4xf32>
    %c0_51 = arith.constant 0 : index
    %c0_52 = arith.constant 0 : index
    %c0_53 = arith.constant 0 : index
    %114 = vector.load %arg9[%c0_51, %c0_52, %c0_53] : memref<9x4x4xf32, #tpu.memory_space<vmem>>, vector<9x4x4xf32>
    %c0_54 = arith.constant 0 : index
    %c0_55 = arith.constant 0 : index
    %115 = vector.load %arg10[%c0_54, %c0_55] : memref<256x4xf32, #tpu.memory_space<vmem>>, vector<256x4xf32>
    %116 = vector.shape_cast %113 : vector<1x256x4xf32> to vector<1x16x16x4xf32>
    %c0_56 = arith.constant 0 : index
    %c1_57 = arith.constant 1 : index
    %c1_58 = arith.constant 1 : index
    %c0_59 = arith.constant 0 : index
    %117 = vector.load %arg14[%c0_56, %c1_57, %c1_58, %c0_59] : memref<1x18x18x4xf32, #tpu.memory_space<vmem>>, vector<1x16x16x4xf32>
    tpu.vector_store %arg14[%c0_56, %c1_57, %c1_58, %c0_59], %116 {strides = array<i32>} : memref<1x18x18x4xf32, #tpu.memory_space<vmem>>, vector<1x16x16x4xf32>,
    %c0_60 = arith.constant 0 : index
    %c0_61 = arith.constant 0 : index
    %c0_62 = arith.constant 0 : index
    %c0_63 = arith.constant 0 : index
    %118 = vector.load %arg14[%c0_60, %c0_61, %c0_62, %c0_63] : memref<1x18x18x4xf32, #tpu.memory_space<vmem>>, vector<1x18x18x4xf32>
    %cst_64 = arith.constant 0.000000e+00 : f32
    %119 = vector.broadcast %cst_64 : f32 to vector<256x4xf32>
    %120 = vector.extract_strided_slice %118 {offsets = [0, 0, 0, 0], sizes = [1, 16, 16, 4], strides = [1, 1, 1, 1]} : vector<1x18x18x4xf32> to vector<1x16x16x4xf32>
    %121 = vector.shape_cast %120 : vector<1x16x16x4xf32> to vector<256x4xf32>
    %122 = vector.extract_strided_slice %114 {offsets = [0, 0, 0], sizes = [1, 4, 4], strides = [1, 1, 1]} : vector<9x4x4xf32> to vector<1x4x4xf32>
    %123 = vector.shape_cast %122 : vector<1x4x4xf32> to vector<4x4xf32>
    %cst_65 = arith.constant dense<0.000000e+00> : vector<256x4xf32>
    %124 = tpu.matmul %121, %123, %cst_65 {dimension_numbers = #tpu.dot_dimension_numbers<[1], [0], [0], [1], [0, 0, 1, 1], [], []>} : vector<256x4xf32>, vector<4x4xf32>, vector<256x4xf32> -> vector<256x4xf32>
    %125 = arith.addf %119, %124 : vector<256x4xf32>
    %126 = vector.extract_strided_slice %118 {offsets = [0, 0, 1, 0], sizes = [1, 16, 16, 4], strides = [1, 1, 1, 1]} : vector<1x18x18x4xf32> to vector<1x16x16x4xf32>
    %127 = vector.shape_cast %126 : vector<1x16x16x4xf32> to vector<256x4xf32>
    %128 = vector.extract_strided_slice %114 {offsets = [1, 0, 0], sizes = [1, 4, 4], strides = [1, 1, 1]} : vector<9x4x4xf32> to vector<1x4x4xf32>
    %129 = vector.shape_cast %128 : vector<1x4x4xf32> to vector<4x4xf32>
    %cst_66 = arith.constant dense<0.000000e+00> : vector<256x4xf32>
    %130 = tpu.matmul %127, %129, %cst_66 {dimension_numbers = #tpu.dot_dimension_numbers<[1], [0], [0], [1], [0, 0, 1, 1], [], []>} : vector<256x4xf32>, vector<4x4xf32>, vector<256x4xf32> -> vector<256x4xf32>
    %131 = arith.addf %125, %130 : vector<256x4xf32>
    %132 = vector.extract_strided_slice %118 {offsets = [0, 0, 2, 0], sizes = [1, 16, 16, 4], strides = [1, 1, 1, 1]} : vector<1x18x18x4xf32> to vector<1x16x16x4xf32>
    %133 = vector.shape_cast %132 : vector<1x16x16x4xf32> to vector<256x4xf32>
    %134 = vector.extract_strided_slice %114 {offsets = [2, 0, 0], sizes = [1, 4, 4], strides = [1, 1, 1]} : vector<9x4x4xf32> to vector<1x4x4xf32>
    %135 = vector.shape_cast %134 : vector<1x4x4xf32> to vector<4x4xf32>
    %cst_67 = arith.constant dense<0.000000e+00> : vector<256x4xf32>
    %136 = tpu.matmul %133, %135, %cst_67 {dimension_numbers = #tpu.dot_dimension_numbers<[1], [0], [0], [1], [0, 0, 1, 1], [], []>} : vector<256x4xf32>, vector<4x4xf32>, vector<256x4xf32> -> vector<256x4xf32>
    %137 = arith.addf %131, %136 : vector<256x4xf32>
    %138 = vector.extract_strided_slice %118 {offsets = [0, 1, 0, 0], sizes = [1, 16, 16, 4], strides = [1, 1, 1, 1]} : vector<1x18x18x4xf32> to vector<1x16x16x4xf32>
    %139 = vector.shape_cast %138 : vector<1x16x16x4xf32> to vector<256x4xf32>
    %140 = vector.extract_strided_slice %114 {offsets = [3, 0, 0], sizes = [1, 4, 4], strides = [1, 1, 1]} : vector<9x4x4xf32> to vector<1x4x4xf32>
    %141 = vector.shape_cast %140 : vector<1x4x4xf32> to vector<4x4xf32>
    %cst_68 = arith.constant dense<0.000000e+00> : vector<256x4xf32>
    %142 = tpu.matmul %139, %141, %cst_68 {dimension_numbers = #tpu.dot_dimension_numbers<[1], [0], [0], [1], [0, 0, 1, 1], [], []>} : vector<256x4xf32>, vector<4x4xf32>, vector<256x4xf32> -> vector<256x4xf32>
    %143 = arith.addf %137, %142 : vector<256x4xf32>
    %144 = vector.extract_strided_slice %118 {offsets = [0, 1, 1, 0], sizes = [1, 16, 16, 4], strides = [1, 1, 1, 1]} : vector<1x18x18x4xf32> to vector<1x16x16x4xf32>
    %145 = vector.shape_cast %144 : vector<1x16x16x4xf32> to vector<256x4xf32>
    %146 = vector.extract_strided_slice %114 {offsets = [4, 0, 0], sizes = [1, 4, 4], strides = [1, 1, 1]} : vector<9x4x4xf32> to vector<1x4x4xf32>
    %147 = vector.shape_cast %146 : vector<1x4x4xf32> to vector<4x4xf32>
    %cst_69 = arith.constant dense<0.000000e+00> : vector<256x4xf32>
    %148 = tpu.matmul %145, %147, %cst_69 {dimension_numbers = #tpu.dot_dimension_numbers<[1], [0], [0], [1], [0, 0, 1, 1], [], []>} : vector<256x4xf32>, vector<4x4xf32>, vector<256x4xf32> -> vector<256x4xf32>
    %149 = arith.addf %143, %148 : vector<256x4xf32>
    %150 = vector.extract_strided_slice %118 {offsets = [0, 1, 2, 0], sizes = [1, 16, 16, 4], strides = [1, 1, 1, 1]} : vector<1x18x18x4xf32> to vector<1x16x16x4xf32>
    %151 = vector.shape_cast %150 : vector<1x16x16x4xf32> to vector<256x4xf32>
    %152 = vector.extract_strided_slice %114 {offsets = [5, 0, 0], sizes = [1, 4, 4], strides = [1, 1, 1]} : vector<9x4x4xf32> to vector<1x4x4xf32>
    %153 = vector.shape_cast %152 : vector<1x4x4xf32> to vector<4x4xf32>
    %cst_70 = arith.constant dense<0.000000e+00> : vector<256x4xf32>
    %154 = tpu.matmul %151, %153, %cst_70 {dimension_numbers = #tpu.dot_dimension_numbers<[1], [0], [0], [1], [0, 0, 1, 1], [], []>} : vector<256x4xf32>, vector<4x4xf32>, vector<256x4xf32> -> vector<256x4xf32>
    %155 = arith.addf %149, %154 : vector<256x4xf32>
    %156 = vector.extract_strided_slice %118 {offsets = [0, 2, 0, 0], sizes = [1, 16, 16, 4], strides = [1, 1, 1, 1]} : vector<1x18x18x4xf32> to vector<1x16x16x4xf32>
    %157 = vector.shape_cast %156 : vector<1x16x16x4xf32> to vector<256x4xf32>
    %158 = vector.extract_strided_slice %114 {offsets = [6, 0, 0], sizes = [1, 4, 4], strides = [1, 1, 1]} : vector<9x4x4xf32> to vector<1x4x4xf32>
    %159 = vector.shape_cast %158 : vector<1x4x4xf32> to vector<4x4xf32>
    %cst_71 = arith.constant dense<0.000000e+00> : vector<256x4xf32>
    %160 = tpu.matmul %157, %159, %cst_71 {dimension_numbers = #tpu.dot_dimension_numbers<[1], [0], [0], [1], [0, 0, 1, 1], [], []>} : vector<256x4xf32>, vector<4x4xf32>, vector<256x4xf32> -> vector<256x4xf32>
    %161 = arith.addf %155, %160 : vector<256x4xf32>
    %162 = vector.extract_strided_slice %118 {offsets = [0, 2, 1, 0], sizes = [1, 16, 16, 4], strides = [1, 1, 1, 1]} : vector<1x18x18x4xf32> to vector<1x16x16x4xf32>
    %163 = vector.shape_cast %162 : vector<1x16x16x4xf32> to vector<256x4xf32>
    %164 = vector.extract_strided_slice %114 {offsets = [7, 0, 0], sizes = [1, 4, 4], strides = [1, 1, 1]} : vector<9x4x4xf32> to vector<1x4x4xf32>
    %165 = vector.shape_cast %164 : vector<1x4x4xf32> to vector<4x4xf32>
    %cst_72 = arith.constant dense<0.000000e+00> : vector<256x4xf32>
    %166 = tpu.matmul %163, %165, %cst_72 {dimension_numbers = #tpu.dot_dimension_numbers<[1], [0], [0], [1], [0, 0, 1, 1], [], []>} : vector<256x4xf32>, vector<4x4xf32>, vector<256x4xf32> -> vector<256x4xf32>
    %167 = arith.addf %161, %166 : vector<256x4xf32>
    %168 = vector.extract_strided_slice %118 {offsets = [0, 2, 2, 0], sizes = [1, 16, 16, 4], strides = [1, 1, 1, 1]} : vector<1x18x18x4xf32> to vector<1x16x16x4xf32>
    %169 = vector.shape_cast %168 : vector<1x16x16x4xf32> to vector<256x4xf32>
    %170 = vector.extract_strided_slice %114 {offsets = [8, 0, 0], sizes = [1, 4, 4], strides = [1, 1, 1]} : vector<9x4x4xf32> to vector<1x4x4xf32>
    %171 = vector.shape_cast %170 : vector<1x4x4xf32> to vector<4x4xf32>
    %cst_73 = arith.constant dense<0.000000e+00> : vector<256x4xf32>
    %172 = tpu.matmul %169, %171, %cst_73 {dimension_numbers = #tpu.dot_dimension_numbers<[1], [0], [0], [1], [0, 0, 1, 1], [], []>} : vector<256x4xf32>, vector<4x4xf32>, vector<256x4xf32> -> vector<256x4xf32>
    %173 = arith.addf %167, %172 : vector<256x4xf32>
    %174 = vector.shape_cast %173 : vector<256x4xf32> to vector<1x256x4xf32>
    %175 = vector.shape_cast %115 : vector<256x4xf32> to vector<1x256x4xf32>
    %176 = arith.addf %174, %175 : vector<1x256x4xf32>
    %c0_74 = arith.constant 0 : index
    %c0_75 = arith.constant 0 : index
    %177 = vector.load %arg11[%c0_74, %c0_75] : memref<1x4xf32, #tpu.memory_space<vmem>>, vector<1x4xf32>
    %c0_76 = arith.constant 0 : index
    %c0_77 = arith.constant 0 : index
    %178 = vector.load %arg12[%c0_76, %c0_77] : memref<1x4xf32, #tpu.memory_space<vmem>>, vector<1x4xf32>
    %cst_78 = arith.constant dense<0.000000e+00> : vector<1x4xf32>
    %179 = vector.multi_reduction <add>, %176, %cst_78 [1] : vector<1x256x4xf32> to vector<1x4xf32>
    %cst_79 = arith.constant dense<0.000000e+00> : vector<1x4xf32>
    %180 = tpu.matmul %179, %0, %cst_79 {dimension_numbers = #tpu.dot_dimension_numbers<[1], [0], [0], [1], [0, 0, 1, 1], [], []>} : vector<1x4xf32>, vector<4x4xf32>, vector<1x4xf32> -> vector<1x4xf32>
    %181 = vector.shape_cast %180 : vector<1x4xf32> to vector<1x1x4xf32>
    %182 = vector.broadcast %181 : vector<1x1x4xf32> to vector<1x256x4xf32>
    %183 = arith.subf %176, %182 : vector<1x256x4xf32>
    %184 = arith.mulf %183, %183 : vector<1x256x4xf32>
    %cst_80 = arith.constant dense<0.000000e+00> : vector<1x4xf32>
    %185 = vector.multi_reduction <add>, %184, %cst_80 [1] : vector<1x256x4xf32> to vector<1x4xf32>
    %cst_81 = arith.constant dense<0.000000e+00> : vector<1x4xf32>
    %186 = tpu.matmul %185, %0, %cst_81 {dimension_numbers = #tpu.dot_dimension_numbers<[1], [0], [0], [1], [0, 0, 1, 1], [], []>} : vector<1x4xf32>, vector<4x4xf32>, vector<1x4xf32> -> vector<1x4xf32>
    %cst_82 = arith.constant 9.99999974E-6 : f32
    %187 = vector.broadcast %cst_82 : f32 to vector<1x4xf32>
    %188 = arith.addf %186, %187 : vector<1x4xf32>
    %189 = math.rsqrt %188 : vector<1x4xf32>
    %190 = vector.shape_cast %189 : vector<1x4xf32> to vector<1x1x4xf32>
    %191 = vector.shape_cast %177 : vector<1x4xf32> to vector<1x1x4xf32>
    %192 = arith.mulf %190, %191 : vector<1x1x4xf32>
    %193 = vector.broadcast %192 : vector<1x1x4xf32> to vector<1x256x4xf32>
    %194 = arith.mulf %183, %193 : vector<1x256x4xf32>
    %195 = vector.shape_cast %178 : vector<1x4xf32> to vector<1x1x4xf32>
    %196 = vector.broadcast %195 : vector<1x1x4xf32> to vector<1x256x4xf32>
    %197 = arith.addf %194, %196 : vector<1x256x4xf32>
    %198 = vector.shape_cast %197 : vector<1x256x4xf32> to vector<1x16x16x4xf32>
    %c0_83 = arith.constant 0 : index
    %c0_84 = arith.constant 0 : index
    %c0_85 = arith.constant 0 : index
    %c0_86 = arith.constant 0 : index
    %199 = vector.load %arg13[%c0_83, %c0_84, %c0_85, %c0_86] : memref<1x16x16x4xf32, #tpu.memory_space<vmem>>, vector<1x16x16x4xf32>
    tpu.vector_store %arg13[%c0_83, %c0_84, %c0_85, %c0_86], %198 {strides = array<i32>} : memref<1x16x16x4xf32, #tpu.memory_space<vmem>>, vector<1x16x16x4xf32>,
    return
  }
  func.func @transform_0(%arg0: i32) -> (i32, i32, i32, i32) {
    %c0_i32 = arith.constant 0 : i32
    %c0_i32_0 = arith.constant 0 : i32
    %c0_i32_1 = arith.constant 0 : i32
    %c0_i32_2 = arith.constant 0 : i32
    return %arg0, %c0_i32, %c0_i32_0, %c0_i32_1 : i32, i32, i32, i32
  }
  func.func @transform_1(%arg0: i32) -> (i32, i32) {
    %c0_i32 = arith.constant 0 : i32
    %c0_i32_0 = arith.constant 0 : i32
    %c0_i32_1 = arith.constant 0 : i32
    return %c0_i32, %c0_i32_0 : i32, i32
  }
  func.func @transform_2(%arg0: i32) -> (i32, i32) {
    %c0_i32 = arith.constant 0 : i32
    %c0_i32_0 = arith.constant 0 : i32
    %c0_i32_1 = arith.constant 0 : i32
    return %c0_i32, %c0_i32_0 : i32, i32
  }
  func.func @transform_3(%arg0: i32) -> (i32, i32) {
    %c0_i32 = arith.constant 0 : i32
    %c0_i32_0 = arith.constant 0 : i32
    %c0_i32_1 = arith.constant 0 : i32
    return %c0_i32, %c0_i32_0 : i32, i32
  }
  func.func @transform_4(%arg0: i32) -> (i32, i32, i32) {
    %c0_i32 = arith.constant 0 : i32
    %c0_i32_0 = arith.constant 0 : i32
    %c0_i32_1 = arith.constant 0 : i32
    %c0_i32_2 = arith.constant 0 : i32
    return %c0_i32, %c0_i32_0, %c0_i32_1 : i32, i32, i32
  }
  func.func @transform_5(%arg0: i32) -> (i32, i32) {
    %c0_i32 = arith.constant 0 : i32
    %c0_i32_0 = arith.constant 0 : i32
    %c0_i32_1 = arith.constant 0 : i32
    return %c0_i32, %c0_i32_0 : i32, i32
  }
  func.func @transform_6(%arg0: i32) -> (i32, i32) {
    %c0_i32 = arith.constant 0 : i32
    %c0_i32_0 = arith.constant 0 : i32
    %c0_i32_1 = arith.constant 0 : i32
    return %c0_i32, %c0_i32_0 : i32, i32
  }
  func.func @transform_7(%arg0: i32) -> (i32, i32) {
    %c0_i32 = arith.constant 0 : i32
    %c0_i32_0 = arith.constant 0 : i32
    %c0_i32_1 = arith.constant 0 : i32
    return %c0_i32, %c0_i32_0 : i32, i32
  }
  func.func @transform_8(%arg0: i32) -> (i32, i32, i32) {
    %c0_i32 = arith.constant 0 : i32
    %c0_i32_0 = arith.constant 0 : i32
    %c0_i32_1 = arith.constant 0 : i32
    %c0_i32_2 = arith.constant 0 : i32
    return %c0_i32, %c0_i32_0, %c0_i32_1 : i32, i32, i32
  }
  func.func @transform_9(%arg0: i32) -> (i32, i32) {
    %c0_i32 = arith.constant 0 : i32
    %c0_i32_0 = arith.constant 0 : i32
    %c0_i32_1 = arith.constant 0 : i32
    return %c0_i32, %c0_i32_0 : i32, i32
  }
  func.func @transform_10(%arg0: i32) -> (i32, i32) {
    %c0_i32 = arith.constant 0 : i32
    %c0_i32_0 = arith.constant 0 : i32
    %c0_i32_1 = arith.constant 0 : i32
    return %c0_i32, %c0_i32_0 : i32, i32
  }
  func.func @transform_11(%arg0: i32) -> (i32, i32) {
    %c0_i32 = arith.constant 0 : i32
    %c0_i32_0 = arith.constant 0 : i32
    %c0_i32_1 = arith.constant 0 : i32
    return %c0_i32, %c0_i32_0 : i32, i32
  }
  func.func @transform_12(%arg0: i32) -> (i32, i32, i32, i32) {
    %c0_i32 = arith.constant 0 : i32
    %c0_i32_0 = arith.constant 0 : i32
    %c0_i32_1 = arith.constant 0 : i32
    %c0_i32_2 = arith.constant 0 : i32
    return %arg0, %c0_i32, %c0_i32_0, %c0_i32_1 : i32, i32, i32, i32
  }
}

</mosaic_0001>

<llo_original>
// kernel: tpu_custom_call.1
$region0: #{tpu_custom_call.1}
  #allocation0 [shape = 'u32[]', space=smem, size = 0x4, offset = 0x4, fixed_abs, tag = 'smem constant byte address 0x4 - core index']
  #allocation1 [shape = 'u32[144,128]{1,0:T(1,128)}', space=vmem, size = 0x12000, scoped, tag = 'internal scratch']
  #allocation2 [shape = 'f32[1,18,18,4]{3,2,1,0:T(8,128)}', space=vmem, size = 0x36000, scoped, tag = 'scratch operand']
  %s0 = inlined_call_operand.vmem [shape: f32[2,16,16,4], index: 0, kind: input, shape index: {}]
  %s1 = inlined_call_operand.vmem [shape: f32[4,4], index: 1, kind: input, shape index: {}]
  %s2 = inlined_call_operand.vmem [shape: f32[1,4], index: 2, kind: input, shape index: {}]
  %s3 = inlined_call_operand.vmem [shape: f32[1,4], index: 3, kind: input, shape index: {}]
  %s4 = inlined_call_operand.vmem [shape: f32[9,4,4], index: 4, kind: input, shape index: {}]
  %s5 = inlined_call_operand.vmem [shape: f32[256,4], index: 5, kind: input, shape index: {}]
  %s6 = inlined_call_operand.vmem [shape: f32[1,4], index: 6, kind: input, shape index: {}]
  %s7 = inlined_call_operand.vmem [shape: f32[1,4], index: 7, kind: input, shape index: {}]
  %s8 = inlined_call_operand.vmem [shape: f32[9,4,4], index: 8, kind: input, shape index: {}]
  %s9 = inlined_call_operand.vmem [shape: f32[256,4], index: 9, kind: input, shape index: {}]
  %s10 = inlined_call_operand.vmem [shape: f32[1,4], index: 10, kind: input, shape index: {}]
  %s11 = inlined_call_operand.vmem [shape: f32[1,4], index: 11, kind: input, shape index: {}]
  %s12 = inlined_call_operand.vmem [shape: f32[2,16,16,4], index: 12, kind: output, shape index: {}]
  %s13 = sld [smem:[#allocation0]]
  $region81: #{tpu_custom_call.1} parent=0
    _
  %s15 = ssub.s32 1, %s13
  %s16 = scalar_select 0, %s15, %s13
  loop: start=0, step=1, limit=4
  $region2: #{tpu_custom_call.1} parent=0 // loop_pre_header
    _
  $region3: #{tpu_custom_call.1} parent=0 // loop_header
    %s18 = sphi 0, %s22
    %p19 = scmp.ge.s32.totalorder %s18, 4
    %s28 = sphi 0, %s30
    %s31 = sphi 0, %s28
    %s32 = sphi 0, %s31
    %s48 = sphi 0, %s32
    %s52 = sphi 0, %s52
    %s54 = sphi 0, %s52
    %s55 = sphi 0, %s54
    %s69 = sphi 0, %s55
    %s73 = sphi 0, %s73
    %s75 = sphi 0, %s73
    %s76 = sphi 0, %s75
    %s90 = sphi 0, %s76
    %s94 = sphi 0, %s94
    %s96 = sphi 0, %s94
    %s97 = sphi 0, %s96
    %s111 = sphi 0, %s97
    %s115 = sphi 0, %s115
    %s117 = sphi 0, %s115
    %s118 = sphi 0, %s117
    %s132 = sphi 0, %s118
    %s136 = sphi 0, %s136
    %s138 = sphi 0, %s136
    %s139 = sphi 0, %s138
    %s153 = sphi 0, %s139
    %s157 = sphi 0, %s157
    %s159 = sphi 0, %s157
    %s160 = sphi 0, %s159
    %s174 = sphi 0, %s160
    %s178 = sphi 0, %s178
    %s180 = sphi 0, %s178
    %s181 = sphi 0, %s180
    %s195 = sphi 0, %s181
    %s199 = sphi 0, %s199
    %s201 = sphi 0, %s199
    %s202 = sphi 0, %s201
    %s216 = sphi 0, %s202
    %s220 = sphi 0, %s220
    %s222 = sphi 0, %s220
    %s223 = sphi 0, %s222
    %s237 = sphi 0, %s223
    %s241 = sphi 0, %s241
    %s243 = sphi 0, %s241
    %s244 = sphi 0, %s243
    %s258 = sphi 0, %s244
    %s262 = sphi 0, %s262
    %s264 = sphi 0, %s262
    %s265 = sphi 0, %s264
    %s279 = sphi 0, %s265
    %s285 = sphi 0, %s287
    %s288 = sphi 0, %s285
    %s289 = sphi 0, %s288
    %s305 = sphi 0, %s289
  $region4: #{tpu_custom_call.1} parent=0 // loop_header_branch
    %21 = sbr.rel (%p19) target = $region8
  $region5: #{tpu_custom_call.1} parent=0 // loop_body
    %s23 = ssub.s32 %s18, 1
    %s24 = ssub.s32 %s18, 2
    %s25 = sadd.s32 %s18, 1
    %s26 = ssub.s32 %s18, %s25
    %p27 = scmp.eq.s32.totalorder %s26, 0
    %s29 = sadd.s32 %s28, 1
    %s30 = scalar_select %p27, %s28, %s29
    %p33 = pneg %p27
    %p34 = scmp.eq.s32.totalorder %s18, 1
    %p35 = por %p33, %p34
    %p36 = scmp.ne.s32.totalorder %s28, %s31
    %p37 = scmp.eq.s32.totalorder %s18, 0
    %p38 = por %p36, %p37
    %p39 = scmp.ne.s32.totalorder %s28, %s31
    %p40 = scmp.eq.s32.totalorder %s23, 1
    %p41 = por %p39, %p40
    %p42 = scmp.ne.s32.totalorder %s31, %s32
    %p43 = scmp.eq.s32.totalorder %s23, 0
    %p44 = por %p42, %p43
    %p45 = scmp.ne.s32.totalorder %s31, %s32
    %p46 = scmp.eq.s32.totalorder %s24, 1
    %p47 = por %p45, %p46
    %p49 = scmp.ne.s32.totalorder %s32, %s48
    %p50 = scmp.eq.s32.totalorder %s24, 0
    %p51 = por %p49, %p50
    %s53 = sadd.s32 %s52, 1
    %p56 = scmp.eq.s32.totalorder %s18, 1
    %p57 = scmp.ne.s32.totalorder %s52, %s54
    %p58 = scmp.eq.s32.totalorder %s18, 0
    %p59 = por %p57, %p58
    %p60 = scmp.ne.s32.totalorder %s52, %s54
    %p61 = scmp.eq.s32.totalorder %s23, 1
    %p62 = por %p60, %p61
    %p63 = scmp.ne.s32.totalorder %s54, %s55
    %p64 = scmp.eq.s32.totalorder %s23, 0
    %p65 = por %p63, %p64
    %p66 = scmp.ne.s32.totalorder %s54, %s55
    %p67 = scmp.eq.s32.totalorder %s24, 1
    %p68 = por %p66, %p67
    %p70 = scmp.ne.s32.totalorder %s55, %s69
    %p71 = scmp.eq.s32.totalorder %s24, 0
    %p72 = por %p70, %p71
    %s74 = sadd.s32 %s73, 1
    %p77 = scmp.eq.s32.totalorder %s18, 1
    %p78 = scmp.ne.s32.totalorder %s73, %s75
    %p79 = scmp.eq.s32.totalorder %s18, 0
    %p80 = por %p78, %p79
    %p81 = scmp.ne.s32.totalorder %s73, %s75
    %p82 = scmp.eq.s32.totalorder %s23, 1
    %p83 = por %p81, %p82
    %p84 = scmp.ne.s32.totalorder %s75, %s76
    %p85 = scmp.eq.s32.totalorder %s23, 0
    %p86 = por %p84, %p85
    %p87 = scmp.ne.s32.totalorder %s75, %s76
    %p88 = scmp.eq.s32.totalorder %s24, 1
    %p89 = por %p87, %p88
    %p91 = scmp.ne.s32.totalorder %s76, %s90
    %p92 = scmp.eq.s32.totalorder %s24, 0
    %p93 = por %p91, %p92
    %s95 = sadd.s32 %s94, 1
    %p98 = scmp.eq.s32.totalorder %s18, 1
    %p99 = scmp.ne.s32.totalorder %s94, %s96
    %p100 = scmp.eq.s32.totalorder %s18, 0
    %p101 = por %p99, %p100
    %p102 = scmp.ne.s32.totalorder %s94, %s96
    %p103 = scmp.eq.s32.totalorder %s23, 1
    %p104 = por %p102, %p103
    %p105 = scmp.ne.s32.totalorder %s96, %s97
    %p106 = scmp.eq.s32.totalorder %s23, 0
    %p107 = por %p105, %p106
    %p108 = scmp.ne.s32.totalorder %s96, %s97
    %p109 = scmp.eq.s32.totalorder %s24, 1
    %p110 = por %p108, %p109
    %p112 = scmp.ne.s32.totalorder %s97, %s111
    %p113 = scmp.eq.s32.totalorder %s24, 0
    %p114 = por %p112, %p113
    %s116 = sadd.s32 %s115, 1
    %p119 = scmp.eq.s32.totalorder %s18, 1
    %p120 = scmp.ne.s32.totalorder %s115, %s117
    %p121 = scmp.eq.s32.totalorder %s18, 0
    %p122 = por %p120, %p121
    %p123 = scmp.ne.s32.totalorder %s115, %s117
    %p124 = scmp.eq.s32.totalorder %s23, 1
    %p125 = por %p123, %p124
    %p126 = scmp.ne.s32.totalorder %s117, %s118
    %p127 = scmp.eq.s32.totalorder %s23, 0
    %p128 = por %p126, %p127
    %p129 = scmp.ne.s32.totalorder %s117, %s118
    %p130 = scmp.eq.s32.totalorder %s24, 1
    %p131 = por %p129, %p130
    %p133 = scmp.ne.s32.totalorder %s118, %s132
    %p134 = scmp.eq.s32.totalorder %s24, 0
    %p135 = por %p133, %p134
    %s137 = sadd.s32 %s136, 1
    %p140 = scmp.eq.s32.totalorder %s18, 1
    %p141 = scmp.ne.s32.totalorder %s136, %s138
    %p142 = scmp.eq.s32.totalorder %s18, 0
    %p143 = por %p141, %p142
    %p144 = scmp.ne.s32.totalorder %s136, %s138
    %p145 = scmp.eq.s32.totalorder %s23, 1
    %p146 = por %p144, %p145
    %p147 = scmp.ne.s32.totalorder %s138, %s139
    %p148 = scmp.eq.s32.totalorder %s23, 0
    %p149 = por %p147, %p148
    %p150 = scmp.ne.s32.totalorder %s138, %s139
    %p151 = scmp.eq.s32.totalorder %s24, 1
    %p152 = por %p150, %p151
    %p154 = scmp.ne.s32.totalorder %s139, %s153
    %p155 = scmp.eq.s32.totalorder %s24, 0
    %p156 = por %p154, %p155
    %s158 = sadd.s32 %s157, 1
    %p161 = scmp.eq.s32.totalorder %s18, 1
    %p162 = scmp.ne.s32.totalorder %s157, %s159
    %p163 = scmp.eq.s32.totalorder %s18, 0
    %p164 = por %p162, %p163
    %p165 = scmp.ne.s32.totalorder %s157, %s159
    %p166 = scmp.eq.s32.totalorder %s23, 1
    %p167 = por %p165, %p166
    %p168 = scmp.ne.s32.totalorder %s159, %s160
    %p169 = scmp.eq.s32.totalorder %s23, 0
    %p170 = por %p168, %p169
    %p171 = scmp.ne.s32.totalorder %s159, %s160
    %p172 = scmp.eq.s32.totalorder %s24, 1
    %p173 = por %p171, %p172
    %p175 = scmp.ne.s32.totalorder %s160, %s174
    %p176 = scmp.eq.s32.totalorder %s24, 0
    %p177 = por %p175, %p176
    %s179 = sadd.s32 %s178, 1
    %p182 = scmp.eq.s32.totalorder %s18, 1
    %p183 = scmp.ne.s32.totalorder %s178, %s180
    %p184 = scmp.eq.s32.totalorder %s18, 0
    %p185 = por %p183, %p184
    %p186 = scmp.ne.s32.totalorder %s178, %s180
    %p187 = scmp.eq.s32.totalorder %s23, 1
    %p188 = por %p186, %p187
    %p189 = scmp.ne.s32.totalorder %s180, %s181
    %p190 = scmp.eq.s32.totalorder %s23, 0
    %p191 = por %p189, %p190
    %p192 = scmp.ne.s32.totalorder %s180, %s181
    %p193 = scmp.eq.s32.totalorder %s24, 1
    %p194 = por %p192, %p193
    %p196 = scmp.ne.s32.totalorder %s181, %s195
    %p197 = scmp.eq.s32.totalorder %s24, 0
    %p198 = por %p196, %p197
    %s200 = sadd.s32 %s199, 1
    %p203 = scmp.eq.s32.totalorder %s18, 1
    %p204 = scmp.ne.s32.totalorder %s199, %s201
    %p205 = scmp.eq.s32.totalorder %s18, 0
    %p206 = por %p204, %p205
    %p207 = scmp.ne.s32.totalorder %s199, %s201
    %p208 = scmp.eq.s32.totalorder %s23, 1
    %p209 = por %p207, %p208
    %p210 = scmp.ne.s32.totalorder %s201, %s202
    %p211 = scmp.eq.s32.totalorder %s23, 0
    %p212 = por %p210, %p211
    %p213 = scmp.ne.s32.totalorder %s201, %s202
    %p214 = scmp.eq.s32.totalorder %s24, 1
    %p215 = por %p213, %p214
    %p217 = scmp.ne.s32.totalorder %s202, %s216
    %p218 = scmp.eq.s32.totalorder %s24, 0
    %p219 = por %p217, %p218
    %s221 = sadd.s32 %s220, 1
    %p224 = scmp.eq.s32.totalorder %s18, 1
    %p225 = scmp.ne.s32.totalorder %s220, %s222
    %p226 = scmp.eq.s32.totalorder %s18, 0
    %p227 = por %p225, %p226
    %p228 = scmp.ne.s32.totalorder %s220, %s222
    %p229 = scmp.eq.s32.totalorder %s23, 1
    %p230 = por %p228, %p229
    %p231 = scmp.ne.s32.totalorder %s222, %s223
    %p232 = scmp.eq.s32.totalorder %s23, 0
    %p233 = por %p231, %p232
    %p234 = scmp.ne.s32.totalorder %s222, %s223
    %p235 = scmp.eq.s32.totalorder %s24, 1
    %p236 = por %p234, %p235
    %p238 = scmp.ne.s32.totalorder %s223, %s237
    %p239 = scmp.eq.s32.totalorder %s24, 0
    %p240 = por %p238, %p239
    %s242 = sadd.s32 %s241, 1
    %p245 = scmp.eq.s32.totalorder %s18, 1
    %p246 = scmp.ne.s32.totalorder %s241, %s243
    %p247 = scmp.eq.s32.totalorder %s18, 0
    %p248 = por %p246, %p247
    %p249 = scmp.ne.s32.totalorder %s241, %s243
    %p250 = scmp.eq.s32.totalorder %s23, 1
    %p251 = por %p249, %p250
    %p252 = scmp.ne.s32.totalorder %s243, %s244
    %p253 = scmp.eq.s32.totalorder %s23, 0
    %p254 = por %p252, %p253
    %p255 = scmp.ne.s32.totalorder %s243, %s244
    %p256 = scmp.eq.s32.totalorder %s24, 1
    %p257 = por %p255, %p256
    %p259 = scmp.ne.s32.totalorder %s244, %s258
    %p260 = scmp.eq.s32.totalorder %s24, 0
    %p261 = por %p259, %p260
    %s263 = sadd.s32 %s262, 1
    %p266 = scmp.eq.s32.totalorder %s18, 1
    %p267 = scmp.ne.s32.totalorder %s262, %s264
    %p268 = scmp.eq.s32.totalorder %s18, 0
    %p269 = por %p267, %p268
    %p270 = scmp.ne.s32.totalorder %s262, %s264
    %p271 = scmp.eq.s32.totalorder %s23, 1
    %p272 = por %p270, %p271
    %p273 = scmp.ne.s32.totalorder %s264, %s265
    %p274 = scmp.eq.s32.totalorder %s23, 0
    %p275 = por %p273, %p274
    %p276 = scmp.ne.s32.totalorder %s264, %s265
    %p277 = scmp.eq.s32.totalorder %s24, 1
    %p278 = por %p276, %p277
    %p280 = scmp.ne.s32.totalorder %s265, %s279
    %p281 = scmp.eq.s32.totalorder %s24, 0
    %p282 = por %p280, %p281
    %s283 = ssub.s32 %s18, %s25
    %p284 = scmp.eq.s32.totalorder %s283, 0
    %s286 = sadd.s32 %s285, 1
    %s287 = scalar_select %p284, %s285, %s286
    %p290 = pneg %p284
    %p291 = scmp.eq.s32.totalorder %s18, 1
    %p292 = por %p290, %p291
    %p293 = scmp.ne.s32.totalorder %s285, %s288
    %p294 = scmp.eq.s32.totalorder %s18, 0
    %p295 = por %p293, %p294
    %p296 = scmp.ne.s32.totalorder %s285, %s288
    %p297 = scmp.eq.s32.totalorder %s23, 1
    %p298 = por %p296, %p297
    %p299 = scmp.ne.s32.totalorder %s288, %s289
    %p300 = scmp.eq.s32.totalorder %s23, 0
    %p301 = por %p299, %p300
    %p302 = scmp.ne.s32.totalorder %s288, %s289
    %p303 = scmp.eq.s32.totalorder %s24, 1
    %p304 = por %p302, %p303
    %p306 = scmp.ne.s32.totalorder %s289, %s305
    %p307 = scmp.eq.s32.totalorder %s24, 0
    %p308 = por %p306, %p307
    %p309 = scmp.le.s32.totalorder 1, %s18
    %p310 = scmp.lt.s32.totalorder %s18, 3
    %p311 = pnand %p309, %p310
    %p312 = pneg %p311
    // Predicated region
    $region9: #{tpu_custom_call.1} parent=5 // pred_check
      _
    $region10: #{tpu_custom_call.1} parent=5 // pred_check_branch
      %314 = sbr.rel (%p311) target = $region12
    $region11: #{tpu_custom_call.1} parent=5 // pred_region
      %s315 = ssub.s32 %s18, 1
      // Predicated region
      $region13: #{tpu_custom_call.1} parent=11 // pred_check
        %p316 = pneg %p65
      $region14: #{tpu_custom_call.1} parent=11 // pred_check_branch
        %318 = sbr.rel (%p316) target = $region16
      $region15: #{tpu_custom_call.1} parent=11 // pred_region
        _
      $region16: #{tpu_custom_call.1} parent=11 // pred_fallthru
        _
      // Predicated region
      $region17: #{tpu_custom_call.1} parent=11 // pred_check
        %p319 = pneg %p86
      $region18: #{tpu_custom_call.1} parent=11 // pred_check_branch
        %321 = sbr.rel (%p319) target = $region20
      $region19: #{tpu_custom_call.1} parent=11 // pred_region
        _
      $region20: #{tpu_custom_call.1} parent=11 // pred_fallthru
        _
      // Predicated region
      $region21: #{tpu_custom_call.1} parent=11 // pred_check
        %p322 = pneg %p107
      $region22: #{tpu_custom_call.1} parent=11 // pred_check_branch
        %324 = sbr.rel (%p322) target = $region24
      $region23: #{tpu_custom_call.1} parent=11 // pred_region
        _
      $region24: #{tpu_custom_call.1} parent=11 // pred_fallthru
        _
      // Predicated region
      $region25: #{tpu_custom_call.1} parent=11 // pred_check
        %p325 = pneg %p128
      $region26: #{tpu_custom_call.1} parent=11 // pred_check_branch
        %327 = sbr.rel (%p325) target = $region28
      $region27: #{tpu_custom_call.1} parent=11 // pred_region
        _
      $region28: #{tpu_custom_call.1} parent=11 // pred_fallthru
        _
      // Predicated region
      $region29: #{tpu_custom_call.1} parent=11 // pred_check
        %p328 = pneg %p149
      $region30: #{tpu_custom_call.1} parent=11 // pred_check_branch
        %330 = sbr.rel (%p328) target = $region32
      $region31: #{tpu_custom_call.1} parent=11 // pred_region
        _
      $region32: #{tpu_custom_call.1} parent=11 // pred_fallthru
        _
      // Predicated region
      $region33: #{tpu_custom_call.1} parent=11 // pred_check
        %p331 = pneg %p170
      $region34: #{tpu_custom_call.1} parent=11 // pred_check_branch
        %333 = sbr.rel (%p331) target = $region36
      $region35: #{tpu_custom_call.1} parent=11 // pred_region
        _
      $region36: #{tpu_custom_call.1} parent=11 // pred_fallthru
        _
      // Predicated region
      $region37: #{tpu_custom_call.1} parent=11 // pred_check
        %p334 = pneg %p191
      $region38: #{tpu_custom_call.1} parent=11 // pred_check_branch
        %336 = sbr.rel (%p334) target = $region40
      $region39: #{tpu_custom_call.1} parent=11 // pred_region
        _
      $region40: #{tpu_custom_call.1} parent=11 // pred_fallthru
        _
      // Predicated region
      $region41: #{tpu_custom_call.1} parent=11 // pred_check
        %p337 = pneg %p212
      $region42: #{tpu_custom_call.1} parent=11 // pred_check_branch
        %339 = sbr.rel (%p337) target = $region44
      $region43: #{tpu_custom_call.1} parent=11 // pred_region
        _
      $region44: #{tpu_custom_call.1} parent=11 // pred_fallthru
        _
      // Predicated region
      $region45: #{tpu_custom_call.1} parent=11 // pred_check
        %p340 = pneg %p233
      $region46: #{tpu_custom_call.1} parent=11 // pred_check_branch
        %342 = sbr.rel (%p340) target = $region48
      $region47: #{tpu_custom_call.1} parent=11 // pred_region
        _
      $region48: #{tpu_custom_call.1} parent=11 // pred_fallthru
        _
      // Predicated region
      $region49: #{tpu_custom_call.1} parent=11 // pred_check
        %p343 = pneg %p254
      $region50: #{tpu_custom_call.1} parent=11 // pred_check_branch
        %345 = sbr.rel (%p343) target = $region52
      $region51: #{tpu_custom_call.1} parent=11 // pred_region
        _
      $region52: #{tpu_custom_call.1} parent=11 // pred_fallthru
        _
      // Predicated region
      $region53: #{tpu_custom_call.1} parent=11 // pred_check
        %p346 = pneg %p275
      $region54: #{tpu_custom_call.1} parent=11 // pred_check_branch
        %348 = sbr.rel (%p346) target = $region56
      $region55: #{tpu_custom_call.1} parent=11 // pred_region
        _
      $region56: #{tpu_custom_call.1} parent=11 // pred_fallthru
        _
    $region12: #{tpu_custom_call.1} parent=5 // pred_fallthru
      _
    %p349 = scmp.lt.s32.totalorder %s18, 2
    // Predicated region
    $region57: #{tpu_custom_call.1} parent=5 // pred_check
      %p350 = pneg %p349
    $region58: #{tpu_custom_call.1} parent=5 // pred_check_branch
      %352 = sbr.rel (%p350) target = $region60
    $region59: #{tpu_custom_call.1} parent=5 // pred_region
      // Predicated region
      $region61: #{tpu_custom_call.1} parent=59 // pred_check
        %p353 = pneg %p38
      $region62: #{tpu_custom_call.1} parent=59 // pred_check_branch
        %355 = sbr.rel (%p353) target = $region64
      $region63: #{tpu_custom_call.1} parent=59 // pred_region
        %p356 = scmp.lt.s32.totalorder %s18, 1
        %s357 = scalar_select %p356, %s18, 1
        %s358 = smul.addr %s357, 32
        %s359 = smul.addr %s358, 8
        %s360 = scalar_lea.vmem %s0, %s359
      $region64: #{tpu_custom_call.1} parent=59 // pred_fallthru
        _
    $region60: #{tpu_custom_call.1} parent=5 // pred_fallthru
      _
    %p361 = scmp.le.s32.totalorder 1, %s18
    %p362 = scmp.lt.s32.totalorder %s18, 3
    %p363 = pnand %p361, %p362
    %p364 = pneg %p363
    // Predicated region
    $region65: #{tpu_custom_call.1} parent=5 // pred_check
      _
    $region66: #{tpu_custom_call.1} parent=5 // pred_check_branch
      %366 = sbr.rel (%p363) target = $region68
    $region67: #{tpu_custom_call.1} parent=5 // pred_region
      %s367 = ssub.s32 %s18, 1
      %p368 = scmp.lt.s32.totalorder %s23, 1
      %s369 = scalar_select %p368, %s23, 1
      %s370 = smul.addr %s369, 32
      %s371 = smul.addr %s370, 8
      %s372 = scalar_lea.vmem %s0, %s371
      %p373 = pneg %p44
      %p374 = pneg %p41
      %p375 = pneg %p65
      %p376 = pneg %p62
      %p377 = pneg %p86
      %p378 = pneg %p83
      %p379 = pneg %p107
      %p380 = pneg %p104
      %p381 = pneg %p128
      %p382 = pneg %p125
      %p383 = pneg %p149
      %p384 = pneg %p146
      %p385 = pneg %p170
      %p386 = pneg %p167
      %p387 = pneg %p191
      %p388 = pneg %p188
      %p389 = pneg %p212
      %p390 = pneg %p209
      %p391 = pneg %p233
      %p392 = pneg %p230
      %p393 = pneg %p254
      %p394 = pneg %p251
      %p395 = pneg %p275
      %p396 = pneg %p272
      %p397 = pneg %p301
      %p398 = pneg %p298
      %p399 = scmp.lt.s32.totalorder %s23, 1
      %s400 = scalar_select %p399, %s23, 1
      %s401 = smul.addr %s400, 32
      %s402 = smul.addr %s401, 8
      %s403 = scalar_lea.vmem %s12, %s402
      %p404 = scmp.lt.s32.totalorder %s23, 1
      %s405 = scalar_select %p404, %s23, 1
      %s406 = smul.addr %s405, 32
      %s407 = smul.addr %s406, 8
      %s408 = scalar_lea.vmem %s0, %s407
      %p409 = scmp.lt.s32.totalorder %s23, 1
      %s410 = scalar_select %p409, %s23, 1
      %s411 = smul.addr %s410, 32
      %s412 = smul.addr %s411, 8
      %s413 = scalar_lea.vmem %s12, %s412
      %v414 = vld [vmem:[%s1] sm:$0xf]
      %vm415 = vcmask 31744
      %416 = vst.msk [vmem:[#allocation2] sm:$0xff] %vm415, 0.0
      %417 = vst.msk [vmem:[#allocation2 + $0x8] sm:$0xff] %vm415, 0.0
      %vm418 = vcmask 25600
      %419 = vst.msk [vmem:[#allocation2 + $0x10] sm:$0x3] %vm418, 0.0
      %420 = vst.msk [vmem:[#allocation2 + $0x18] sm:$0xff] %vm415, 0.0
      %421 = vst.msk [vmem:[#allocation2 + $0x20] sm:$0xff] %vm415, 0.0
      %422 = vst.msk [vmem:[#allocation2 + $0x28] sm:$0x3] %vm418, 0.0
      %423 = vst.msk [vmem:[#allocation2 + $0x30] sm:$0xff] %vm415, 0.0
      %424 = vst.msk [vmem:[#allocation2 + $0x38] sm:$0xff] %vm415, 0.0
      %425 = vst.msk [vmem:[#allocation2 + $0x40] sm:$0x3] %vm418, 0.0
      %426 = vst.msk [vmem:[#allocation2 + $0x48] sm:$0xff] %vm415, 0.0
      %427 = vst.msk [vmem:[#allocation2 + $0x50] sm:$0xff] %vm415, 0.0
      %428 = vst.msk [vmem:[#allocation2 + $0x58] sm:$0x3] %vm418, 0.0
      %429 = vst.msk [vmem:[#allocation2 + $0x60] sm:$0xff] %vm415, 0.0
      %430 = vst.msk [vmem:[#allocation2 + $0x68] sm:$0xff] %vm415, 0.0
      %431 = vst.msk [vmem:[#allocation2 + $0x70] sm:$0x3] %vm418, 0.0
      %432 = vst.msk [vmem:[#allocation2 + $0x78] sm:$0xff] %vm415, 0.0
      %433 = vst.msk [vmem:[#allocation2 + $0x80] sm:$0xff] %vm415, 0.0
      %434 = vst.msk [vmem:[#allocation2 + $0x88] sm:$0x3] %vm418, 0.0
      %435 = vst.msk [vmem:[#allocation2 + $0x90] sm:$0xff] %vm415, 0.0
      %436 = vst.msk [vmem:[#allocation2 + $0x98] sm:$0xff] %vm415, 0.0
      %437 = vst.msk [vmem:[#allocation2 + $0xa0] sm:$0x3] %vm418, 0.0
      %438 = vst.msk [vmem:[#allocation2 + $0xa8] sm:$0xff] %vm415, 0.0
      %439 = vst.msk [vmem:[#allocation2 + $0xb0] sm:$0xff] %vm415, 0.0
      %440 = vst.msk [vmem:[#allocation2 + $0xb8] sm:$0x3] %vm418, 0.0
      %441 = vst.msk [vmem:[#allocation2 + $0xc0] sm:$0xff] %vm415, 0.0
      %442 = vst.msk [vmem:[#allocation2 + $0xc8] sm:$0xff] %vm415, 0.0
      %443 = vst.msk [vmem:[#allocation2 + $0xd0] sm:$0x3] %vm418, 0.0
      %444 = vst.msk [vmem:[#allocation2 + $0xd8] sm:$0xff] %vm415, 0.0
      %445 = vst.msk [vmem:[#allocation2 + $0xe0] sm:$0xff] %vm415, 0.0
      %446 = vst.msk [vmem:[#allocation2 + $0xe8] sm:$0x3] %vm418, 0.0
      %447 = vst.msk [vmem:[#allocation2 + $0xf0] sm:$0xff] %vm415, 0.0
      %448 = vst.msk [vmem:[#allocation2 + $0xf8] sm:$0xff] %vm415, 0.0
      %449 = vst.msk [vmem:[#allocation2 + $0x100] sm:$0x3] %vm418, 0.0
      %450 = vst.msk [vmem:[#allocation2 + $0x108] sm:$0xff] %vm415, 0.0
      %451 = vst.msk [vmem:[#allocation2 + $0x110] sm:$0xff] %vm415, 0.0
      %452 = vst.msk [vmem:[#allocation2 + $0x118] sm:$0x3] %vm418, 0.0
      %453 = vst.msk [vmem:[#allocation2 + $0x120] sm:$0xff] %vm415, 0.0
      %454 = vst.msk [vmem:[#allocation2 + $0x128] sm:$0xff] %vm415, 0.0
      %455 = vst.msk [vmem:[#allocation2 + $0x130] sm:$0x3] %vm418, 0.0
      %456 = vst.msk [vmem:[#allocation2 + $0x138] sm:$0xff] %vm415, 0.0
      %457 = vst.msk [vmem:[#allocation2 + $0x140] sm:$0xff] %vm415, 0.0
      %458 = vst.msk [vmem:[#allocation2 + $0x148] sm:$0x3] %vm418, 0.0
      %459 = vst.msk [vmem:[#allocation2 + $0x150] sm:$0xff] %vm415, 0.0
      %460 = vst.msk [vmem:[#allocation2 + $0x158] sm:$0xff] %vm415, 0.0
      %461 = vst.msk [vmem:[#allocation2 + $0x160] sm:$0x3] %vm418, 0.0
      %462 = vst.msk [vmem:[#allocation2 + $0x168] sm:$0xff] %vm415, 0.0
      %463 = vst.msk [vmem:[#allocation2 + $0x170] sm:$0xff] %vm415, 0.0
      %464 = vst.msk [vmem:[#allocation2 + $0x178] sm:$0x3] %vm418, 0.0
      %465 = vst.msk [vmem:[#allocation2 + $0x180] sm:$0xff] %vm415, 0.0
      %466 = vst.msk [vmem:[#allocation2 + $0x188] sm:$0xff] %vm415, 0.0
      %467 = vst.msk [vmem:[#allocation2 + $0x190] sm:$0x3] %vm418, 0.0
      %468 = vst.msk [vmem:[#allocation2 + $0x198] sm:$0xff] %vm415, 0.0
      %469 = vst.msk [vmem:[#allocation2 + $0x1a0] sm:$0xff] %vm415, 0.0
      %470 = vst.msk [vmem:[#allocation2 + $0x1a8] sm:$0x3] %vm418, 0.0
      %v471 = vld [vmem:[%s408] sm:$0xff]
      %v472 = vld [vmem:[%s408 + $0x8] sm:$0xff]
      %v473 = vld [vmem:[%s408 + $0x10] sm:$0xff]
      %v474 = vld [vmem:[%s408 + $0x18] sm:$0xff]
      %v475 = vld [vmem:[%s408 + $0x20] sm:$0xff]
      %v476 = vld [vmem:[%s408 + $0x28] sm:$0xff]
      %v477 = vld [vmem:[%s408 + $0x30] sm:$0xff]
      %v478 = vld [vmem:[%s408 + $0x38] sm:$0xff]
      %v479 = vld [vmem:[%s408 + $0x40] sm:$0xff]
      %v480 = vld [vmem:[%s408 + $0x48] sm:$0xff]
      %v481 = vld [vmem:[%s408 + $0x50] sm:$0xff]
      %v482 = vld [vmem:[%s408 + $0x58] sm:$0xff]
      %v483 = vld [vmem:[%s408 + $0x60] sm:$0xff]
      %v484 = vld [vmem:[%s408 + $0x68] sm:$0xff]
      %v485 = vld [vmem:[%s408 + $0x70] sm:$0xff]
      %v486 = vld [vmem:[%s408 + $0x78] sm:$0xff]
      %v487 = vld [vmem:[%s408 + $0x80] sm:$0xff]
      %v488 = vld [vmem:[%s408 + $0x88] sm:$0xff]
      %v489 = vld [vmem:[%s408 + $0x90] sm:$0xff]
      %v490 = vld [vmem:[%s408 + $0x98] sm:$0xff]
      %v491 = vld [vmem:[%s408 + $0xa0] sm:$0xff]
      %v492 = vld [vmem:[%s408 + $0xa8] sm:$0xff]
      %v493 = vld [vmem:[%s408 + $0xb0] sm:$0xff]
      %v494 = vld [vmem:[%s408 + $0xb8] sm:$0xff]
      %v495 = vld [vmem:[%s408 + $0xc0] sm:$0xff]
      %v496 = vld [vmem:[%s408 + $0xc8] sm:$0xff]
      %v497 = vld [vmem:[%s408 + $0xd0] sm:$0xff]
      %v498 = vld [vmem:[%s408 + $0xd8] sm:$0xff]
      %v499 = vld [vmem:[%s408 + $0xe0] sm:$0xff]
      %v500 = vld [vmem:[%s408 + $0xe8] sm:$0xff]
      %v501 = vld [vmem:[%s408 + $0xf0] sm:$0xff]
      %v502 = vld [vmem:[%s408 + $0xf8] sm:$0xff]
      %v503 = vld [vmem:[%s2] sm:$0x1]
      %v504 = vld [vmem:[%s3] sm:$0x1]
      %v505 = vsel %vm415, %v471, 0.0
      %v506 = vsel %vm415, %v472, 0.0
      %v507 = vadd.f32 %v505, %v506
      %v508 = vsel %vm415, %v473, 0.0
      %v509 = vadd.f32 %v507, %v508
      %v510 = vsel %vm415, %v474, 0.0
      %v511 = vadd.f32 %v509, %v510
      %v512 = vsel %vm415, %v475, 0.0
      %v513 = vadd.f32 %v511, %v512
      %v514 = vsel %vm415, %v476, 0.0
      %v515 = vadd.f32 %v513, %v514
      %v516 = vsel %vm415, %v477, 0.0
      %v517 = vadd.f32 %v515, %v516
      %v518 = vsel %vm415, %v478, 0.0
      %v519 = vadd.f32 %v517, %v518
      %v520 = vsel %vm415, %v479, 0.0
      %v521 = vadd.f32 %v519, %v520
      %v522 = vsel %vm415, %v480, 0.0
      %v523 = vadd.f32 %v521, %v522
      %v524 = vsel %vm415, %v481, 0.0
      %v525 = vadd.f32 %v523, %v524
      %v526 = vsel %vm415, %v482, 0.0
      %v527 = vadd.f32 %v525, %v526
      %v528 = vsel %vm415, %v483, 0.0
      %v529 = vadd.f32 %v527, %v528
      %v530 = vsel %vm415, %v484, 0.0
      %v531 = vadd.f32 %v529, %v530
      %v532 = vsel %vm415, %v485, 0.0
      %v533 = vadd.f32 %v531, %v532
      %v534 = vsel %vm415, %v486, 0.0
      %v535 = vadd.f32 %v533, %v534
      %v536 = vsel %vm415, %v487, 0.0
      %v537 = vadd.f32 %v535, %v536
      %v538 = vsel %vm415, %v488, 0.0
      %v539 = vadd.f32 %v537, %v538
      %v540 = vsel %vm415, %v489, 0.0
      %v541 = vadd.f32 %v539, %v540
      %v542 = vsel %vm415, %v490, 0.0
      %v543 = vadd.f32 %v541, %v542
      %v544 = vsel %vm415, %v491, 0.0
      %v545 = vadd.f32 %v543, %v544
      %v546 = vsel %vm415, %v492, 0.0
      %v547 = vadd.f32 %v545, %v546
      %v548 = vsel %vm415, %v493, 0.0
      %v549 = vadd.f32 %v547, %v548
      %v550 = vsel %vm415, %v494, 0.0
      %v551 = vadd.f32 %v549, %v550
      %v552 = vsel %vm415, %v495, 0.0
      %v553 = vadd.f32 %v551, %v552
      %v554 = vsel %vm415, %v496, 0.0
      %v555 = vadd.f32 %v553, %v554
      %v556 = vsel %vm415, %v497, 0.0
      %v557 = vadd.f32 %v555, %v556
      %v558 = vsel %vm415, %v498, 0.0
      %v559 = vadd.f32 %v557, %v558
      %v560 = vsel %vm415, %v499, 0.0
      %v561 = vadd.f32 %v559, %v560
      %v562 = vsel %vm415, %v500, 0.0
      %v563 = vadd.f32 %v561, %v562
      %v564 = vsel %vm415, %v501, 0.0
      %v565 = vadd.f32 %v563, %v564
      %v566 = vsel %vm415, %v502, 0.0
      %v567 = vadd.f32 %v565, %v566
      %v568 = vrot.slane %v567, 4
      %v569 = vadd.f32 %v567, %v568
      %v570 = vrot.slane %v569, 2
      %v571 = vadd.f32 %v569, %v570
      %v572 = vrot.slane %v571, 1
      %v573 = vadd.f32 %v571, %v572
      %v575 = vsel %vm415, %v573, 0
      %vm577 = vcmask 1043456
      %v579 = vsel %vm577, %v414, 0
      %581 = vmatprep.subr.mxu0 0.0
      %582 = vmatpush1.msra.mxu0 0.0
      %583 = vmatprep.subr.mxu0 0.0
      %584 = vmatpush1.msra.mxu0 0.0
      %585 = vmatprep.subr.mxu0 0.0
      %586 = vmatpush1.msra.mxu0 0.0
      %587 = vmatprep.subr.mxu0 0.0
      %588 = vmatpush1.msra.mxu0 0.0
      %589 = vmatprep.subr.mxu0 0.0
      %590 = vmatpush1.msra.mxu0 0.0
      %591 = vmatprep.subr.mxu0 0.0
      %592 = vmatpush1.msra.mxu0 0.0
      %593 = vmatprep.subr.mxu0 0.0
      %594 = vmatpush1.msra.mxu0 0.0
      %595 = vmatprep.subr.mxu0 0.0
      %596 = vmatpush1.msra.mxu0 0.0
      %597 = vmatprep.subr.mxu0 0.0
      %598 = vmatpush1.msra.mxu0 0.0
      %599 = vmatprep.subr.mxu0 0.0
      %600 = vmatpush1.msra.mxu0 0.0
      %601 = vmatprep.subr.mxu0 0.0
      %602 = vmatpush1.msra.mxu0 0.0
      %603 = vmatprep.subr.mxu0 0.0
      %604 = vmatpush1.msra.mxu0 0.0
      %605 = vmatprep.subr.mxu0 0.0
      %606 = vmatpush1.msra.mxu0 0.0
      %607 = vmatprep.subr.mxu0 0.0
      %608 = vmatpush1.msra.mxu0 0.0
      %609 = vmatprep.subr.mxu0 0.0
      %610 = vmatpush1.msra.mxu0 0.0
      %611 = vmatprep.subr.mxu0 0.0
      %612 = vmatpush1.msra.mxu0 %v579
      %613 = vmatprep.subr.mxu0 0.0
      %614 = vmatpush2.msra.mxu0 0.0
      %615 = vmatprep.subr.mxu0 0.0
      %616 = vmatpush2.msra.mxu0 0.0
      %617 = vmatprep.subr.mxu0 0.0
      %618 = vmatpush2.msra.mxu0 0.0
      %619 = vmatprep.subr.mxu0 0.0
      %620 = vmatpush2.msra.mxu0 0.0
      %621 = vmatprep.subr.mxu0 0.0
      %622 = vmatpush2.msra.mxu0 0.0
      %623 = vmatprep.subr.mxu0 0.0
      %624 = vmatpush2.msra.mxu0 0.0
      %625 = vmatprep.subr.mxu0 0.0
      %626 = vmatpush2.msra.mxu0 0.0
      %627 = vmatprep.subr.mxu0 0.0
      %628 = vmatpush2.msra.mxu0 0.0
      %629 = vmatprep.subr.mxu0 0.0
      %630 = vmatpush2.msra.mxu0 0.0
      %631 = vmatprep.subr.mxu0 0.0
      %632 = vmatpush2.msra.mxu0 0.0
      %633 = vmatprep.subr.mxu0 0.0
      %634 = vmatpush2.msra.mxu0 0.0
      %635 = vmatprep.subr.mxu0 0.0
      %636 = vmatpush2.msra.mxu0 0.0
      %637 = vmatprep.subr.mxu0 0.0
      %638 = vmatpush2.msra.mxu0 0.0
      %639 = vmatprep.subr.mxu0 0.0
      %640 = vmatpush2.msra.mxu0 0.0
      %641 = vmatprep.subr.mxu0 0.0
      %642 = vmatpush2.msra.mxu0 0.0
      %643 = vmatprep.subr.mxu0 0.0
      %644 = vmatpush2.msra.mxu0 0.0
      %645 = vmatprep.mubr.f32.mxu0 0.0
      %646 = vmatmul.mubr.f32.gmra.mxu0 %v575
      %v647 = vpop.f32.mrf.mxu0
      %v648 = vadd.f32 0.0, %v647
      %v649 = vpop.f32.mrf.mxu0
      %650 = vdwg.mxu0
      %v651 = vlaneseq
      %v652 = vshrl.u32 %v651, 7
      %v653 = vsub.s32 0, %v652
      %v654 = vrot.slane %v648, %v653
      %v655 = vsub.f32 %v471, %v654
      %v656 = vsub.f32 %v472, %v654
      %v657 = vsub.f32 %v473, %v654
      %v658 = vsub.f32 %v474, %v654
      %v659 = vsub.f32 %v475, %v654
      %v660 = vsub.f32 %v476, %v654
      %v661 = vsub.f32 %v477, %v654
      %v662 = vsub.f32 %v478, %v654
      %v663 = vsub.f32 %v479, %v654
      %v664 = vsub.f32 %v480, %v654
      %v665 = vsub.f32 %v481, %v654
      %v666 = vsub.f32 %v482, %v654
      %v667 = vsub.f32 %v483, %v654
      %v668 = vsub.f32 %v484, %v654
      %v669 = vsub.f32 %v485, %v654
      %v670 = vsub.f32 %v486, %v654
      %v671 = vsub.f32 %v487, %v654
      %v672 = vsub.f32 %v488, %v654
      %v673 = vsub.f32 %v489, %v654
      %v674 = vsub.f32 %v490, %v654
      %v675 = vsub.f32 %v491, %v654
      %v676 = vsub.f32 %v492, %v654
      %v677 = vsub.f32 %v493, %v654
      %v678 = vsub.f32 %v494, %v654
      %v679 = vsub.f32 %v495, %v654
      %v680 = vsub.f32 %v496, %v654
      %v681 = vsub.f32 %v497, %v654
      %v682 = vsub.f32 %v498, %v654
      %v683 = vsub.f32 %v499, %v654
      %v684 = vsub.f32 %v500, %v654
      %v685 = vsub.f32 %v501, %v654
      %v686 = vsub.f32 %v502, %v654
      %v687 = vmul.f32 %v655, %v655
      %v688 = vmul.f32 %v656, %v656
      %v689 = vmul.f32 %v657, %v657
      %v690 = vmul.f32 %v658, %v658
      %v691 = vmul.f32 %v659, %v659
      %v692 = vmul.f32 %v660, %v660
      %v693 = vmul.f32 %v661, %v661
      %v694 = vmul.f32 %v662, %v662
      %v695 = vmul.f32 %v663, %v663
      %v696 = vmul.f32 %v664, %v664
      %v697 = vmul.f32 %v665, %v665
      %v698 = vmul.f32 %v666, %v666
      %v699 = vmul.f32 %v667, %v667
      %v700 = vmul.f32 %v668, %v668
      %v701 = vmul.f32 %v669, %v669
      %v702 = vmul.f32 %v670, %v670
      %v703 = vmul.f32 %v671, %v671
      %v704 = vmul.f32 %v672, %v672
      %v705 = vmul.f32 %v673, %v673
      %v706 = vmul.f32 %v674, %v674
      %v707 = vmul.f32 %v675, %v675
      %v708 = vmul.f32 %v676, %v676
      %v709 = vmul.f32 %v677, %v677
      %v710 = vmul.f32 %v678, %v678
      %v711 = vmul.f32 %v679, %v679
      %v712 = vmul.f32 %v680, %v680
      %v713 = vmul.f32 %v681, %v681
      %v714 = vmul.f32 %v682, %v682
      %v715 = vmul.f32 %v683, %v683
      %v716 = vmul.f32 %v684, %v684
      %v717 = vmul.f32 %v685, %v685
      %v718 = vmul.f32 %v686, %v686
      %v719 = vsel %vm415, %v687, 0.0
      %v720 = vsel %vm415, %v688, 0.0
      %v721 = vadd.f32 %v719, %v720
      %v722 = vsel %vm415, %v689, 0.0
      %v723 = vadd.f32 %v721, %v722
      %v724 = vsel %vm415, %v690, 0.0
      %v725 = vadd.f32 %v723, %v724
      %v726 = vsel %vm415, %v691, 0.0
      %v727 = vadd.f32 %v725, %v726
      %v728 = vsel %vm415, %v692, 0.0
      %v729 = vadd.f32 %v727, %v728
      %v730 = vsel %vm415, %v693, 0.0
      %v731 = vadd.f32 %v729, %v730
      %v732 = vsel %vm415, %v694, 0.0
      %v733 = vadd.f32 %v731, %v732
      %v734 = vsel %vm415, %v695, 0.0
      %v735 = vadd.f32 %v733, %v734
      %v736 = vsel %vm415, %v696, 0.0
      %v737 = vadd.f32 %v735, %v736
      %v738 = vsel %vm415, %v697, 0.0
      %v739 = vadd.f32 %v737, %v738
      %v740 = vsel %vm415, %v698, 0.0
      %v741 = vadd.f32 %v739, %v740
      %v742 = vsel %vm415, %v699, 0.0
      %v743 = vadd.f32 %v741, %v742
      %v744 = vsel %vm415, %v700, 0.0
      %v745 = vadd.f32 %v743, %v744
      %v746 = vsel %vm415, %v701, 0.0
      %v747 = vadd.f32 %v745, %v746
      %v748 = vsel %vm415, %v702, 0.0
      %v749 = vadd.f32 %v747, %v748
      %v750 = vsel %vm415, %v703, 0.0
      %v751 = vadd.f32 %v749, %v750
      %v752 = vsel %vm415, %v704, 0.0
      %v753 = vadd.f32 %v751, %v752
      %v754 = vsel %vm415, %v705, 0.0
      %v755 = vadd.f32 %v753, %v754
      %v756 = vsel %vm415, %v706, 0.0
      %v757 = vadd.f32 %v755, %v756
      %v758 = vsel %vm415, %v707, 0.0
      %v759 = vadd.f32 %v757, %v758
      %v760 = vsel %vm415, %v708, 0.0
      %v761 = vadd.f32 %v759, %v760
      %v762 = vsel %vm415, %v709, 0.0
      %v763 = vadd.f32 %v761, %v762
      %v764 = vsel %vm415, %v710, 0.0
      %v765 = vadd.f32 %v763, %v764
      %v766 = vsel %vm415, %v711, 0.0
      %v767 = vadd.f32 %v765, %v766
      %v768 = vsel %vm415, %v712, 0.0
      %v769 = vadd.f32 %v767, %v768
      %v770 = vsel %vm415, %v713, 0.0
      %v771 = vadd.f32 %v769, %v770
      %v772 = vsel %vm415, %v714, 0.0
      %v773 = vadd.f32 %v771, %v772
      %v774 = vsel %vm415, %v715, 0.0
      %v775 = vadd.f32 %v773, %v774
      %v776 = vsel %vm415, %v716, 0.0
      %v777 = vadd.f32 %v775, %v776
      %v778 = vsel %vm415, %v717, 0.0
      %v779 = vadd.f32 %v777, %v778
      %v780 = vsel %vm415, %v718, 0.0
      %v781 = vadd.f32 %v779, %v780
      %v782 = vrot.slane %v781, 4
      %v783 = vadd.f32 %v781, %v782
      %v784 = vrot.slane %v783, 2
      %v785 = vadd.f32 %v783, %v784
      %v786 = vrot.slane %v785, 1
      %v787 = vadd.f32 %v785, %v786
      %v789 = vsel %vm415, %v787, 0
      %791 = vmatprep.subr.mxu0 0.0
      %792 = vmatpush1.msra.mxu0 0.0
      %793 = vmatprep.subr.mxu0 0.0
      %794 = vmatpush1.msra.mxu0 0.0
      %795 = vmatprep.subr.mxu0 0.0
      %796 = vmatpush1.msra.mxu0 0.0
      %797 = vmatprep.subr.mxu0 0.0
      %798 = vmatpush1.msra.mxu0 0.0
      %799 = vmatprep.subr.mxu0 0.0
      %800 = vmatpush1.msra.mxu0 0.0
      %801 = vmatprep.subr.mxu0 0.0
      %802 = vmatpush1.msra.mxu0 0.0
      %803 = vmatprep.subr.mxu0 0.0
      %804 = vmatpush1.msra.mxu0 0.0
      %805 = vmatprep.subr.mxu0 0.0
      %806 = vmatpush1.msra.mxu0 0.0
      %807 = vmatprep.subr.mxu0 0.0
      %808 = vmatpush1.msra.mxu0 0.0
      %809 = vmatprep.subr.mxu0 0.0
      %810 = vmatpush1.msra.mxu0 0.0
      %811 = vmatprep.subr.mxu0 0.0
      %812 = vmatpush1.msra.mxu0 0.0
      %813 = vmatprep.subr.mxu0 0.0
      %814 = vmatpush1.msra.mxu0 0.0
      %815 = vmatprep.subr.mxu0 0.0
      %816 = vmatpush1.msra.mxu0 0.0
      %817 = vmatprep.subr.mxu0 0.0
      %818 = vmatpush1.msra.mxu0 0.0
      %819 = vmatprep.subr.mxu0 0.0
      %820 = vmatpush1.msra.mxu0 0.0
      %821 = vmatprep.subr.mxu0 0.0
      %822 = vmatpush1.msra.mxu0 %v579
      %823 = vmatprep.subr.mxu0 0.0
      %824 = vmatpush2.msra.mxu0 0.0
      %825 = vmatprep.subr.mxu0 0.0
      %826 = vmatpush2.msra.mxu0 0.0
      %827 = vmatprep.subr.mxu0 0.0
      %828 = vmatpush2.msra.mxu0 0.0
      %829 = vmatprep.subr.mxu0 0.0
      %830 = vmatpush2.msra.mxu0 0.0
      %831 = vmatprep.subr.mxu0 0.0
      %832 = vmatpush2.msra.mxu0 0.0
      %833 = vmatprep.subr.mxu0 0.0
      %834 = vmatpush2.msra.mxu0 0.0
      %835 = vmatprep.subr.mxu0 0.0
      %836 = vmatpush2.msra.mxu0 0.0
      %837 = vmatprep.subr.mxu0 0.0
      %838 = vmatpush2.msra.mxu0 0.0
      %839 = vmatprep.subr.mxu0 0.0
      %840 = vmatpush2.msra.mxu0 0.0
      %841 = vmatprep.subr.mxu0 0.0
      %842 = vmatpush2.msra.mxu0 0.0
      %843 = vmatprep.subr.mxu0 0.0
      %844 = vmatpush2.msra.mxu0 0.0
      %845 = vmatprep.subr.mxu0 0.0
      %846 = vmatpush2.msra.mxu0 0.0
      %847 = vmatprep.subr.mxu0 0.0
      %848 = vmatpush2.msra.mxu0 0.0
      %849 = vmatprep.subr.mxu0 0.0
      %850 = vmatpush2.msra.mxu0 0.0
      %851 = vmatprep.subr.mxu0 0.0
      %852 = vmatpush2.msra.mxu0 0.0
      %853 = vmatprep.subr.mxu0 0.0
      %854 = vmatpush2.msra.mxu0 0.0
      %855 = vmatprep.mubr.f32.mxu0 0.0
      %856 = vmatmul.mubr.f32.gmra.mxu0 %v789
      %v857 = vpop.f32.mrf.mxu0
      %v858 = vadd.f32 1e-05, %v857
      %v859 = vpop.f32.mrf.mxu0
      %860 = vdwg.mxu0
      %v861 = vrsqrt.pop %v858
      %v862 = vmul.f32 %v861, %v503
      %v863 = vlaneseq
      %v864 = vshrl.u32 %v863, 7
      %v865 = vsub.s32 0, %v864
      %v866 = vrot.slane %v862, %v865
      %v867 = vmul.f32 %v655, %v866
      %v868 = vmul.f32 %v656, %v866
      %v869 = vmul.f32 %v657, %v866
      %v870 = vmul.f32 %v658, %v866
      %v871 = vmul.f32 %v659, %v866
      %v872 = vmul.f32 %v660, %v866
      %v873 = vmul.f32 %v661, %v866
      %v874 = vmul.f32 %v662, %v866
      %v875 = vmul.f32 %v663, %v866
      %v876 = vmul.f32 %v664, %v866
      %v877 = vmul.f32 %v665, %v866
      %v878 = vmul.f32 %v666, %v866
      %v879 = vmul.f32 %v667, %v866
      %v880 = vmul.f32 %v668, %v866
      %v881 = vmul.f32 %v669, %v866
      %v882 = vmul.f32 %v670, %v866
      %v883 = vmul.f32 %v671, %v866
      %v884 = vmul.f32 %v672, %v866
      %v885 = vmul.f32 %v673, %v866
      %v886 = vmul.f32 %v674, %v866
      %v887 = vmul.f32 %v675, %v866
      %v888 = vmul.f32 %v676, %v866
      %v889 = vmul.f32 %v677, %v866
      %v890 = vmul.f32 %v678, %v866
      %v891 = vmul.f32 %v679, %v866
      %v892 = vmul.f32 %v680, %v866
      %v893 = vmul.f32 %v681, %v866
      %v894 = vmul.f32 %v682, %v866
      %v895 = vmul.f32 %v683, %v866
      %v896 = vmul.f32 %v684, %v866
      %v897 = vmul.f32 %v685, %v866
      %v898 = vmul.f32 %v686, %v866
      %v900 = vlaneseq
      %v901 = vshrl.u32 %v900, 7
      %v902 = vsub.s32 0, %v901
      %v903 = vrot.slane %v504, %v902
      %v905 = vadd.f32 %v867, %v903
      %v906 = vadd.f32 %v868, %v903
      %v907 = vadd.f32 %v869, %v903
      %v908 = vadd.f32 %v870, %v903
      %v909 = vadd.f32 %v871, %v903
      %v910 = vadd.f32 %v872, %v903
      %v911 = vadd.f32 %v873, %v903
      %v912 = vadd.f32 %v874, %v903
      %v913 = vadd.f32 %v875, %v903
      %v914 = vadd.f32 %v876, %v903
      %v915 = vadd.f32 %v877, %v903
      %v916 = vadd.f32 %v878, %v903
      %v917 = vadd.f32 %v879, %v903
      %v918 = vadd.f32 %v880, %v903
      %v919 = vadd.f32 %v881, %v903
      %v920 = vadd.f32 %v882, %v903
      %v921 = vadd.f32 %v883, %v903
      %v922 = vadd.f32 %v884, %v903
      %v923 = vadd.f32 %v885, %v903
      %v924 = vadd.f32 %v886, %v903
      %v925 = vadd.f32 %v887, %v903
      %v926 = vadd.f32 %v888, %v903
      %v927 = vadd.f32 %v889, %v903
      %v928 = vadd.f32 %v890, %v903
      %v929 = vadd.f32 %v891, %v903
      %v930 = vadd.f32 %v892, %v903
      %v931 = vadd.f32 %v893, %v903
      %v932 = vadd.f32 %v894, %v903
      %v933 = vadd.f32 %v895, %v903
      %v934 = vadd.f32 %v896, %v903
      %v935 = vadd.f32 %v897, %v903
      %v936 = vadd.f32 %v898, %v903
      %v937 = vmax.f32 %v905, 0.0
      %v938 = vmax.f32 %v906, 0.0
      %v939 = vmax.f32 %v907, 0.0
      %v940 = vmax.f32 %v908, 0.0
      %v941 = vmax.f32 %v909, 0.0
      %v942 = vmax.f32 %v910, 0.0
      %v943 = vmax.f32 %v911, 0.0
      %v944 = vmax.f32 %v912, 0.0
      %v945 = vmax.f32 %v913, 0.0
      %v946 = vmax.f32 %v914, 0.0
      %v947 = vmax.f32 %v915, 0.0
      %v948 = vmax.f32 %v916, 0.0
      %v949 = vmax.f32 %v917, 0.0
      %v950 = vmax.f32 %v918, 0.0
      %v951 = vmax.f32 %v919, 0.0
      %v952 = vmax.f32 %v920, 0.0
      %v953 = vmax.f32 %v921, 0.0
      %v954 = vmax.f32 %v922, 0.0
      %v955 = vmax.f32 %v923, 0.0
      %v956 = vmax.f32 %v924, 0.0
      %v957 = vmax.f32 %v925, 0.0
      %v958 = vmax.f32 %v926, 0.0
      %v959 = vmax.f32 %v927, 0.0
      %v960 = vmax.f32 %v928, 0.0
      %v961 = vmax.f32 %v929, 0.0
      %v962 = vmax.f32 %v930, 0.0
      %v963 = vmax.f32 %v931, 0.0
      %v964 = vmax.f32 %v932, 0.0
      %v965 = vmax.f32 %v933, 0.0
      %v966 = vmax.f32 %v934, 0.0
      %v967 = vmax.f32 %v935, 0.0
      %v968 = vmax.f32 %v936, 0.0
      %v969 = vld [vmem:[%s4] sm:$0xf]
      %v970 = vld [vmem:[%s4 + $0x4] sm:$0xf]
      %v971 = vld [vmem:[%s4 + $0x8] sm:$0xf]
      %v972 = vld [vmem:[%s4 + $0xc] sm:$0xf]
      %v973 = vld [vmem:[%s4 + $0x10] sm:$0xf]
      %v974 = vld [vmem:[%s4 + $0x14] sm:$0xf]
      %v975 = vld [vmem:[%s4 + $0x18] sm:$0xf]
      %v976 = vld [vmem:[%s4 + $0x1c] sm:$0xf]
      %v977 = vld [vmem:[%s4 + $0x20] sm:$0xf]
      %v978 = vld [vmem:[%s5] sm:$0xff]
      %v979 = vld [vmem:[%s5 + $0x8] sm:$0xff]
      %v980 = vld [vmem:[%s5 + $0x10] sm:$0xff]
      %v981 = vld [vmem:[%s5 + $0x18] sm:$0xff]
      %v982 = vld [vmem:[%s5 + $0x20] sm:$0xff]
      %v983 = vld [vmem:[%s5 + $0x28] sm:$0xff]
      %v984 = vld [vmem:[%s5 + $0x30] sm:$0xff]
      %v985 = vld [vmem:[%s5 + $0x38] sm:$0xff]
      %v986 = vld [vmem:[%s5 + $0x40] sm:$0xff]
      %v987 = vld [vmem:[%s5 + $0x48] sm:$0xff]
      %v988 = vld [vmem:[%s5 + $0x50] sm:$0xff]
      %v989 = vld [vmem:[%s5 + $0x58] sm:$0xff]
      %v990 = vld [vmem:[%s5 + $0x60] sm:$0xff]
      %v991 = vld [vmem:[%s5 + $0x68] sm:$0xff]
      %v992 = vld [vmem:[%s5 + $0x70] sm:$0xff]
      %v993 = vld [vmem:[%s5 + $0x78] sm:$0xff]
      %v994 = vld [vmem:[%s5 + $0x80] sm:$0xff]
      %v995 = vld [vmem:[%s5 + $0x88] sm:$0xff]
      %v996 = vld [vmem:[%s5 + $0x90] sm:$0xff]
      %v997 = vld [vmem:[%s5 + $0x98] sm:$0xff]
      %v998 = vld [vmem:[%s5 + $0xa0] sm:$0xff]
      %v999 = vld [vmem:[%s5 + $0xa8] sm:$0xff]
      %v1000 = vld [vmem:[%s5 + $0xb0] sm:$0xff]
      %v1001 = vld [vmem:[%s5 + $0xb8] sm:$0xff]
      %v1002 = vld [vmem:[%s5 + $0xc0] sm:$0xff]
      %v1003 = vld [vmem:[%s5 + $0xc8] sm:$0xff]
      %v1004 = vld [vmem:[%s5 + $0xd0] sm:$0xff]
      %v1005 = vld [vmem:[%s5 + $0xd8] sm:$0xff]
      %v1006 = vld [vmem:[%s5 + $0xe0] sm:$0xff]
      %v1007 = vld [vmem:[%s5 + $0xe8] sm:$0xff]
      %v1008 = vld [vmem:[%s5 + $0xf0] sm:$0xff]
      %v1009 = vld [vmem:[%s5 + $0xf8] sm:$0xff]
      %s1010 = scalar_lea.vmem [#allocation2], 24
      %1011 = vst.msk [vmem:[%s1010 + $0x1] sm:$0xff] %vm415, %v937
      %1012 = vst.msk [vmem:[%s1010 + $0x9] sm:$0xff] %vm415, %v938
      %1013 = vst.msk [vmem:[%s1010 + $0x19] sm:$0xff] %vm415, %v939
      %1014 = vst.msk [vmem:[%s1010 + $0x21] sm:$0xff] %vm415, %v940
      %1015 = vst.msk [vmem:[%s1010 + $0x31] sm:$0xff] %vm415, %v941
      %1016 = vst.msk [vmem:[%s1010 + $0x39] sm:$0xff] %vm415, %v942
      %1017 = vst.msk [vmem:[%s1010 + $0x49] sm:$0xff] %vm415, %v943
      %1018 = vst.msk [vmem:[%s1010 + $0x51] sm:$0xff] %vm415, %v944
      %1019 = vst.msk [vmem:[%s1010 + $0x61] sm:$0xff] %vm415, %v945
      %1020 = vst.msk [vmem:[%s1010 + $0x69] sm:$0xff] %vm415, %v946
      %1021 = vst.msk [vmem:[%s1010 + $0x79] sm:$0xff] %vm415, %v947
      %1022 = vst.msk [vmem:[%s1010 + $0x81] sm:$0xff] %vm415, %v948
      %1023 = vst.msk [vmem:[%s1010 + $0x91] sm:$0xff] %vm415, %v949
      %1024 = vst.msk [vmem:[%s1010 + $0x99] sm:$0xff] %vm415, %v950
      %1025 = vst.msk [vmem:[%s1010 + $0xa9] sm:$0xff] %vm415, %v951
      %1026 = vst.msk [vmem:[%s1010 + $0xb1] sm:$0xff] %vm415, %v952
      %1027 = vst.msk [vmem:[%s1010 + $0xc1] sm:$0xff] %vm415, %v953
      %1028 = vst.msk [vmem:[%s1010 + $0xc9] sm:$0xff] %vm415, %v954
      %1029 = vst.msk [vmem:[%s1010 + $0xd9] sm:$0xff] %vm415, %v955
      %1030 = vst.msk [vmem:[%s1010 + $0xe1] sm:$0xff] %vm415, %v956
      %1031 = vst.msk [vmem:[%s1010 + $0xf1] sm:$0xff] %vm415, %v957
      %1032 = vst.msk [vmem:[%s1010 + $0xf9] sm:$0xff] %vm415, %v958
      %1033 = vst.msk [vmem:[%s1010 + $0x109] sm:$0xff] %vm415, %v959
      %1034 = vst.msk [vmem:[%s1010 + $0x111] sm:$0xff] %vm415, %v960
      %1035 = vst.msk [vmem:[%s1010 + $0x121] sm:$0xff] %vm415, %v961
      %1036 = vst.msk [vmem:[%s1010 + $0x129] sm:$0xff] %vm415, %v962
      %1037 = vst.msk [vmem:[%s1010 + $0x139] sm:$0xff] %vm415, %v963
      %1038 = vst.msk [vmem:[%s1010 + $0x141] sm:$0xff] %vm415, %v964
      %1039 = vst.msk [vmem:[%s1010 + $0x151] sm:$0xff] %vm415, %v965
      %1040 = vst.msk [vmem:[%s1010 + $0x159] sm:$0xff] %vm415, %v966
      %1041 = vst.msk [vmem:[%s1010 + $0x169] sm:$0xff] %vm415, %v967
      %1042 = vst.msk [vmem:[%s1010 + $0x171] sm:$0xff] %vm415, %v968
      %v1043 = vld [vmem:[#allocation2] sm:$0xff]
      %v1044 = vld [vmem:[#allocation2 + $0x8] sm:$0xff]
      %v1045 = vld [vmem:[#allocation2 + $0x10] sm:$0x3]
      %v1046 = vld [vmem:[#allocation2 + $0x18] sm:$0xff]
      %v1047 = vld [vmem:[#allocation2 + $0x20] sm:$0xff]
      %v1048 = vld [vmem:[#allocation2 + $0x28] sm:$0x3]
      %v1049 = vld [vmem:[#allocation2 + $0x30] sm:$0xff]
      %v1050 = vld [vmem:[#allocation2 + $0x38] sm:$0xff]
      %v1051 = vld [vmem:[#allocation2 + $0x40] sm:$0x3]
      %v1052 = vld [vmem:[#allocation2 + $0x48] sm:$0xff]
      %v1053 = vld [vmem:[#allocation2 + $0x50] sm:$0xff]
      %v1054 = vld [vmem:[#allocation2 + $0x58] sm:$0x3]
      %v1055 = vld [vmem:[#allocation2 + $0x60] sm:$0xff]
      %v1056 = vld [vmem:[#allocation2 + $0x68] sm:$0xff]
      %v1057 = vld [vmem:[#allocation2 + $0x70] sm:$0x3]
      %v1058 = vld [vmem:[#allocation2 + $0x78] sm:$0xff]
      %v1059 = vld [vmem:[#allocation2 + $0x80] sm:$0xff]
      %v1060 = vld [vmem:[#allocation2 + $0x88] sm:$0x3]
      %v1061 = vld [vmem:[#allocation2 + $0x90] sm:$0xff]
      %v1062 = vld [vmem:[#allocation2 + $0x98] sm:$0xff]
      %v1063 = vld [vmem:[#allocation2 + $0xa0] sm:$0x3]
      %v1064 = vld [vmem:[#allocation2 + $0xa8] sm:$0xff]
      %v1065 = vld [vmem:[#allocation2 + $0xb0] sm:$0xff]
      %v1066 = vld [vmem:[#allocation2 + $0xb8] sm:$0x3]
      %v1067 = vld [vmem:[#allocation2 + $0xc0] sm:$0xff]
      %v1068 = vld [vmem:[#allocation2 + $0xc8] sm:$0xff]
      %v1069 = vld [vmem:[#allocation2 + $0xd0] sm:$0x3]
      %v1070 = vld [vmem:[#allocation2 + $0xd8] sm:$0xff]
      %v1071 = vld [vmem:[#allocation2 + $0xe0] sm:$0xff]
      %v1072 = vld [vmem:[#allocation2 + $0xe8] sm:$0x3]
      %v1073 = vld [vmem:[#allocation2 + $0xf0] sm:$0xff]
      %v1074 = vld [vmem:[#allocation2 + $0xf8] sm:$0xff]
      %v1075 = vld [vmem:[#allocation2 + $0x100] sm:$0x3]
      %v1076 = vld [vmem:[#allocation2 + $0x108] sm:$0xff]
      %v1077 = vld [vmem:[#allocation2 + $0x110] sm:$0xff]
      %v1078 = vld [vmem:[#allocation2 + $0x118] sm:$0x3]
      %v1079 = vld [vmem:[#allocation2 + $0x120] sm:$0xff]
      %v1080 = vld [vmem:[#allocation2 + $0x128] sm:$0xff]
      %v1081 = vld [vmem:[#allocation2 + $0x130] sm:$0x3]
      %v1082 = vld [vmem:[#allocation2 + $0x138] sm:$0xff]
      %v1083 = vld [vmem:[#allocation2 + $0x140] sm:$0xff]
      %v1084 = vld [vmem:[#allocation2 + $0x148] sm:$0x3]
      %v1085 = vld [vmem:[#allocation2 + $0x150] sm:$0xff]
      %v1086 = vld [vmem:[#allocation2 + $0x158] sm:$0xff]
      %v1087 = vld [vmem:[#allocation2 + $0x160] sm:$0x3]
      %v1088 = vld [vmem:[#allocation2 + $0x168] sm:$0xff]
      %v1089 = vld [vmem:[#allocation2 + $0x170] sm:$0xff]
      %v1090 = vld [vmem:[#allocation2 + $0x178] sm:$0x3]
      %v1091 = vld [vmem:[#allocation2 + $0x180] sm:$0xff]
      %v1092 = vld [vmem:[#allocation2 + $0x188] sm:$0xff]
      %v1093 = vld [vmem:[#allocation2 + $0x190] sm:$0x3]
      %v1094 = vld [vmem:[#allocation2 + $0x198] sm:$0xff]
      %v1095 = vld [vmem:[#allocation2 + $0x1a0] sm:$0xff]
      %v1096 = vld [vmem:[#allocation2 + $0x1a8] sm:$0x3]
      %vm1145 = vcmask 1046528
      %v1146 = vrot.slane %v1043, 1
      %v1147 = vrot.slane %v1044, 1
      %v1148 = vsel %vm1145, %v1146, %v1147
      %v1149 = vrot.slane %v1045, 1
      %v1150 = vsel %vm1145, %v1147, %v1149
      %v1151 = vrot.slane %v1046, 1
      %v1152 = vrot.slane %v1047, 1
      %v1153 = vsel %vm1145, %v1151, %v1152
      %v1154 = vrot.slane %v1048, 1
      %v1155 = vsel %vm1145, %v1152, %v1154
      %v1156 = vrot.slane %v1049, 1
      %v1157 = vrot.slane %v1050, 1
      %v1158 = vsel %vm1145, %v1156, %v1157
      %v1159 = vrot.slane %v1051, 1
      %v1160 = vsel %vm1145, %v1157, %v1159
      %v1161 = vrot.slane %v1052, 1
      %v1162 = vrot.slane %v1053, 1
      %v1163 = vsel %vm1145, %v1161, %v1162
      %v1164 = vrot.slane %v1054, 1
      %v1165 = vsel %vm1145, %v1162, %v1164
      %v1166 = vrot.slane %v1055, 1
      %v1167 = vrot.slane %v1056, 1
      %v1168 = vsel %vm1145, %v1166, %v1167
      %v1169 = vrot.slane %v1057, 1
      %v1170 = vsel %vm1145, %v1167, %v1169
      %v1171 = vrot.slane %v1058, 1
      %v1172 = vrot.slane %v1059, 1
      %v1173 = vsel %vm1145, %v1171, %v1172
      %v1174 = vrot.slane %v1060, 1
      %v1175 = vsel %vm1145, %v1172, %v1174
      %v1176 = vrot.slane %v1061, 1
      %v1177 = vrot.slane %v1062, 1
      %v1178 = vsel %vm1145, %v1176, %v1177
      %v1179 = vrot.slane %v1063, 1
      %v1180 = vsel %vm1145, %v1177, %v1179
      %v1181 = vrot.slane %v1064, 1
      %v1182 = vrot.slane %v1065, 1
      %v1183 = vsel %vm1145, %v1181, %v1182
      %v1184 = vrot.slane %v1066, 1
      %v1185 = vsel %vm1145, %v1182, %v1184
      %v1186 = vrot.slane %v1067, 1
      %v1187 = vrot.slane %v1068, 1
      %v1188 = vsel %vm1145, %v1186, %v1187
      %v1189 = vrot.slane %v1069, 1
      %v1190 = vsel %vm1145, %v1187, %v1189
      %v1191 = vrot.slane %v1070, 1
      %v1192 = vrot.slane %v1071, 1
      %v1193 = vsel %vm1145, %v1191, %v1192
      %v1194 = vrot.slane %v1072, 1
      %v1195 = vsel %vm1145, %v1192, %v1194
      %v1196 = vrot.slane %v1073, 1
      %v1197 = vrot.slane %v1074, 1
      %v1198 = vsel %vm1145, %v1196, %v1197
      %v1199 = vrot.slane %v1075, 1
      %v1200 = vsel %vm1145, %v1197, %v1199
      %v1201 = vrot.slane %v1076, 1
      %v1202 = vrot.slane %v1077, 1
      %v1203 = vsel %vm1145, %v1201, %v1202
      %v1204 = vrot.slane %v1078, 1
      %v1205 = vsel %vm1145, %v1202, %v1204
      %v1206 = vrot.slane %v1079, 1
      %v1207 = vrot.slane %v1080, 1
      %v1208 = vsel %vm1145, %v1206, %v1207
      %v1209 = vrot.slane %v1081, 1
      %v1210 = vsel %vm1145, %v1207, %v1209
      %v1211 = vrot.slane %v1082, 1
      %v1212 = vrot.slane %v1083, 1
      %v1213 = vsel %vm1145, %v1211, %v1212
      %v1214 = vrot.slane %v1084, 1
      %v1215 = vsel %vm1145, %v1212, %v1214
      %v1216 = vrot.slane %v1085, 1
      %v1217 = vrot.slane %v1086, 1
      %v1218 = vsel %vm1145, %v1216, %v1217
      %v1219 = vrot.slane %v1087, 1
      %v1220 = vsel %vm1145, %v1217, %v1219
      %v1221 = vrot.slane %v1088, 1
      %v1222 = vrot.slane %v1089, 1
      %v1223 = vsel %vm1145, %v1221, %v1222
      %v1224 = vrot.slane %v1090, 1
      %v1225 = vsel %vm1145, %v1222, %v1224
      %v1226 = vsel %vm415, %v1148, 0
      %v1228 = vsel %vm415, %v1150, 0
      %v1230 = vsel %vm415, %v1153, 0
      %v1232 = vsel %vm415, %v1155, 0
      %v1234 = vsel %vm415, %v1158, 0
      %v1236 = vsel %vm415, %v1160, 0
      %v1238 = vsel %vm415, %v1163, 0
      %v1240 = vsel %vm415, %v1165, 0
      %v1242 = vsel %vm415, %v1168, 0
      %v1244 = vsel %vm415, %v1170, 0
      %v1246 = vsel %vm415, %v1173, 0
      %v1248 = vsel %vm415, %v1175, 0
      %v1250 = vsel %vm415, %v1178, 0
      %v1252 = vsel %vm415, %v1180, 0
      %v1254 = vsel %vm415, %v1183, 0
      %v1256 = vsel %vm415, %v1185, 0
      %v1258 = vsel %vm415, %v1188, 0
      %v1260 = vsel %vm415, %v1190, 0
      %v1262 = vsel %vm415, %v1193, 0
      %v1264 = vsel %vm415, %v1195, 0
      %v1266 = vsel %vm415, %v1198, 0
      %v1268 = vsel %vm415, %v1200, 0
      %v1270 = vsel %vm415, %v1203, 0
      %v1272 = vsel %vm415, %v1205, 0
      %v1274 = vsel %vm415, %v1208, 0
      %v1276 = vsel %vm415, %v1210, 0
      %v1278 = vsel %vm415, %v1213, 0
      %v1280 = vsel %vm415, %v1215, 0
      %v1282 = vsel %vm415, %v1218, 0
      %v1284 = vsel %vm415, %v1220, 0
      %v1286 = vsel %vm415, %v1223, 0
      %v1288 = vsel %vm415, %v1225, 0
      %v1291 = vsel %vm577, %v970, 0
      %1293 = vmatprep.subr.mxu0 0.0
      %1294 = vmatpush1.msra.mxu0 0.0
      %1295 = vmatprep.subr.mxu0 0.0
      %1296 = vmatpush1.msra.mxu0 0.0
      %1297 = vmatprep.subr.mxu0 0.0
      %1298 = vmatpush1.msra.mxu0 0.0
      %1299 = vmatprep.subr.mxu0 0.0
      %1300 = vmatpush1.msra.mxu0 0.0
      %1301 = vmatprep.subr.mxu0 0.0
      %1302 = vmatpush1.msra.mxu0 0.0
      %1303 = vmatprep.subr.mxu0 0.0
      %1304 = vmatpush1.msra.mxu0 0.0
      %1305 = vmatprep.subr.mxu0 0.0
      %1306 = vmatpush1.msra.mxu0 0.0
      %1307 = vmatprep.subr.mxu0 0.0
      %1308 = vmatpush1.msra.mxu0 0.0
      %1309 = vmatprep.subr.mxu0 0.0
      %1310 = vmatpush1.msra.mxu0 0.0
      %1311 = vmatprep.subr.mxu0 0.0
      %1312 = vmatpush1.msra.mxu0 0.0
      %1313 = vmatprep.subr.mxu0 0.0
      %1314 = vmatpush1.msra.mxu0 0.0
      %1315 = vmatprep.subr.mxu0 0.0
      %1316 = vmatpush1.msra.mxu0 0.0
      %1317 = vmatprep.subr.mxu0 0.0
      %1318 = vmatpush1.msra.mxu0 0.0
      %1319 = vmatprep.subr.mxu0 0.0
      %1320 = vmatpush1.msra.mxu0 0.0
      %1321 = vmatprep.subr.mxu0 0.0
      %1322 = vmatpush1.msra.mxu0 0.0
      %1323 = vmatprep.subr.mxu0 0.0
      %1324 = vmatpush1.msra.mxu0 %v1291
      %1325 = vmatprep.subr.mxu0 0.0
      %1326 = vmatpush2.msra.mxu0 0.0
      %1327 = vmatprep.subr.mxu0 0.0
      %1328 = vmatpush2.msra.mxu0 0.0
      %1329 = vmatprep.subr.mxu0 0.0
      %1330 = vmatpush2.msra.mxu0 0.0
      %1331 = vmatprep.subr.mxu0 0.0
      %1332 = vmatpush2.msra.mxu0 0.0
      %1333 = vmatprep.subr.mxu0 0.0
      %1334 = vmatpush2.msra.mxu0 0.0
      %1335 = vmatprep.subr.mxu0 0.0
      %1336 = vmatpush2.msra.mxu0 0.0
      %1337 = vmatprep.subr.mxu0 0.0
      %1338 = vmatpush2.msra.mxu0 0.0
      %1339 = vmatprep.subr.mxu0 0.0
      %1340 = vmatpush2.msra.mxu0 0.0
      %1341 = vmatprep.subr.mxu0 0.0
      %1342 = vmatpush2.msra.mxu0 0.0
      %1343 = vmatprep.subr.mxu0 0.0
      %1344 = vmatpush2.msra.mxu0 0.0
      %1345 = vmatprep.subr.mxu0 0.0
      %1346 = vmatpush2.msra.mxu0 0.0
      %1347 = vmatprep.subr.mxu0 0.0
      %1348 = vmatpush2.msra.mxu0 0.0
      %1349 = vmatprep.subr.mxu0 0.0
      %1350 = vmatpush2.msra.mxu0 0.0
      %1351 = vmatprep.subr.mxu0 0.0
      %1352 = vmatpush2.msra.mxu0 0.0
      %1353 = vmatprep.subr.mxu0 0.0
      %1354 = vmatpush2.msra.mxu0 0.0
      %1355 = vmatprep.subr.mxu0 0.0
      %1356 = vmatpush2.msra.mxu0 0.0
      %1357 = vmatprep.mubr.f32.mxu0 0.0
      %1358 = vmatmul.mubr.f32.gmra.mxu0 %v1226
      %v1359 = vpop.f32.mrf.mxu0
      %v1360 = vadd.f32 0.0, %v1359
      %v1361 = vpop.f32.mrf.mxu0
      %1362 = vmatprep.mubr.f32.mxu0 0.0
      %1363 = vmatmul.mubr.f32.gmra.mxu0 %v1228
      %v1364 = vpop.f32.mrf.mxu0
      %v1365 = vadd.f32 0.0, %v1364
      %v1366 = vpop.f32.mrf.mxu0
      %1367 = vmatprep.mubr.f32.mxu0 0.0
      %1368 = vmatmul.mubr.f32.gmra.mxu0 %v1230
      %v1369 = vpop.f32.mrf.mxu0
      %v1370 = vadd.f32 0.0, %v1369
      %v1371 = vpop.f32.mrf.mxu0
      %1372 = vmatprep.mubr.f32.mxu0 0.0
      %1373 = vmatmul.mubr.f32.gmra.mxu0 %v1232
      %v1374 = vpop.f32.mrf.mxu0
      %v1375 = vadd.f32 0.0, %v1374
      %v1376 = vpop.f32.mrf.mxu0
      %1377 = vmatprep.mubr.f32.mxu0 0.0
      %1378 = vmatmul.mubr.f32.gmra.mxu0 %v1234
      %v1379 = vpop.f32.mrf.mxu0
      %v1380 = vadd.f32 0.0, %v1379
      %v1381 = vpop.f32.mrf.mxu0
      %1382 = vmatprep.mubr.f32.mxu0 0.0
      %1383 = vmatmul.mubr.f32.gmra.mxu0 %v1236
      %v1384 = vpop.f32.mrf.mxu0
      %v1385 = vadd.f32 0.0, %v1384
      %v1386 = vpop.f32.mrf.mxu0
      %1387 = vmatprep.mubr.f32.mxu0 0.0
      %1388 = vmatmul.mubr.f32.gmra.mxu0 %v1238
      %v1389 = vpop.f32.mrf.mxu0
      %v1390 = vadd.f32 0.0, %v1389
      %v1391 = vpop.f32.mrf.mxu0
      %1392 = vmatprep.mubr.f32.mxu0 0.0
      %1393 = vmatmul.mubr.f32.gmra.mxu0 %v1240
      %v1394 = vpop.f32.mrf.mxu0
      %v1395 = vadd.f32 0.0, %v1394
      %v1396 = vpop.f32.mrf.mxu0
      %1397 = vmatprep.mubr.f32.mxu0 0.0
      %1398 = vmatmul.mubr.f32.gmra.mxu0 %v1242
      %v1399 = vpop.f32.mrf.mxu0
      %v1400 = vadd.f32 0.0, %v1399
      %v1401 = vpop.f32.mrf.mxu0
      %1402 = vmatprep.mubr.f32.mxu0 0.0
      %1403 = vmatmul.mubr.f32.gmra.mxu0 %v1244
      %v1404 = vpop.f32.mrf.mxu0
      %v1405 = vadd.f32 0.0, %v1404
      %v1406 = vpop.f32.mrf.mxu0
      %1407 = vmatprep.mubr.f32.mxu0 0.0
      %1408 = vmatmul.mubr.f32.gmra.mxu0 %v1246
      %v1409 = vpop.f32.mrf.mxu0
      %v1410 = vadd.f32 0.0, %v1409
      %v1411 = vpop.f32.mrf.mxu0
      %1412 = vmatprep.mubr.f32.mxu0 0.0
      %1413 = vmatmul.mubr.f32.gmra.mxu0 %v1248
      %v1414 = vpop.f32.mrf.mxu0
      %v1415 = vadd.f32 0.0, %v1414
      %v1416 = vpop.f32.mrf.mxu0
      %1417 = vmatprep.mubr.f32.mxu0 0.0
      %1418 = vmatmul.mubr.f32.gmra.mxu0 %v1250
      %v1419 = vpop.f32.mrf.mxu0
      %v1420 = vadd.f32 0.0, %v1419
      %v1421 = vpop.f32.mrf.mxu0
      %1422 = vmatprep.mubr.f32.mxu0 0.0
      %1423 = vmatmul.mubr.f32.gmra.mxu0 %v1252
      %v1424 = vpop.f32.mrf.mxu0
      %v1425 = vadd.f32 0.0, %v1424
      %v1426 = vpop.f32.mrf.mxu0
      %1427 = vmatprep.mubr.f32.mxu0 0.0
      %1428 = vmatmul.mubr.f32.gmra.mxu0 %v1254
      %v1429 = vpop.f32.mrf.mxu0
      %v1430 = vadd.f32 0.0, %v1429
      %v1431 = vpop.f32.mrf.mxu0
      %1432 = vmatprep.mubr.f32.mxu0 0.0
      %1433 = vmatmul.mubr.f32.gmra.mxu0 %v1256
      %v1434 = vpop.f32.mrf.mxu0
      %v1435 = vadd.f32 0.0, %v1434
      %v1436 = vpop.f32.mrf.mxu0
      %1437 = vmatprep.mubr.f32.mxu0 0.0
      %1438 = vmatmul.mubr.f32.gmra.mxu0 %v1258
      %v1439 = vpop.f32.mrf.mxu0
      %v1440 = vadd.f32 0.0, %v1439
      %v1441 = vpop.f32.mrf.mxu0
      %1442 = vmatprep.mubr.f32.mxu0 0.0
      %1443 = vmatmul.mubr.f32.gmra.mxu0 %v1260
      %v1444 = vpop.f32.mrf.mxu0
      %v1445 = vadd.f32 0.0, %v1444
      %v1446 = vpop.f32.mrf.mxu0
      %1447 = vmatprep.mubr.f32.mxu0 0.0
      %1448 = vmatmul.mubr.f32.gmra.mxu0 %v1262
      %v1449 = vpop.f32.mrf.mxu0
      %v1450 = vadd.f32 0.0, %v1449
      %v1451 = vpop.f32.mrf.mxu0
      %1452 = vmatprep.mubr.f32.mxu0 0.0
      %1453 = vmatmul.mubr.f32.gmra.mxu0 %v1264
      %v1454 = vpop.f32.mrf.mxu0
      %v1455 = vadd.f32 0.0, %v1454
      %v1456 = vpop.f32.mrf.mxu0
      %1457 = vmatprep.mubr.f32.mxu0 0.0
      %1458 = vmatmul.mubr.f32.gmra.mxu0 %v1266
      %v1459 = vpop.f32.mrf.mxu0
      %v1460 = vadd.f32 0.0, %v1459
      %v1461 = vpop.f32.mrf.mxu0
      %1462 = vmatprep.mubr.f32.mxu0 0.0
      %1463 = vmatmul.mubr.f32.gmra.mxu0 %v1268
      %v1464 = vpop.f32.mrf.mxu0
      %v1465 = vadd.f32 0.0, %v1464
      %v1466 = vpop.f32.mrf.mxu0
      %1467 = vmatprep.mubr.f32.mxu0 0.0
      %1468 = vmatmul.mubr.f32.gmra.mxu0 %v1270
      %v1469 = vpop.f32.mrf.mxu0
      %v1470 = vadd.f32 0.0, %v1469
      %v1471 = vpop.f32.mrf.mxu0
      %1472 = vmatprep.mubr.f32.mxu0 0.0
      %1473 = vmatmul.mubr.f32.gmra.mxu0 %v1272
      %v1474 = vpop.f32.mrf.mxu0
      %v1475 = vadd.f32 0.0, %v1474
      %v1476 = vpop.f32.mrf.mxu0
      %1477 = vmatprep.mubr.f32.mxu0 0.0
      %1478 = vmatmul.mubr.f32.gmra.mxu0 %v1274
      %v1479 = vpop.f32.mrf.mxu0
      %v1480 = vadd.f32 0.0, %v1479
      %v1481 = vpop.f32.mrf.mxu0
      %1482 = vmatprep.mubr.f32.mxu0 0.0
      %1483 = vmatmul.mubr.f32.gmra.mxu0 %v1276
      %v1484 = vpop.f32.mrf.mxu0
      %v1485 = vadd.f32 0.0, %v1484
      %v1486 = vpop.f32.mrf.mxu0
      %1487 = vmatprep.mubr.f32.mxu0 0.0
      %1488 = vmatmul.mubr.f32.gmra.mxu0 %v1278
      %v1489 = vpop.f32.mrf.mxu0
      %v1490 = vadd.f32 0.0, %v1489
      %v1491 = vpop.f32.mrf.mxu0
      %1492 = vmatprep.mubr.f32.mxu0 0.0
      %1493 = vmatmul.mubr.f32.gmra.mxu0 %v1280
      %v1494 = vpop.f32.mrf.mxu0
      %v1495 = vadd.f32 0.0, %v1494
      %v1496 = vpop.f32.mrf.mxu0
      %1497 = vmatprep.mubr.f32.mxu0 0.0
      %1498 = vmatmul.mubr.f32.gmra.mxu0 %v1282
      %v1499 = vpop.f32.mrf.mxu0
      %v1500 = vadd.f32 0.0, %v1499
      %v1501 = vpop.f32.mrf.mxu0
      %1502 = vmatprep.mubr.f32.mxu0 0.0
      %1503 = vmatmul.mubr.f32.gmra.mxu0 %v1284
      %v1504 = vpop.f32.mrf.mxu0
      %v1505 = vadd.f32 0.0, %v1504
      %v1506 = vpop.f32.mrf.mxu0
      %1507 = vmatprep.mubr.f32.mxu0 0.0
      %1508 = vmatmul.mubr.f32.gmra.mxu0 %v1286
      %v1509 = vpop.f32.mrf.mxu0
      %v1510 = vadd.f32 0.0, %v1509
      %v1511 = vpop.f32.mrf.mxu0
      %1512 = vmatprep.mubr.f32.mxu0 0.0
      %1513 = vmatmul.mubr.f32.gmra.mxu0 %v1288
      %v1514 = vpop.f32.mrf.mxu0
      %v1515 = vadd.f32 0.0, %v1514
      %v1516 = vpop.f32.mrf.mxu0
      %1517 = vdwg.mxu0
      %v1518 = vsel %vm415, %v1043, 0
      %v1520 = vsel %vm415, %v1044, 0
      %v1522 = vsel %vm415, %v1046, 0
      %v1524 = vsel %vm415, %v1047, 0
      %v1526 = vsel %vm415, %v1049, 0
      %v1528 = vsel %vm415, %v1050, 0
      %v1530 = vsel %vm415, %v1052, 0
      %v1532 = vsel %vm415, %v1053, 0
      %v1534 = vsel %vm415, %v1055, 0
      %v1536 = vsel %vm415, %v1056, 0
      %v1538 = vsel %vm415, %v1058, 0
      %v1540 = vsel %vm415, %v1059, 0
      %v1542 = vsel %vm415, %v1061, 0
      %v1544 = vsel %vm415, %v1062, 0
      %v1546 = vsel %vm415, %v1064, 0
      %v1548 = vsel %vm415, %v1065, 0
      %v1550 = vsel %vm415, %v1067, 0
      %v1552 = vsel %vm415, %v1068, 0
      %v1554 = vsel %vm415, %v1070, 0
      %v1556 = vsel %vm415, %v1071, 0
      %v1558 = vsel %vm415, %v1073, 0
      %v1560 = vsel %vm415, %v1074, 0
      %v1562 = vsel %vm415, %v1076, 0
      %v1564 = vsel %vm415, %v1077, 0
      %v1566 = vsel %vm415, %v1079, 0
      %v1568 = vsel %vm415, %v1080, 0
      %v1570 = vsel %vm415, %v1082, 0
      %v1572 = vsel %vm415, %v1083, 0
      %v1574 = vsel %vm415, %v1085, 0
      %v1576 = vsel %vm415, %v1086, 0
      %v1578 = vsel %vm415, %v1088, 0
      %v1580 = vsel %vm415, %v1089, 0
      %v1583 = vsel %vm577, %v969, 0
      %1585 = vmatprep.subr.mxu0 0.0
      %1586 = vmatpush1.msra.mxu0 0.0
      %1587 = vmatprep.subr.mxu0 0.0
      %1588 = vmatpush1.msra.mxu0 0.0
      %1589 = vmatprep.subr.mxu0 0.0
      %1590 = vmatpush1.msra.mxu0 0.0
      %1591 = vmatprep.subr.mxu0 0.0
      %1592 = vmatpush1.msra.mxu0 0.0
      %1593 = vmatprep.subr.mxu0 0.0
      %1594 = vmatpush1.msra.mxu0 0.0
      %1595 = vmatprep.subr.mxu0 0.0
      %1596 = vmatpush1.msra.mxu0 0.0
      %1597 = vmatprep.subr.mxu0 0.0
      %1598 = vmatpush1.msra.mxu0 0.0
      %1599 = vmatprep.subr.mxu0 0.0
      %1600 = vmatpush1.msra.mxu0 0.0
      %1601 = vmatprep.subr.mxu0 0.0
      %1602 = vmatpush1.msra.mxu0 0.0
      %1603 = vmatprep.subr.mxu0 0.0
      %1604 = vmatpush1.msra.mxu0 0.0
      %1605 = vmatprep.subr.mxu0 0.0
      %1606 = vmatpush1.msra.mxu0 0.0
      %1607 = vmatprep.subr.mxu0 0.0
      %1608 = vmatpush1.msra.mxu0 0.0
      %1609 = vmatprep.subr.mxu0 0.0
      %1610 = vmatpush1.msra.mxu0 0.0
      %1611 = vmatprep.subr.mxu0 0.0
      %1612 = vmatpush1.msra.mxu0 0.0
      %1613 = vmatprep.subr.mxu0 0.0
      %1614 = vmatpush1.msra.mxu0 0.0
      %1615 = vmatprep.subr.mxu0 0.0
      %1616 = vmatpush1.msra.mxu0 %v1583
      %1617 = vmatprep.subr.mxu0 0.0
      %1618 = vmatpush2.msra.mxu0 0.0
      %1619 = vmatprep.subr.mxu0 0.0
      %1620 = vmatpush2.msra.mxu0 0.0
      %1621 = vmatprep.subr.mxu0 0.0
      %1622 = vmatpush2.msra.mxu0 0.0
      %1623 = vmatprep.subr.mxu0 0.0
      %1624 = vmatpush2.msra.mxu0 0.0
      %1625 = vmatprep.subr.mxu0 0.0
      %1626 = vmatpush2.msra.mxu0 0.0
      %1627 = vmatprep.subr.mxu0 0.0
      %1628 = vmatpush2.msra.mxu0 0.0
      %1629 = vmatprep.subr.mxu0 0.0
      %1630 = vmatpush2.msra.mxu0 0.0
      %1631 = vmatprep.subr.mxu0 0.0
      %1632 = vmatpush2.msra.mxu0 0.0
      %1633 = vmatprep.subr.mxu0 0.0
      %1634 = vmatpush2.msra.mxu0 0.0
      %1635 = vmatprep.subr.mxu0 0.0
      %1636 = vmatpush2.msra.mxu0 0.0
      %1637 = vmatprep.subr.mxu0 0.0
      %1638 = vmatpush2.msra.mxu0 0.0
      %1639 = vmatprep.subr.mxu0 0.0
      %1640 = vmatpush2.msra.mxu0 0.0
      %1641 = vmatprep.subr.mxu0 0.0
      %1642 = vmatpush2.msra.mxu0 0.0
      %1643 = vmatprep.subr.mxu0 0.0
      %1644 = vmatpush2.msra.mxu0 0.0
      %1645 = vmatprep.subr.mxu0 0.0
      %1646 = vmatpush2.msra.mxu0 0.0
      %1647 = vmatprep.subr.mxu0 0.0
      %1648 = vmatpush2.msra.mxu0 0.0
      %1649 = vmatprep.mubr.f32.mxu0 0.0
      %1650 = vmatmul.mubr.f32.gmra.mxu0 %v1518
      %v1651 = vpop.f32.mrf.mxu0
      %v1652 = vadd.f32 %v1360, %v1651
      %v1653 = vpop.f32.mrf.mxu0
      %1654 = vmatprep.mubr.f32.mxu0 0.0
      %1655 = vmatmul.mubr.f32.gmra.mxu0 %v1520
      %v1656 = vpop.f32.mrf.mxu0
      %v1657 = vadd.f32 %v1365, %v1656
      %v1658 = vpop.f32.mrf.mxu0
      %1659 = vmatprep.mubr.f32.mxu0 0.0
      %1660 = vmatmul.mubr.f32.gmra.mxu0 %v1522
      %v1661 = vpop.f32.mrf.mxu0
      %v1662 = vadd.f32 %v1370, %v1661
      %v1663 = vpop.f32.mrf.mxu0
      %1664 = vmatprep.mubr.f32.mxu0 0.0
      %1665 = vmatmul.mubr.f32.gmra.mxu0 %v1524
      %v1666 = vpop.f32.mrf.mxu0
      %v1667 = vadd.f32 %v1375, %v1666
      %v1668 = vpop.f32.mrf.mxu0
      %1669 = vmatprep.mubr.f32.mxu0 0.0
      %1670 = vmatmul.mubr.f32.gmra.mxu0 %v1526
      %v1671 = vpop.f32.mrf.mxu0
      %v1672 = vadd.f32 %v1380, %v1671
      %v1673 = vpop.f32.mrf.mxu0
      %1674 = vmatprep.mubr.f32.mxu0 0.0
      %1675 = vmatmul.mubr.f32.gmra.mxu0 %v1528
      %v1676 = vpop.f32.mrf.mxu0
      %v1677 = vadd.f32 %v1385, %v1676
      %v1678 = vpop.f32.mrf.mxu0
      %1679 = vmatprep.mubr.f32.mxu0 0.0
      %1680 = vmatmul.mubr.f32.gmra.mxu0 %v1530
      %v1681 = vpop.f32.mrf.mxu0
      %v1682 = vadd.f32 %v1390, %v1681
      %v1683 = vpop.f32.mrf.mxu0
      %1684 = vmatprep.mubr.f32.mxu0 0.0
      %1685 = vmatmul.mubr.f32.gmra.mxu0 %v1532
      %v1686 = vpop.f32.mrf.mxu0
      %v1687 = vadd.f32 %v1395, %v1686
      %v1688 = vpop.f32.mrf.mxu0
      %1689 = vmatprep.mubr.f32.mxu0 0.0
      %1690 = vmatmul.mubr.f32.gmra.mxu0 %v1534
      %v1691 = vpop.f32.mrf.mxu0
      %v1692 = vadd.f32 %v1400, %v1691
      %v1693 = vpop.f32.mrf.mxu0
      %1694 = vmatprep.mubr.f32.mxu0 0.0
      %1695 = vmatmul.mubr.f32.gmra.mxu0 %v1536
      %v1696 = vpop.f32.mrf.mxu0
      %v1697 = vadd.f32 %v1405, %v1696
      %v1698 = vpop.f32.mrf.mxu0
      %1699 = vmatprep.mubr.f32.mxu0 0.0
      %1700 = vmatmul.mubr.f32.gmra.mxu0 %v1538
      %v1701 = vpop.f32.mrf.mxu0
      %v1702 = vadd.f32 %v1410, %v1701
      %v1703 = vpop.f32.mrf.mxu0
      %1704 = vmatprep.mubr.f32.mxu0 0.0
      %1705 = vmatmul.mubr.f32.gmra.mxu0 %v1540
      %v1706 = vpop.f32.mrf.mxu0
      %v1707 = vadd.f32 %v1415, %v1706
      %v1708 = vpop.f32.mrf.mxu0
      %1709 = vmatprep.mubr.f32.mxu0 0.0
      %1710 = vmatmul.mubr.f32.gmra.mxu0 %v1542
      %v1711 = vpop.f32.mrf.mxu0
      %v1712 = vadd.f32 %v1420, %v1711
      %v1713 = vpop.f32.mrf.mxu0
      %1714 = vmatprep.mubr.f32.mxu0 0.0
      %1715 = vmatmul.mubr.f32.gmra.mxu0 %v1544
      %v1716 = vpop.f32.mrf.mxu0
      %v1717 = vadd.f32 %v1425, %v1716
      %v1718 = vpop.f32.mrf.mxu0
      %1719 = vmatprep.mubr.f32.mxu0 0.0
      %1720 = vmatmul.mubr.f32.gmra.mxu0 %v1546
      %v1721 = vpop.f32.mrf.mxu0
      %v1722 = vadd.f32 %v1430, %v1721
      %v1723 = vpop.f32.mrf.mxu0
      %1724 = vmatprep.mubr.f32.mxu0 0.0
      %1725 = vmatmul.mubr.f32.gmra.mxu0 %v1548
      %v1726 = vpop.f32.mrf.mxu0
      %v1727 = vadd.f32 %v1435, %v1726
      %v1728 = vpop.f32.mrf.mxu0
      %1729 = vmatprep.mubr.f32.mxu0 0.0
      %1730 = vmatmul.mubr.f32.gmra.mxu0 %v1550
      %v1731 = vpop.f32.mrf.mxu0
      %v1732 = vadd.f32 %v1440, %v1731
      %v1733 = vpop.f32.mrf.mxu0
      %1734 = vmatprep.mubr.f32.mxu0 0.0
      %1735 = vmatmul.mubr.f32.gmra.mxu0 %v1552
      %v1736 = vpop.f32.mrf.mxu0
      %v1737 = vadd.f32 %v1445, %v1736
      %v1738 = vpop.f32.mrf.mxu0
      %1739 = vmatprep.mubr.f32.mxu0 0.0
      %1740 = vmatmul.mubr.f32.gmra.mxu0 %v1554
      %v1741 = vpop.f32.mrf.mxu0
      %v1742 = vadd.f32 %v1450, %v1741
      %v1743 = vpop.f32.mrf.mxu0
      %1744 = vmatprep.mubr.f32.mxu0 0.0
      %1745 = vmatmul.mubr.f32.gmra.mxu0 %v1556
      %v1746 = vpop.f32.mrf.mxu0
      %v1747 = vadd.f32 %v1455, %v1746
      %v1748 = vpop.f32.mrf.mxu0
      %1749 = vmatprep.mubr.f32.mxu0 0.0
      %1750 = vmatmul.mubr.f32.gmra.mxu0 %v1558
      %v1751 = vpop.f32.mrf.mxu0
      %v1752 = vadd.f32 %v1460, %v1751
      %v1753 = vpop.f32.mrf.mxu0
      %1754 = vmatprep.mubr.f32.mxu0 0.0
      %1755 = vmatmul.mubr.f32.gmra.mxu0 %v1560
      %v1756 = vpop.f32.mrf.mxu0
      %v1757 = vadd.f32 %v1465, %v1756
      %v1758 = vpop.f32.mrf.mxu0
      %1759 = vmatprep.mubr.f32.mxu0 0.0
      %1760 = vmatmul.mubr.f32.gmra.mxu0 %v1562
      %v1761 = vpop.f32.mrf.mxu0
      %v1762 = vadd.f32 %v1470, %v1761
      %v1763 = vpop.f32.mrf.mxu0
      %1764 = vmatprep.mubr.f32.mxu0 0.0
      %1765 = vmatmul.mubr.f32.gmra.mxu0 %v1564
      %v1766 = vpop.f32.mrf.mxu0
      %v1767 = vadd.f32 %v1475, %v1766
      %v1768 = vpop.f32.mrf.mxu0
      %1769 = vmatprep.mubr.f32.mxu0 0.0
      %1770 = vmatmul.mubr.f32.gmra.mxu0 %v1566
      %v1771 = vpop.f32.mrf.mxu0
      %v1772 = vadd.f32 %v1480, %v1771
      %v1773 = vpop.f32.mrf.mxu0
      %1774 = vmatprep.mubr.f32.mxu0 0.0
      %1775 = vmatmul.mubr.f32.gmra.mxu0 %v1568
      %v1776 = vpop.f32.mrf.mxu0
      %v1777 = vadd.f32 %v1485, %v1776
      %v1778 = vpop.f32.mrf.mxu0
      %1779 = vmatprep.mubr.f32.mxu0 0.0
      %1780 = vmatmul.mubr.f32.gmra.mxu0 %v1570
      %v1781 = vpop.f32.mrf.mxu0
      %v1782 = vadd.f32 %v1490, %v1781
      %v1783 = vpop.f32.mrf.mxu0
      %1784 = vmatprep.mubr.f32.mxu0 0.0
      %1785 = vmatmul.mubr.f32.gmra.mxu0 %v1572
      %v1786 = vpop.f32.mrf.mxu0
      %v1787 = vadd.f32 %v1495, %v1786
      %v1788 = vpop.f32.mrf.mxu0
      %1789 = vmatprep.mubr.f32.mxu0 0.0
      %1790 = vmatmul.mubr.f32.gmra.mxu0 %v1574
      %v1791 = vpop.f32.mrf.mxu0
      %v1792 = vadd.f32 %v1500, %v1791
      %v1793 = vpop.f32.mrf.mxu0
      %1794 = vmatprep.mubr.f32.mxu0 0.0
      %1795 = vmatmul.mubr.f32.gmra.mxu0 %v1576
      %v1796 = vpop.f32.mrf.mxu0
      %v1797 = vadd.f32 %v1505, %v1796
      %v1798 = vpop.f32.mrf.mxu0
      %1799 = vmatprep.mubr.f32.mxu0 0.0
      %1800 = vmatmul.mubr.f32.gmra.mxu0 %v1578
      %v1801 = vpop.f32.mrf.mxu0
      %v1802 = vadd.f32 %v1510, %v1801
      %v1803 = vpop.f32.mrf.mxu0
      %1804 = vmatprep.mubr.f32.mxu0 0.0
      %1805 = vmatmul.mubr.f32.gmra.mxu0 %v1580
      %v1806 = vpop.f32.mrf.mxu0
      %v1807 = vadd.f32 %v1515, %v1806
      %v1808 = vpop.f32.mrf.mxu0
      %1809 = vdwg.mxu0
      %vm1810 = vcmask 1045504
      %v1811 = vrot.slane %v1043, 2
      %v1812 = vrot.slane %v1044, 2
      %v1813 = vsel %vm1810, %v1811, %v1812
      %v1814 = vrot.slane %v1045, 2
      %v1815 = vsel %vm1810, %v1812, %v1814
      %v1816 = vrot.slane %v1046, 2
      %v1817 = vrot.slane %v1047, 2
      %v1818 = vsel %vm1810, %v1816, %v1817
      %v1819 = vrot.slane %v1048, 2
      %v1820 = vsel %vm1810, %v1817, %v1819
      %v1821 = vrot.slane %v1049, 2
      %v1822 = vrot.slane %v1050, 2
      %v1823 = vsel %vm1810, %v1821, %v1822
      %v1824 = vrot.slane %v1051, 2
      %v1825 = vsel %vm1810, %v1822, %v1824
      %v1826 = vrot.slane %v1052, 2
      %v1827 = vrot.slane %v1053, 2
      %v1828 = vsel %vm1810, %v1826, %v1827
      %v1829 = vrot.slane %v1054, 2
      %v1830 = vsel %vm1810, %v1827, %v1829
      %v1831 = vrot.slane %v1055, 2
      %v1832 = vrot.slane %v1056, 2
      %v1833 = vsel %vm1810, %v1831, %v1832
      %v1834 = vrot.slane %v1057, 2
      %v1835 = vsel %vm1810, %v1832, %v1834
      %v1836 = vrot.slane %v1058, 2
      %v1837 = vrot.slane %v1059, 2
      %v1838 = vsel %vm1810, %v1836, %v1837
      %v1839 = vrot.slane %v1060, 2
      %v1840 = vsel %vm1810, %v1837, %v1839
      %v1841 = vrot.slane %v1061, 2
      %v1842 = vrot.slane %v1062, 2
      %v1843 = vsel %vm1810, %v1841, %v1842
      %v1844 = vrot.slane %v1063, 2
      %v1845 = vsel %vm1810, %v1842, %v1844
      %v1846 = vrot.slane %v1064, 2
      %v1847 = vrot.slane %v1065, 2
      %v1848 = vsel %vm1810, %v1846, %v1847
      %v1849 = vrot.slane %v1066, 2
      %v1850 = vsel %vm1810, %v1847, %v1849
      %v1851 = vrot.slane %v1067, 2
      %v1852 = vrot.slane %v1068, 2
      %v1853 = vsel %vm1810, %v1851, %v1852
      %v1854 = vrot.slane %v1069, 2
      %v1855 = vsel %vm1810, %v1852, %v1854
      %v1856 = vrot.slane %v1070, 2
      %v1857 = vrot.slane %v1071, 2
      %v1858 = vsel %vm1810, %v1856, %v1857
      %v1859 = vrot.slane %v1072, 2
      %v1860 = vsel %vm1810, %v1857, %v1859
      %v1861 = vrot.slane %v1073, 2
      %v1862 = vrot.slane %v1074, 2
      %v1863 = vsel %vm1810, %v1861, %v1862
      %v1864 = vrot.slane %v1075, 2
      %v1865 = vsel %vm1810, %v1862, %v1864
      %v1866 = vrot.slane %v1076, 2
      %v1867 = vrot.slane %v1077, 2
      %v1868 = vsel %vm1810, %v1866, %v1867
      %v1869 = vrot.slane %v1078, 2
      %v1870 = vsel %vm1810, %v1867, %v1869
      %v1871 = vrot.slane %v1079, 2
      %v1872 = vrot.slane %v1080, 2
      %v1873 = vsel %vm1810, %v1871, %v1872
      %v1874 = vrot.slane %v1081, 2
      %v1875 = vsel %vm1810, %v1872, %v1874
      %v1876 = vrot.slane %v1082, 2
      %v1877 = vrot.slane %v1083, 2
      %v1878 = vsel %vm1810, %v1876, %v1877
      %v1879 = vrot.slane %v1084, 2
      %v1880 = vsel %vm1810, %v1877, %v1879
      %v1881 = vrot.slane %v1085, 2
      %v1882 = vrot.slane %v1086, 2
      %v1883 = vsel %vm1810, %v1881, %v1882
      %v1884 = vrot.slane %v1087, 2
      %v1885 = vsel %vm1810, %v1882, %v1884
      %v1886 = vrot.slane %v1088, 2
      %v1887 = vrot.slane %v1089, 2
      %v1888 = vsel %vm1810, %v1886, %v1887
      %v1889 = vrot.slane %v1090, 2
      %v1890 = vsel %vm1810, %v1887, %v1889
      %v1891 = vsel %vm415, %v1813, 0
      %v1893 = vsel %vm415, %v1815, 0
      %v1895 = vsel %vm415, %v1818, 0
      %v1897 = vsel %vm415, %v1820, 0
      %v1899 = vsel %vm415, %v1823, 0
      %v1901 = vsel %vm415, %v1825, 0
      %v1903 = vsel %vm415, %v1828, 0
      %v1905 = vsel %vm415, %v1830, 0
      %v1907 = vsel %vm415, %v1833, 0
      %v1909 = vsel %vm415, %v1835, 0
      %v1911 = vsel %vm415, %v1838, 0
      %v1913 = vsel %vm415, %v1840, 0
      %v1915 = vsel %vm415, %v1843, 0
      %v1917 = vsel %vm415, %v1845, 0
      %v1919 = vsel %vm415, %v1848, 0
      %v1921 = vsel %vm415, %v1850, 0
      %v1923 = vsel %vm415, %v1853, 0
      %v1925 = vsel %vm415, %v1855, 0
      %v1927 = vsel %vm415, %v1858, 0
      %v1929 = vsel %vm415, %v1860, 0
      %v1931 = vsel %vm415, %v1863, 0
      %v1933 = vsel %vm415, %v1865, 0
      %v1935 = vsel %vm415, %v1868, 0
      %v1937 = vsel %vm415, %v1870, 0
      %v1939 = vsel %vm415, %v1873, 0
      %v1941 = vsel %vm415, %v1875, 0
      %v1943 = vsel %vm415, %v1878, 0
      %v1945 = vsel %vm415, %v1880, 0
      %v1947 = vsel %vm415, %v1883, 0
      %v1949 = vsel %vm415, %v1885, 0
      %v1951 = vsel %vm415, %v1888, 0
      %v1953 = vsel %vm415, %v1890, 0
      %v1956 = vsel %vm577, %v971, 0
      %1958 = vmatprep.subr.mxu0 0.0
      %1959 = vmatpush1.msra.mxu0 0.0
      %1960 = vmatprep.subr.mxu0 0.0
      %1961 = vmatpush1.msra.mxu0 0.0
      %1962 = vmatprep.subr.mxu0 0.0
      %1963 = vmatpush1.msra.mxu0 0.0
      %1964 = vmatprep.subr.mxu0 0.0
      %1965 = vmatpush1.msra.mxu0 0.0
      %1966 = vmatprep.subr.mxu0 0.0
      %1967 = vmatpush1.msra.mxu0 0.0
      %1968 = vmatprep.subr.mxu0 0.0
      %1969 = vmatpush1.msra.mxu0 0.0
      %1970 = vmatprep.subr.mxu0 0.0
      %1971 = vmatpush1.msra.mxu0 0.0
      %1972 = vmatprep.subr.mxu0 0.0
      %1973 = vmatpush1.msra.mxu0 0.0
      %1974 = vmatprep.subr.mxu0 0.0
      %1975 = vmatpush1.msra.mxu0 0.0
      %1976 = vmatprep.subr.mxu0 0.0
      %1977 = vmatpush1.msra.mxu0 0.0
      %1978 = vmatprep.subr.mxu0 0.0
      %1979 = vmatpush1.msra.mxu0 0.0
      %1980 = vmatprep.subr.mxu0 0.0
      %1981 = vmatpush1.msra.mxu0 0.0
      %1982 = vmatprep.subr.mxu0 0.0
      %1983 = vmatpush1.msra.mxu0 0.0
      %1984 = vmatprep.subr.mxu0 0.0
      %1985 = vmatpush1.msra.mxu0 0.0
      %1986 = vmatprep.subr.mxu0 0.0
      %1987 = vmatpush1.msra.mxu0 0.0
      %1988 = vmatprep.subr.mxu0 0.0
      %1989 = vmatpush1.msra.mxu0 %v1956
      %1990 = vmatprep.subr.mxu0 0.0
      %1991 = vmatpush2.msra.mxu0 0.0
      %1992 = vmatprep.subr.mxu0 0.0
      %1993 = vmatpush2.msra.mxu0 0.0
      %1994 = vmatprep.subr.mxu0 0.0
      %1995 = vmatpush2.msra.mxu0 0.0
      %1996 = vmatprep.subr.mxu0 0.0
      %1997 = vmatpush2.msra.mxu0 0.0
      %1998 = vmatprep.subr.mxu0 0.0
      %1999 = vmatpush2.msra.mxu0 0.0
      %2000 = vmatprep.subr.mxu0 0.0
      %2001 = vmatpush2.msra.mxu0 0.0
      %2002 = vmatprep.subr.mxu0 0.0
      %2003 = vmatpush2.msra.mxu0 0.0
      %2004 = vmatprep.subr.mxu0 0.0
      %2005 = vmatpush2.msra.mxu0 0.0
      %2006 = vmatprep.subr.mxu0 0.0
      %2007 = vmatpush2.msra.mxu0 0.0
      %2008 = vmatprep.subr.mxu0 0.0
      %2009 = vmatpush2.msra.mxu0 0.0
      %2010 = vmatprep.subr.mxu0 0.0
      %2011 = vmatpush2.msra.mxu0 0.0
      %2012 = vmatprep.subr.mxu0 0.0
      %2013 = vmatpush2.msra.mxu0 0.0
      %2014 = vmatprep.subr.mxu0 0.0
      %2015 = vmatpush2.msra.mxu0 0.0
      %2016 = vmatprep.subr.mxu0 0.0
      %2017 = vmatpush2.msra.mxu0 0.0
      %2018 = vmatprep.subr.mxu0 0.0
      %2019 = vmatpush2.msra.mxu0 0.0
      %2020 = vmatprep.subr.mxu0 0.0
      %2021 = vmatpush2.msra.mxu0 0.0
      %2022 = vmatprep.mubr.f32.mxu0 0.0
      %2023 = vmatmul.mubr.f32.gmra.mxu0 %v1891
      %v2024 = vpop.f32.mrf.mxu0
      %v2025 = vadd.f32 0.0, %v2024
      %v2026 = vpop.f32.mrf.mxu0
      %2027 = vmatprep.mubr.f32.mxu0 0.0
      %2028 = vmatmul.mubr.f32.gmra.mxu0 %v1893
      %v2029 = vpop.f32.mrf.mxu0
      %v2030 = vadd.f32 0.0, %v2029
      %v2031 = vpop.f32.mrf.mxu0
      %2032 = vmatprep.mubr.f32.mxu0 0.0
      %2033 = vmatmul.mubr.f32.gmra.mxu0 %v1895
      %v2034 = vpop.f32.mrf.mxu0
      %v2035 = vadd.f32 0.0, %v2034
      %v2036 = vpop.f32.mrf.mxu0
      %2037 = vmatprep.mubr.f32.mxu0 0.0
      %2038 = vmatmul.mubr.f32.gmra.mxu0 %v1897
      %v2039 = vpop.f32.mrf.mxu0
      %v2040 = vadd.f32 0.0, %v2039
      %v2041 = vpop.f32.mrf.mxu0
      %2042 = vmatprep.mubr.f32.mxu0 0.0
      %2043 = vmatmul.mubr.f32.gmra.mxu0 %v1899
      %v2044 = vpop.f32.mrf.mxu0
      %v2045 = vadd.f32 0.0, %v2044
      %v2046 = vpop.f32.mrf.mxu0
      %2047 = vmatprep.mubr.f32.mxu0 0.0
      %2048 = vmatmul.mubr.f32.gmra.mxu0 %v1901
      %v2049 = vpop.f32.mrf.mxu0
      %v2050 = vadd.f32 0.0, %v2049
      %v2051 = vpop.f32.mrf.mxu0
      %2052 = vmatprep.mubr.f32.mxu0 0.0
      %2053 = vmatmul.mubr.f32.gmra.mxu0 %v1903
      %v2054 = vpop.f32.mrf.mxu0
      %v2055 = vadd.f32 0.0, %v2054
      %v2056 = vpop.f32.mrf.mxu0
      %2057 = vmatprep.mubr.f32.mxu0 0.0
      %2058 = vmatmul.mubr.f32.gmra.mxu0 %v1905
      %v2059 = vpop.f32.mrf.mxu0
      %v2060 = vadd.f32 0.0, %v2059
      %v2061 = vpop.f32.mrf.mxu0
      %2062 = vmatprep.mubr.f32.mxu0 0.0
      %2063 = vmatmul.mubr.f32.gmra.mxu0 %v1907
      %v2064 = vpop.f32.mrf.mxu0
      %v2065 = vadd.f32 0.0, %v2064
      %v2066 = vpop.f32.mrf.mxu0
      %2067 = vmatprep.mubr.f32.mxu0 0.0
      %2068 = vmatmul.mubr.f32.gmra.mxu0 %v1909
      %v2069 = vpop.f32.mrf.mxu0
      %v2070 = vadd.f32 0.0, %v2069
      %v2071 = vpop.f32.mrf.mxu0
      %2072 = vmatprep.mubr.f32.mxu0 0.0
      %2073 = vmatmul.mubr.f32.gmra.mxu0 %v1911
      %v2074 = vpop.f32.mrf.mxu0
      %v2075 = vadd.f32 0.0, %v2074
      %v2076 = vpop.f32.mrf.mxu0
      %2077 = vmatprep.mubr.f32.mxu0 0.0
      %2078 = vmatmul.mubr.f32.gmra.mxu0 %v1913
      %v2079 = vpop.f32.mrf.mxu0
      %v2080 = vadd.f32 0.0, %v2079
      %v2081 = vpop.f32.mrf.mxu0
      %2082 = vmatprep.mubr.f32.mxu0 0.0
      %2083 = vmatmul.mubr.f32.gmra.mxu0 %v1915
      %v2084 = vpop.f32.mrf.mxu0
      %v2085 = vadd.f32 0.0, %v2084
      %v2086 = vpop.f32.mrf.mxu0
      %2087 = vmatprep.mubr.f32.mxu0 0.0
      %2088 = vmatmul.mubr.f32.gmra.mxu0 %v1917
      %v2089 = vpop.f32.mrf.mxu0
      %v2090 = vadd.f32 0.0, %v2089
      %v2091 = vpop.f32.mrf.mxu0
      %2092 = vmatprep.mubr.f32.mxu0 0.0
      %2093 = vmatmul.mubr.f32.gmra.mxu0 %v1919
      %v2094 = vpop.f32.mrf.mxu0
      %v2095 = vadd.f32 0.0, %v2094
      %v2096 = vpop.f32.mrf.mxu0
      %2097 = vmatprep.mubr.f32.mxu0 0.0
      %2098 = vmatmul.mubr.f32.gmra.mxu0 %v1921
      %v2099 = vpop.f32.mrf.mxu0
      %v2100 = vadd.f32 0.0, %v2099
      %v2101 = vpop.f32.mrf.mxu0
      %2102 = vmatprep.mubr.f32.mxu0 0.0
      %2103 = vmatmul.mubr.f32.gmra.mxu0 %v1923
      %v2104 = vpop.f32.mrf.mxu0
      %v2105 = vadd.f32 0.0, %v2104
      %v2106 = vpop.f32.mrf.mxu0
      %2107 = vmatprep.mubr.f32.mxu0 0.0
      %2108 = vmatmul.mubr.f32.gmra.mxu0 %v1925
      %v2109 = vpop.f32.mrf.mxu0
      %v2110 = vadd.f32 0.0, %v2109
      %v2111 = vpop.f32.mrf.mxu0
      %2112 = vmatprep.mubr.f32.mxu0 0.0
      %2113 = vmatmul.mubr.f32.gmra.mxu0 %v1927
      %v2114 = vpop.f32.mrf.mxu0
      %v2115 = vadd.f32 0.0, %v2114
      %v2116 = vpop.f32.mrf.mxu0
      %2117 = vmatprep.mubr.f32.mxu0 0.0
      %2118 = vmatmul.mubr.f32.gmra.mxu0 %v1929
      %v2119 = vpop.f32.mrf.mxu0
      %v2120 = vadd.f32 0.0, %v2119
      %v2121 = vpop.f32.mrf.mxu0
      %2122 = vmatprep.mubr.f32.mxu0 0.0
      %2123 = vmatmul.mubr.f32.gmra.mxu0 %v1931
      %v2124 = vpop.f32.mrf.mxu0
      %v2125 = vadd.f32 0.0, %v2124
      %v2126 = vpop.f32.mrf.mxu0
      %2127 = vmatprep.mubr.f32.mxu0 0.0
      %2128 = vmatmul.mubr.f32.gmra.mxu0 %v1933
      %v2129 = vpop.f32.mrf.mxu0
      %v2130 = vadd.f32 0.0, %v2129
      %v2131 = vpop.f32.mrf.mxu0
      %2132 = vmatprep.mubr.f32.mxu0 0.0
      %2133 = vmatmul.mubr.f32.gmra.mxu0 %v1935
      %v2134 = vpop.f32.mrf.mxu0
      %v2135 = vadd.f32 0.0, %v2134
      %v2136 = vpop.f32.mrf.mxu0
      %2137 = vmatprep.mubr.f32.mxu0 0.0
      %2138 = vmatmul.mubr.f32.gmra.mxu0 %v1937
      %v2139 = vpop.f32.mrf.mxu0
      %v2140 = vadd.f32 0.0, %v2139
      %v2141 = vpop.f32.mrf.mxu0
      %2142 = vmatprep.mubr.f32.mxu0 0.0
      %2143 = vmatmul.mubr.f32.gmra.mxu0 %v1939
      %v2144 = vpop.f32.mrf.mxu0
      %v2145 = vadd.f32 0.0, %v2144
      %v2146 = vpop.f32.mrf.mxu0
      %2147 = vmatprep.mubr.f32.mxu0 0.0
      %2148 = vmatmul.mubr.f32.gmra.mxu0 %v1941
      %v2149 = vpop.f32.mrf.mxu0
      %v2150 = vadd.f32 0.0, %v2149
      %v2151 = vpop.f32.mrf.mxu0
      %2152 = vmatprep.mubr.f32.mxu0 0.0
      %2153 = vmatmul.mubr.f32.gmra.mxu0 %v1943
      %v2154 = vpop.f32.mrf.mxu0
      %v2155 = vadd.f32 0.0, %v2154
      %v2156 = vpop.f32.mrf.mxu0
      %2157 = vmatprep.mubr.f32.mxu0 0.0
      %2158 = vmatmul.mubr.f32.gmra.mxu0 %v1945
      %v2159 = vpop.f32.mrf.mxu0
      %v2160 = vadd.f32 0.0, %v2159
      %v2161 = vpop.f32.mrf.mxu0
      %2162 = vmatprep.mubr.f32.mxu0 0.0
      %2163 = vmatmul.mubr.f32.gmra.mxu0 %v1947
      %v2164 = vpop.f32.mrf.mxu0
      %v2165 = vadd.f32 0.0, %v2164
      %v2166 = vpop.f32.mrf.mxu0
      %2167 = vmatprep.mubr.f32.mxu0 0.0
      %2168 = vmatmul.mubr.f32.gmra.mxu0 %v1949
      %v2169 = vpop.f32.mrf.mxu0
      %v2170 = vadd.f32 0.0, %v2169
      %v2171 = vpop.f32.mrf.mxu0
      %2172 = vmatprep.mubr.f32.mxu0 0.0
      %2173 = vmatmul.mubr.f32.gmra.mxu0 %v1951
      %v2174 = vpop.f32.mrf.mxu0
      %v2175 = vadd.f32 0.0, %v2174
      %v2176 = vpop.f32.mrf.mxu0
      %2177 = vmatprep.mubr.f32.mxu0 0.0
      %2178 = vmatmul.mubr.f32.gmra.mxu0 %v1953
      %v2179 = vpop.f32.mrf.mxu0
      %v2180 = vadd.f32 0.0, %v2179
      %v2181 = vpop.f32.mrf.mxu0
      %2182 = vdwg.mxu0
      %v2183 = vadd.f32 %v1652, %v2025
      %v2184 = vadd.f32 %v1657, %v2030
      %v2185 = vadd.f32 %v1662, %v2035
      %v2186 = vadd.f32 %v1667, %v2040
      %v2187 = vadd.f32 %v1672, %v2045
      %v2188 = vadd.f32 %v1677, %v2050
      %v2189 = vadd.f32 %v1682, %v2055
      %v2190 = vadd.f32 %v1687, %v2060
      %v2191 = vadd.f32 %v1692, %v2065
      %v2192 = vadd.f32 %v1697, %v2070
      %v2193 = vadd.f32 %v1702, %v2075
      %v2194 = vadd.f32 %v1707, %v2080
      %v2195 = vadd.f32 %v1712, %v2085
      %v2196 = vadd.f32 %v1717, %v2090
      %v2197 = vadd.f32 %v1722, %v2095
      %v2198 = vadd.f32 %v1727, %v2100
      %v2199 = vadd.f32 %v1732, %v2105
      %v2200 = vadd.f32 %v1737, %v2110
      %v2201 = vadd.f32 %v1742, %v2115
      %v2202 = vadd.f32 %v1747, %v2120
      %v2203 = vadd.f32 %v1752, %v2125
      %v2204 = vadd.f32 %v1757, %v2130
      %v2205 = vadd.f32 %v1762, %v2135
      %v2206 = vadd.f32 %v1767, %v2140
      %v2207 = vadd.f32 %v1772, %v2145
      %v2208 = vadd.f32 %v1777, %v2150
      %v2209 = vadd.f32 %v1782, %v2155
      %v2210 = vadd.f32 %v1787, %v2160
      %v2211 = vadd.f32 %v1792, %v2165
      %v2212 = vadd.f32 %v1797, %v2170
      %v2213 = vadd.f32 %v1802, %v2175
      %v2214 = vadd.f32 %v1807, %v2180
      %v2216 = vsel %vm415, %v1091, 0
      %v2219 = vsel %vm415, %v1092, 0
      %v2222 = vsel %vm577, %v972, 0
      %2224 = vmatprep.subr.mxu0 0.0
      %2225 = vmatpush1.msra.mxu0 0.0
      %2226 = vmatprep.subr.mxu0 0.0
      %2227 = vmatpush1.msra.mxu0 0.0
      %2228 = vmatprep.subr.mxu0 0.0
      %2229 = vmatpush1.msra.mxu0 0.0
      %2230 = vmatprep.subr.mxu0 0.0
      %2231 = vmatpush1.msra.mxu0 0.0
      %2232 = vmatprep.subr.mxu0 0.0
      %2233 = vmatpush1.msra.mxu0 0.0
      %2234 = vmatprep.subr.mxu0 0.0
      %2235 = vmatpush1.msra.mxu0 0.0
      %2236 = vmatprep.subr.mxu0 0.0
      %2237 = vmatpush1.msra.mxu0 0.0
      %2238 = vmatprep.subr.mxu0 0.0
      %2239 = vmatpush1.msra.mxu0 0.0
      %2240 = vmatprep.subr.mxu0 0.0
      %2241 = vmatpush1.msra.mxu0 0.0
      %2242 = vmatprep.subr.mxu0 0.0
      %2243 = vmatpush1.msra.mxu0 0.0
      %2244 = vmatprep.subr.mxu0 0.0
      %2245 = vmatpush1.msra.mxu0 0.0
      %2246 = vmatprep.subr.mxu0 0.0
      %2247 = vmatpush1.msra.mxu0 0.0
      %2248 = vmatprep.subr.mxu0 0.0
      %2249 = vmatpush1.msra.mxu0 0.0
      %2250 = vmatprep.subr.mxu0 0.0
      %2251 = vmatpush1.msra.mxu0 0.0
      %2252 = vmatprep.subr.mxu0 0.0
      %2253 = vmatpush1.msra.mxu0 0.0
      %2254 = vmatprep.subr.mxu0 0.0
      %2255 = vmatpush1.msra.mxu0 %v2222
      %2256 = vmatprep.subr.mxu0 0.0
      %2257 = vmatpush2.msra.mxu0 0.0
      %2258 = vmatprep.subr.mxu0 0.0
      %2259 = vmatpush2.msra.mxu0 0.0
      %2260 = vmatprep.subr.mxu0 0.0
      %2261 = vmatpush2.msra.mxu0 0.0
      %2262 = vmatprep.subr.mxu0 0.0
      %2263 = vmatpush2.msra.mxu0 0.0
      %2264 = vmatprep.subr.mxu0 0.0
      %2265 = vmatpush2.msra.mxu0 0.0
      %2266 = vmatprep.subr.mxu0 0.0
      %2267 = vmatpush2.msra.mxu0 0.0
      %2268 = vmatprep.subr.mxu0 0.0
      %2269 = vmatpush2.msra.mxu0 0.0
      %2270 = vmatprep.subr.mxu0 0.0
      %2271 = vmatpush2.msra.mxu0 0.0
      %2272 = vmatprep.subr.mxu0 0.0
      %2273 = vmatpush2.msra.mxu0 0.0
      %2274 = vmatprep.subr.mxu0 0.0
      %2275 = vmatpush2.msra.mxu0 0.0
      %2276 = vmatprep.subr.mxu0 0.0
      %2277 = vmatpush2.msra.mxu0 0.0
      %2278 = vmatprep.subr.mxu0 0.0
      %2279 = vmatpush2.msra.mxu0 0.0
      %2280 = vmatprep.subr.mxu0 0.0
      %2281 = vmatpush2.msra.mxu0 0.0
      %2282 = vmatprep.subr.mxu0 0.0
      %2283 = vmatpush2.msra.mxu0 0.0
      %2284 = vmatprep.subr.mxu0 0.0
      %2285 = vmatpush2.msra.mxu0 0.0
      %2286 = vmatprep.subr.mxu0 0.0
      %2287 = vmatpush2.msra.mxu0 0.0
      %2288 = vmatprep.mubr.f32.mxu0 0.0
      %2289 = vmatmul.mubr.f32.gmra.mxu0 %v1522
      %v2290 = vpop.f32.mrf.mxu0
      %v2291 = vadd.f32 0.0, %v2290
      %v2292 = vpop.f32.mrf.mxu0
      %2293 = vmatprep.mubr.f32.mxu0 0.0
      %2294 = vmatmul.mubr.f32.gmra.mxu0 %v1524
      %v2295 = vpop.f32.mrf.mxu0
      %v2296 = vadd.f32 0.0, %v2295
      %v2297 = vpop.f32.mrf.mxu0
      %2298 = vmatprep.mubr.f32.mxu0 0.0
      %2299 = vmatmul.mubr.f32.gmra.mxu0 %v1526
      %v2300 = vpop.f32.mrf.mxu0
      %v2301 = vadd.f32 0.0, %v2300
      %v2302 = vpop.f32.mrf.mxu0
      %2303 = vmatprep.mubr.f32.mxu0 0.0
      %2304 = vmatmul.mubr.f32.gmra.mxu0 %v1528
      %v2305 = vpop.f32.mrf.mxu0
      %v2306 = vadd.f32 0.0, %v2305
      %v2307 = vpop.f32.mrf.mxu0
      %2308 = vmatprep.mubr.f32.mxu0 0.0
      %2309 = vmatmul.mubr.f32.gmra.mxu0 %v1530
      %v2310 = vpop.f32.mrf.mxu0
      %v2311 = vadd.f32 0.0, %v2310
      %v2312 = vpop.f32.mrf.mxu0
      %2313 = vmatprep.mubr.f32.mxu0 0.0
      %2314 = vmatmul.mubr.f32.gmra.mxu0 %v1532
      %v2315 = vpop.f32.mrf.mxu0
      %v2316 = vadd.f32 0.0, %v2315
      %v2317 = vpop.f32.mrf.mxu0
      %2318 = vmatprep.mubr.f32.mxu0 0.0
      %2319 = vmatmul.mubr.f32.gmra.mxu0 %v1534
      %v2320 = vpop.f32.mrf.mxu0
      %v2321 = vadd.f32 0.0, %v2320
      %v2322 = vpop.f32.mrf.mxu0
      %2323 = vmatprep.mubr.f32.mxu0 0.0
      %2324 = vmatmul.mubr.f32.gmra.mxu0 %v1536
      %v2325 = vpop.f32.mrf.mxu0
      %v2326 = vadd.f32 0.0, %v2325
      %v2327 = vpop.f32.mrf.mxu0
      %2328 = vmatprep.mubr.f32.mxu0 0.0
      %2329 = vmatmul.mubr.f32.gmra.mxu0 %v1538
      %v2330 = vpop.f32.mrf.mxu0
      %v2331 = vadd.f32 0.0, %v2330
      %v2332 = vpop.f32.mrf.mxu0
      %2333 = vmatprep.mubr.f32.mxu0 0.0
      %2334 = vmatmul.mubr.f32.gmra.mxu0 %v1540
      %v2335 = vpop.f32.mrf.mxu0
      %v2336 = vadd.f32 0.0, %v2335
      %v2337 = vpop.f32.mrf.mxu0
      %2338 = vmatprep.mubr.f32.mxu0 0.0
      %2339 = vmatmul.mubr.f32.gmra.mxu0 %v1542
      %v2340 = vpop.f32.mrf.mxu0
      %v2341 = vadd.f32 0.0, %v2340
      %v2342 = vpop.f32.mrf.mxu0
      %2343 = vmatprep.mubr.f32.mxu0 0.0
      %2344 = vmatmul.mubr.f32.gmra.mxu0 %v1544
      %v2345 = vpop.f32.mrf.mxu0
      %v2346 = vadd.f32 0.0, %v2345
      %v2347 = vpop.f32.mrf.mxu0
      %2348 = vmatprep.mubr.f32.mxu0 0.0
      %2349 = vmatmul.mubr.f32.gmra.mxu0 %v1546
      %v2350 = vpop.f32.mrf.mxu0
      %v2351 = vadd.f32 0.0, %v2350
      %v2352 = vpop.f32.mrf.mxu0
      %2353 = vmatprep.mubr.f32.mxu0 0.0
      %2354 = vmatmul.mubr.f32.gmra.mxu0 %v1548
      %v2355 = vpop.f32.mrf.mxu0
      %v2356 = vadd.f32 0.0, %v2355
      %v2357 = vpop.f32.mrf.mxu0
      %2358 = vmatprep.mubr.f32.mxu0 0.0
      %2359 = vmatmul.mubr.f32.gmra.mxu0 %v1550
      %v2360 = vpop.f32.mrf.mxu0
      %v2361 = vadd.f32 0.0, %v2360
      %v2362 = vpop.f32.mrf.mxu0
      %2363 = vmatprep.mubr.f32.mxu0 0.0
      %2364 = vmatmul.mubr.f32.gmra.mxu0 %v1552
      %v2365 = vpop.f32.mrf.mxu0
      %v2366 = vadd.f32 0.0, %v2365
      %v2367 = vpop.f32.mrf.mxu0
      %2368 = vmatprep.mubr.f32.mxu0 0.0
      %2369 = vmatmul.mubr.f32.gmra.mxu0 %v1554
      %v2370 = vpop.f32.mrf.mxu0
      %v2371 = vadd.f32 0.0, %v2370
      %v2372 = vpop.f32.mrf.mxu0
      %2373 = vmatprep.mubr.f32.mxu0 0.0
      %2374 = vmatmul.mubr.f32.gmra.mxu0 %v1556
      %v2375 = vpop.f32.mrf.mxu0
      %v2376 = vadd.f32 0.0, %v2375
      %v2377 = vpop.f32.mrf.mxu0
      %2378 = vmatprep.mubr.f32.mxu0 0.0
      %2379 = vmatmul.mubr.f32.gmra.mxu0 %v1558
      %v2380 = vpop.f32.mrf.mxu0
      %v2381 = vadd.f32 0.0, %v2380
      %v2382 = vpop.f32.mrf.mxu0
      %2383 = vmatprep.mubr.f32.mxu0 0.0
      %2384 = vmatmul.mubr.f32.gmra.mxu0 %v1560
      %v2385 = vpop.f32.mrf.mxu0
      %v2386 = vadd.f32 0.0, %v2385
      %v2387 = vpop.f32.mrf.mxu0
      %2388 = vmatprep.mubr.f32.mxu0 0.0
      %2389 = vmatmul.mubr.f32.gmra.mxu0 %v1562
      %v2390 = vpop.f32.mrf.mxu0
      %v2391 = vadd.f32 0.0, %v2390
      %v2392 = vpop.f32.mrf.mxu0
      %2393 = vmatprep.mubr.f32.mxu0 0.0
      %2394 = vmatmul.mubr.f32.gmra.mxu0 %v1564
      %v2395 = vpop.f32.mrf.mxu0
      %v2396 = vadd.f32 0.0, %v2395
      %v2397 = vpop.f32.mrf.mxu0
      %2398 = vmatprep.mubr.f32.mxu0 0.0
      %2399 = vmatmul.mubr.f32.gmra.mxu0 %v1566
      %v2400 = vpop.f32.mrf.mxu0
      %v2401 = vadd.f32 0.0, %v2400
      %v2402 = vpop.f32.mrf.mxu0
      %2403 = vmatprep.mubr.f32.mxu0 0.0
      %2404 = vmatmul.mubr.f32.gmra.mxu0 %v1568
      %v2405 = vpop.f32.mrf.mxu0
      %v2406 = vadd.f32 0.0, %v2405
      %v2407 = vpop.f32.mrf.mxu0
      %2408 = vmatprep.mubr.f32.mxu0 0.0
      %2409 = vmatmul.mubr.f32.gmra.mxu0 %v1570
      %v2410 = vpop.f32.mrf.mxu0
      %v2411 = vadd.f32 0.0, %v2410
      %v2412 = vpop.f32.mrf.mxu0
      %2413 = vmatprep.mubr.f32.mxu0 0.0
      %2414 = vmatmul.mubr.f32.gmra.mxu0 %v1572
      %v2415 = vpop.f32.mrf.mxu0
      %v2416 = vadd.f32 0.0, %v2415
      %v2417 = vpop.f32.mrf.mxu0
      %2418 = vmatprep.mubr.f32.mxu0 0.0
      %2419 = vmatmul.mubr.f32.gmra.mxu0 %v1574
      %v2420 = vpop.f32.mrf.mxu0
      %v2421 = vadd.f32 0.0, %v2420
      %v2422 = vpop.f32.mrf.mxu0
      %2423 = vmatprep.mubr.f32.mxu0 0.0
      %2424 = vmatmul.mubr.f32.gmra.mxu0 %v1576
      %v2425 = vpop.f32.mrf.mxu0
      %v2426 = vadd.f32 0.0, %v2425
      %v2427 = vpop.f32.mrf.mxu0
      %2428 = vmatprep.mubr.f32.mxu0 0.0
      %2429 = vmatmul.mubr.f32.gmra.mxu0 %v1578
      %v2430 = vpop.f32.mrf.mxu0
      %v2431 = vadd.f32 0.0, %v2430
      %v2432 = vpop.f32.mrf.mxu0
      %2433 = vmatprep.mubr.f32.mxu0 0.0
      %2434 = vmatmul.mubr.f32.gmra.mxu0 %v1580
      %v2435 = vpop.f32.mrf.mxu0
      %v2436 = vadd.f32 0.0, %v2435
      %v2437 = vpop.f32.mrf.mxu0
      %2438 = vmatprep.mubr.f32.mxu0 0.0
      %2439 = vmatmul.mubr.f32.gmra.mxu0 %v2216
      %v2440 = vpop.f32.mrf.mxu0
      %v2441 = vadd.f32 0.0, %v2440
      %v2442 = vpop.f32.mrf.mxu0
      %2443 = vmatprep.mubr.f32.mxu0 0.0
      %2444 = vmatmul.mubr.f32.gmra.mxu0 %v2219
      %v2445 = vpop.f32.mrf.mxu0
      %v2446 = vadd.f32 0.0, %v2445
      %v2447 = vpop.f32.mrf.mxu0
      %2448 = vdwg.mxu0
      %v2449 = vadd.f32 %v2183, %v2291
      %v2450 = vadd.f32 %v2184, %v2296
      %v2451 = vadd.f32 %v2185, %v2301
      %v2452 = vadd.f32 %v2186, %v2306
      %v2453 = vadd.f32 %v2187, %v2311
      %v2454 = vadd.f32 %v2188, %v2316
      %v2455 = vadd.f32 %v2189, %v2321
      %v2456 = vadd.f32 %v2190, %v2326
      %v2457 = vadd.f32 %v2191, %v2331
      %v2458 = vadd.f32 %v2192, %v2336
      %v2459 = vadd.f32 %v2193, %v2341
      %v2460 = vadd.f32 %v2194, %v2346
      %v2461 = vadd.f32 %v2195, %v2351
      %v2462 = vadd.f32 %v2196, %v2356
      %v2463 = vadd.f32 %v2197, %v2361
      %v2464 = vadd.f32 %v2198, %v2366
      %v2465 = vadd.f32 %v2199, %v2371
      %v2466 = vadd.f32 %v2200, %v2376
      %v2467 = vadd.f32 %v2201, %v2381
      %v2468 = vadd.f32 %v2202, %v2386
      %v2469 = vadd.f32 %v2203, %v2391
      %v2470 = vadd.f32 %v2204, %v2396
      %v2471 = vadd.f32 %v2205, %v2401
      %v2472 = vadd.f32 %v2206, %v2406
      %v2473 = vadd.f32 %v2207, %v2411
      %v2474 = vadd.f32 %v2208, %v2416
      %v2475 = vadd.f32 %v2209, %v2421
      %v2476 = vadd.f32 %v2210, %v2426
      %v2477 = vadd.f32 %v2211, %v2431
      %v2478 = vadd.f32 %v2212, %v2436
      %v2479 = vadd.f32 %v2213, %v2441
      %v2480 = vadd.f32 %v2214, %v2446
      %v2482 = vrot.slane %v1091, 1
      %v2483 = vrot.slane %v1092, 1
      %v2484 = vsel %vm1145, %v2482, %v2483
      %v2485 = vrot.slane %v1093, 1
      %v2486 = vsel %vm1145, %v2483, %v2485
      %v2487 = vsel %vm415, %v2484, 0
      %v2489 = vsel %vm415, %v2486, 0
      %v2492 = vsel %vm577, %v973, 0
      %2494 = vmatprep.subr.mxu0 0.0
      %2495 = vmatpush1.msra.mxu0 0.0
      %2496 = vmatprep.subr.mxu0 0.0
      %2497 = vmatpush1.msra.mxu0 0.0
      %2498 = vmatprep.subr.mxu0 0.0
      %2499 = vmatpush1.msra.mxu0 0.0
      %2500 = vmatprep.subr.mxu0 0.0
      %2501 = vmatpush1.msra.mxu0 0.0
      %2502 = vmatprep.subr.mxu0 0.0
      %2503 = vmatpush1.msra.mxu0 0.0
      %2504 = vmatprep.subr.mxu0 0.0
      %2505 = vmatpush1.msra.mxu0 0.0
      %2506 = vmatprep.subr.mxu0 0.0
      %2507 = vmatpush1.msra.mxu0 0.0
      %2508 = vmatprep.subr.mxu0 0.0
      %2509 = vmatpush1.msra.mxu0 0.0
      %2510 = vmatprep.subr.mxu0 0.0
      %2511 = vmatpush1.msra.mxu0 0.0
      %2512 = vmatprep.subr.mxu0 0.0
      %2513 = vmatpush1.msra.mxu0 0.0
      %2514 = vmatprep.subr.mxu0 0.0
      %2515 = vmatpush1.msra.mxu0 0.0
      %2516 = vmatprep.subr.mxu0 0.0
      %2517 = vmatpush1.msra.mxu0 0.0
      %2518 = vmatprep.subr.mxu0 0.0
      %2519 = vmatpush1.msra.mxu0 0.0
      %2520 = vmatprep.subr.mxu0 0.0
      %2521 = vmatpush1.msra.mxu0 0.0
      %2522 = vmatprep.subr.mxu0 0.0
      %2523 = vmatpush1.msra.mxu0 0.0
      %2524 = vmatprep.subr.mxu0 0.0
      %2525 = vmatpush1.msra.mxu0 %v2492
      %2526 = vmatprep.subr.mxu0 0.0
      %2527 = vmatpush2.msra.mxu0 0.0
      %2528 = vmatprep.subr.mxu0 0.0
      %2529 = vmatpush2.msra.mxu0 0.0
      %2530 = vmatprep.subr.mxu0 0.0
      %2531 = vmatpush2.msra.mxu0 0.0
      %2532 = vmatprep.subr.mxu0 0.0
      %2533 = vmatpush2.msra.mxu0 0.0
      %2534 = vmatprep.subr.mxu0 0.0
      %2535 = vmatpush2.msra.mxu0 0.0
      %2536 = vmatprep.subr.mxu0 0.0
      %2537 = vmatpush2.msra.mxu0 0.0
      %2538 = vmatprep.subr.mxu0 0.0
      %2539 = vmatpush2.msra.mxu0 0.0
      %2540 = vmatprep.subr.mxu0 0.0
      %2541 = vmatpush2.msra.mxu0 0.0
      %2542 = vmatprep.subr.mxu0 0.0
      %2543 = vmatpush2.msra.mxu0 0.0
      %2544 = vmatprep.subr.mxu0 0.0
      %2545 = vmatpush2.msra.mxu0 0.0
      %2546 = vmatprep.subr.mxu0 0.0
      %2547 = vmatpush2.msra.mxu0 0.0
      %2548 = vmatprep.subr.mxu0 0.0
      %2549 = vmatpush2.msra.mxu0 0.0
      %2550 = vmatprep.subr.mxu0 0.0
      %2551 = vmatpush2.msra.mxu0 0.0
      %2552 = vmatprep.subr.mxu0 0.0
      %2553 = vmatpush2.msra.mxu0 0.0
      %2554 = vmatprep.subr.mxu0 0.0
      %2555 = vmatpush2.msra.mxu0 0.0
      %2556 = vmatprep.subr.mxu0 0.0
      %2557 = vmatpush2.msra.mxu0 0.0
      %2558 = vmatprep.mubr.f32.mxu0 0.0
      %2559 = vmatmul.mubr.f32.gmra.mxu0 %v1230
      %v2560 = vpop.f32.mrf.mxu0
      %v2561 = vadd.f32 0.0, %v2560
      %v2562 = vpop.f32.mrf.mxu0
      %2563 = vmatprep.mubr.f32.mxu0 0.0
      %2564 = vmatmul.mubr.f32.gmra.mxu0 %v1232
      %v2565 = vpop.f32.mrf.mxu0
      %v2566 = vadd.f32 0.0, %v2565
      %v2567 = vpop.f32.mrf.mxu0
      %2568 = vmatprep.mubr.f32.mxu0 0.0
      %2569 = vmatmul.mubr.f32.gmra.mxu0 %v1234
      %v2570 = vpop.f32.mrf.mxu0
      %v2571 = vadd.f32 0.0, %v2570
      %v2572 = vpop.f32.mrf.mxu0
      %2573 = vmatprep.mubr.f32.mxu0 0.0
      %2574 = vmatmul.mubr.f32.gmra.mxu0 %v1236
      %v2575 = vpop.f32.mrf.mxu0
      %v2576 = vadd.f32 0.0, %v2575
      %v2577 = vpop.f32.mrf.mxu0
      %2578 = vmatprep.mubr.f32.mxu0 0.0
      %2579 = vmatmul.mubr.f32.gmra.mxu0 %v1238
      %v2580 = vpop.f32.mrf.mxu0
      %v2581 = vadd.f32 0.0, %v2580
      %v2582 = vpop.f32.mrf.mxu0
      %2583 = vmatprep.mubr.f32.mxu0 0.0
      %2584 = vmatmul.mubr.f32.gmra.mxu0 %v1240
      %v2585 = vpop.f32.mrf.mxu0
      %v2586 = vadd.f32 0.0, %v2585
      %v2587 = vpop.f32.mrf.mxu0
      %2588 = vmatprep.mubr.f32.mxu0 0.0
      %2589 = vmatmul.mubr.f32.gmra.mxu0 %v1242
      %v2590 = vpop.f32.mrf.mxu0
      %v2591 = vadd.f32 0.0, %v2590
      %v2592 = vpop.f32.mrf.mxu0
      %2593 = vmatprep.mubr.f32.mxu0 0.0
      %2594 = vmatmul.mubr.f32.gmra.mxu0 %v1244
      %v2595 = vpop.f32.mrf.mxu0
      %v2596 = vadd.f32 0.0, %v2595
      %v2597 = vpop.f32.mrf.mxu0
      %2598 = vmatprep.mubr.f32.mxu0 0.0
      %2599 = vmatmul.mubr.f32.gmra.mxu0 %v1246
      %v2600 = vpop.f32.mrf.mxu0
      %v2601 = vadd.f32 0.0, %v2600
      %v2602 = vpop.f32.mrf.mxu0
      %2603 = vmatprep.mubr.f32.mxu0 0.0
      %2604 = vmatmul.mubr.f32.gmra.mxu0 %v1248
      %v2605 = vpop.f32.mrf.mxu0
      %v2606 = vadd.f32 0.0, %v2605
      %v2607 = vpop.f32.mrf.mxu0
      %2608 = vmatprep.mubr.f32.mxu0 0.0
      %2609 = vmatmul.mubr.f32.gmra.mxu0 %v1250
      %v2610 = vpop.f32.mrf.mxu0
      %v2611 = vadd.f32 0.0, %v2610
      %v2612 = vpop.f32.mrf.mxu0
      %2613 = vmatprep.mubr.f32.mxu0 0.0
      %2614 = vmatmul.mubr.f32.gmra.mxu0 %v1252
      %v2615 = vpop.f32.mrf.mxu0
      %v2616 = vadd.f32 0.0, %v2615
      %v2617 = vpop.f32.mrf.mxu0
      %2618 = vmatprep.mubr.f32.mxu0 0.0
      %2619 = vmatmul.mubr.f32.gmra.mxu0 %v1254
      %v2620 = vpop.f32.mrf.mxu0
      %v2621 = vadd.f32 0.0, %v2620
      %v2622 = vpop.f32.mrf.mxu0
      %2623 = vmatprep.mubr.f32.mxu0 0.0
      %2624 = vmatmul.mubr.f32.gmra.mxu0 %v1256
      %v2625 = vpop.f32.mrf.mxu0
      %v2626 = vadd.f32 0.0, %v2625
      %v2627 = vpop.f32.mrf.mxu0
      %2628 = vmatprep.mubr.f32.mxu0 0.0
      %2629 = vmatmul.mubr.f32.gmra.mxu0 %v1258
      %v2630 = vpop.f32.mrf.mxu0
      %v2631 = vadd.f32 0.0, %v2630
      %v2632 = vpop.f32.mrf.mxu0
      %2633 = vmatprep.mubr.f32.mxu0 0.0
      %2634 = vmatmul.mubr.f32.gmra.mxu0 %v1260
      %v2635 = vpop.f32.mrf.mxu0
      %v2636 = vadd.f32 0.0, %v2635
      %v2637 = vpop.f32.mrf.mxu0
      %2638 = vmatprep.mubr.f32.mxu0 0.0
      %2639 = vmatmul.mubr.f32.gmra.mxu0 %v1262
      %v2640 = vpop.f32.mrf.mxu0
      %v2641 = vadd.f32 0.0, %v2640
      %v2642 = vpop.f32.mrf.mxu0
      %2643 = vmatprep.mubr.f32.mxu0 0.0
      %2644 = vmatmul.mubr.f32.gmra.mxu0 %v1264
      %v2645 = vpop.f32.mrf.mxu0
      %v2646 = vadd.f32 0.0, %v2645
      %v2647 = vpop.f32.mrf.mxu0
      %2648 = vmatprep.mubr.f32.mxu0 0.0
      %2649 = vmatmul.mubr.f32.gmra.mxu0 %v1266
      %v2650 = vpop.f32.mrf.mxu0
      %v2651 = vadd.f32 0.0, %v2650
      %v2652 = vpop.f32.mrf.mxu0
      %2653 = vmatprep.mubr.f32.mxu0 0.0
      %2654 = vmatmul.mubr.f32.gmra.mxu0 %v1268
      %v2655 = vpop.f32.mrf.mxu0
      %v2656 = vadd.f32 0.0, %v2655
      %v2657 = vpop.f32.mrf.mxu0
      %2658 = vmatprep.mubr.f32.mxu0 0.0
      %2659 = vmatmul.mubr.f32.gmra.mxu0 %v1270
      %v2660 = vpop.f32.mrf.mxu0
      %v2661 = vadd.f32 0.0, %v2660
      %v2662 = vpop.f32.mrf.mxu0
      %2663 = vmatprep.mubr.f32.mxu0 0.0
      %2664 = vmatmul.mubr.f32.gmra.mxu0 %v1272
      %v2665 = vpop.f32.mrf.mxu0
      %v2666 = vadd.f32 0.0, %v2665
      %v2667 = vpop.f32.mrf.mxu0
      %2668 = vmatprep.mubr.f32.mxu0 0.0
      %2669 = vmatmul.mubr.f32.gmra.mxu0 %v1274
      %v2670 = vpop.f32.mrf.mxu0
      %v2671 = vadd.f32 0.0, %v2670
      %v2672 = vpop.f32.mrf.mxu0
      %2673 = vmatprep.mubr.f32.mxu0 0.0
      %2674 = vmatmul.mubr.f32.gmra.mxu0 %v1276
      %v2675 = vpop.f32.mrf.mxu0
      %v2676 = vadd.f32 0.0, %v2675
      %v2677 = vpop.f32.mrf.mxu0
      %2678 = vmatprep.mubr.f32.mxu0 0.0
      %2679 = vmatmul.mubr.f32.gmra.mxu0 %v1278
      %v2680 = vpop.f32.mrf.mxu0
      %v2681 = vadd.f32 0.0, %v2680
      %v2682 = vpop.f32.mrf.mxu0
      %2683 = vmatprep.mubr.f32.mxu0 0.0
      %2684 = vmatmul.mubr.f32.gmra.mxu0 %v1280
      %v2685 = vpop.f32.mrf.mxu0
      %v2686 = vadd.f32 0.0, %v2685
      %v2687 = vpop.f32.mrf.mxu0
      %2688 = vmatprep.mubr.f32.mxu0 0.0
      %2689 = vmatmul.mubr.f32.gmra.mxu0 %v1282
      %v2690 = vpop.f32.mrf.mxu0
      %v2691 = vadd.f32 0.0, %v2690
      %v2692 = vpop.f32.mrf.mxu0
      %2693 = vmatprep.mubr.f32.mxu0 0.0
      %2694 = vmatmul.mubr.f32.gmra.mxu0 %v1284
      %v2695 = vpop.f32.mrf.mxu0
      %v2696 = vadd.f32 0.0, %v2695
      %v2697 = vpop.f32.mrf.mxu0
      %2698 = vmatprep.mubr.f32.mxu0 0.0
      %2699 = vmatmul.mubr.f32.gmra.mxu0 %v1286
      %v2700 = vpop.f32.mrf.mxu0
      %v2701 = vadd.f32 0.0, %v2700
      %v2702 = vpop.f32.mrf.mxu0
      %2703 = vmatprep.mubr.f32.mxu0 0.0
      %2704 = vmatmul.mubr.f32.gmra.mxu0 %v1288
      %v2705 = vpop.f32.mrf.mxu0
      %v2706 = vadd.f32 0.0, %v2705
      %v2707 = vpop.f32.mrf.mxu0
      %2708 = vmatprep.mubr.f32.mxu0 0.0
      %2709 = vmatmul.mubr.f32.gmra.mxu0 %v2487
      %v2710 = vpop.f32.mrf.mxu0
      %v2711 = vadd.f32 0.0, %v2710
      %v2712 = vpop.f32.mrf.mxu0
      %2713 = vmatprep.mubr.f32.mxu0 0.0
      %2714 = vmatmul.mubr.f32.gmra.mxu0 %v2489
      %v2715 = vpop.f32.mrf.mxu0
      %v2716 = vadd.f32 0.0, %v2715
      %v2717 = vpop.f32.mrf.mxu0
      %2718 = vdwg.mxu0
      %v2719 = vadd.f32 %v2449, %v2561
      %v2720 = vadd.f32 %v2450, %v2566
      %v2721 = vadd.f32 %v2451, %v2571
      %v2722 = vadd.f32 %v2452, %v2576
      %v2723 = vadd.f32 %v2453, %v2581
      %v2724 = vadd.f32 %v2454, %v2586
      %v2725 = vadd.f32 %v2455, %v2591
      %v2726 = vadd.f32 %v2456, %v2596
      %v2727 = vadd.f32 %v2457, %v2601
      %v2728 = vadd.f32 %v2458, %v2606
      %v2729 = vadd.f32 %v2459, %v2611
      %v2730 = vadd.f32 %v2460, %v2616
      %v2731 = vadd.f32 %v2461, %v2621
      %v2732 = vadd.f32 %v2462, %v2626
      %v2733 = vadd.f32 %v2463, %v2631
      %v2734 = vadd.f32 %v2464, %v2636
      %v2735 = vadd.f32 %v2465, %v2641
      %v2736 = vadd.f32 %v2466, %v2646
      %v2737 = vadd.f32 %v2467, %v2651
      %v2738 = vadd.f32 %v2468, %v2656
      %v2739 = vadd.f32 %v2469, %v2661
      %v2740 = vadd.f32 %v2470, %v2666
      %v2741 = vadd.f32 %v2471, %v2671
      %v2742 = vadd.f32 %v2472, %v2676
      %v2743 = vadd.f32 %v2473, %v2681
      %v2744 = vadd.f32 %v2474, %v2686
      %v2745 = vadd.f32 %v2475, %v2691
      %v2746 = vadd.f32 %v2476, %v2696
      %v2747 = vadd.f32 %v2477, %v2701
      %v2748 = vadd.f32 %v2478, %v2706
      %v2749 = vadd.f32 %v2479, %v2711
      %v2750 = vadd.f32 %v2480, %v2716
      %v2751 = vrot.slane %v1091, 2
      %v2752 = vrot.slane %v1092, 2
      %v2753 = vsel %vm1810, %v2751, %v2752
      %v2754 = vrot.slane %v1093, 2
      %v2755 = vsel %vm1810, %v2752, %v2754
      %v2756 = vsel %vm415, %v2753, 0
      %v2758 = vsel %vm415, %v2755, 0
      %v2761 = vsel %vm577, %v974, 0
      %2763 = vmatprep.subr.mxu0 0.0
      %2764 = vmatpush1.msra.mxu0 0.0
      %2765 = vmatprep.subr.mxu0 0.0
      %2766 = vmatpush1.msra.mxu0 0.0
      %2767 = vmatprep.subr.mxu0 0.0
      %2768 = vmatpush1.msra.mxu0 0.0
      %2769 = vmatprep.subr.mxu0 0.0
      %2770 = vmatpush1.msra.mxu0 0.0
      %2771 = vmatprep.subr.mxu0 0.0
      %2772 = vmatpush1.msra.mxu0 0.0
      %2773 = vmatprep.subr.mxu0 0.0
      %2774 = vmatpush1.msra.mxu0 0.0
      %2775 = vmatprep.subr.mxu0 0.0
      %2776 = vmatpush1.msra.mxu0 0.0
      %2777 = vmatprep.subr.mxu0 0.0
      %2778 = vmatpush1.msra.mxu0 0.0
      %2779 = vmatprep.subr.mxu0 0.0
      %2780 = vmatpush1.msra.mxu0 0.0
      %2781 = vmatprep.subr.mxu0 0.0
      %2782 = vmatpush1.msra.mxu0 0.0
      %2783 = vmatprep.subr.mxu0 0.0
      %2784 = vmatpush1.msra.mxu0 0.0
      %2785 = vmatprep.subr.mxu0 0.0
      %2786 = vmatpush1.msra.mxu0 0.0
      %2787 = vmatprep.subr.mxu0 0.0
      %2788 = vmatpush1.msra.mxu0 0.0
      %2789 = vmatprep.subr.mxu0 0.0
      %2790 = vmatpush1.msra.mxu0 0.0
      %2791 = vmatprep.subr.mxu0 0.0
      %2792 = vmatpush1.msra.mxu0 0.0
      %2793 = vmatprep.subr.mxu0 0.0
      %2794 = vmatpush1.msra.mxu0 %v2761
      %2795 = vmatprep.subr.mxu0 0.0
      %2796 = vmatpush2.msra.mxu0 0.0
      %2797 = vmatprep.subr.mxu0 0.0
      %2798 = vmatpush2.msra.mxu0 0.0
      %2799 = vmatprep.subr.mxu0 0.0
      %2800 = vmatpush2.msra.mxu0 0.0
      %2801 = vmatprep.subr.mxu0 0.0
      %2802 = vmatpush2.msra.mxu0 0.0
      %2803 = vmatprep.subr.mxu0 0.0
      %2804 = vmatpush2.msra.mxu0 0.0
      %2805 = vmatprep.subr.mxu0 0.0
      %2806 = vmatpush2.msra.mxu0 0.0
      %2807 = vmatprep.subr.mxu0 0.0
      %2808 = vmatpush2.msra.mxu0 0.0
      %2809 = vmatprep.subr.mxu0 0.0
      %2810 = vmatpush2.msra.mxu0 0.0
      %2811 = vmatprep.subr.mxu0 0.0
      %2812 = vmatpush2.msra.mxu0 0.0
      %2813 = vmatprep.subr.mxu0 0.0
      %2814 = vmatpush2.msra.mxu0 0.0
      %2815 = vmatprep.subr.mxu0 0.0
      %2816 = vmatpush2.msra.mxu0 0.0
      %2817 = vmatprep.subr.mxu0 0.0
      %2818 = vmatpush2.msra.mxu0 0.0
      %2819 = vmatprep.subr.mxu0 0.0
      %2820 = vmatpush2.msra.mxu0 0.0
      %2821 = vmatprep.subr.mxu0 0.0
      %2822 = vmatpush2.msra.mxu0 0.0
      %2823 = vmatprep.subr.mxu0 0.0
      %2824 = vmatpush2.msra.mxu0 0.0
      %2825 = vmatprep.subr.mxu0 0.0
      %2826 = vmatpush2.msra.mxu0 0.0
      %2827 = vmatprep.mubr.f32.mxu0 0.0
      %2828 = vmatmul.mubr.f32.gmra.mxu0 %v1895
      %v2829 = vpop.f32.mrf.mxu0
      %v2830 = vadd.f32 0.0, %v2829
      %v2831 = vpop.f32.mrf.mxu0
      %2832 = vmatprep.mubr.f32.mxu0 0.0
      %2833 = vmatmul.mubr.f32.gmra.mxu0 %v1897
      %v2834 = vpop.f32.mrf.mxu0
      %v2835 = vadd.f32 0.0, %v2834
      %v2836 = vpop.f32.mrf.mxu0
      %2837 = vmatprep.mubr.f32.mxu0 0.0
      %2838 = vmatmul.mubr.f32.gmra.mxu0 %v1899
      %v2839 = vpop.f32.mrf.mxu0
      %v2840 = vadd.f32 0.0, %v2839
      %v2841 = vpop.f32.mrf.mxu0
      %2842 = vmatprep.mubr.f32.mxu0 0.0
      %2843 = vmatmul.mubr.f32.gmra.mxu0 %v1901
      %v2844 = vpop.f32.mrf.mxu0
      %v2845 = vadd.f32 0.0, %v2844
      %v2846 = vpop.f32.mrf.mxu0
      %2847 = vmatprep.mubr.f32.mxu0 0.0
      %2848 = vmatmul.mubr.f32.gmra.mxu0 %v1903
      %v2849 = vpop.f32.mrf.mxu0
      %v2850 = vadd.f32 0.0, %v2849
      %v2851 = vpop.f32.mrf.mxu0
      %2852 = vmatprep.mubr.f32.mxu0 0.0
      %2853 = vmatmul.mubr.f32.gmra.mxu0 %v1905
      %v2854 = vpop.f32.mrf.mxu0
      %v2855 = vadd.f32 0.0, %v2854
      %v2856 = vpop.f32.mrf.mxu0
      %2857 = vmatprep.mubr.f32.mxu0 0.0
      %2858 = vmatmul.mubr.f32.gmra.mxu0 %v1907
      %v2859 = vpop.f32.mrf.mxu0
      %v2860 = vadd.f32 0.0, %v2859
      %v2861 = vpop.f32.mrf.mxu0
      %2862 = vmatprep.mubr.f32.mxu0 0.0
      %2863 = vmatmul.mubr.f32.gmra.mxu0 %v1909
      %v2864 = vpop.f32.mrf.mxu0
      %v2865 = vadd.f32 0.0, %v2864
      %v2866 = vpop.f32.mrf.mxu0
      %2867 = vmatprep.mubr.f32.mxu0 0.0
      %2868 = vmatmul.mubr.f32.gmra.mxu0 %v1911
      %v2869 = vpop.f32.mrf.mxu0
      %v2870 = vadd.f32 0.0, %v2869
      %v2871 = vpop.f32.mrf.mxu0
      %2872 = vmatprep.mubr.f32.mxu0 0.0
      %2873 = vmatmul.mubr.f32.gmra.mxu0 %v1913
      %v2874 = vpop.f32.mrf.mxu0
      %v2875 = vadd.f32 0.0, %v2874
      %v2876 = vpop.f32.mrf.mxu0
      %2877 = vmatprep.mubr.f32.mxu0 0.0
      %2878 = vmatmul.mubr.f32.gmra.mxu0 %v1915
      %v2879 = vpop.f32.mrf.mxu0
      %v2880 = vadd.f32 0.0, %v2879
      %v2881 = vpop.f32.mrf.mxu0
      %2882 = vmatprep.mubr.f32.mxu0 0.0
      %2883 = vmatmul.mubr.f32.gmra.mxu0 %v1917
      %v2884 = vpop.f32.mrf.mxu0
      %v2885 = vadd.f32 0.0, %v2884
      %v2886 = vpop.f32.mrf.mxu0
      %2887 = vmatprep.mubr.f32.mxu0 0.0
      %2888 = vmatmul.mubr.f32.gmra.mxu0 %v1919
      %v2889 = vpop.f32.mrf.mxu0
      %v2890 = vadd.f32 0.0, %v2889
      %v2891 = vpop.f32.mrf.mxu0
      %2892 = vmatprep.mubr.f32.mxu0 0.0
      %2893 = vmatmul.mubr.f32.gmra.mxu0 %v1921
      %v2894 = vpop.f32.mrf.mxu0
      %v2895 = vadd.f32 0.0, %v2894
      %v2896 = vpop.f32.mrf.mxu0
      %2897 = vmatprep.mubr.f32.mxu0 0.0
      %2898 = vmatmul.mubr.f32.gmra.mxu0 %v1923
      %v2899 = vpop.f32.mrf.mxu0
      %v2900 = vadd.f32 0.0, %v2899
      %v2901 = vpop.f32.mrf.mxu0
      %2902 = vmatprep.mubr.f32.mxu0 0.0
      %2903 = vmatmul.mubr.f32.gmra.mxu0 %v1925
      %v2904 = vpop.f32.mrf.mxu0
      %v2905 = vadd.f32 0.0, %v2904
      %v2906 = vpop.f32.mrf.mxu0
      %2907 = vmatprep.mubr.f32.mxu0 0.0
      %2908 = vmatmul.mubr.f32.gmra.mxu0 %v1927
      %v2909 = vpop.f32.mrf.mxu0
      %v2910 = vadd.f32 0.0, %v2909
      %v2911 = vpop.f32.mrf.mxu0
      %2912 = vmatprep.mubr.f32.mxu0 0.0
      %2913 = vmatmul.mubr.f32.gmra.mxu0 %v1929
      %v2914 = vpop.f32.mrf.mxu0
      %v2915 = vadd.f32 0.0, %v2914
      %v2916 = vpop.f32.mrf.mxu0
      %2917 = vmatprep.mubr.f32.mxu0 0.0
      %2918 = vmatmul.mubr.f32.gmra.mxu0 %v1931
      %v2919 = vpop.f32.mrf.mxu0
      %v2920 = vadd.f32 0.0, %v2919
      %v2921 = vpop.f32.mrf.mxu0
      %2922 = vmatprep.mubr.f32.mxu0 0.0
      %2923 = vmatmul.mubr.f32.gmra.mxu0 %v1933
      %v2924 = vpop.f32.mrf.mxu0
      %v2925 = vadd.f32 0.0, %v2924
      %v2926 = vpop.f32.mrf.mxu0
      %2927 = vmatprep.mubr.f32.mxu0 0.0
      %2928 = vmatmul.mubr.f32.gmra.mxu0 %v1935
      %v2929 = vpop.f32.mrf.mxu0
      %v2930 = vadd.f32 0.0, %v2929
      %v2931 = vpop.f32.mrf.mxu0
      %2932 = vmatprep.mubr.f32.mxu0 0.0
      %2933 = vmatmul.mubr.f32.gmra.mxu0 %v1937
      %v2934 = vpop.f32.mrf.mxu0
      %v2935 = vadd.f32 0.0, %v2934
      %v2936 = vpop.f32.mrf.mxu0
      %2937 = vmatprep.mubr.f32.mxu0 0.0
      %2938 = vmatmul.mubr.f32.gmra.mxu0 %v1939
      %v2939 = vpop.f32.mrf.mxu0
      %v2940 = vadd.f32 0.0, %v2939
      %v2941 = vpop.f32.mrf.mxu0
      %2942 = vmatprep.mubr.f32.mxu0 0.0
      %2943 = vmatmul.mubr.f32.gmra.mxu0 %v1941
      %v2944 = vpop.f32.mrf.mxu0
      %v2945 = vadd.f32 0.0, %v2944
      %v2946 = vpop.f32.mrf.mxu0
      %2947 = vmatprep.mubr.f32.mxu0 0.0
      %2948 = vmatmul.mubr.f32.gmra.mxu0 %v1943
      %v2949 = vpop.f32.mrf.mxu0
      %v2950 = vadd.f32 0.0, %v2949
      %v2951 = vpop.f32.mrf.mxu0
      %2952 = vmatprep.mubr.f32.mxu0 0.0
      %2953 = vmatmul.mubr.f32.gmra.mxu0 %v1945
      %v2954 = vpop.f32.mrf.mxu0
      %v2955 = vadd.f32 0.0, %v2954
      %v2956 = vpop.f32.mrf.mxu0
      %2957 = vmatprep.mubr.f32.mxu0 0.0
      %2958 = vmatmul.mubr.f32.gmra.mxu0 %v1947
      %v2959 = vpop.f32.mrf.mxu0
      %v2960 = vadd.f32 0.0, %v2959
      %v2961 = vpop.f32.mrf.mxu0
      %2962 = vmatprep.mubr.f32.mxu0 0.0
      %2963 = vmatmul.mubr.f32.gmra.mxu0 %v1949
      %v2964 = vpop.f32.mrf.mxu0
      %v2965 = vadd.f32 0.0, %v2964
      %v2966 = vpop.f32.mrf.mxu0
      %2967 = vmatprep.mubr.f32.mxu0 0.0
      %2968 = vmatmul.mubr.f32.gmra.mxu0 %v1951
      %v2969 = vpop.f32.mrf.mxu0
      %v2970 = vadd.f32 0.0, %v2969
      %v2971 = vpop.f32.mrf.mxu0
      %2972 = vmatprep.mubr.f32.mxu0 0.0
      %2973 = vmatmul.mubr.f32.gmra.mxu0 %v1953
      %v2974 = vpop.f32.mrf.mxu0
      %v2975 = vadd.f32 0.0, %v2974
      %v2976 = vpop.f32.mrf.mxu0
      %2977 = vmatprep.mubr.f32.mxu0 0.0
      %2978 = vmatmul.mubr.f32.gmra.mxu0 %v2756
      %v2979 = vpop.f32.mrf.mxu0
      %v2980 = vadd.f32 0.0, %v2979
      %v2981 = vpop.f32.mrf.mxu0
      %2982 = vmatprep.mubr.f32.mxu0 0.0
      %2983 = vmatmul.mubr.f32.gmra.mxu0 %v2758
      %v2984 = vpop.f32.mrf.mxu0
      %v2985 = vadd.f32 0.0, %v2984
      %v2986 = vpop.f32.mrf.mxu0
      %2987 = vdwg.mxu0
      %v2988 = vadd.f32 %v2719, %v2830
      %v2989 = vadd.f32 %v2720, %v2835
      %v2990 = vadd.f32 %v2721, %v2840
      %v2991 = vadd.f32 %v2722, %v2845
      %v2992 = vadd.f32 %v2723, %v2850
      %v2993 = vadd.f32 %v2724, %v2855
      %v2994 = vadd.f32 %v2725, %v2860
      %v2995 = vadd.f32 %v2726, %v2865
      %v2996 = vadd.f32 %v2727, %v2870
      %v2997 = vadd.f32 %v2728, %v2875
      %v2998 = vadd.f32 %v2729, %v2880
      %v2999 = vadd.f32 %v2730, %v2885
      %v3000 = vadd.f32 %v2731, %v2890
      %v3001 = vadd.f32 %v2732, %v2895
      %v3002 = vadd.f32 %v2733, %v2900
      %v3003 = vadd.f32 %v2734, %v2905
      %v3004 = vadd.f32 %v2735, %v2910
      %v3005 = vadd.f32 %v2736, %v2915
      %v3006 = vadd.f32 %v2737, %v2920
      %v3007 = vadd.f32 %v2738, %v2925
      %v3008 = vadd.f32 %v2739, %v2930
      %v3009 = vadd.f32 %v2740, %v2935
      %v3010 = vadd.f32 %v2741, %v2940
      %v3011 = vadd.f32 %v2742, %v2945
      %v3012 = vadd.f32 %v2743, %v2950
      %v3013 = vadd.f32 %v2744, %v2955
      %v3014 = vadd.f32 %v2745, %v2960
      %v3015 = vadd.f32 %v2746, %v2965
      %v3016 = vadd.f32 %v2747, %v2970
      %v3017 = vadd.f32 %v2748, %v2975
      %v3018 = vadd.f32 %v2749, %v2980
      %v3019 = vadd.f32 %v2750, %v2985
      %v3021 = vsel %vm415, %v1094, 0
      %v3024 = vsel %vm415, %v1095, 0
      %v3027 = vsel %vm577, %v975, 0
      %3029 = vmatprep.subr.mxu0 0.0
      %3030 = vmatpush1.msra.mxu0 0.0
      %3031 = vmatprep.subr.mxu0 0.0
      %3032 = vmatpush1.msra.mxu0 0.0
      %3033 = vmatprep.subr.mxu0 0.0
      %3034 = vmatpush1.msra.mxu0 0.0
      %3035 = vmatprep.subr.mxu0 0.0
      %3036 = vmatpush1.msra.mxu0 0.0
      %3037 = vmatprep.subr.mxu0 0.0
      %3038 = vmatpush1.msra.mxu0 0.0
      %3039 = vmatprep.subr.mxu0 0.0
      %3040 = vmatpush1.msra.mxu0 0.0
      %3041 = vmatprep.subr.mxu0 0.0
      %3042 = vmatpush1.msra.mxu0 0.0
      %3043 = vmatprep.subr.mxu0 0.0
      %3044 = vmatpush1.msra.mxu0 0.0
      %3045 = vmatprep.subr.mxu0 0.0
      %3046 = vmatpush1.msra.mxu0 0.0
      %3047 = vmatprep.subr.mxu0 0.0
      %3048 = vmatpush1.msra.mxu0 0.0
      %3049 = vmatprep.subr.mxu0 0.0
      %3050 = vmatpush1.msra.mxu0 0.0
      %3051 = vmatprep.subr.mxu0 0.0
      %3052 = vmatpush1.msra.mxu0 0.0
      %3053 = vmatprep.subr.mxu0 0.0
      %3054 = vmatpush1.msra.mxu0 0.0
      %3055 = vmatprep.subr.mxu0 0.0
      %3056 = vmatpush1.msra.mxu0 0.0
      %3057 = vmatprep.subr.mxu0 0.0
      %3058 = vmatpush1.msra.mxu0 0.0
      %3059 = vmatprep.subr.mxu0 0.0
      %3060 = vmatpush1.msra.mxu0 %v3027
      %3061 = vmatprep.subr.mxu0 0.0
      %3062 = vmatpush2.msra.mxu0 0.0
      %3063 = vmatprep.subr.mxu0 0.0
      %3064 = vmatpush2.msra.mxu0 0.0
      %3065 = vmatprep.subr.mxu0 0.0
      %3066 = vmatpush2.msra.mxu0 0.0
      %3067 = vmatprep.subr.mxu0 0.0
      %3068 = vmatpush2.msra.mxu0 0.0
      %3069 = vmatprep.subr.mxu0 0.0
      %3070 = vmatpush2.msra.mxu0 0.0
      %3071 = vmatprep.subr.mxu0 0.0
      %3072 = vmatpush2.msra.mxu0 0.0
      %3073 = vmatprep.subr.mxu0 0.0
      %3074 = vmatpush2.msra.mxu0 0.0
      %3075 = vmatprep.subr.mxu0 0.0
      %3076 = vmatpush2.msra.mxu0 0.0
      %3077 = vmatprep.subr.mxu0 0.0
      %3078 = vmatpush2.msra.mxu0 0.0
      %3079 = vmatprep.subr.mxu0 0.0
      %3080 = vmatpush2.msra.mxu0 0.0
      %3081 = vmatprep.subr.mxu0 0.0
      %3082 = vmatpush2.msra.mxu0 0.0
      %3083 = vmatprep.subr.mxu0 0.0
      %3084 = vmatpush2.msra.mxu0 0.0
      %3085 = vmatprep.subr.mxu0 0.0
      %3086 = vmatpush2.msra.mxu0 0.0
      %3087 = vmatprep.subr.mxu0 0.0
      %3088 = vmatpush2.msra.mxu0 0.0
      %3089 = vmatprep.subr.mxu0 0.0
      %3090 = vmatpush2.msra.mxu0 0.0
      %3091 = vmatprep.subr.mxu0 0.0
      %3092 = vmatpush2.msra.mxu0 0.0
      %3093 = vmatprep.mubr.f32.mxu0 0.0
      %3094 = vmatmul.mubr.f32.gmra.mxu0 %v1526
      %v3095 = vpop.f32.mrf.mxu0
      %v3096 = vadd.f32 0.0, %v3095
      %v3097 = vpop.f32.mrf.mxu0
      %3098 = vmatprep.mubr.f32.mxu0 0.0
      %3099 = vmatmul.mubr.f32.gmra.mxu0 %v1528
      %v3100 = vpop.f32.mrf.mxu0
      %v3101 = vadd.f32 0.0, %v3100
      %v3102 = vpop.f32.mrf.mxu0
      %3103 = vmatprep.mubr.f32.mxu0 0.0
      %3104 = vmatmul.mubr.f32.gmra.mxu0 %v1530
      %v3105 = vpop.f32.mrf.mxu0
      %v3106 = vadd.f32 0.0, %v3105
      %v3107 = vpop.f32.mrf.mxu0
      %3108 = vmatprep.mubr.f32.mxu0 0.0
      %3109 = vmatmul.mubr.f32.gmra.mxu0 %v1532
      %v3110 = vpop.f32.mrf.mxu0
      %v3111 = vadd.f32 0.0, %v3110
      %v3112 = vpop.f32.mrf.mxu0
      %3113 = vmatprep.mubr.f32.mxu0 0.0
      %3114 = vmatmul.mubr.f32.gmra.mxu0 %v1534
      %v3115 = vpop.f32.mrf.mxu0
      %v3116 = vadd.f32 0.0, %v3115
      %v3117 = vpop.f32.mrf.mxu0
      %3118 = vmatprep.mubr.f32.mxu0 0.0
      %3119 = vmatmul.mubr.f32.gmra.mxu0 %v1536
      %v3120 = vpop.f32.mrf.mxu0
      %v3121 = vadd.f32 0.0, %v3120
      %v3122 = vpop.f32.mrf.mxu0
      %3123 = vmatprep.mubr.f32.mxu0 0.0
      %3124 = vmatmul.mubr.f32.gmra.mxu0 %v1538
      %v3125 = vpop.f32.mrf.mxu0
      %v3126 = vadd.f32 0.0, %v3125
      %v3127 = vpop.f32.mrf.mxu0
      %3128 = vmatprep.mubr.f32.mxu0 0.0
      %3129 = vmatmul.mubr.f32.gmra.mxu0 %v1540
      %v3130 = vpop.f32.mrf.mxu0
      %v3131 = vadd.f32 0.0, %v3130
      %v3132 = vpop.f32.mrf.mxu0
      %3133 = vmatprep.mubr.f32.mxu0 0.0
      %3134 = vmatmul.mubr.f32.gmra.mxu0 %v1542
      %v3135 = vpop.f32.mrf.mxu0
      %v3136 = vadd.f32 0.0, %v3135
      %v3137 = vpop.f32.mrf.mxu0
      %3138 = vmatprep.mubr.f32.mxu0 0.0
      %3139 = vmatmul.mubr.f32.gmra.mxu0 %v1544
      %v3140 = vpop.f32.mrf.mxu0
      %v3141 = vadd.f32 0.0, %v3140
      %v3142 = vpop.f32.mrf.mxu0
      %3143 = vmatprep.mubr.f32.mxu0 0.0
      %3144 = vmatmul.mubr.f32.gmra.mxu0 %v1546
      %v3145 = vpop.f32.mrf.mxu0
      %v3146 = vadd.f32 0.0, %v3145
      %v3147 = vpop.f32.mrf.mxu0
      %3148 = vmatprep.mubr.f32.mxu0 0.0
      %3149 = vmatmul.mubr.f32.gmra.mxu0 %v1548
      %v3150 = vpop.f32.mrf.mxu0
      %v3151 = vadd.f32 0.0, %v3150
      %v3152 = vpop.f32.mrf.mxu0
      %3153 = vmatprep.mubr.f32.mxu0 0.0
      %3154 = vmatmul.mubr.f32.gmra.mxu0 %v1550
      %v3155 = vpop.f32.mrf.mxu0
      %v3156 = vadd.f32 0.0, %v3155
      %v3157 = vpop.f32.mrf.mxu0
      %3158 = vmatprep.mubr.f32.mxu0 0.0
      %3159 = vmatmul.mubr.f32.gmra.mxu0 %v1552
      %v3160 = vpop.f32.mrf.mxu0
      %v3161 = vadd.f32 0.0, %v3160
      %v3162 = vpop.f32.mrf.mxu0
      %3163 = vmatprep.mubr.f32.mxu0 0.0
      %3164 = vmatmul.mubr.f32.gmra.mxu0 %v1554
      %v3165 = vpop.f32.mrf.mxu0
      %v3166 = vadd.f32 0.0, %v3165
      %v3167 = vpop.f32.mrf.mxu0
      %3168 = vmatprep.mubr.f32.mxu0 0.0
      %3169 = vmatmul.mubr.f32.gmra.mxu0 %v1556
      %v3170 = vpop.f32.mrf.mxu0
      %v3171 = vadd.f32 0.0, %v3170
      %v3172 = vpop.f32.mrf.mxu0
      %3173 = vmatprep.mubr.f32.mxu0 0.0
      %3174 = vmatmul.mubr.f32.gmra.mxu0 %v1558
      %v3175 = vpop.f32.mrf.mxu0
      %v3176 = vadd.f32 0.0, %v3175
      %v3177 = vpop.f32.mrf.mxu0
      %3178 = vmatprep.mubr.f32.mxu0 0.0
      %3179 = vmatmul.mubr.f32.gmra.mxu0 %v1560
      %v3180 = vpop.f32.mrf.mxu0
      %v3181 = vadd.f32 0.0, %v3180
      %v3182 = vpop.f32.mrf.mxu0
      %3183 = vmatprep.mubr.f32.mxu0 0.0
      %3184 = vmatmul.mubr.f32.gmra.mxu0 %v1562
      %v3185 = vpop.f32.mrf.mxu0
      %v3186 = vadd.f32 0.0, %v3185
      %v3187 = vpop.f32.mrf.mxu0
      %3188 = vmatprep.mubr.f32.mxu0 0.0
      %3189 = vmatmul.mubr.f32.gmra.mxu0 %v1564
      %v3190 = vpop.f32.mrf.mxu0
      %v3191 = vadd.f32 0.0, %v3190
      %v3192 = vpop.f32.mrf.mxu0
      %3193 = vmatprep.mubr.f32.mxu0 0.0
      %3194 = vmatmul.mubr.f32.gmra.mxu0 %v1566
      %v3195 = vpop.f32.mrf.mxu0
      %v3196 = vadd.f32 0.0, %v3195
      %v3197 = vpop.f32.mrf.mxu0
      %3198 = vmatprep.mubr.f32.mxu0 0.0
      %3199 = vmatmul.mubr.f32.gmra.mxu0 %v1568
      %v3200 = vpop.f32.mrf.mxu0
      %v3201 = vadd.f32 0.0, %v3200
      %v3202 = vpop.f32.mrf.mxu0
      %3203 = vmatprep.mubr.f32.mxu0 0.0
      %3204 = vmatmul.mubr.f32.gmra.mxu0 %v1570
      %v3205 = vpop.f32.mrf.mxu0
      %v3206 = vadd.f32 0.0, %v3205
      %v3207 = vpop.f32.mrf.mxu0
      %3208 = vmatprep.mubr.f32.mxu0 0.0
      %3209 = vmatmul.mubr.f32.gmra.mxu0 %v1572
      %v3210 = vpop.f32.mrf.mxu0
      %v3211 = vadd.f32 0.0, %v3210
      %v3212 = vpop.f32.mrf.mxu0
      %3213 = vmatprep.mubr.f32.mxu0 0.0
      %3214 = vmatmul.mubr.f32.gmra.mxu0 %v1574
      %v3215 = vpop.f32.mrf.mxu0
      %v3216 = vadd.f32 0.0, %v3215
      %v3217 = vpop.f32.mrf.mxu0
      %3218 = vmatprep.mubr.f32.mxu0 0.0
      %3219 = vmatmul.mubr.f32.gmra.mxu0 %v1576
      %v3220 = vpop.f32.mrf.mxu0
      %v3221 = vadd.f32 0.0, %v3220
      %v3222 = vpop.f32.mrf.mxu0
      %3223 = vmatprep.mubr.f32.mxu0 0.0
      %3224 = vmatmul.mubr.f32.gmra.mxu0 %v1578
      %v3225 = vpop.f32.mrf.mxu0
      %v3226 = vadd.f32 0.0, %v3225
      %v3227 = vpop.f32.mrf.mxu0
      %3228 = vmatprep.mubr.f32.mxu0 0.0
      %3229 = vmatmul.mubr.f32.gmra.mxu0 %v1580
      %v3230 = vpop.f32.mrf.mxu0
      %v3231 = vadd.f32 0.0, %v3230
      %v3232 = vpop.f32.mrf.mxu0
      %3233 = vmatprep.mubr.f32.mxu0 0.0
      %3234 = vmatmul.mubr.f32.gmra.mxu0 %v2216
      %v3235 = vpop.f32.mrf.mxu0
      %v3236 = vadd.f32 0.0, %v3235
      %v3237 = vpop.f32.mrf.mxu0
      %3238 = vmatprep.mubr.f32.mxu0 0.0
      %3239 = vmatmul.mubr.f32.gmra.mxu0 %v2219
      %v3240 = vpop.f32.mrf.mxu0
      %v3241 = vadd.f32 0.0, %v3240
      %v3242 = vpop.f32.mrf.mxu0
      %3243 = vmatprep.mubr.f32.mxu0 0.0
      %3244 = vmatmul.mubr.f32.gmra.mxu0 %v3021
      %v3245 = vpop.f32.mrf.mxu0
      %v3246 = vadd.f32 0.0, %v3245
      %v3247 = vpop.f32.mrf.mxu0
      %3248 = vmatprep.mubr.f32.mxu0 0.0
      %3249 = vmatmul.mubr.f32.gmra.mxu0 %v3024
      %v3250 = vpop.f32.mrf.mxu0
      %v3251 = vadd.f32 0.0, %v3250
      %v3252 = vpop.f32.mrf.mxu0
      %3253 = vdwg.mxu0
      %v3254 = vadd.f32 %v2988, %v3096
      %v3255 = vadd.f32 %v2989, %v3101
      %v3256 = vadd.f32 %v2990, %v3106
      %v3257 = vadd.f32 %v2991, %v3111
      %v3258 = vadd.f32 %v2992, %v3116
      %v3259 = vadd.f32 %v2993, %v3121
      %v3260 = vadd.f32 %v2994, %v3126
      %v3261 = vadd.f32 %v2995, %v3131
      %v3262 = vadd.f32 %v2996, %v3136
      %v3263 = vadd.f32 %v2997, %v3141
      %v3264 = vadd.f32 %v2998, %v3146
      %v3265 = vadd.f32 %v2999, %v3151
      %v3266 = vadd.f32 %v3000, %v3156
      %v3267 = vadd.f32 %v3001, %v3161
      %v3268 = vadd.f32 %v3002, %v3166
      %v3269 = vadd.f32 %v3003, %v3171
      %v3270 = vadd.f32 %v3004, %v3176
      %v3271 = vadd.f32 %v3005, %v3181
      %v3272 = vadd.f32 %v3006, %v3186
      %v3273 = vadd.f32 %v3007, %v3191
      %v3274 = vadd.f32 %v3008, %v3196
      %v3275 = vadd.f32 %v3009, %v3201
      %v3276 = vadd.f32 %v3010, %v3206
      %v3277 = vadd.f32 %v3011, %v3211
      %v3278 = vadd.f32 %v3012, %v3216
      %v3279 = vadd.f32 %v3013, %v3221
      %v3280 = vadd.f32 %v3014, %v3226
      %v3281 = vadd.f32 %v3015, %v3231
      %v3282 = vadd.f32 %v3016, %v3236
      %v3283 = vadd.f32 %v3017, %v3241
      %v3284 = vadd.f32 %v3018, %v3246
      %v3285 = vadd.f32 %v3019, %v3251
      %v3287 = vrot.slane %v1094, 1
      %v3288 = vrot.slane %v1095, 1
      %v3289 = vsel %vm1145, %v3287, %v3288
      %v3290 = vrot.slane %v1096, 1
      %v3291 = vsel %vm1145, %v3288, %v3290
      %v3292 = vsel %vm415, %v3289, 0
      %v3294 = vsel %vm415, %v3291, 0
      %v3297 = vsel %vm577, %v976, 0
      %3299 = vmatprep.subr.mxu0 0.0
      %3300 = vmatpush1.msra.mxu0 0.0
      %3301 = vmatprep.subr.mxu0 0.0
      %3302 = vmatpush1.msra.mxu0 0.0
      %3303 = vmatprep.subr.mxu0 0.0
      %3304 = vmatpush1.msra.mxu0 0.0
      %3305 = vmatprep.subr.mxu0 0.0
      %3306 = vmatpush1.msra.mxu0 0.0
      %3307 = vmatprep.subr.mxu0 0.0
      %3308 = vmatpush1.msra.mxu0 0.0
      %3309 = vmatprep.subr.mxu0 0.0
      %3310 = vmatpush1.msra.mxu0 0.0
      %3311 = vmatprep.subr.mxu0 0.0
      %3312 = vmatpush1.msra.mxu0 0.0
      %3313 = vmatprep.subr.mxu0 0.0
      %3314 = vmatpush1.msra.mxu0 0.0
      %3315 = vmatprep.subr.mxu0 0.0
      %3316 = vmatpush1.msra.mxu0 0.0
      %3317 = vmatprep.subr.mxu0 0.0
      %3318 = vmatpush1.msra.mxu0 0.0
      %3319 = vmatprep.subr.mxu0 0.0
      %3320 = vmatpush1.msra.mxu0 0.0
      %3321 = vmatprep.subr.mxu0 0.0
      %3322 = vmatpush1.msra.mxu0 0.0
      %3323 = vmatprep.subr.mxu0 0.0
      %3324 = vmatpush1.msra.mxu0 0.0
      %3325 = vmatprep.subr.mxu0 0.0
      %3326 = vmatpush1.msra.mxu0 0.0
      %3327 = vmatprep.subr.mxu0 0.0
      %3328 = vmatpush1.msra.mxu0 0.0
      %3329 = vmatprep.subr.mxu0 0.0
      %3330 = vmatpush1.msra.mxu0 %v3297
      %3331 = vmatprep.subr.mxu0 0.0
      %3332 = vmatpush2.msra.mxu0 0.0
      %3333 = vmatprep.subr.mxu0 0.0
      %3334 = vmatpush2.msra.mxu0 0.0
      %3335 = vmatprep.subr.mxu0 0.0
      %3336 = vmatpush2.msra.mxu0 0.0
      %3337 = vmatprep.subr.mxu0 0.0
      %3338 = vmatpush2.msra.mxu0 0.0
      %3339 = vmatprep.subr.mxu0 0.0
      %3340 = vmatpush2.msra.mxu0 0.0
      %3341 = vmatprep.subr.mxu0 0.0
      %3342 = vmatpush2.msra.mxu0 0.0
      %3343 = vmatprep.subr.mxu0 0.0
      %3344 = vmatpush2.msra.mxu0 0.0
      %3345 = vmatprep.subr.mxu0 0.0
      %3346 = vmatpush2.msra.mxu0 0.0
      %3347 = vmatprep.subr.mxu0 0.0
      %3348 = vmatpush2.msra.mxu0 0.0
      %3349 = vmatprep.subr.mxu0 0.0
      %3350 = vmatpush2.msra.mxu0 0.0
      %3351 = vmatprep.subr.mxu0 0.0
      %3352 = vmatpush2.msra.mxu0 0.0
      %3353 = vmatprep.subr.mxu0 0.0
      %3354 = vmatpush2.msra.mxu0 0.0
      %3355 = vmatprep.subr.mxu0 0.0
      %3356 = vmatpush2.msra.mxu0 0.0
      %3357 = vmatprep.subr.mxu0 0.0
      %3358 = vmatpush2.msra.mxu0 0.0
      %3359 = vmatprep.subr.mxu0 0.0
      %3360 = vmatpush2.msra.mxu0 0.0
      %3361 = vmatprep.subr.mxu0 0.0
      %3362 = vmatpush2.msra.mxu0 0.0
      %3363 = vmatprep.mubr.f32.mxu0 0.0
      %3364 = vmatmul.mubr.f32.gmra.mxu0 %v1234
      %v3365 = vpop.f32.mrf.mxu0
      %v3366 = vadd.f32 0.0, %v3365
      %v3367 = vpop.f32.mrf.mxu0
      %3368 = vmatprep.mubr.f32.mxu0 0.0
      %3369 = vmatmul.mubr.f32.gmra.mxu0 %v1236
      %v3370 = vpop.f32.mrf.mxu0
      %v3371 = vadd.f32 0.0, %v3370
      %v3372 = vpop.f32.mrf.mxu0
      %3373 = vmatprep.mubr.f32.mxu0 0.0
      %3374 = vmatmul.mubr.f32.gmra.mxu0 %v1238
      %v3375 = vpop.f32.mrf.mxu0
      %v3376 = vadd.f32 0.0, %v3375
      %v3377 = vpop.f32.mrf.mxu0
      %3378 = vmatprep.mubr.f32.mxu0 0.0
      %3379 = vmatmul.mubr.f32.gmra.mxu0 %v1240
      %v3380 = vpop.f32.mrf.mxu0
      %v3381 = vadd.f32 0.0, %v3380
      %v3382 = vpop.f32.mrf.mxu0
      %3383 = vmatprep.mubr.f32.mxu0 0.0
      %3384 = vmatmul.mubr.f32.gmra.mxu0 %v1242
      %v3385 = vpop.f32.mrf.mxu0
      %v3386 = vadd.f32 0.0, %v3385
      %v3387 = vpop.f32.mrf.mxu0
      %3388 = vmatprep.mubr.f32.mxu0 0.0
      %3389 = vmatmul.mubr.f32.gmra.mxu0 %v1244
      %v3390 = vpop.f32.mrf.mxu0
      %v3391 = vadd.f32 0.0, %v3390
      %v3392 = vpop.f32.mrf.mxu0
      %3393 = vmatprep.mubr.f32.mxu0 0.0
      %3394 = vmatmul.mubr.f32.gmra.mxu0 %v1246
      %v3395 = vpop.f32.mrf.mxu0
      %v3396 = vadd.f32 0.0, %v3395
      %v3397 = vpop.f32.mrf.mxu0
      %3398 = vmatprep.mubr.f32.mxu0 0.0
      %3399 = vmatmul.mubr.f32.gmra.mxu0 %v1248
      %v3400 = vpop.f32.mrf.mxu0
      %v3401 = vadd.f32 0.0, %v3400
      %v3402 = vpop.f32.mrf.mxu0
      %3403 = vmatprep.mubr.f32.mxu0 0.0
      %3404 = vmatmul.mubr.f32.gmra.mxu0 %v1250
      %v3405 = vpop.f32.mrf.mxu0
      %v3406 = vadd.f32 0.0, %v3405
      %v3407 = vpop.f32.mrf.mxu0
      %3408 = vmatprep.mubr.f32.mxu0 0.0
      %3409 = vmatmul.mubr.f32.gmra.mxu0 %v1252
      %v3410 = vpop.f32.mrf.mxu0
      %v3411 = vadd.f32 0.0, %v3410
      %v3412 = vpop.f32.mrf.mxu0
      %3413 = vmatprep.mubr.f32.mxu0 0.0
      %3414 = vmatmul.mubr.f32.gmra.mxu0 %v1254
      %v3415 = vpop.f32.mrf.mxu0
      %v3416 = vadd.f32 0.0, %v3415
      %v3417 = vpop.f32.mrf.mxu0
      %3418 = vmatprep.mubr.f32.mxu0 0.0
      %3419 = vmatmul.mubr.f32.gmra.mxu0 %v1256
      %v3420 = vpop.f32.mrf.mxu0
      %v3421 = vadd.f32 0.0, %v3420
      %v3422 = vpop.f32.mrf.mxu0
      %3423 = vmatprep.mubr.f32.mxu0 0.0
      %3424 = vmatmul.mubr.f32.gmra.mxu0 %v1258
      %v3425 = vpop.f32.mrf.mxu0
      %v3426 = vadd.f32 0.0, %v3425
      %v3427 = vpop.f32.mrf.mxu0
      %3428 = vmatprep.mubr.f32.mxu0 0.0
      %3429 = vmatmul.mubr.f32.gmra.mxu0 %v1260
      %v3430 = vpop.f32.mrf.mxu0
      %v3431 = vadd.f32 0.0, %v3430
      %v3432 = vpop.f32.mrf.mxu0
      %3433 = vmatprep.mubr.f32.mxu0 0.0
      %3434 = vmatmul.mubr.f32.gmra.mxu0 %v1262
      %v3435 = vpop.f32.mrf.mxu0
      %v3436 = vadd.f32 0.0, %v3435
      %v3437 = vpop.f32.mrf.mxu0
      %3438 = vmatprep.mubr.f32.mxu0 0.0
      %3439 = vmatmul.mubr.f32.gmra.mxu0 %v1264
      %v3440 = vpop.f32.mrf.mxu0
      %v3441 = vadd.f32 0.0, %v3440
      %v3442 = vpop.f32.mrf.mxu0
      %3443 = vmatprep.mubr.f32.mxu0 0.0
      %3444 = vmatmul.mubr.f32.gmra.mxu0 %v1266
      %v3445 = vpop.f32.mrf.mxu0
      %v3446 = vadd.f32 0.0, %v3445
      %v3447 = vpop.f32.mrf.mxu0
      %3448 = vmatprep.mubr.f32.mxu0 0.0
      %3449 = vmatmul.mubr.f32.gmra.mxu0 %v1268
      %v3450 = vpop.f32.mrf.mxu0
      %v3451 = vadd.f32 0.0, %v3450
      %v3452 = vpop.f32.mrf.mxu0
      %3453 = vmatprep.mubr.f32.mxu0 0.0
      %3454 = vmatmul.mubr.f32.gmra.mxu0 %v1270
      %v3455 = vpop.f32.mrf.mxu0
      %v3456 = vadd.f32 0.0, %v3455
      %v3457 = vpop.f32.mrf.mxu0
      %3458 = vmatprep.mubr.f32.mxu0 0.0
      %3459 = vmatmul.mubr.f32.gmra.mxu0 %v1272
      %v3460 = vpop.f32.mrf.mxu0
      %v3461 = vadd.f32 0.0, %v3460
      %v3462 = vpop.f32.mrf.mxu0
      %3463 = vmatprep.mubr.f32.mxu0 0.0
      %3464 = vmatmul.mubr.f32.gmra.mxu0 %v1274
      %v3465 = vpop.f32.mrf.mxu0
      %v3466 = vadd.f32 0.0, %v3465
      %v3467 = vpop.f32.mrf.mxu0
      %3468 = vmatprep.mubr.f32.mxu0 0.0
      %3469 = vmatmul.mubr.f32.gmra.mxu0 %v1276
      %v3470 = vpop.f32.mrf.mxu0
      %v3471 = vadd.f32 0.0, %v3470
      %v3472 = vpop.f32.mrf.mxu0
      %3473 = vmatprep.mubr.f32.mxu0 0.0
      %3474 = vmatmul.mubr.f32.gmra.mxu0 %v1278
      %v3475 = vpop.f32.mrf.mxu0
      %v3476 = vadd.f32 0.0, %v3475
      %v3477 = vpop.f32.mrf.mxu0
      %3478 = vmatprep.mubr.f32.mxu0 0.0
      %3479 = vmatmul.mubr.f32.gmra.mxu0 %v1280
      %v3480 = vpop.f32.mrf.mxu0
      %v3481 = vadd.f32 0.0, %v3480
      %v3482 = vpop.f32.mrf.mxu0
      %3483 = vmatprep.mubr.f32.mxu0 0.0
      %3484 = vmatmul.mubr.f32.gmra.mxu0 %v1282
      %v3485 = vpop.f32.mrf.mxu0
      %v3486 = vadd.f32 0.0, %v3485
      %v3487 = vpop.f32.mrf.mxu0
      %3488 = vmatprep.mubr.f32.mxu0 0.0
      %3489 = vmatmul.mubr.f32.gmra.mxu0 %v1284
      %v3490 = vpop.f32.mrf.mxu0
      %v3491 = vadd.f32 0.0, %v3490
      %v3492 = vpop.f32.mrf.mxu0
      %3493 = vmatprep.mubr.f32.mxu0 0.0
      %3494 = vmatmul.mubr.f32.gmra.mxu0 %v1286
      %v3495 = vpop.f32.mrf.mxu0
      %v3496 = vadd.f32 0.0, %v3495
      %v3497 = vpop.f32.mrf.mxu0
      %3498 = vmatprep.mubr.f32.mxu0 0.0
      %3499 = vmatmul.mubr.f32.gmra.mxu0 %v1288
      %v3500 = vpop.f32.mrf.mxu0
      %v3501 = vadd.f32 0.0, %v3500
      %v3502 = vpop.f32.mrf.mxu0
      %3503 = vmatprep.mubr.f32.mxu0 0.0
      %3504 = vmatmul.mubr.f32.gmra.mxu0 %v2487
      %v3505 = vpop.f32.mrf.mxu0
      %v3506 = vadd.f32 0.0, %v3505
      %v3507 = vpop.f32.mrf.mxu0
      %3508 = vmatprep.mubr.f32.mxu0 0.0
      %3509 = vmatmul.mubr.f32.gmra.mxu0 %v2489
      %v3510 = vpop.f32.mrf.mxu0
      %v3511 = vadd.f32 0.0, %v3510
      %v3512 = vpop.f32.mrf.mxu0
      %3513 = vmatprep.mubr.f32.mxu0 0.0
      %3514 = vmatmul.mubr.f32.gmra.mxu0 %v3292
      %v3515 = vpop.f32.mrf.mxu0
      %v3516 = vadd.f32 0.0, %v3515
      %v3517 = vpop.f32.mrf.mxu0
      %3518 = vmatprep.mubr.f32.mxu0 0.0
      %3519 = vmatmul.mubr.f32.gmra.mxu0 %v3294
      %v3520 = vpop.f32.mrf.mxu0
      %v3521 = vadd.f32 0.0, %v3520
      %v3522 = vpop.f32.mrf.mxu0
      %3523 = vdwg.mxu0
      %v3524 = vadd.f32 %v3254, %v3366
      %v3525 = vadd.f32 %v3255, %v3371
      %v3526 = vadd.f32 %v3256, %v3376
      %v3527 = vadd.f32 %v3257, %v3381
      %v3528 = vadd.f32 %v3258, %v3386
      %v3529 = vadd.f32 %v3259, %v3391
      %v3530 = vadd.f32 %v3260, %v3396
      %v3531 = vadd.f32 %v3261, %v3401
      %v3532 = vadd.f32 %v3262, %v3406
      %v3533 = vadd.f32 %v3263, %v3411
      %v3534 = vadd.f32 %v3264, %v3416
      %v3535 = vadd.f32 %v3265, %v3421
      %v3536 = vadd.f32 %v3266, %v3426
      %v3537 = vadd.f32 %v3267, %v3431
      %v3538 = vadd.f32 %v3268, %v3436
      %v3539 = vadd.f32 %v3269, %v3441
      %v3540 = vadd.f32 %v3270, %v3446
      %v3541 = vadd.f32 %v3271, %v3451
      %v3542 = vadd.f32 %v3272, %v3456
      %v3543 = vadd.f32 %v3273, %v3461
      %v3544 = vadd.f32 %v3274, %v3466
      %v3545 = vadd.f32 %v3275, %v3471
      %v3546 = vadd.f32 %v3276, %v3476
      %v3547 = vadd.f32 %v3277, %v3481
      %v3548 = vadd.f32 %v3278, %v3486
      %v3549 = vadd.f32 %v3279, %v3491
      %v3550 = vadd.f32 %v3280, %v3496
      %v3551 = vadd.f32 %v3281, %v3501
      %v3552 = vadd.f32 %v3282, %v3506
      %v3553 = vadd.f32 %v3283, %v3511
      %v3554 = vadd.f32 %v3284, %v3516
      %v3555 = vadd.f32 %v3285, %v3521
      %v3556 = vrot.slane %v1094, 2
      %v3557 = vrot.slane %v1095, 2
      %v3558 = vsel %vm1810, %v3556, %v3557
      %v3559 = vrot.slane %v1096, 2
      %v3560 = vsel %vm1810, %v3557, %v3559
      %v3561 = vsel %vm415, %v3558, 0
      %v3563 = vsel %vm415, %v3560, 0
      %v3566 = vsel %vm577, %v977, 0
      %3568 = vmatprep.subr.mxu0 0.0
      %3569 = vmatpush1.msra.mxu0 0.0
      %3570 = vmatprep.subr.mxu0 0.0
      %3571 = vmatpush1.msra.mxu0 0.0
      %3572 = vmatprep.subr.mxu0 0.0
      %3573 = vmatpush1.msra.mxu0 0.0
      %3574 = vmatprep.subr.mxu0 0.0
      %3575 = vmatpush1.msra.mxu0 0.0
      %3576 = vmatprep.subr.mxu0 0.0
      %3577 = vmatpush1.msra.mxu0 0.0
      %3578 = vmatprep.subr.mxu0 0.0
      %3579 = vmatpush1.msra.mxu0 0.0
      %3580 = vmatprep.subr.mxu0 0.0
      %3581 = vmatpush1.msra.mxu0 0.0
      %3582 = vmatprep.subr.mxu0 0.0
      %3583 = vmatpush1.msra.mxu0 0.0
      %3584 = vmatprep.subr.mxu0 0.0
      %3585 = vmatpush1.msra.mxu0 0.0
      %3586 = vmatprep.subr.mxu0 0.0
      %3587 = vmatpush1.msra.mxu0 0.0
      %3588 = vmatprep.subr.mxu0 0.0
      %3589 = vmatpush1.msra.mxu0 0.0
      %3590 = vmatprep.subr.mxu0 0.0
      %3591 = vmatpush1.msra.mxu0 0.0
      %3592 = vmatprep.subr.mxu0 0.0
      %3593 = vmatpush1.msra.mxu0 0.0
      %3594 = vmatprep.subr.mxu0 0.0
      %3595 = vmatpush1.msra.mxu0 0.0
      %3596 = vmatprep.subr.mxu0 0.0
      %3597 = vmatpush1.msra.mxu0 0.0
      %3598 = vmatprep.subr.mxu0 0.0
      %3599 = vmatpush1.msra.mxu0 %v3566
      %3600 = vmatprep.subr.mxu0 0.0
      %3601 = vmatpush2.msra.mxu0 0.0
      %3602 = vmatprep.subr.mxu0 0.0
      %3603 = vmatpush2.msra.mxu0 0.0
      %3604 = vmatprep.subr.mxu0 0.0
      %3605 = vmatpush2.msra.mxu0 0.0
      %3606 = vmatprep.subr.mxu0 0.0
      %3607 = vmatpush2.msra.mxu0 0.0
      %3608 = vmatprep.subr.mxu0 0.0
      %3609 = vmatpush2.msra.mxu0 0.0
      %3610 = vmatprep.subr.mxu0 0.0
      %3611 = vmatpush2.msra.mxu0 0.0
      %3612 = vmatprep.subr.mxu0 0.0
      %3613 = vmatpush2.msra.mxu0 0.0
      %3614 = vmatprep.subr.mxu0 0.0
      %3615 = vmatpush2.msra.mxu0 0.0
      %3616 = vmatprep.subr.mxu0 0.0
      %3617 = vmatpush2.msra.mxu0 0.0
      %3618 = vmatprep.subr.mxu0 0.0
      %3619 = vmatpush2.msra.mxu0 0.0
      %3620 = vmatprep.subr.mxu0 0.0
      %3621 = vmatpush2.msra.mxu0 0.0
      %3622 = vmatprep.subr.mxu0 0.0
      %3623 = vmatpush2.msra.mxu0 0.0
      %3624 = vmatprep.subr.mxu0 0.0
      %3625 = vmatpush2.msra.mxu0 0.0
      %3626 = vmatprep.subr.mxu0 0.0
      %3627 = vmatpush2.msra.mxu0 0.0
      %3628 = vmatprep.subr.mxu0 0.0
      %3629 = vmatpush2.msra.mxu0 0.0
      %3630 = vmatprep.subr.mxu0 0.0
      %3631 = vmatpush2.msra.mxu0 0.0
      %3632 = vmatprep.mubr.f32.mxu0 0.0
      %3633 = vmatmul.mubr.f32.gmra.mxu0 %v1899
      %v3634 = vpop.f32.mrf.mxu0
      %v3635 = vadd.f32 0.0, %v3634
      %v3636 = vpop.f32.mrf.mxu0
      %3637 = vmatprep.mubr.f32.mxu0 0.0
      %3638 = vmatmul.mubr.f32.gmra.mxu0 %v1901
      %v3639 = vpop.f32.mrf.mxu0
      %v3640 = vadd.f32 0.0, %v3639
      %v3641 = vpop.f32.mrf.mxu0
      %3642 = vmatprep.mubr.f32.mxu0 0.0
      %3643 = vmatmul.mubr.f32.gmra.mxu0 %v1903
      %v3644 = vpop.f32.mrf.mxu0
      %v3645 = vadd.f32 0.0, %v3644
      %v3646 = vpop.f32.mrf.mxu0
      %3647 = vmatprep.mubr.f32.mxu0 0.0
      %3648 = vmatmul.mubr.f32.gmra.mxu0 %v1905
      %v3649 = vpop.f32.mrf.mxu0
      %v3650 = vadd.f32 0.0, %v3649
      %v3651 = vpop.f32.mrf.mxu0
      %3652 = vmatprep.mubr.f32.mxu0 0.0
      %3653 = vmatmul.mubr.f32.gmra.mxu0 %v1907
      %v3654 = vpop.f32.mrf.mxu0
      %v3655 = vadd.f32 0.0, %v3654
      %v3656 = vpop.f32.mrf.mxu0
      %3657 = vmatprep.mubr.f32.mxu0 0.0
      %3658 = vmatmul.mubr.f32.gmra.mxu0 %v1909
      %v3659 = vpop.f32.mrf.mxu0
      %v3660 = vadd.f32 0.0, %v3659
      %v3661 = vpop.f32.mrf.mxu0
      %3662 = vmatprep.mubr.f32.mxu0 0.0
      %3663 = vmatmul.mubr.f32.gmra.mxu0 %v1911
      %v3664 = vpop.f32.mrf.mxu0
      %v3665 = vadd.f32 0.0, %v3664
      %v3666 = vpop.f32.mrf.mxu0
      %3667 = vmatprep.mubr.f32.mxu0 0.0
      %3668 = vmatmul.mubr.f32.gmra.mxu0 %v1913
      %v3669 = vpop.f32.mrf.mxu0
      %v3670 = vadd.f32 0.0, %v3669
      %v3671 = vpop.f32.mrf.mxu0
      %3672 = vmatprep.mubr.f32.mxu0 0.0
      %3673 = vmatmul.mubr.f32.gmra.mxu0 %v1915
      %v3674 = vpop.f32.mrf.mxu0
      %v3675 = vadd.f32 0.0, %v3674
      %v3676 = vpop.f32.mrf.mxu0
      %3677 = vmatprep.mubr.f32.mxu0 0.0
      %3678 = vmatmul.mubr.f32.gmra.mxu0 %v1917
      %v3679 = vpop.f32.mrf.mxu0
      %v3680 = vadd.f32 0.0, %v3679
      %v3681 = vpop.f32.mrf.mxu0
      %3682 = vmatprep.mubr.f32.mxu0 0.0
      %3683 = vmatmul.mubr.f32.gmra.mxu0 %v1919
      %v3684 = vpop.f32.mrf.mxu0
      %v3685 = vadd.f32 0.0, %v3684
      %v3686 = vpop.f32.mrf.mxu0
      %3687 = vmatprep.mubr.f32.mxu0 0.0
      %3688 = vmatmul.mubr.f32.gmra.mxu0 %v1921
      %v3689 = vpop.f32.mrf.mxu0
      %v3690 = vadd.f32 0.0, %v3689
      %v3691 = vpop.f32.mrf.mxu0
      %3692 = vmatprep.mubr.f32.mxu0 0.0
      %3693 = vmatmul.mubr.f32.gmra.mxu0 %v1923
      %v3694 = vpop.f32.mrf.mxu0
      %v3695 = vadd.f32 0.0, %v3694
      %v3696 = vpop.f32.mrf.mxu0
      %3697 = vmatprep.mubr.f32.mxu0 0.0
      %3698 = vmatmul.mubr.f32.gmra.mxu0 %v1925
      %v3699 = vpop.f32.mrf.mxu0
      %v3700 = vadd.f32 0.0, %v3699
      %v3701 = vpop.f32.mrf.mxu0
      %3702 = vmatprep.mubr.f32.mxu0 0.0
      %3703 = vmatmul.mubr.f32.gmra.mxu0 %v1927
      %v3704 = vpop.f32.mrf.mxu0
      %v3705 = vadd.f32 0.0, %v3704
      %v3706 = vpop.f32.mrf.mxu0
      %3707 = vmatprep.mubr.f32.mxu0 0.0
      %3708 = vmatmul.mubr.f32.gmra.mxu0 %v1929
      %v3709 = vpop.f32.mrf.mxu0
      %v3710 = vadd.f32 0.0, %v3709
      %v3711 = vpop.f32.mrf.mxu0
      %3712 = vmatprep.mubr.f32.mxu0 0.0
      %3713 = vmatmul.mubr.f32.gmra.mxu0 %v1931
      %v3714 = vpop.f32.mrf.mxu0
      %v3715 = vadd.f32 0.0, %v3714
      %v3716 = vpop.f32.mrf.mxu0
      %3717 = vmatprep.mubr.f32.mxu0 0.0
      %3718 = vmatmul.mubr.f32.gmra.mxu0 %v1933
      %v3719 = vpop.f32.mrf.mxu0
      %v3720 = vadd.f32 0.0, %v3719
      %v3721 = vpop.f32.mrf.mxu0
      %3722 = vmatprep.mubr.f32.mxu0 0.0
      %3723 = vmatmul.mubr.f32.gmra.mxu0 %v1935
      %v3724 = vpop.f32.mrf.mxu0
      %v3725 = vadd.f32 0.0, %v3724
      %v3726 = vpop.f32.mrf.mxu0
      %3727 = vmatprep.mubr.f32.mxu0 0.0
      %3728 = vmatmul.mubr.f32.gmra.mxu0 %v1937
      %v3729 = vpop.f32.mrf.mxu0
      %v3730 = vadd.f32 0.0, %v3729
      %v3731 = vpop.f32.mrf.mxu0
      %3732 = vmatprep.mubr.f32.mxu0 0.0
      %3733 = vmatmul.mubr.f32.gmra.mxu0 %v1939
      %v3734 = vpop.f32.mrf.mxu0
      %v3735 = vadd.f32 0.0, %v3734
      %v3736 = vpop.f32.mrf.mxu0
      %3737 = vmatprep.mubr.f32.mxu0 0.0
      %3738 = vmatmul.mubr.f32.gmra.mxu0 %v1941
      %v3739 = vpop.f32.mrf.mxu0
      %v3740 = vadd.f32 0.0, %v3739
      %v3741 = vpop.f32.mrf.mxu0
      %3742 = vmatprep.mubr.f32.mxu0 0.0
      %3743 = vmatmul.mubr.f32.gmra.mxu0 %v1943
      %v3744 = vpop.f32.mrf.mxu0
      %v3745 = vadd.f32 0.0, %v3744
      %v3746 = vpop.f32.mrf.mxu0
      %3747 = vmatprep.mubr.f32.mxu0 0.0
      %3748 = vmatmul.mubr.f32.gmra.mxu0 %v1945
      %v3749 = vpop.f32.mrf.mxu0
      %v3750 = vadd.f32 0.0, %v3749
      %v3751 = vpop.f32.mrf.mxu0
      %3752 = vmatprep.mubr.f32.mxu0 0.0
      %3753 = vmatmul.mubr.f32.gmra.mxu0 %v1947
      %v3754 = vpop.f32.mrf.mxu0
      %v3755 = vadd.f32 0.0, %v3754
      %v3756 = vpop.f32.mrf.mxu0
      %3757 = vmatprep.mubr.f32.mxu0 0.0
      %3758 = vmatmul.mubr.f32.gmra.mxu0 %v1949
      %v3759 = vpop.f32.mrf.mxu0
      %v3760 = vadd.f32 0.0, %v3759
      %v3761 = vpop.f32.mrf.mxu0
      %3762 = vmatprep.mubr.f32.mxu0 0.0
      %3763 = vmatmul.mubr.f32.gmra.mxu0 %v1951
      %v3764 = vpop.f32.mrf.mxu0
      %v3765 = vadd.f32 0.0, %v3764
      %v3766 = vpop.f32.mrf.mxu0
      %3767 = vmatprep.mubr.f32.mxu0 0.0
      %3768 = vmatmul.mubr.f32.gmra.mxu0 %v1953
      %v3769 = vpop.f32.mrf.mxu0
      %v3770 = vadd.f32 0.0, %v3769
      %v3771 = vpop.f32.mrf.mxu0
      %3772 = vmatprep.mubr.f32.mxu0 0.0
      %3773 = vmatmul.mubr.f32.gmra.mxu0 %v2756
      %v3774 = vpop.f32.mrf.mxu0
      %v3775 = vadd.f32 0.0, %v3774
      %v3776 = vpop.f32.mrf.mxu0
      %3777 = vmatprep.mubr.f32.mxu0 0.0
      %3778 = vmatmul.mubr.f32.gmra.mxu0 %v2758
      %v3779 = vpop.f32.mrf.mxu0
      %v3780 = vadd.f32 0.0, %v3779
      %v3781 = vpop.f32.mrf.mxu0
      %3782 = vmatprep.mubr.f32.mxu0 0.0
      %3783 = vmatmul.mubr.f32.gmra.mxu0 %v3561
      %v3784 = vpop.f32.mrf.mxu0
      %v3785 = vadd.f32 0.0, %v3784
      %v3786 = vpop.f32.mrf.mxu0
      %3787 = vmatprep.mubr.f32.mxu0 0.0
      %3788 = vmatmul.mubr.f32.gmra.mxu0 %v3563
      %v3789 = vpop.f32.mrf.mxu0
      %v3790 = vadd.f32 0.0, %v3789
      %v3791 = vpop.f32.mrf.mxu0
      %3792 = vdwg.mxu0
      %v3793 = vadd.f32 %v3524, %v3635
      %v3794 = vadd.f32 %v3525, %v3640
      %v3795 = vadd.f32 %v3526, %v3645
      %v3796 = vadd.f32 %v3527, %v3650
      %v3797 = vadd.f32 %v3528, %v3655
      %v3798 = vadd.f32 %v3529, %v3660
      %v3799 = vadd.f32 %v3530, %v3665
      %v3800 = vadd.f32 %v3531, %v3670
      %v3801 = vadd.f32 %v3532, %v3675
      %v3802 = vadd.f32 %v3533, %v3680
      %v3803 = vadd.f32 %v3534, %v3685
      %v3804 = vadd.f32 %v3535, %v3690
      %v3805 = vadd.f32 %v3536, %v3695
      %v3806 = vadd.f32 %v3537, %v3700
      %v3807 = vadd.f32 %v3538, %v3705
      %v3808 = vadd.f32 %v3539, %v3710
      %v3809 = vadd.f32 %v3540, %v3715
      %v3810 = vadd.f32 %v3541, %v3720
      %v3811 = vadd.f32 %v3542, %v3725
      %v3812 = vadd.f32 %v3543, %v3730
      %v3813 = vadd.f32 %v3544, %v3735
      %v3814 = vadd.f32 %v3545, %v3740
      %v3815 = vadd.f32 %v3546, %v3745
      %v3816 = vadd.f32 %v3547, %v3750
      %v3817 = vadd.f32 %v3548, %v3755
      %v3818 = vadd.f32 %v3549, %v3760
      %v3819 = vadd.f32 %v3550, %v3765
      %v3820 = vadd.f32 %v3551, %v3770
      %v3821 = vadd.f32 %v3552, %v3775
      %v3822 = vadd.f32 %v3553, %v3780
      %v3823 = vadd.f32 %v3554, %v3785
      %v3824 = vadd.f32 %v3555, %v3790
      %v3825 = vadd.f32 %v3793, %v978
      %v3826 = vadd.f32 %v3794, %v979
      %v3827 = vadd.f32 %v3795, %v980
      %v3828 = vadd.f32 %v3796, %v981
      %v3829 = vadd.f32 %v3797, %v982
      %v3830 = vadd.f32 %v3798, %v983
      %v3831 = vadd.f32 %v3799, %v984
      %v3832 = vadd.f32 %v3800, %v985
      %v3833 = vadd.f32 %v3801, %v986
      %v3834 = vadd.f32 %v3802, %v987
      %v3835 = vadd.f32 %v3803, %v988
      %v3836 = vadd.f32 %v3804, %v989
      %v3837 = vadd.f32 %v3805, %v990
      %v3838 = vadd.f32 %v3806, %v991
      %v3839 = vadd.f32 %v3807, %v992
      %v3840 = vadd.f32 %v3808, %v993
      %v3841 = vadd.f32 %v3809, %v994
      %v3842 = vadd.f32 %v3810, %v995
      %v3843 = vadd.f32 %v3811, %v996
      %v3844 = vadd.f32 %v3812, %v997
      %v3845 = vadd.f32 %v3813, %v998
      %v3846 = vadd.f32 %v3814, %v999
      %v3847 = vadd.f32 %v3815, %v1000
      %v3848 = vadd.f32 %v3816, %v1001
      %v3849 = vadd.f32 %v3817, %v1002
      %v3850 = vadd.f32 %v3818, %v1003
      %v3851 = vadd.f32 %v3819, %v1004
      %v3852 = vadd.f32 %v3820, %v1005
      %v3853 = vadd.f32 %v3821, %v1006
      %v3854 = vadd.f32 %v3822, %v1007
      %v3855 = vadd.f32 %v3823, %v1008
      %v3856 = vadd.f32 %v3824, %v1009
      %v3857 = vld [vmem:[%s6] sm:$0x1]
      %v3858 = vld [vmem:[%s7] sm:$0x1]
      %v3859 = vsel %vm415, %v3825, 0.0
      %v3860 = vsel %vm415, %v3826, 0.0
      %v3861 = vadd.f32 %v3859, %v3860
      %v3862 = vsel %vm415, %v3827, 0.0
      %v3863 = vadd.f32 %v3861, %v3862
      %v3864 = vsel %vm415, %v3828, 0.0
      %v3865 = vadd.f32 %v3863, %v3864
      %v3866 = vsel %vm415, %v3829, 0.0
      %v3867 = vadd.f32 %v3865, %v3866
      %v3868 = vsel %vm415, %v3830, 0.0
      %v3869 = vadd.f32 %v3867, %v3868
      %v3870 = vsel %vm415, %v3831, 0.0
      %v3871 = vadd.f32 %v3869, %v3870
      %v3872 = vsel %vm415, %v3832, 0.0
      %v3873 = vadd.f32 %v3871, %v3872
      %v3874 = vsel %vm415, %v3833, 0.0
      %v3875 = vadd.f32 %v3873, %v3874
      %v3876 = vsel %vm415, %v3834, 0.0
      %v3877 = vadd.f32 %v3875, %v3876
      %v3878 = vsel %vm415, %v3835, 0.0
      %v3879 = vadd.f32 %v3877, %v3878
      %v3880 = vsel %vm415, %v3836, 0.0
      %v3881 = vadd.f32 %v3879, %v3880
      %v3882 = vsel %vm415, %v3837, 0.0
      %v3883 = vadd.f32 %v3881, %v3882
      %v3884 = vsel %vm415, %v3838, 0.0
      %v3885 = vadd.f32 %v3883, %v3884
      %v3886 = vsel %vm415, %v3839, 0.0
      %v3887 = vadd.f32 %v3885, %v3886
      %v3888 = vsel %vm415, %v3840, 0.0
      %v3889 = vadd.f32 %v3887, %v3888
      %v3890 = vsel %vm415, %v3841, 0.0
      %v3891 = vadd.f32 %v3889, %v3890
      %v3892 = vsel %vm415, %v3842, 0.0
      %v3893 = vadd.f32 %v3891, %v3892
      %v3894 = vsel %vm415, %v3843, 0.0
      %v3895 = vadd.f32 %v3893, %v3894
      %v3896 = vsel %vm415, %v3844, 0.0
      %v3897 = vadd.f32 %v3895, %v3896
      %v3898 = vsel %vm415, %v3845, 0.0
      %v3899 = vadd.f32 %v3897, %v3898
      %v3900 = vsel %vm415, %v3846, 0.0
      %v3901 = vadd.f32 %v3899, %v3900
      %v3902 = vsel %vm415, %v3847, 0.0
      %v3903 = vadd.f32 %v3901, %v3902
      %v3904 = vsel %vm415, %v3848, 0.0
      %v3905 = vadd.f32 %v3903, %v3904
      %v3906 = vsel %vm415, %v3849, 0.0
      %v3907 = vadd.f32 %v3905, %v3906
      %v3908 = vsel %vm415, %v3850, 0.0
      %v3909 = vadd.f32 %v3907, %v3908
      %v3910 = vsel %vm415, %v3851, 0.0
      %v3911 = vadd.f32 %v3909, %v3910
      %v3912 = vsel %vm415, %v3852, 0.0
      %v3913 = vadd.f32 %v3911, %v3912
      %v3914 = vsel %vm415, %v3853, 0.0
      %v3915 = vadd.f32 %v3913, %v3914
      %v3916 = vsel %vm415, %v3854, 0.0
      %v3917 = vadd.f32 %v3915, %v3916
      %v3918 = vsel %vm415, %v3855, 0.0
      %v3919 = vadd.f32 %v3917, %v3918
      %v3920 = vsel %vm415, %v3856, 0.0
      %v3921 = vadd.f32 %v3919, %v3920
      %v3922 = vrot.slane %v3921, 4
      %v3923 = vadd.f32 %v3921, %v3922
      %v3924 = vrot.slane %v3923, 2
      %v3925 = vadd.f32 %v3923, %v3924
      %v3926 = vrot.slane %v3925, 1
      %v3927 = vadd.f32 %v3925, %v3926
      %v3929 = vsel %vm415, %v3927, 0
      %3931 = vmatprep.subr.mxu0 0.0
      %3932 = vmatpush1.msra.mxu0 0.0
      %3933 = vmatprep.subr.mxu0 0.0
      %3934 = vmatpush1.msra.mxu0 0.0
      %3935 = vmatprep.subr.mxu0 0.0
      %3936 = vmatpush1.msra.mxu0 0.0
      %3937 = vmatprep.subr.mxu0 0.0
      %3938 = vmatpush1.msra.mxu0 0.0
      %3939 = vmatprep.subr.mxu0 0.0
      %3940 = vmatpush1.msra.mxu0 0.0
      %3941 = vmatprep.subr.mxu0 0.0
      %3942 = vmatpush1.msra.mxu0 0.0
      %3943 = vmatprep.subr.mxu0 0.0
      %3944 = vmatpush1.msra.mxu0 0.0
      %3945 = vmatprep.subr.mxu0 0.0
      %3946 = vmatpush1.msra.mxu0 0.0
      %3947 = vmatprep.subr.mxu0 0.0
      %3948 = vmatpush1.msra.mxu0 0.0
      %3949 = vmatprep.subr.mxu0 0.0
      %3950 = vmatpush1.msra.mxu0 0.0
      %3951 = vmatprep.subr.mxu0 0.0
      %3952 = vmatpush1.msra.mxu0 0.0
      %3953 = vmatprep.subr.mxu0 0.0
      %3954 = vmatpush1.msra.mxu0 0.0
      %3955 = vmatprep.subr.mxu0 0.0
      %3956 = vmatpush1.msra.mxu0 0.0
      %3957 = vmatprep.subr.mxu0 0.0
      %3958 = vmatpush1.msra.mxu0 0.0
      %3959 = vmatprep.subr.mxu0 0.0
      %3960 = vmatpush1.msra.mxu0 0.0
      %3961 = vmatprep.subr.mxu0 0.0
      %3962 = vmatpush1.msra.mxu0 %v579
      %3963 = vmatprep.subr.mxu0 0.0
      %3964 = vmatpush2.msra.mxu0 0.0
      %3965 = vmatprep.subr.mxu0 0.0
      %3966 = vmatpush2.msra.mxu0 0.0
      %3967 = vmatprep.subr.mxu0 0.0
      %3968 = vmatpush2.msra.mxu0 0.0
      %3969 = vmatprep.subr.mxu0 0.0
      %3970 = vmatpush2.msra.mxu0 0.0
      %3971 = vmatprep.subr.mxu0 0.0
      %3972 = vmatpush2.msra.mxu0 0.0
      %3973 = vmatprep.subr.mxu0 0.0
      %3974 = vmatpush2.msra.mxu0 0.0
      %3975 = vmatprep.subr.mxu0 0.0
      %3976 = vmatpush2.msra.mxu0 0.0
      %3977 = vmatprep.subr.mxu0 0.0
      %3978 = vmatpush2.msra.mxu0 0.0
      %3979 = vmatprep.subr.mxu0 0.0
      %3980 = vmatpush2.msra.mxu0 0.0
      %3981 = vmatprep.subr.mxu0 0.0
      %3982 = vmatpush2.msra.mxu0 0.0
      %3983 = vmatprep.subr.mxu0 0.0
      %3984 = vmatpush2.msra.mxu0 0.0
      %3985 = vmatprep.subr.mxu0 0.0
      %3986 = vmatpush2.msra.mxu0 0.0
      %3987 = vmatprep.subr.mxu0 0.0
      %3988 = vmatpush2.msra.mxu0 0.0
      %3989 = vmatprep.subr.mxu0 0.0
      %3990 = vmatpush2.msra.mxu0 0.0
      %3991 = vmatprep.subr.mxu0 0.0
      %3992 = vmatpush2.msra.mxu0 0.0
      %3993 = vmatprep.subr.mxu0 0.0
      %3994 = vmatpush2.msra.mxu0 0.0
      %3995 = vmatprep.mubr.f32.mxu0 0.0
      %3996 = vmatmul.mubr.f32.gmra.mxu0 %v3929
      %v3997 = vpop.f32.mrf.mxu0
      %v3998 = vadd.f32 0.0, %v3997
      %v3999 = vpop.f32.mrf.mxu0
      %4000 = vdwg.mxu0
      %v4001 = vlaneseq
      %v4002 = vshrl.u32 %v4001, 7
      %v4003 = vsub.s32 0, %v4002
      %v4004 = vrot.slane %v3998, %v4003
      %v4005 = vsub.f32 %v3825, %v4004
      %v4006 = vsub.f32 %v3826, %v4004
      %v4007 = vsub.f32 %v3827, %v4004
      %v4008 = vsub.f32 %v3828, %v4004
      %v4009 = vsub.f32 %v3829, %v4004
      %v4010 = vsub.f32 %v3830, %v4004
      %v4011 = vsub.f32 %v3831, %v4004
      %v4012 = vsub.f32 %v3832, %v4004
      %v4013 = vsub.f32 %v3833, %v4004
      %v4014 = vsub.f32 %v3834, %v4004
      %v4015 = vsub.f32 %v3835, %v4004
      %v4016 = vsub.f32 %v3836, %v4004
      %v4017 = vsub.f32 %v3837, %v4004
      %v4018 = vsub.f32 %v3838, %v4004
      %v4019 = vsub.f32 %v3839, %v4004
      %v4020 = vsub.f32 %v3840, %v4004
      %v4021 = vsub.f32 %v3841, %v4004
      %v4022 = vsub.f32 %v3842, %v4004
      %v4023 = vsub.f32 %v3843, %v4004
      %v4024 = vsub.f32 %v3844, %v4004
      %v4025 = vsub.f32 %v3845, %v4004
      %v4026 = vsub.f32 %v3846, %v4004
      %v4027 = vsub.f32 %v3847, %v4004
      %v4028 = vsub.f32 %v3848, %v4004
      %v4029 = vsub.f32 %v3849, %v4004
      %v4030 = vsub.f32 %v3850, %v4004
      %v4031 = vsub.f32 %v3851, %v4004
      %v4032 = vsub.f32 %v3852, %v4004
      %v4033 = vsub.f32 %v3853, %v4004
      %v4034 = vsub.f32 %v3854, %v4004
      %v4035 = vsub.f32 %v3855, %v4004
      %v4036 = vsub.f32 %v3856, %v4004
      %v4037 = vmul.f32 %v4005, %v4005
      %v4038 = vmul.f32 %v4006, %v4006
      %v4039 = vmul.f32 %v4007, %v4007
      %v4040 = vmul.f32 %v4008, %v4008
      %v4041 = vmul.f32 %v4009, %v4009
      %v4042 = vmul.f32 %v4010, %v4010
      %v4043 = vmul.f32 %v4011, %v4011
      %v4044 = vmul.f32 %v4012, %v4012
      %v4045 = vmul.f32 %v4013, %v4013
      %v4046 = vmul.f32 %v4014, %v4014
      %v4047 = vmul.f32 %v4015, %v4015
      %v4048 = vmul.f32 %v4016, %v4016
      %v4049 = vmul.f32 %v4017, %v4017
      %v4050 = vmul.f32 %v4018, %v4018
      %v4051 = vmul.f32 %v4019, %v4019
      %v4052 = vmul.f32 %v4020, %v4020
      %v4053 = vmul.f32 %v4021, %v4021
      %v4054 = vmul.f32 %v4022, %v4022
      %v4055 = vmul.f32 %v4023, %v4023
      %v4056 = vmul.f32 %v4024, %v4024
      %v4057 = vmul.f32 %v4025, %v4025
      %v4058 = vmul.f32 %v4026, %v4026
      %v4059 = vmul.f32 %v4027, %v4027
      %v4060 = vmul.f32 %v4028, %v4028
      %v4061 = vmul.f32 %v4029, %v4029
      %v4062 = vmul.f32 %v4030, %v4030
      %v4063 = vmul.f32 %v4031, %v4031
      %v4064 = vmul.f32 %v4032, %v4032
      %v4065 = vmul.f32 %v4033, %v4033
      %v4066 = vmul.f32 %v4034, %v4034
      %v4067 = vmul.f32 %v4035, %v4035
      %v4068 = vmul.f32 %v4036, %v4036
      %v4069 = vsel %vm415, %v4037, 0.0
      %v4070 = vsel %vm415, %v4038, 0.0
      %v4071 = vadd.f32 %v4069, %v4070
      %v4072 = vsel %vm415, %v4039, 0.0
      %v4073 = vadd.f32 %v4071, %v4072
      %v4074 = vsel %vm415, %v4040, 0.0
      %v4075 = vadd.f32 %v4073, %v4074
      %v4076 = vsel %vm415, %v4041, 0.0
      %v4077 = vadd.f32 %v4075, %v4076
      %v4078 = vsel %vm415, %v4042, 0.0
      %v4079 = vadd.f32 %v4077, %v4078
      %v4080 = vsel %vm415, %v4043, 0.0
      %v4081 = vadd.f32 %v4079, %v4080
      %v4082 = vsel %vm415, %v4044, 0.0
      %v4083 = vadd.f32 %v4081, %v4082
      %v4084 = vsel %vm415, %v4045, 0.0
      %v4085 = vadd.f32 %v4083, %v4084
      %v4086 = vsel %vm415, %v4046, 0.0
      %v4087 = vadd.f32 %v4085, %v4086
      %v4088 = vsel %vm415, %v4047, 0.0
      %v4089 = vadd.f32 %v4087, %v4088
      %v4090 = vsel %vm415, %v4048, 0.0
      %v4091 = vadd.f32 %v4089, %v4090
      %v4092 = vsel %vm415, %v4049, 0.0
      %v4093 = vadd.f32 %v4091, %v4092
      %v4094 = vsel %vm415, %v4050, 0.0
      %v4095 = vadd.f32 %v4093, %v4094
      %v4096 = vsel %vm415, %v4051, 0.0
      %v4097 = vadd.f32 %v4095, %v4096
      %v4098 = vsel %vm415, %v4052, 0.0
      %v4099 = vadd.f32 %v4097, %v4098
      %v4100 = vsel %vm415, %v4053, 0.0
      %v4101 = vadd.f32 %v4099, %v4100
      %v4102 = vsel %vm415, %v4054, 0.0
      %v4103 = vadd.f32 %v4101, %v4102
      %v4104 = vsel %vm415, %v4055, 0.0
      %v4105 = vadd.f32 %v4103, %v4104
      %v4106 = vsel %vm415, %v4056, 0.0
      %v4107 = vadd.f32 %v4105, %v4106
      %v4108 = vsel %vm415, %v4057, 0.0
      %v4109 = vadd.f32 %v4107, %v4108
      %v4110 = vsel %vm415, %v4058, 0.0
      %v4111 = vadd.f32 %v4109, %v4110
      %v4112 = vsel %vm415, %v4059, 0.0
      %v4113 = vadd.f32 %v4111, %v4112
      %v4114 = vsel %vm415, %v4060, 0.0
      %v4115 = vadd.f32 %v4113, %v4114
      %v4116 = vsel %vm415, %v4061, 0.0
      %v4117 = vadd.f32 %v4115, %v4116
      %v4118 = vsel %vm415, %v4062, 0.0
      %v4119 = vadd.f32 %v4117, %v4118
      %v4120 = vsel %vm415, %v4063, 0.0
      %v4121 = vadd.f32 %v4119, %v4120
      %v4122 = vsel %vm415, %v4064, 0.0
      %v4123 = vadd.f32 %v4121, %v4122
      %v4124 = vsel %vm415, %v4065, 0.0
      %v4125 = vadd.f32 %v4123, %v4124
      %v4126 = vsel %vm415, %v4066, 0.0
      %v4127 = vadd.f32 %v4125, %v4126
      %v4128 = vsel %vm415, %v4067, 0.0
      %v4129 = vadd.f32 %v4127, %v4128
      %v4130 = vsel %vm415, %v4068, 0.0
      %v4131 = vadd.f32 %v4129, %v4130
      %v4132 = vrot.slane %v4131, 4
      %v4133 = vadd.f32 %v4131, %v4132
      %v4134 = vrot.slane %v4133, 2
      %v4135 = vadd.f32 %v4133, %v4134
      %v4136 = vrot.slane %v4135, 1
      %v4137 = vadd.f32 %v4135, %v4136
      %v4139 = vsel %vm415, %v4137, 0
      %4141 = vmatprep.subr.mxu0 0.0
      %4142 = vmatpush1.msra.mxu0 0.0
      %4143 = vmatprep.subr.mxu0 0.0
      %4144 = vmatpush1.msra.mxu0 0.0
      %4145 = vmatprep.subr.mxu0 0.0
      %4146 = vmatpush1.msra.mxu0 0.0
      %4147 = vmatprep.subr.mxu0 0.0
      %4148 = vmatpush1.msra.mxu0 0.0
      %4149 = vmatprep.subr.mxu0 0.0
      %4150 = vmatpush1.msra.mxu0 0.0
      %4151 = vmatprep.subr.mxu0 0.0
      %4152 = vmatpush1.msra.mxu0 0.0
      %4153 = vmatprep.subr.mxu0 0.0
      %4154 = vmatpush1.msra.mxu0 0.0
      %4155 = vmatprep.subr.mxu0 0.0
      %4156 = vmatpush1.msra.mxu0 0.0
      %4157 = vmatprep.subr.mxu0 0.0
      %4158 = vmatpush1.msra.mxu0 0.0
      %4159 = vmatprep.subr.mxu0 0.0
      %4160 = vmatpush1.msra.mxu0 0.0
      %4161 = vmatprep.subr.mxu0 0.0
      %4162 = vmatpush1.msra.mxu0 0.0
      %4163 = vmatprep.subr.mxu0 0.0
      %4164 = vmatpush1.msra.mxu0 0.0
      %4165 = vmatprep.subr.mxu0 0.0
      %4166 = vmatpush1.msra.mxu0 0.0
      %4167 = vmatprep.subr.mxu0 0.0
      %4168 = vmatpush1.msra.mxu0 0.0
      %4169 = vmatprep.subr.mxu0 0.0
      %4170 = vmatpush1.msra.mxu0 0.0
      %4171 = vmatprep.subr.mxu0 0.0
      %4172 = vmatpush1.msra.mxu0 %v579
      %4173 = vmatprep.subr.mxu0 0.0
      %4174 = vmatpush2.msra.mxu0 0.0
      %4175 = vmatprep.subr.mxu0 0.0
      %4176 = vmatpush2.msra.mxu0 0.0
      %4177 = vmatprep.subr.mxu0 0.0
      %4178 = vmatpush2.msra.mxu0 0.0
      %4179 = vmatprep.subr.mxu0 0.0
      %4180 = vmatpush2.msra.mxu0 0.0
      %4181 = vmatprep.subr.mxu0 0.0
      %4182 = vmatpush2.msra.mxu0 0.0
      %4183 = vmatprep.subr.mxu0 0.0
      %4184 = vmatpush2.msra.mxu0 0.0
      %4185 = vmatprep.subr.mxu0 0.0
      %4186 = vmatpush2.msra.mxu0 0.0
      %4187 = vmatprep.subr.mxu0 0.0
      %4188 = vmatpush2.msra.mxu0 0.0
      %4189 = vmatprep.subr.mxu0 0.0
      %4190 = vmatpush2.msra.mxu0 0.0
      %4191 = vmatprep.subr.mxu0 0.0
      %4192 = vmatpush2.msra.mxu0 0.0
      %4193 = vmatprep.subr.mxu0 0.0
      %4194 = vmatpush2.msra.mxu0 0.0
      %4195 = vmatprep.subr.mxu0 0.0
      %4196 = vmatpush2.msra.mxu0 0.0
      %4197 = vmatprep.subr.mxu0 0.0
      %4198 = vmatpush2.msra.mxu0 0.0
      %4199 = vmatprep.subr.mxu0 0.0
      %4200 = vmatpush2.msra.mxu0 0.0
      %4201 = vmatprep.subr.mxu0 0.0
      %4202 = vmatpush2.msra.mxu0 0.0
      %4203 = vmatprep.subr.mxu0 0.0
      %4204 = vmatpush2.msra.mxu0 0.0
      %4205 = vmatprep.mubr.f32.mxu0 0.0
      %4206 = vmatmul.mubr.f32.gmra.mxu0 %v4139
      %v4207 = vpop.f32.mrf.mxu0
      %v4208 = vadd.f32 1e-05, %v4207
      %v4209 = vpop.f32.mrf.mxu0
      %4210 = vdwg.mxu0
      %v4211 = vrsqrt.pop %v4208
      %v4212 = vmul.f32 %v4211, %v3857
      %v4213 = vlaneseq
      %v4214 = vshrl.u32 %v4213, 7
      %v4215 = vsub.s32 0, %v4214
      %v4216 = vrot.slane %v4212, %v4215
      %v4217 = vmul.f32 %v4005, %v4216
      %v4218 = vmul.f32 %v4006, %v4216
      %v4219 = vmul.f32 %v4007, %v4216
      %v4220 = vmul.f32 %v4008, %v4216
      %v4221 = vmul.f32 %v4009, %v4216
      %v4222 = vmul.f32 %v4010, %v4216
      %v4223 = vmul.f32 %v4011, %v4216
      %v4224 = vmul.f32 %v4012, %v4216
      %v4225 = vmul.f32 %v4013, %v4216
      %v4226 = vmul.f32 %v4014, %v4216
      %v4227 = vmul.f32 %v4015, %v4216
      %v4228 = vmul.f32 %v4016, %v4216
      %v4229 = vmul.f32 %v4017, %v4216
      %v4230 = vmul.f32 %v4018, %v4216
      %v4231 = vmul.f32 %v4019, %v4216
      %v4232 = vmul.f32 %v4020, %v4216
      %v4233 = vmul.f32 %v4021, %v4216
      %v4234 = vmul.f32 %v4022, %v4216
      %v4235 = vmul.f32 %v4023, %v4216
      %v4236 = vmul.f32 %v4024, %v4216
      %v4237 = vmul.f32 %v4025, %v4216
      %v4238 = vmul.f32 %v4026, %v4216
      %v4239 = vmul.f32 %v4027, %v4216
      %v4240 = vmul.f32 %v4028, %v4216
      %v4241 = vmul.f32 %v4029, %v4216
      %v4242 = vmul.f32 %v4030, %v4216
      %v4243 = vmul.f32 %v4031, %v4216
      %v4244 = vmul.f32 %v4032, %v4216
      %v4245 = vmul.f32 %v4033, %v4216
      %v4246 = vmul.f32 %v4034, %v4216
      %v4247 = vmul.f32 %v4035, %v4216
      %v4248 = vmul.f32 %v4036, %v4216
      %v4250 = vlaneseq
      %v4251 = vshrl.u32 %v4250, 7
      %v4252 = vsub.s32 0, %v4251
      %v4253 = vrot.slane %v3858, %v4252
      %v4255 = vadd.f32 %v4217, %v4253
      %v4256 = vadd.f32 %v4218, %v4253
      %v4257 = vadd.f32 %v4219, %v4253
      %v4258 = vadd.f32 %v4220, %v4253
      %v4259 = vadd.f32 %v4221, %v4253
      %v4260 = vadd.f32 %v4222, %v4253
      %v4261 = vadd.f32 %v4223, %v4253
      %v4262 = vadd.f32 %v4224, %v4253
      %v4263 = vadd.f32 %v4225, %v4253
      %v4264 = vadd.f32 %v4226, %v4253
      %v4265 = vadd.f32 %v4227, %v4253
      %v4266 = vadd.f32 %v4228, %v4253
      %v4267 = vadd.f32 %v4229, %v4253
      %v4268 = vadd.f32 %v4230, %v4253
      %v4269 = vadd.f32 %v4231, %v4253
      %v4270 = vadd.f32 %v4232, %v4253
      %v4271 = vadd.f32 %v4233, %v4253
      %v4272 = vadd.f32 %v4234, %v4253
      %v4273 = vadd.f32 %v4235, %v4253
      %v4274 = vadd.f32 %v4236, %v4253
      %v4275 = vadd.f32 %v4237, %v4253
      %v4276 = vadd.f32 %v4238, %v4253
      %v4277 = vadd.f32 %v4239, %v4253
      %v4278 = vadd.f32 %v4240, %v4253
      %v4279 = vadd.f32 %v4241, %v4253
      %v4280 = vadd.f32 %v4242, %v4253
      %v4281 = vadd.f32 %v4243, %v4253
      %v4282 = vadd.f32 %v4244, %v4253
      %v4283 = vadd.f32 %v4245, %v4253
      %v4284 = vadd.f32 %v4246, %v4253
      %v4285 = vadd.f32 %v4247, %v4253
      %v4286 = vadd.f32 %v4248, %v4253
      %v4287 = vmax.f32 %v4255, 0.0
      %v4288 = vmax.f32 %v4256, 0.0
      %v4289 = vmax.f32 %v4257, 0.0
      %v4290 = vmax.f32 %v4258, 0.0
      %v4291 = vmax.f32 %v4259, 0.0
      %v4292 = vmax.f32 %v4260, 0.0
      %v4293 = vmax.f32 %v4261, 0.0
      %v4294 = vmax.f32 %v4262, 0.0
      %v4295 = vmax.f32 %v4263, 0.0
      %v4296 = vmax.f32 %v4264, 0.0
      %v4297 = vmax.f32 %v4265, 0.0
      %v4298 = vmax.f32 %v4266, 0.0
      %v4299 = vmax.f32 %v4267, 0.0
      %v4300 = vmax.f32 %v4268, 0.0
      %v4301 = vmax.f32 %v4269, 0.0
      %v4302 = vmax.f32 %v4270, 0.0
      %v4303 = vmax.f32 %v4271, 0.0
      %v4304 = vmax.f32 %v4272, 0.0
      %v4305 = vmax.f32 %v4273, 0.0
      %v4306 = vmax.f32 %v4274, 0.0
      %v4307 = vmax.f32 %v4275, 0.0
      %v4308 = vmax.f32 %v4276, 0.0
      %v4309 = vmax.f32 %v4277, 0.0
      %v4310 = vmax.f32 %v4278, 0.0
      %v4311 = vmax.f32 %v4279, 0.0
      %v4312 = vmax.f32 %v4280, 0.0
      %v4313 = vmax.f32 %v4281, 0.0
      %v4314 = vmax.f32 %v4282, 0.0
      %v4315 = vmax.f32 %v4283, 0.0
      %v4316 = vmax.f32 %v4284, 0.0
      %v4317 = vmax.f32 %v4285, 0.0
      %v4318 = vmax.f32 %v4286, 0.0
      %v4319 = vld [vmem:[%s8] sm:$0xf]
      %v4320 = vld [vmem:[%s8 + $0x4] sm:$0xf]
      %v4321 = vld [vmem:[%s8 + $0x8] sm:$0xf]
      %v4322 = vld [vmem:[%s8 + $0xc] sm:$0xf]
      %v4323 = vld [vmem:[%s8 + $0x10] sm:$0xf]
      %v4324 = vld [vmem:[%s8 + $0x14] sm:$0xf]
      %v4325 = vld [vmem:[%s8 + $0x18] sm:$0xf]
      %v4326 = vld [vmem:[%s8 + $0x1c] sm:$0xf]
      %v4327 = vld [vmem:[%s8 + $0x20] sm:$0xf]
      %v4328 = vld [vmem:[%s9] sm:$0xff]
      %v4329 = vld [vmem:[%s9 + $0x8] sm:$0xff]
      %v4330 = vld [vmem:[%s9 + $0x10] sm:$0xff]
      %v4331 = vld [vmem:[%s9 + $0x18] sm:$0xff]
      %v4332 = vld [vmem:[%s9 + $0x20] sm:$0xff]
      %v4333 = vld [vmem:[%s9 + $0x28] sm:$0xff]
      %v4334 = vld [vmem:[%s9 + $0x30] sm:$0xff]
      %v4335 = vld [vmem:[%s9 + $0x38] sm:$0xff]
      %v4336 = vld [vmem:[%s9 + $0x40] sm:$0xff]
      %v4337 = vld [vmem:[%s9 + $0x48] sm:$0xff]
      %v4338 = vld [vmem:[%s9 + $0x50] sm:$0xff]
      %v4339 = vld [vmem:[%s9 + $0x58] sm:$0xff]
      %v4340 = vld [vmem:[%s9 + $0x60] sm:$0xff]
      %v4341 = vld [vmem:[%s9 + $0x68] sm:$0xff]
      %v4342 = vld [vmem:[%s9 + $0x70] sm:$0xff]
      %v4343 = vld [vmem:[%s9 + $0x78] sm:$0xff]
      %v4344 = vld [vmem:[%s9 + $0x80] sm:$0xff]
      %v4345 = vld [vmem:[%s9 + $0x88] sm:$0xff]
      %v4346 = vld [vmem:[%s9 + $0x90] sm:$0xff]
      %v4347 = vld [vmem:[%s9 + $0x98] sm:$0xff]
      %v4348 = vld [vmem:[%s9 + $0xa0] sm:$0xff]
      %v4349 = vld [vmem:[%s9 + $0xa8] sm:$0xff]
      %v4350 = vld [vmem:[%s9 + $0xb0] sm:$0xff]
      %v4351 = vld [vmem:[%s9 + $0xb8] sm:$0xff]
      %v4352 = vld [vmem:[%s9 + $0xc0] sm:$0xff]
      %v4353 = vld [vmem:[%s9 + $0xc8] sm:$0xff]
      %v4354 = vld [vmem:[%s9 + $0xd0] sm:$0xff]
      %v4355 = vld [vmem:[%s9 + $0xd8] sm:$0xff]
      %v4356 = vld [vmem:[%s9 + $0xe0] sm:$0xff]
      %v4357 = vld [vmem:[%s9 + $0xe8] sm:$0xff]
      %v4358 = vld [vmem:[%s9 + $0xf0] sm:$0xff]
      %v4359 = vld [vmem:[%s9 + $0xf8] sm:$0xff]
      %4360 = vst.msk [vmem:[%s1010 + $0x1] sm:$0xff] %vm415, %v4287
      %4361 = vst.msk [vmem:[%s1010 + $0x9] sm:$0xff] %vm415, %v4288
      %4362 = vst.msk [vmem:[%s1010 + $0x19] sm:$0xff] %vm415, %v4289
      %4363 = vst.msk [vmem:[%s1010 + $0x21] sm:$0xff] %vm415, %v4290
      %4364 = vst.msk [vmem:[%s1010 + $0x31] sm:$0xff] %vm415, %v4291
      %4365 = vst.msk [vmem:[%s1010 + $0x39] sm:$0xff] %vm415, %v4292
      %4366 = vst.msk [vmem:[%s1010 + $0x49] sm:$0xff] %vm415, %v4293
      %4367 = vst.msk [vmem:[%s1010 + $0x51] sm:$0xff] %vm415, %v4294
      %4368 = vst.msk [vmem:[%s1010 + $0x61] sm:$0xff] %vm415, %v4295
      %4369 = vst.msk [vmem:[%s1010 + $0x69] sm:$0xff] %vm415, %v4296
      %4370 = vst.msk [vmem:[%s1010 + $0x79] sm:$0xff] %vm415, %v4297
      %4371 = vst.msk [vmem:[%s1010 + $0x81] sm:$0xff] %vm415, %v4298
      %4372 = vst.msk [vmem:[%s1010 + $0x91] sm:$0xff] %vm415, %v4299
      %4373 = vst.msk [vmem:[%s1010 + $0x99] sm:$0xff] %vm415, %v4300
      %4374 = vst.msk [vmem:[%s1010 + $0xa9] sm:$0xff] %vm415, %v4301
      %4375 = vst.msk [vmem:[%s1010 + $0xb1] sm:$0xff] %vm415, %v4302
      %4376 = vst.msk [vmem:[%s1010 + $0xc1] sm:$0xff] %vm415, %v4303
      %4377 = vst.msk [vmem:[%s1010 + $0xc9] sm:$0xff] %vm415, %v4304
      %4378 = vst.msk [vmem:[%s1010 + $0xd9] sm:$0xff] %vm415, %v4305
      %4379 = vst.msk [vmem:[%s1010 + $0xe1] sm:$0xff] %vm415, %v4306
      %4380 = vst.msk [vmem:[%s1010 + $0xf1] sm:$0xff] %vm415, %v4307
      %4381 = vst.msk [vmem:[%s1010 + $0xf9] sm:$0xff] %vm415, %v4308
      %4382 = vst.msk [vmem:[%s1010 + $0x109] sm:$0xff] %vm415, %v4309
      %4383 = vst.msk [vmem:[%s1010 + $0x111] sm:$0xff] %vm415, %v4310
      %4384 = vst.msk [vmem:[%s1010 + $0x121] sm:$0xff] %vm415, %v4311
      %4385 = vst.msk [vmem:[%s1010 + $0x129] sm:$0xff] %vm415, %v4312
      %4386 = vst.msk [vmem:[%s1010 + $0x139] sm:$0xff] %vm415, %v4313
      %4387 = vst.msk [vmem:[%s1010 + $0x141] sm:$0xff] %vm415, %v4314
      %4388 = vst.msk [vmem:[%s1010 + $0x151] sm:$0xff] %vm415, %v4315
      %4389 = vst.msk [vmem:[%s1010 + $0x159] sm:$0xff] %vm415, %v4316
      %4390 = vst.msk [vmem:[%s1010 + $0x169] sm:$0xff] %vm415, %v4317
      %4391 = vst.msk [vmem:[%s1010 + $0x171] sm:$0xff] %vm415, %v4318
      %v4392 = vld [vmem:[#allocation2] sm:$0xff]
      %v4393 = vld [vmem:[#allocation2 + $0x8] sm:$0xff]
      %v4394 = vld [vmem:[#allocation2 + $0x10] sm:$0x3]
      %v4395 = vld [vmem:[#allocation2 + $0x18] sm:$0xff]
      %v4396 = vld [vmem:[#allocation2 + $0x20] sm:$0xff]
      %v4397 = vld [vmem:[#allocation2 + $0x28] sm:$0x3]
      %v4398 = vld [vmem:[#allocation2 + $0x30] sm:$0xff]
      %v4399 = vld [vmem:[#allocation2 + $0x38] sm:$0xff]
      %v4400 = vld [vmem:[#allocation2 + $0x40] sm:$0x3]
      %v4401 = vld [vmem:[#allocation2 + $0x48] sm:$0xff]
      %v4402 = vld [vmem:[#allocation2 + $0x50] sm:$0xff]
      %v4403 = vld [vmem:[#allocation2 + $0x58] sm:$0x3]
      %v4404 = vld [vmem:[#allocation2 + $0x60] sm:$0xff]
      %v4405 = vld [vmem:[#allocation2 + $0x68] sm:$0xff]
      %v4406 = vld [vmem:[#allocation2 + $0x70] sm:$0x3]
      %v4407 = vld [vmem:[#allocation2 + $0x78] sm:$0xff]
      %v4408 = vld [vmem:[#allocation2 + $0x80] sm:$0xff]
      %v4409 = vld [vmem:[#allocation2 + $0x88] sm:$0x3]
      %v4410 = vld [vmem:[#allocation2 + $0x90] sm:$0xff]
      %v4411 = vld [vmem:[#allocation2 + $0x98] sm:$0xff]
      %v4412 = vld [vmem:[#allocation2 + $0xa0] sm:$0x3]
      %v4413 = vld [vmem:[#allocation2 + $0xa8] sm:$0xff]
      %v4414 = vld [vmem:[#allocation2 + $0xb0] sm:$0xff]
      %v4415 = vld [vmem:[#allocation2 + $0xb8] sm:$0x3]
      %v4416 = vld [vmem:[#allocation2 + $0xc0] sm:$0xff]
      %v4417 = vld [vmem:[#allocation2 + $0xc8] sm:$0xff]
      %v4418 = vld [vmem:[#allocation2 + $0xd0] sm:$0x3]
      %v4419 = vld [vmem:[#allocation2 + $0xd8] sm:$0xff]
      %v4420 = vld [vmem:[#allocation2 + $0xe0] sm:$0xff]
      %v4421 = vld [vmem:[#allocation2 + $0xe8] sm:$0x3]
      %v4422 = vld [vmem:[#allocation2 + $0xf0] sm:$0xff]
      %v4423 = vld [vmem:[#allocation2 + $0xf8] sm:$0xff]
      %v4424 = vld [vmem:[#allocation2 + $0x100] sm:$0x3]
      %v4425 = vld [vmem:[#allocation2 + $0x108] sm:$0xff]
      %v4426 = vld [vmem:[#allocation2 + $0x110] sm:$0xff]
      %v4427 = vld [vmem:[#allocation2 + $0x118] sm:$0x3]
      %v4428 = vld [vmem:[#allocation2 + $0x120] sm:$0xff]
      %v4429 = vld [vmem:[#allocation2 + $0x128] sm:$0xff]
      %v4430 = vld [vmem:[#allocation2 + $0x130] sm:$0x3]
      %v4431 = vld [vmem:[#allocation2 + $0x138] sm:$0xff]
      %v4432 = vld [vmem:[#allocation2 + $0x140] sm:$0xff]
      %v4433 = vld [vmem:[#allocation2 + $0x148] sm:$0x3]
      %v4434 = vld [vmem:[#allocation2 + $0x150] sm:$0xff]
      %v4435 = vld [vmem:[#allocation2 + $0x158] sm:$0xff]
      %v4436 = vld [vmem:[#allocation2 + $0x160] sm:$0x3]
      %v4437 = vld [vmem:[#allocation2 + $0x168] sm:$0xff]
      %v4438 = vld [vmem:[#allocation2 + $0x170] sm:$0xff]
      %v4439 = vld [vmem:[#allocation2 + $0x178] sm:$0x3]
      %v4440 = vld [vmem:[#allocation2 + $0x180] sm:$0xff]
      %v4441 = vld [vmem:[#allocation2 + $0x188] sm:$0xff]
      %v4442 = vld [vmem:[#allocation2 + $0x190] sm:$0x3]
      %v4443 = vld [vmem:[#allocation2 + $0x198] sm:$0xff]
      %v4444 = vld [vmem:[#allocation2 + $0x1a0] sm:$0xff]
      %v4445 = vld [vmem:[#allocation2 + $0x1a8] sm:$0x3]
      %v4494 = vrot.slane %v4392, 1
      %v4495 = vrot.slane %v4393, 1
      %v4496 = vsel %vm1145, %v4494, %v4495
      %v4497 = vrot.slane %v4394, 1
      %v4498 = vsel %vm1145, %v4495, %v4497
      %v4499 = vrot.slane %v4395, 1
      %v4500 = vrot.slane %v4396, 1
      %v4501 = vsel %vm1145, %v4499, %v4500
      %v4502 = vrot.slane %v4397, 1
      %v4503 = vsel %vm1145, %v4500, %v4502
      %v4504 = vrot.slane %v4398, 1
      %v4505 = vrot.slane %v4399, 1
      %v4506 = vsel %vm1145, %v4504, %v4505
      %v4507 = vrot.slane %v4400, 1
      %v4508 = vsel %vm1145, %v4505, %v4507
      %v4509 = vrot.slane %v4401, 1
      %v4510 = vrot.slane %v4402, 1
      %v4511 = vsel %vm1145, %v4509, %v4510
      %v4512 = vrot.slane %v4403, 1
      %v4513 = vsel %vm1145, %v4510, %v4512
      %v4514 = vrot.slane %v4404, 1
      %v4515 = vrot.slane %v4405, 1
      %v4516 = vsel %vm1145, %v4514, %v4515
      %v4517 = vrot.slane %v4406, 1
      %v4518 = vsel %vm1145, %v4515, %v4517
      %v4519 = vrot.slane %v4407, 1
      %v4520 = vrot.slane %v4408, 1
      %v4521 = vsel %vm1145, %v4519, %v4520
      %v4522 = vrot.slane %v4409, 1
      %v4523 = vsel %vm1145, %v4520, %v4522
      %v4524 = vrot.slane %v4410, 1
      %v4525 = vrot.slane %v4411, 1
      %v4526 = vsel %vm1145, %v4524, %v4525
      %v4527 = vrot.slane %v4412, 1
      %v4528 = vsel %vm1145, %v4525, %v4527
      %v4529 = vrot.slane %v4413, 1
      %v4530 = vrot.slane %v4414, 1
      %v4531 = vsel %vm1145, %v4529, %v4530
      %v4532 = vrot.slane %v4415, 1
      %v4533 = vsel %vm1145, %v4530, %v4532
      %v4534 = vrot.slane %v4416, 1
      %v4535 = vrot.slane %v4417, 1
      %v4536 = vsel %vm1145, %v4534, %v4535
      %v4537 = vrot.slane %v4418, 1
      %v4538 = vsel %vm1145, %v4535, %v4537
      %v4539 = vrot.slane %v4419, 1
      %v4540 = vrot.slane %v4420, 1
      %v4541 = vsel %vm1145, %v4539, %v4540
      %v4542 = vrot.slane %v4421, 1
      %v4543 = vsel %vm1145, %v4540, %v4542
      %v4544 = vrot.slane %v4422, 1
      %v4545 = vrot.slane %v4423, 1
      %v4546 = vsel %vm1145, %v4544, %v4545
      %v4547 = vrot.slane %v4424, 1
      %v4548 = vsel %vm1145, %v4545, %v4547
      %v4549 = vrot.slane %v4425, 1
      %v4550 = vrot.slane %v4426, 1
      %v4551 = vsel %vm1145, %v4549, %v4550
      %v4552 = vrot.slane %v4427, 1
      %v4553 = vsel %vm1145, %v4550, %v4552
      %v4554 = vrot.slane %v4428, 1
      %v4555 = vrot.slane %v4429, 1
      %v4556 = vsel %vm1145, %v4554, %v4555
      %v4557 = vrot.slane %v4430, 1
      %v4558 = vsel %vm1145, %v4555, %v4557
      %v4559 = vrot.slane %v4431, 1
      %v4560 = vrot.slane %v4432, 1
      %v4561 = vsel %vm1145, %v4559, %v4560
      %v4562 = vrot.slane %v4433, 1
      %v4563 = vsel %vm1145, %v4560, %v4562
      %v4564 = vrot.slane %v4434, 1
      %v4565 = vrot.slane %v4435, 1
      %v4566 = vsel %vm1145, %v4564, %v4565
      %v4567 = vrot.slane %v4436, 1
      %v4568 = vsel %vm1145, %v4565, %v4567
      %v4569 = vrot.slane %v4437, 1
      %v4570 = vrot.slane %v4438, 1
      %v4571 = vsel %vm1145, %v4569, %v4570
      %v4572 = vrot.slane %v4439, 1
      %v4573 = vsel %vm1145, %v4570, %v4572
      %v4574 = vsel %vm415, %v4496, 0
      %v4576 = vsel %vm415, %v4498, 0
      %v4578 = vsel %vm415, %v4501, 0
      %v4580 = vsel %vm415, %v4503, 0
      %v4582 = vsel %vm415, %v4506, 0
      %v4584 = vsel %vm415, %v4508, 0
      %v4586 = vsel %vm415, %v4511, 0
      %v4588 = vsel %vm415, %v4513, 0
      %v4590 = vsel %vm415, %v4516, 0
      %v4592 = vsel %vm415, %v4518, 0
      %v4594 = vsel %vm415, %v4521, 0
      %v4596 = vsel %vm415, %v4523, 0
      %v4598 = vsel %vm415, %v4526, 0
      %v4600 = vsel %vm415, %v4528, 0
      %v4602 = vsel %vm415, %v4531, 0
      %v4604 = vsel %vm415, %v4533, 0
      %v4606 = vsel %vm415, %v4536, 0
      %v4608 = vsel %vm415, %v4538, 0
      %v4610 = vsel %vm415, %v4541, 0
      %v4612 = vsel %vm415, %v4543, 0
      %v4614 = vsel %vm415, %v4546, 0
      %v4616 = vsel %vm415, %v4548, 0
      %v4618 = vsel %vm415, %v4551, 0
      %v4620 = vsel %vm415, %v4553, 0
      %v4622 = vsel %vm415, %v4556, 0
      %v4624 = vsel %vm415, %v4558, 0
      %v4626 = vsel %vm415, %v4561, 0
      %v4628 = vsel %vm415, %v4563, 0
      %v4630 = vsel %vm415, %v4566, 0
      %v4632 = vsel %vm415, %v4568, 0
      %v4634 = vsel %vm415, %v4571, 0
      %v4636 = vsel %vm415, %v4573, 0
      %v4639 = vsel %vm577, %v4320, 0
      %4641 = vmatprep.subr.mxu0 0.0
      %4642 = vmatpush1.msra.mxu0 0.0
      %4643 = vmatprep.subr.mxu0 0.0
      %4644 = vmatpush1.msra.mxu0 0.0
      %4645 = vmatprep.subr.mxu0 0.0
      %4646 = vmatpush1.msra.mxu0 0.0
      %4647 = vmatprep.subr.mxu0 0.0
      %4648 = vmatpush1.msra.mxu0 0.0
      %4649 = vmatprep.subr.mxu0 0.0
      %4650 = vmatpush1.msra.mxu0 0.0
      %4651 = vmatprep.subr.mxu0 0.0
      %4652 = vmatpush1.msra.mxu0 0.0
      %4653 = vmatprep.subr.mxu0 0.0
      %4654 = vmatpush1.msra.mxu0 0.0
      %4655 = vmatprep.subr.mxu0 0.0
      %4656 = vmatpush1.msra.mxu0 0.0
      %4657 = vmatprep.subr.mxu0 0.0
      %4658 = vmatpush1.msra.mxu0 0.0
      %4659 = vmatprep.subr.mxu0 0.0
      %4660 = vmatpush1.msra.mxu0 0.0
      %4661 = vmatprep.subr.mxu0 0.0
      %4662 = vmatpush1.msra.mxu0 0.0
      %4663 = vmatprep.subr.mxu0 0.0
      %4664 = vmatpush1.msra.mxu0 0.0
      %4665 = vmatprep.subr.mxu0 0.0
      %4666 = vmatpush1.msra.mxu0 0.0
      %4667 = vmatprep.subr.mxu0 0.0
      %4668 = vmatpush1.msra.mxu0 0.0
      %4669 = vmatprep.subr.mxu0 0.0
      %4670 = vmatpush1.msra.mxu0 0.0
      %4671 = vmatprep.subr.mxu0 0.0
      %4672 = vmatpush1.msra.mxu0 %v4639
      %4673 = vmatprep.subr.mxu0 0.0
      %4674 = vmatpush2.msra.mxu0 0.0
      %4675 = vmatprep.subr.mxu0 0.0
      %4676 = vmatpush2.msra.mxu0 0.0
      %4677 = vmatprep.subr.mxu0 0.0
      %4678 = vmatpush2.msra.mxu0 0.0
      %4679 = vmatprep.subr.mxu0 0.0
      %4680 = vmatpush2.msra.mxu0 0.0
      %4681 = vmatprep.subr.mxu0 0.0
      %4682 = vmatpush2.msra.mxu0 0.0
      %4683 = vmatprep.subr.mxu0 0.0
      %4684 = vmatpush2.msra.mxu0 0.0
      %4685 = vmatprep.subr.mxu0 0.0
      %4686 = vmatpush2.msra.mxu0 0.0
      %4687 = vmatprep.subr.mxu0 0.0
      %4688 = vmatpush2.msra.mxu0 0.0
      %4689 = vmatprep.subr.mxu0 0.0
      %4690 = vmatpush2.msra.mxu0 0.0
      %4691 = vmatprep.subr.mxu0 0.0
      %4692 = vmatpush2.msra.mxu0 0.0
      %4693 = vmatprep.subr.mxu0 0.0
      %4694 = vmatpush2.msra.mxu0 0.0
      %4695 = vmatprep.subr.mxu0 0.0
      %4696 = vmatpush2.msra.mxu0 0.0
      %4697 = vmatprep.subr.mxu0 0.0
      %4698 = vmatpush2.msra.mxu0 0.0
      %4699 = vmatprep.subr.mxu0 0.0
      %4700 = vmatpush2.msra.mxu0 0.0
      %4701 = vmatprep.subr.mxu0 0.0
      %4702 = vmatpush2.msra.mxu0 0.0
      %4703 = vmatprep.subr.mxu0 0.0
      %4704 = vmatpush2.msra.mxu0 0.0
      %4705 = vmatprep.mubr.f32.mxu0 0.0
      %4706 = vmatmul.mubr.f32.gmra.mxu0 %v4574
      %v4707 = vpop.f32.mrf.mxu0
      %v4708 = vadd.f32 0.0, %v4707
      %v4709 = vpop.f32.mrf.mxu0
      %4710 = vmatprep.mubr.f32.mxu0 0.0
      %4711 = vmatmul.mubr.f32.gmra.mxu0 %v4576
      %v4712 = vpop.f32.mrf.mxu0
      %v4713 = vadd.f32 0.0, %v4712
      %v4714 = vpop.f32.mrf.mxu0
      %4715 = vmatprep.mubr.f32.mxu0 0.0
      %4716 = vmatmul.mubr.f32.gmra.mxu0 %v4578
      %v4717 = vpop.f32.mrf.mxu0
      %v4718 = vadd.f32 0.0, %v4717
      %v4719 = vpop.f32.mrf.mxu0
      %4720 = vmatprep.mubr.f32.mxu0 0.0
      %4721 = vmatmul.mubr.f32.gmra.mxu0 %v4580
      %v4722 = vpop.f32.mrf.mxu0
      %v4723 = vadd.f32 0.0, %v4722
      %v4724 = vpop.f32.mrf.mxu0
      %4725 = vmatprep.mubr.f32.mxu0 0.0
      %4726 = vmatmul.mubr.f32.gmra.mxu0 %v4582
      %v4727 = vpop.f32.mrf.mxu0
      %v4728 = vadd.f32 0.0, %v4727
      %v4729 = vpop.f32.mrf.mxu0
      %4730 = vmatprep.mubr.f32.mxu0 0.0
      %4731 = vmatmul.mubr.f32.gmra.mxu0 %v4584
      %v4732 = vpop.f32.mrf.mxu0
      %v4733 = vadd.f32 0.0, %v4732
      %v4734 = vpop.f32.mrf.mxu0
      %4735 = vmatprep.mubr.f32.mxu0 0.0
      %4736 = vmatmul.mubr.f32.gmra.mxu0 %v4586
      %v4737 = vpop.f32.mrf.mxu0
      %v4738 = vadd.f32 0.0, %v4737
      %v4739 = vpop.f32.mrf.mxu0
      %4740 = vmatprep.mubr.f32.mxu0 0.0
      %4741 = vmatmul.mubr.f32.gmra.mxu0 %v4588
      %v4742 = vpop.f32.mrf.mxu0
      %v4743 = vadd.f32 0.0, %v4742
      %v4744 = vpop.f32.mrf.mxu0
      %4745 = vmatprep.mubr.f32.mxu0 0.0
      %4746 = vmatmul.mubr.f32.gmra.mxu0 %v4590
      %v4747 = vpop.f32.mrf.mxu0
      %v4748 = vadd.f32 0.0, %v4747
      %v4749 = vpop.f32.mrf.mxu0
      %4750 = vmatprep.mubr.f32.mxu0 0.0
      %4751 = vmatmul.mubr.f32.gmra.mxu0 %v4592
      %v4752 = vpop.f32.mrf.mxu0
      %v4753 = vadd.f32 0.0, %v4752
      %v4754 = vpop.f32.mrf.mxu0
      %4755 = vmatprep.mubr.f32.mxu0 0.0
      %4756 = vmatmul.mubr.f32.gmra.mxu0 %v4594
      %v4757 = vpop.f32.mrf.mxu0
      %v4758 = vadd.f32 0.0, %v4757
      %v4759 = vpop.f32.mrf.mxu0
      %4760 = vmatprep.mubr.f32.mxu0 0.0
      %4761 = vmatmul.mubr.f32.gmra.mxu0 %v4596
      %v4762 = vpop.f32.mrf.mxu0
      %v4763 = vadd.f32 0.0, %v4762
      %v4764 = vpop.f32.mrf.mxu0
      %4765 = vmatprep.mubr.f32.mxu0 0.0
      %4766 = vmatmul.mubr.f32.gmra.mxu0 %v4598
      %v4767 = vpop.f32.mrf.mxu0
      %v4768 = vadd.f32 0.0, %v4767
      %v4769 = vpop.f32.mrf.mxu0
      %4770 = vmatprep.mubr.f32.mxu0 0.0
      %4771 = vmatmul.mubr.f32.gmra.mxu0 %v4600
      %v4772 = vpop.f32.mrf.mxu0
      %v4773 = vadd.f32 0.0, %v4772
      %v4774 = vpop.f32.mrf.mxu0
      %4775 = vmatprep.mubr.f32.mxu0 0.0
      %4776 = vmatmul.mubr.f32.gmra.mxu0 %v4602
      %v4777 = vpop.f32.mrf.mxu0
      %v4778 = vadd.f32 0.0, %v4777
      %v4779 = vpop.f32.mrf.mxu0
      %4780 = vmatprep.mubr.f32.mxu0 0.0
      %4781 = vmatmul.mubr.f32.gmra.mxu0 %v4604
      %v4782 = vpop.f32.mrf.mxu0
      %v4783 = vadd.f32 0.0, %v4782
      %v4784 = vpop.f32.mrf.mxu0
      %4785 = vmatprep.mubr.f32.mxu0 0.0
      %4786 = vmatmul.mubr.f32.gmra.mxu0 %v4606
      %v4787 = vpop.f32.mrf.mxu0
      %v4788 = vadd.f32 0.0, %v4787
      %v4789 = vpop.f32.mrf.mxu0
      %4790 = vmatprep.mubr.f32.mxu0 0.0
      %4791 = vmatmul.mubr.f32.gmra.mxu0 %v4608
      %v4792 = vpop.f32.mrf.mxu0
      %v4793 = vadd.f32 0.0, %v4792
      %v4794 = vpop.f32.mrf.mxu0
      %4795 = vmatprep.mubr.f32.mxu0 0.0
      %4796 = vmatmul.mubr.f32.gmra.mxu0 %v4610
      %v4797 = vpop.f32.mrf.mxu0
      %v4798 = vadd.f32 0.0, %v4797
      %v4799 = vpop.f32.mrf.mxu0
      %4800 = vmatprep.mubr.f32.mxu0 0.0
      %4801 = vmatmul.mubr.f32.gmra.mxu0 %v4612
      %v4802 = vpop.f32.mrf.mxu0
      %v4803 = vadd.f32 0.0, %v4802
      %v4804 = vpop.f32.mrf.mxu0
      %4805 = vmatprep.mubr.f32.mxu0 0.0
      %4806 = vmatmul.mubr.f32.gmra.mxu0 %v4614
      %v4807 = vpop.f32.mrf.mxu0
      %v4808 = vadd.f32 0.0, %v4807
      %v4809 = vpop.f32.mrf.mxu0
      %4810 = vmatprep.mubr.f32.mxu0 0.0
      %4811 = vmatmul.mubr.f32.gmra.mxu0 %v4616
      %v4812 = vpop.f32.mrf.mxu0
      %v4813 = vadd.f32 0.0, %v4812
      %v4814 = vpop.f32.mrf.mxu0
      %4815 = vmatprep.mubr.f32.mxu0 0.0
      %4816 = vmatmul.mubr.f32.gmra.mxu0 %v4618
      %v4817 = vpop.f32.mrf.mxu0
      %v4818 = vadd.f32 0.0, %v4817
      %v4819 = vpop.f32.mrf.mxu0
      %4820 = vmatprep.mubr.f32.mxu0 0.0
      %4821 = vmatmul.mubr.f32.gmra.mxu0 %v4620
      %v4822 = vpop.f32.mrf.mxu0
      %v4823 = vadd.f32 0.0, %v4822
      %v4824 = vpop.f32.mrf.mxu0
      %4825 = vmatprep.mubr.f32.mxu0 0.0
      %4826 = vmatmul.mubr.f32.gmra.mxu0 %v4622
      %v4827 = vpop.f32.mrf.mxu0
      %v4828 = vadd.f32 0.0, %v4827
      %v4829 = vpop.f32.mrf.mxu0
      %4830 = vmatprep.mubr.f32.mxu0 0.0
      %4831 = vmatmul.mubr.f32.gmra.mxu0 %v4624
      %v4832 = vpop.f32.mrf.mxu0
      %v4833 = vadd.f32 0.0, %v4832
      %v4834 = vpop.f32.mrf.mxu0
      %4835 = vmatprep.mubr.f32.mxu0 0.0
      %4836 = vmatmul.mubr.f32.gmra.mxu0 %v4626
      %v4837 = vpop.f32.mrf.mxu0
      %v4838 = vadd.f32 0.0, %v4837
      %v4839 = vpop.f32.mrf.mxu0
      %4840 = vmatprep.mubr.f32.mxu0 0.0
      %4841 = vmatmul.mubr.f32.gmra.mxu0 %v4628
      %v4842 = vpop.f32.mrf.mxu0
      %v4843 = vadd.f32 0.0, %v4842
      %v4844 = vpop.f32.mrf.mxu0
      %4845 = vmatprep.mubr.f32.mxu0 0.0
      %4846 = vmatmul.mubr.f32.gmra.mxu0 %v4630
      %v4847 = vpop.f32.mrf.mxu0
      %v4848 = vadd.f32 0.0, %v4847
      %v4849 = vpop.f32.mrf.mxu0
      %4850 = vmatprep.mubr.f32.mxu0 0.0
      %4851 = vmatmul.mubr.f32.gmra.mxu0 %v4632
      %v4852 = vpop.f32.mrf.mxu0
      %v4853 = vadd.f32 0.0, %v4852
      %v4854 = vpop.f32.mrf.mxu0
      %4855 = vmatprep.mubr.f32.mxu0 0.0
      %4856 = vmatmul.mubr.f32.gmra.mxu0 %v4634
      %v4857 = vpop.f32.mrf.mxu0
      %v4858 = vadd.f32 0.0, %v4857
      %v4859 = vpop.f32.mrf.mxu0
      %4860 = vmatprep.mubr.f32.mxu0 0.0
      %4861 = vmatmul.mubr.f32.gmra.mxu0 %v4636
      %v4862 = vpop.f32.mrf.mxu0
      %v4863 = vadd.f32 0.0, %v4862
      %v4864 = vpop.f32.mrf.mxu0
      %4865 = vdwg.mxu0
      %v4866 = vsel %vm415, %v4392, 0
      %v4868 = vsel %vm415, %v4393, 0
      %v4870 = vsel %vm415, %v4395, 0
      %v4872 = vsel %vm415, %v4396, 0
      %v4874 = vsel %vm415, %v4398, 0
      %v4876 = vsel %vm415, %v4399, 0
      %v4878 = vsel %vm415, %v4401, 0
      %v4880 = vsel %vm415, %v4402, 0
      %v4882 = vsel %vm415, %v4404, 0
      %v4884 = vsel %vm415, %v4405, 0
      %v4886 = vsel %vm415, %v4407, 0
      %v4888 = vsel %vm415, %v4408, 0
      %v4890 = vsel %vm415, %v4410, 0
      %v4892 = vsel %vm415, %v4411, 0
      %v4894 = vsel %vm415, %v4413, 0
      %v4896 = vsel %vm415, %v4414, 0
      %v4898 = vsel %vm415, %v4416, 0
      %v4900 = vsel %vm415, %v4417, 0
      %v4902 = vsel %vm415, %v4419, 0
      %v4904 = vsel %vm415, %v4420, 0
      %v4906 = vsel %vm415, %v4422, 0
      %v4908 = vsel %vm415, %v4423, 0
      %v4910 = vsel %vm415, %v4425, 0
      %v4912 = vsel %vm415, %v4426, 0
      %v4914 = vsel %vm415, %v4428, 0
      %v4916 = vsel %vm415, %v4429, 0
      %v4918 = vsel %vm415, %v4431, 0
      %v4920 = vsel %vm415, %v4432, 0
      %v4922 = vsel %vm415, %v4434, 0
      %v4924 = vsel %vm415, %v4435, 0
      %v4926 = vsel %vm415, %v4437, 0
      %v4928 = vsel %vm415, %v4438, 0
      %v4931 = vsel %vm577, %v4319, 0
      %4933 = vmatprep.subr.mxu0 0.0
      %4934 = vmatpush1.msra.mxu0 0.0
      %4935 = vmatprep.subr.mxu0 0.0
      %4936 = vmatpush1.msra.mxu0 0.0
      %4937 = vmatprep.subr.mxu0 0.0
      %4938 = vmatpush1.msra.mxu0 0.0
      %4939 = vmatprep.subr.mxu0 0.0
      %4940 = vmatpush1.msra.mxu0 0.0
      %4941 = vmatprep.subr.mxu0 0.0
      %4942 = vmatpush1.msra.mxu0 0.0
      %4943 = vmatprep.subr.mxu0 0.0
      %4944 = vmatpush1.msra.mxu0 0.0
      %4945 = vmatprep.subr.mxu0 0.0
      %4946 = vmatpush1.msra.mxu0 0.0
      %4947 = vmatprep.subr.mxu0 0.0
      %4948 = vmatpush1.msra.mxu0 0.0
      %4949 = vmatprep.subr.mxu0 0.0
      %4950 = vmatpush1.msra.mxu0 0.0
      %4951 = vmatprep.subr.mxu0 0.0
      %4952 = vmatpush1.msra.mxu0 0.0
      %4953 = vmatprep.subr.mxu0 0.0
      %4954 = vmatpush1.msra.mxu0 0.0
      %4955 = vmatprep.subr.mxu0 0.0
      %4956 = vmatpush1.msra.mxu0 0.0
      %4957 = vmatprep.subr.mxu0 0.0
      %4958 = vmatpush1.msra.mxu0 0.0
      %4959 = vmatprep.subr.mxu0 0.0
      %4960 = vmatpush1.msra.mxu0 0.0
      %4961 = vmatprep.subr.mxu0 0.0
      %4962 = vmatpush1.msra.mxu0 0.0
      %4963 = vmatprep.subr.mxu0 0.0
      %4964 = vmatpush1.msra.mxu0 %v4931
      %4965 = vmatprep.subr.mxu0 0.0
      %4966 = vmatpush2.msra.mxu0 0.0
      %4967 = vmatprep.subr.mxu0 0.0
      %4968 = vmatpush2.msra.mxu0 0.0
      %4969 = vmatprep.subr.mxu0 0.0
      %4970 = vmatpush2.msra.mxu0 0.0
      %4971 = vmatprep.subr.mxu0 0.0
      %4972 = vmatpush2.msra.mxu0 0.0
      %4973 = vmatprep.subr.mxu0 0.0
      %4974 = vmatpush2.msra.mxu0 0.0
      %4975 = vmatprep.subr.mxu0 0.0
      %4976 = vmatpush2.msra.mxu0 0.0
      %4977 = vmatprep.subr.mxu0 0.0
      %4978 = vmatpush2.msra.mxu0 0.0
      %4979 = vmatprep.subr.mxu0 0.0
      %4980 = vmatpush2.msra.mxu0 0.0
      %4981 = vmatprep.subr.mxu0 0.0
      %4982 = vmatpush2.msra.mxu0 0.0
      %4983 = vmatprep.subr.mxu0 0.0
      %4984 = vmatpush2.msra.mxu0 0.0
      %4985 = vmatprep.subr.mxu0 0.0
      %4986 = vmatpush2.msra.mxu0 0.0
      %4987 = vmatprep.subr.mxu0 0.0
      %4988 = vmatpush2.msra.mxu0 0.0
      %4989 = vmatprep.subr.mxu0 0.0
      %4990 = vmatpush2.msra.mxu0 0.0
      %4991 = vmatprep.subr.mxu0 0.0
      %4992 = vmatpush2.msra.mxu0 0.0
      %4993 = vmatprep.subr.mxu0 0.0
      %4994 = vmatpush2.msra.mxu0 0.0
      %4995 = vmatprep.subr.mxu0 0.0
      %4996 = vmatpush2.msra.mxu0 0.0
      %4997 = vmatprep.mubr.f32.mxu0 0.0
      %4998 = vmatmul.mubr.f32.gmra.mxu0 %v4866
      %v4999 = vpop.f32.mrf.mxu0
      %v5000 = vadd.f32 %v4708, %v4999
      %v5001 = vpop.f32.mrf.mxu0
      %5002 = vmatprep.mubr.f32.mxu0 0.0
      %5003 = vmatmul.mubr.f32.gmra.mxu0 %v4868
      %v5004 = vpop.f32.mrf.mxu0
      %v5005 = vadd.f32 %v4713, %v5004
      %v5006 = vpop.f32.mrf.mxu0
      %5007 = vmatprep.mubr.f32.mxu0 0.0
      %5008 = vmatmul.mubr.f32.gmra.mxu0 %v4870
      %v5009 = vpop.f32.mrf.mxu0
      %v5010 = vadd.f32 %v4718, %v5009
      %v5011 = vpop.f32.mrf.mxu0
      %5012 = vmatprep.mubr.f32.mxu0 0.0
      %5013 = vmatmul.mubr.f32.gmra.mxu0 %v4872
      %v5014 = vpop.f32.mrf.mxu0
      %v5015 = vadd.f32 %v4723, %v5014
      %v5016 = vpop.f32.mrf.mxu0
      %5017 = vmatprep.mubr.f32.mxu0 0.0
      %5018 = vmatmul.mubr.f32.gmra.mxu0 %v4874
      %v5019 = vpop.f32.mrf.mxu0
      %v5020 = vadd.f32 %v4728, %v5019
      %v5021 = vpop.f32.mrf.mxu0
      %5022 = vmatprep.mubr.f32.mxu0 0.0
      %5023 = vmatmul.mubr.f32.gmra.mxu0 %v4876
      %v5024 = vpop.f32.mrf.mxu0
      %v5025 = vadd.f32 %v4733, %v5024
      %v5026 = vpop.f32.mrf.mxu0
      %5027 = vmatprep.mubr.f32.mxu0 0.0
      %5028 = vmatmul.mubr.f32.gmra.mxu0 %v4878
      %v5029 = vpop.f32.mrf.mxu0
      %v5030 = vadd.f32 %v4738, %v5029
      %v5031 = vpop.f32.mrf.mxu0
      %5032 = vmatprep.mubr.f32.mxu0 0.0
      %5033 = vmatmul.mubr.f32.gmra.mxu0 %v4880
      %v5034 = vpop.f32.mrf.mxu0
      %v5035 = vadd.f32 %v4743, %v5034
      %v5036 = vpop.f32.mrf.mxu0
      %5037 = vmatprep.mubr.f32.mxu0 0.0
      %5038 = vmatmul.mubr.f32.gmra.mxu0 %v4882
      %v5039 = vpop.f32.mrf.mxu0
      %v5040 = vadd.f32 %v4748, %v5039
      %v5041 = vpop.f32.mrf.mxu0
      %5042 = vmatprep.mubr.f32.mxu0 0.0
      %5043 = vmatmul.mubr.f32.gmra.mxu0 %v4884
      %v5044 = vpop.f32.mrf.mxu0
      %v5045 = vadd.f32 %v4753, %v5044
      %v5046 = vpop.f32.mrf.mxu0
      %5047 = vmatprep.mubr.f32.mxu0 0.0
      %5048 = vmatmul.mubr.f32.gmra.mxu0 %v4886
      %v5049 = vpop.f32.mrf.mxu0
      %v5050 = vadd.f32 %v4758, %v5049
      %v5051 = vpop.f32.mrf.mxu0
      %5052 = vmatprep.mubr.f32.mxu0 0.0
      %5053 = vmatmul.mubr.f32.gmra.mxu0 %v4888
      %v5054 = vpop.f32.mrf.mxu0
      %v5055 = vadd.f32 %v4763, %v5054
      %v5056 = vpop.f32.mrf.mxu0
      %5057 = vmatprep.mubr.f32.mxu0 0.0
      %5058 = vmatmul.mubr.f32.gmra.mxu0 %v4890
      %v5059 = vpop.f32.mrf.mxu0
      %v5060 = vadd.f32 %v4768, %v5059
      %v5061 = vpop.f32.mrf.mxu0
      %5062 = vmatprep.mubr.f32.mxu0 0.0
      %5063 = vmatmul.mubr.f32.gmra.mxu0 %v4892
      %v5064 = vpop.f32.mrf.mxu0
      %v5065 = vadd.f32 %v4773, %v5064
      %v5066 = vpop.f32.mrf.mxu0
      %5067 = vmatprep.mubr.f32.mxu0 0.0
      %5068 = vmatmul.mubr.f32.gmra.mxu0 %v4894
      %v5069 = vpop.f32.mrf.mxu0
      %v5070 = vadd.f32 %v4778, %v5069
      %v5071 = vpop.f32.mrf.mxu0
      %5072 = vmatprep.mubr.f32.mxu0 0.0
      %5073 = vmatmul.mubr.f32.gmra.mxu0 %v4896
      %v5074 = vpop.f32.mrf.mxu0
      %v5075 = vadd.f32 %v4783, %v5074
      %v5076 = vpop.f32.mrf.mxu0
      %5077 = vmatprep.mubr.f32.mxu0 0.0
      %5078 = vmatmul.mubr.f32.gmra.mxu0 %v4898
      %v5079 = vpop.f32.mrf.mxu0
      %v5080 = vadd.f32 %v4788, %v5079
      %v5081 = vpop.f32.mrf.mxu0
      %5082 = vmatprep.mubr.f32.mxu0 0.0
      %5083 = vmatmul.mubr.f32.gmra.mxu0 %v4900
      %v5084 = vpop.f32.mrf.mxu0
      %v5085 = vadd.f32 %v4793, %v5084
      %v5086 = vpop.f32.mrf.mxu0
      %5087 = vmatprep.mubr.f32.mxu0 0.0
      %5088 = vmatmul.mubr.f32.gmra.mxu0 %v4902
      %v5089 = vpop.f32.mrf.mxu0
      %v5090 = vadd.f32 %v4798, %v5089
      %v5091 = vpop.f32.mrf.mxu0
      %5092 = vmatprep.mubr.f32.mxu0 0.0
      %5093 = vmatmul.mubr.f32.gmra.mxu0 %v4904
      %v5094 = vpop.f32.mrf.mxu0
      %v5095 = vadd.f32 %v4803, %v5094
      %v5096 = vpop.f32.mrf.mxu0
      %5097 = vmatprep.mubr.f32.mxu0 0.0
      %5098 = vmatmul.mubr.f32.gmra.mxu0 %v4906
      %v5099 = vpop.f32.mrf.mxu0
      %v5100 = vadd.f32 %v4808, %v5099
      %v5101 = vpop.f32.mrf.mxu0
      %5102 = vmatprep.mubr.f32.mxu0 0.0
      %5103 = vmatmul.mubr.f32.gmra.mxu0 %v4908
      %v5104 = vpop.f32.mrf.mxu0
      %v5105 = vadd.f32 %v4813, %v5104
      %v5106 = vpop.f32.mrf.mxu0
      %5107 = vmatprep.mubr.f32.mxu0 0.0
      %5108 = vmatmul.mubr.f32.gmra.mxu0 %v4910
      %v5109 = vpop.f32.mrf.mxu0
      %v5110 = vadd.f32 %v4818, %v5109
      %v5111 = vpop.f32.mrf.mxu0
      %5112 = vmatprep.mubr.f32.mxu0 0.0
      %5113 = vmatmul.mubr.f32.gmra.mxu0 %v4912
      %v5114 = vpop.f32.mrf.mxu0
      %v5115 = vadd.f32 %v4823, %v5114
      %v5116 = vpop.f32.mrf.mxu0
      %5117 = vmatprep.mubr.f32.mxu0 0.0
      %5118 = vmatmul.mubr.f32.gmra.mxu0 %v4914
      %v5119 = vpop.f32.mrf.mxu0
      %v5120 = vadd.f32 %v4828, %v5119
      %v5121 = vpop.f32.mrf.mxu0
      %5122 = vmatprep.mubr.f32.mxu0 0.0
      %5123 = vmatmul.mubr.f32.gmra.mxu0 %v4916
      %v5124 = vpop.f32.mrf.mxu0
      %v5125 = vadd.f32 %v4833, %v5124
      %v5126 = vpop.f32.mrf.mxu0
      %5127 = vmatprep.mubr.f32.mxu0 0.0
      %5128 = vmatmul.mubr.f32.gmra.mxu0 %v4918
      %v5129 = vpop.f32.mrf.mxu0
      %v5130 = vadd.f32 %v4838, %v5129
      %v5131 = vpop.f32.mrf.mxu0
      %5132 = vmatprep.mubr.f32.mxu0 0.0
      %5133 = vmatmul.mubr.f32.gmra.mxu0 %v4920
      %v5134 = vpop.f32.mrf.mxu0
      %v5135 = vadd.f32 %v4843, %v5134
      %v5136 = vpop.f32.mrf.mxu0
      %5137 = vmatprep.mubr.f32.mxu0 0.0
      %5138 = vmatmul.mubr.f32.gmra.mxu0 %v4922
      %v5139 = vpop.f32.mrf.mxu0
      %v5140 = vadd.f32 %v4848, %v5139
      %v5141 = vpop.f32.mrf.mxu0
      %5142 = vmatprep.mubr.f32.mxu0 0.0
      %5143 = vmatmul.mubr.f32.gmra.mxu0 %v4924
      %v5144 = vpop.f32.mrf.mxu0
      %v5145 = vadd.f32 %v4853, %v5144
      %v5146 = vpop.f32.mrf.mxu0
      %5147 = vmatprep.mubr.f32.mxu0 0.0
      %5148 = vmatmul.mubr.f32.gmra.mxu0 %v4926
      %v5149 = vpop.f32.mrf.mxu0
      %v5150 = vadd.f32 %v4858, %v5149
      %v5151 = vpop.f32.mrf.mxu0
      %5152 = vmatprep.mubr.f32.mxu0 0.0
      %5153 = vmatmul.mubr.f32.gmra.mxu0 %v4928
      %v5154 = vpop.f32.mrf.mxu0
      %v5155 = vadd.f32 %v4863, %v5154
      %v5156 = vpop.f32.mrf.mxu0
      %5157 = vdwg.mxu0
      %v5158 = vrot.slane %v4392, 2
      %v5159 = vrot.slane %v4393, 2
      %v5160 = vsel %vm1810, %v5158, %v5159
      %v5161 = vrot.slane %v4394, 2
      %v5162 = vsel %vm1810, %v5159, %v5161
      %v5163 = vrot.slane %v4395, 2
      %v5164 = vrot.slane %v4396, 2
      %v5165 = vsel %vm1810, %v5163, %v5164
      %v5166 = vrot.slane %v4397, 2
      %v5167 = vsel %vm1810, %v5164, %v5166
      %v5168 = vrot.slane %v4398, 2
      %v5169 = vrot.slane %v4399, 2
      %v5170 = vsel %vm1810, %v5168, %v5169
      %v5171 = vrot.slane %v4400, 2
      %v5172 = vsel %vm1810, %v5169, %v5171
      %v5173 = vrot.slane %v4401, 2
      %v5174 = vrot.slane %v4402, 2
      %v5175 = vsel %vm1810, %v5173, %v5174
      %v5176 = vrot.slane %v4403, 2
      %v5177 = vsel %vm1810, %v5174, %v5176
      %v5178 = vrot.slane %v4404, 2
      %v5179 = vrot.slane %v4405, 2
      %v5180 = vsel %vm1810, %v5178, %v5179
      %v5181 = vrot.slane %v4406, 2
      %v5182 = vsel %vm1810, %v5179, %v5181
      %v5183 = vrot.slane %v4407, 2
      %v5184 = vrot.slane %v4408, 2
      %v5185 = vsel %vm1810, %v5183, %v5184
      %v5186 = vrot.slane %v4409, 2
      %v5187 = vsel %vm1810, %v5184, %v5186
      %v5188 = vrot.slane %v4410, 2
      %v5189 = vrot.slane %v4411, 2
      %v5190 = vsel %vm1810, %v5188, %v5189
      %v5191 = vrot.slane %v4412, 2
      %v5192 = vsel %vm1810, %v5189, %v5191
      %v5193 = vrot.slane %v4413, 2
      %v5194 = vrot.slane %v4414, 2
      %v5195 = vsel %vm1810, %v5193, %v5194
      %v5196 = vrot.slane %v4415, 2
      %v5197 = vsel %vm1810, %v5194, %v5196
      %v5198 = vrot.slane %v4416, 2
      %v5199 = vrot.slane %v4417, 2
      %v5200 = vsel %vm1810, %v5198, %v5199
      %v5201 = vrot.slane %v4418, 2
      %v5202 = vsel %vm1810, %v5199, %v5201
      %v5203 = vrot.slane %v4419, 2
      %v5204 = vrot.slane %v4420, 2
      %v5205 = vsel %vm1810, %v5203, %v5204
      %v5206 = vrot.slane %v4421, 2
      %v5207 = vsel %vm1810, %v5204, %v5206
      %v5208 = vrot.slane %v4422, 2
      %v5209 = vrot.slane %v4423, 2
      %v5210 = vsel %vm1810, %v5208, %v5209
      %v5211 = vrot.slane %v4424, 2
      %v5212 = vsel %vm1810, %v5209, %v5211
      %v5213 = vrot.slane %v4425, 2
      %v5214 = vrot.slane %v4426, 2
      %v5215 = vsel %vm1810, %v5213, %v5214
      %v5216 = vrot.slane %v4427, 2
      %v5217 = vsel %vm1810, %v5214, %v5216
      %v5218 = vrot.slane %v4428, 2
      %v5219 = vrot.slane %v4429, 2
      %v5220 = vsel %vm1810, %v5218, %v5219
      %v5221 = vrot.slane %v4430, 2
      %v5222 = vsel %vm1810, %v5219, %v5221
      %v5223 = vrot.slane %v4431, 2
      %v5224 = vrot.slane %v4432, 2
      %v5225 = vsel %vm1810, %v5223, %v5224
      %v5226 = vrot.slane %v4433, 2
      %v5227 = vsel %vm1810, %v5224, %v5226
      %v5228 = vrot.slane %v4434, 2
      %v5229 = vrot.slane %v4435, 2
      %v5230 = vsel %vm1810, %v5228, %v5229
      %v5231 = vrot.slane %v4436, 2
      %v5232 = vsel %vm1810, %v5229, %v5231
      %v5233 = vrot.slane %v4437, 2
      %v5234 = vrot.slane %v4438, 2
      %v5235 = vsel %vm1810, %v5233, %v5234
      %v5236 = vrot.slane %v4439, 2
      %v5237 = vsel %vm1810, %v5234, %v5236
      %v5238 = vsel %vm415, %v5160, 0
      %v5240 = vsel %vm415, %v5162, 0
      %v5242 = vsel %vm415, %v5165, 0
      %v5244 = vsel %vm415, %v5167, 0
      %v5246 = vsel %vm415, %v5170, 0
      %v5248 = vsel %vm415, %v5172, 0
      %v5250 = vsel %vm415, %v5175, 0
      %v5252 = vsel %vm415, %v5177, 0
      %v5254 = vsel %vm415, %v5180, 0
      %v5256 = vsel %vm415, %v5182, 0
      %v5258 = vsel %vm415, %v5185, 0
      %v5260 = vsel %vm415, %v5187, 0
      %v5262 = vsel %vm415, %v5190, 0
      %v5264 = vsel %vm415, %v5192, 0
      %v5266 = vsel %vm415, %v5195, 0
      %v5268 = vsel %vm415, %v5197, 0
      %v5270 = vsel %vm415, %v5200, 0
      %v5272 = vsel %vm415, %v5202, 0
      %v5274 = vsel %vm415, %v5205, 0
      %v5276 = vsel %vm415, %v5207, 0
      %v5278 = vsel %vm415, %v5210, 0
      %v5280 = vsel %vm415, %v5212, 0
      %v5282 = vsel %vm415, %v5215, 0
      %v5284 = vsel %vm415, %v5217, 0
      %v5286 = vsel %vm415, %v5220, 0
      %v5288 = vsel %vm415, %v5222, 0
      %v5290 = vsel %vm415, %v5225, 0
      %v5292 = vsel %vm415, %v5227, 0
      %v5294 = vsel %vm415, %v5230, 0
      %v5296 = vsel %vm415, %v5232, 0
      %v5298 = vsel %vm415, %v5235, 0
      %v5300 = vsel %vm415, %v5237, 0
      %v5303 = vsel %vm577, %v4321, 0
      %5305 = vmatprep.subr.mxu0 0.0
      %5306 = vmatpush1.msra.mxu0 0.0
      %5307 = vmatprep.subr.mxu0 0.0
      %5308 = vmatpush1.msra.mxu0 0.0
      %5309 = vmatprep.subr.mxu0 0.0
      %5310 = vmatpush1.msra.mxu0 0.0
      %5311 = vmatprep.subr.mxu0 0.0
      %5312 = vmatpush1.msra.mxu0 0.0
      %5313 = vmatprep.subr.mxu0 0.0
      %5314 = vmatpush1.msra.mxu0 0.0
      %5315 = vmatprep.subr.mxu0 0.0
      %5316 = vmatpush1.msra.mxu0 0.0
      %5317 = vmatprep.subr.mxu0 0.0
      %5318 = vmatpush1.msra.mxu0 0.0
      %5319 = vmatprep.subr.mxu0 0.0
      %5320 = vmatpush1.msra.mxu0 0.0
      %5321 = vmatprep.subr.mxu0 0.0
      %5322 = vmatpush1.msra.mxu0 0.0
      %5323 = vmatprep.subr.mxu0 0.0
      %5324 = vmatpush1.msra.mxu0 0.0
      %5325 = vmatprep.subr.mxu0 0.0
      %5326 = vmatpush1.msra.mxu0 0.0
      %5327 = vmatprep.subr.mxu0 0.0
      %5328 = vmatpush1.msra.mxu0 0.0
      %5329 = vmatprep.subr.mxu0 0.0
      %5330 = vmatpush1.msra.mxu0 0.0
      %5331 = vmatprep.subr.mxu0 0.0
      %5332 = vmatpush1.msra.mxu0 0.0
      %5333 = vmatprep.subr.mxu0 0.0
      %5334 = vmatpush1.msra.mxu0 0.0
      %5335 = vmatprep.subr.mxu0 0.0
      %5336 = vmatpush1.msra.mxu0 %v5303
      %5337 = vmatprep.subr.mxu0 0.0
      %5338 = vmatpush2.msra.mxu0 0.0
      %5339 = vmatprep.subr.mxu0 0.0
      %5340 = vmatpush2.msra.mxu0 0.0
      %5341 = vmatprep.subr.mxu0 0.0
      %5342 = vmatpush2.msra.mxu0 0.0
      %5343 = vmatprep.subr.mxu0 0.0
      %5344 = vmatpush2.msra.mxu0 0.0
      %5345 = vmatprep.subr.mxu0 0.0
      %5346 = vmatpush2.msra.mxu0 0.0
      %5347 = vmatprep.subr.mxu0 0.0
      %5348 = vmatpush2.msra.mxu0 0.0
      %5349 = vmatprep.subr.mxu0 0.0
      %5350 = vmatpush2.msra.mxu0 0.0
      %5351 = vmatprep.subr.mxu0 0.0
      %5352 = vmatpush2.msra.mxu0 0.0
      %5353 = vmatprep.subr.mxu0 0.0
      %5354 = vmatpush2.msra.mxu0 0.0
      %5355 = vmatprep.subr.mxu0 0.0
      %5356 = vmatpush2.msra.mxu0 0.0
      %5357 = vmatprep.subr.mxu0 0.0
      %5358 = vmatpush2.msra.mxu0 0.0
      %5359 = vmatprep.subr.mxu0 0.0
      %5360 = vmatpush2.msra.mxu0 0.0
      %5361 = vmatprep.subr.mxu0 0.0
      %5362 = vmatpush2.msra.mxu0 0.0
      %5363 = vmatprep.subr.mxu0 0.0
      %5364 = vmatpush2.msra.mxu0 0.0
      %5365 = vmatprep.subr.mxu0 0.0
      %5366 = vmatpush2.msra.mxu0 0.0
      %5367 = vmatprep.subr.mxu0 0.0
      %5368 = vmatpush2.msra.mxu0 0.0
      %5369 = vmatprep.mubr.f32.mxu0 0.0
      %5370 = vmatmul.mubr.f32.gmra.mxu0 %v5238
      %v5371 = vpop.f32.mrf.mxu0
      %v5372 = vadd.f32 0.0, %v5371
      %v5373 = vpop.f32.mrf.mxu0
      %5374 = vmatprep.mubr.f32.mxu0 0.0
      %5375 = vmatmul.mubr.f32.gmra.mxu0 %v5240
      %v5376 = vpop.f32.mrf.mxu0
      %v5377 = vadd.f32 0.0, %v5376
      %v5378 = vpop.f32.mrf.mxu0
      %5379 = vmatprep.mubr.f32.mxu0 0.0
      %5380 = vmatmul.mubr.f32.gmra.mxu0 %v5242
      %v5381 = vpop.f32.mrf.mxu0
      %v5382 = vadd.f32 0.0, %v5381
      %v5383 = vpop.f32.mrf.mxu0
      %5384 = vmatprep.mubr.f32.mxu0 0.0
      %5385 = vmatmul.mubr.f32.gmra.mxu0 %v5244
      %v5386 = vpop.f32.mrf.mxu0
      %v5387 = vadd.f32 0.0, %v5386
      %v5388 = vpop.f32.mrf.mxu0
      %5389 = vmatprep.mubr.f32.mxu0 0.0
      %5390 = vmatmul.mubr.f32.gmra.mxu0 %v5246
      %v5391 = vpop.f32.mrf.mxu0
      %v5392 = vadd.f32 0.0, %v5391
      %v5393 = vpop.f32.mrf.mxu0
      %5394 = vmatprep.mubr.f32.mxu0 0.0
      %5395 = vmatmul.mubr.f32.gmra.mxu0 %v5248
      %v5396 = vpop.f32.mrf.mxu0
      %v5397 = vadd.f32 0.0, %v5396
      %v5398 = vpop.f32.mrf.mxu0
      %5399 = vmatprep.mubr.f32.mxu0 0.0
      %5400 = vmatmul.mubr.f32.gmra.mxu0 %v5250
      %v5401 = vpop.f32.mrf.mxu0
      %v5402 = vadd.f32 0.0, %v5401
      %v5403 = vpop.f32.mrf.mxu0
      %5404 = vmatprep.mubr.f32.mxu0 0.0
      %5405 = vmatmul.mubr.f32.gmra.mxu0 %v5252
      %v5406 = vpop.f32.mrf.mxu0
      %v5407 = vadd.f32 0.0, %v5406
      %v5408 = vpop.f32.mrf.mxu0
      %5409 = vmatprep.mubr.f32.mxu0 0.0
      %5410 = vmatmul.mubr.f32.gmra.mxu0 %v5254
      %v5411 = vpop.f32.mrf.mxu0
      %v5412 = vadd.f32 0.0, %v5411
      %v5413 = vpop.f32.mrf.mxu0
      %5414 = vmatprep.mubr.f32.mxu0 0.0
      %5415 = vmatmul.mubr.f32.gmra.mxu0 %v5256
      %v5416 = vpop.f32.mrf.mxu0
      %v5417 = vadd.f32 0.0, %v5416
      %v5418 = vpop.f32.mrf.mxu0
      %5419 = vmatprep.mubr.f32.mxu0 0.0
      %5420 = vmatmul.mubr.f32.gmra.mxu0 %v5258
      %v5421 = vpop.f32.mrf.mxu0
      %v5422 = vadd.f32 0.0, %v5421
      %v5423 = vpop.f32.mrf.mxu0
      %5424 = vmatprep.mubr.f32.mxu0 0.0
      %5425 = vmatmul.mubr.f32.gmra.mxu0 %v5260
      %v5426 = vpop.f32.mrf.mxu0
      %v5427 = vadd.f32 0.0, %v5426
      %v5428 = vpop.f32.mrf.mxu0
      %5429 = vmatprep.mubr.f32.mxu0 0.0
      %5430 = vmatmul.mubr.f32.gmra.mxu0 %v5262
      %v5431 = vpop.f32.mrf.mxu0
      %v5432 = vadd.f32 0.0, %v5431
      %v5433 = vpop.f32.mrf.mxu0
      %5434 = vmatprep.mubr.f32.mxu0 0.0
      %5435 = vmatmul.mubr.f32.gmra.mxu0 %v5264
      %v5436 = vpop.f32.mrf.mxu0
      %v5437 = vadd.f32 0.0, %v5436
      %v5438 = vpop.f32.mrf.mxu0
      %5439 = vmatprep.mubr.f32.mxu0 0.0
      %5440 = vmatmul.mubr.f32.gmra.mxu0 %v5266
      %v5441 = vpop.f32.mrf.mxu0
      %v5442 = vadd.f32 0.0, %v5441
      %v5443 = vpop.f32.mrf.mxu0
      %5444 = vmatprep.mubr.f32.mxu0 0.0
      %5445 = vmatmul.mubr.f32.gmra.mxu0 %v5268
      %v5446 = vpop.f32.mrf.mxu0
      %v5447 = vadd.f32 0.0, %v5446
      %v5448 = vpop.f32.mrf.mxu0
      %5449 = vmatprep.mubr.f32.mxu0 0.0
      %5450 = vmatmul.mubr.f32.gmra.mxu0 %v5270
      %v5451 = vpop.f32.mrf.mxu0
      %v5452 = vadd.f32 0.0, %v5451
      %v5453 = vpop.f32.mrf.mxu0
      %5454 = vmatprep.mubr.f32.mxu0 0.0
      %5455 = vmatmul.mubr.f32.gmra.mxu0 %v5272
      %v5456 = vpop.f32.mrf.mxu0
      %v5457 = vadd.f32 0.0, %v5456
      %v5458 = vpop.f32.mrf.mxu0
      %5459 = vmatprep.mubr.f32.mxu0 0.0
      %5460 = vmatmul.mubr.f32.gmra.mxu0 %v5274
      %v5461 = vpop.f32.mrf.mxu0
      %v5462 = vadd.f32 0.0, %v5461
      %v5463 = vpop.f32.mrf.mxu0
      %5464 = vmatprep.mubr.f32.mxu0 0.0
      %5465 = vmatmul.mubr.f32.gmra.mxu0 %v5276
      %v5466 = vpop.f32.mrf.mxu0
      %v5467 = vadd.f32 0.0, %v5466
      %v5468 = vpop.f32.mrf.mxu0
      %5469 = vmatprep.mubr.f32.mxu0 0.0
      %5470 = vmatmul.mubr.f32.gmra.mxu0 %v5278
      %v5471 = vpop.f32.mrf.mxu0
      %v5472 = vadd.f32 0.0, %v5471
      %v5473 = vpop.f32.mrf.mxu0
      %5474 = vmatprep.mubr.f32.mxu0 0.0
      %5475 = vmatmul.mubr.f32.gmra.mxu0 %v5280
      %v5476 = vpop.f32.mrf.mxu0
      %v5477 = vadd.f32 0.0, %v5476
      %v5478 = vpop.f32.mrf.mxu0
      %5479 = vmatprep.mubr.f32.mxu0 0.0
      %5480 = vmatmul.mubr.f32.gmra.mxu0 %v5282
      %v5481 = vpop.f32.mrf.mxu0
      %v5482 = vadd.f32 0.0, %v5481
      %v5483 = vpop.f32.mrf.mxu0
      %5484 = vmatprep.mubr.f32.mxu0 0.0
      %5485 = vmatmul.mubr.f32.gmra.mxu0 %v5284
      %v5486 = vpop.f32.mrf.mxu0
      %v5487 = vadd.f32 0.0, %v5486
      %v5488 = vpop.f32.mrf.mxu0
      %5489 = vmatprep.mubr.f32.mxu0 0.0
      %5490 = vmatmul.mubr.f32.gmra.mxu0 %v5286
      %v5491 = vpop.f32.mrf.mxu0
      %v5492 = vadd.f32 0.0, %v5491
      %v5493 = vpop.f32.mrf.mxu0
      %5494 = vmatprep.mubr.f32.mxu0 0.0
      %5495 = vmatmul.mubr.f32.gmra.mxu0 %v5288
      %v5496 = vpop.f32.mrf.mxu0
      %v5497 = vadd.f32 0.0, %v5496
      %v5498 = vpop.f32.mrf.mxu0
      %5499 = vmatprep.mubr.f32.mxu0 0.0
      %5500 = vmatmul.mubr.f32.gmra.mxu0 %v5290
      %v5501 = vpop.f32.mrf.mxu0
      %v5502 = vadd.f32 0.0, %v5501
      %v5503 = vpop.f32.mrf.mxu0
      %5504 = vmatprep.mubr.f32.mxu0 0.0
      %5505 = vmatmul.mubr.f32.gmra.mxu0 %v5292
      %v5506 = vpop.f32.mrf.mxu0
      %v5507 = vadd.f32 0.0, %v5506
      %v5508 = vpop.f32.mrf.mxu0
      %5509 = vmatprep.mubr.f32.mxu0 0.0
      %5510 = vmatmul.mubr.f32.gmra.mxu0 %v5294
      %v5511 = vpop.f32.mrf.mxu0
      %v5512 = vadd.f32 0.0, %v5511
      %v5513 = vpop.f32.mrf.mxu0
      %5514 = vmatprep.mubr.f32.mxu0 0.0
      %5515 = vmatmul.mubr.f32.gmra.mxu0 %v5296
      %v5516 = vpop.f32.mrf.mxu0
      %v5517 = vadd.f32 0.0, %v5516
      %v5518 = vpop.f32.mrf.mxu0
      %5519 = vmatprep.mubr.f32.mxu0 0.0
      %5520 = vmatmul.mubr.f32.gmra.mxu0 %v5298
      %v5521 = vpop.f32.mrf.mxu0
      %v5522 = vadd.f32 0.0, %v5521
      %v5523 = vpop.f32.mrf.mxu0
      %5524 = vmatprep.mubr.f32.mxu0 0.0
      %5525 = vmatmul.mubr.f32.gmra.mxu0 %v5300
      %v5526 = vpop.f32.mrf.mxu0
      %v5527 = vadd.f32 0.0, %v5526
      %v5528 = vpop.f32.mrf.mxu0
      %5529 = vdwg.mxu0
      %v5530 = vadd.f32 %v5000, %v5372
      %v5531 = vadd.f32 %v5005, %v5377
      %v5532 = vadd.f32 %v5010, %v5382
      %v5533 = vadd.f32 %v5015, %v5387
      %v5534 = vadd.f32 %v5020, %v5392
      %v5535 = vadd.f32 %v5025, %v5397
      %v5536 = vadd.f32 %v5030, %v5402
      %v5537 = vadd.f32 %v5035, %v5407
      %v5538 = vadd.f32 %v5040, %v5412
      %v5539 = vadd.f32 %v5045, %v5417
      %v5540 = vadd.f32 %v5050, %v5422
      %v5541 = vadd.f32 %v5055, %v5427
      %v5542 = vadd.f32 %v5060, %v5432
      %v5543 = vadd.f32 %v5065, %v5437
      %v5544 = vadd.f32 %v5070, %v5442
      %v5545 = vadd.f32 %v5075, %v5447
      %v5546 = vadd.f32 %v5080, %v5452
      %v5547 = vadd.f32 %v5085, %v5457
      %v5548 = vadd.f32 %v5090, %v5462
      %v5549 = vadd.f32 %v5095, %v5467
      %v5550 = vadd.f32 %v5100, %v5472
      %v5551 = vadd.f32 %v5105, %v5477
      %v5552 = vadd.f32 %v5110, %v5482
      %v5553 = vadd.f32 %v5115, %v5487
      %v5554 = vadd.f32 %v5120, %v5492
      %v5555 = vadd.f32 %v5125, %v5497
      %v5556 = vadd.f32 %v5130, %v5502
      %v5557 = vadd.f32 %v5135, %v5507
      %v5558 = vadd.f32 %v5140, %v5512
      %v5559 = vadd.f32 %v5145, %v5517
      %v5560 = vadd.f32 %v5150, %v5522
      %v5561 = vadd.f32 %v5155, %v5527
      %v5563 = vsel %vm415, %v4440, 0
      %v5566 = vsel %vm415, %v4441, 0
      %v5569 = vsel %vm577, %v4322, 0
      %5571 = vmatprep.subr.mxu0 0.0
      %5572 = vmatpush1.msra.mxu0 0.0
      %5573 = vmatprep.subr.mxu0 0.0
      %5574 = vmatpush1.msra.mxu0 0.0
      %5575 = vmatprep.subr.mxu0 0.0
      %5576 = vmatpush1.msra.mxu0 0.0
      %5577 = vmatprep.subr.mxu0 0.0
      %5578 = vmatpush1.msra.mxu0 0.0
      %5579 = vmatprep.subr.mxu0 0.0
      %5580 = vmatpush1.msra.mxu0 0.0
      %5581 = vmatprep.subr.mxu0 0.0
      %5582 = vmatpush1.msra.mxu0 0.0
      %5583 = vmatprep.subr.mxu0 0.0
      %5584 = vmatpush1.msra.mxu0 0.0
      %5585 = vmatprep.subr.mxu0 0.0
      %5586 = vmatpush1.msra.mxu0 0.0
      %5587 = vmatprep.subr.mxu0 0.0
      %5588 = vmatpush1.msra.mxu0 0.0
      %5589 = vmatprep.subr.mxu0 0.0
      %5590 = vmatpush1.msra.mxu0 0.0
      %5591 = vmatprep.subr.mxu0 0.0
      %5592 = vmatpush1.msra.mxu0 0.0
      %5593 = vmatprep.subr.mxu0 0.0
      %5594 = vmatpush1.msra.mxu0 0.0
      %5595 = vmatprep.subr.mxu0 0.0
      %5596 = vmatpush1.msra.mxu0 0.0
      %5597 = vmatprep.subr.mxu0 0.0
      %5598 = vmatpush1.msra.mxu0 0.0
      %5599 = vmatprep.subr.mxu0 0.0
      %5600 = vmatpush1.msra.mxu0 0.0
      %5601 = vmatprep.subr.mxu0 0.0
      %5602 = vmatpush1.msra.mxu0 %v5569
      %5603 = vmatprep.subr.mxu0 0.0
      %5604 = vmatpush2.msra.mxu0 0.0
      %5605 = vmatprep.subr.mxu0 0.0
      %5606 = vmatpush2.msra.mxu0 0.0
      %5607 = vmatprep.subr.mxu0 0.0
      %5608 = vmatpush2.msra.mxu0 0.0
      %5609 = vmatprep.subr.mxu0 0.0
      %5610 = vmatpush2.msra.mxu0 0.0
      %5611 = vmatprep.subr.mxu0 0.0
      %5612 = vmatpush2.msra.mxu0 0.0
      %5613 = vmatprep.subr.mxu0 0.0
      %5614 = vmatpush2.msra.mxu0 0.0
      %5615 = vmatprep.subr.mxu0 0.0
      %5616 = vmatpush2.msra.mxu0 0.0
      %5617 = vmatprep.subr.mxu0 0.0
      %5618 = vmatpush2.msra.mxu0 0.0
      %5619 = vmatprep.subr.mxu0 0.0
      %5620 = vmatpush2.msra.mxu0 0.0
      %5621 = vmatprep.subr.mxu0 0.0
      %5622 = vmatpush2.msra.mxu0 0.0
      %5623 = vmatprep.subr.mxu0 0.0
      %5624 = vmatpush2.msra.mxu0 0.0
      %5625 = vmatprep.subr.mxu0 0.0
      %5626 = vmatpush2.msra.mxu0 0.0
      %5627 = vmatprep.subr.mxu0 0.0
      %5628 = vmatpush2.msra.mxu0 0.0
      %5629 = vmatprep.subr.mxu0 0.0
      %5630 = vmatpush2.msra.mxu0 0.0
      %5631 = vmatprep.subr.mxu0 0.0
      %5632 = vmatpush2.msra.mxu0 0.0
      %5633 = vmatprep.subr.mxu0 0.0
      %5634 = vmatpush2.msra.mxu0 0.0
      %5635 = vmatprep.mubr.f32.mxu0 0.0
      %5636 = vmatmul.mubr.f32.gmra.mxu0 %v4870
      %v5637 = vpop.f32.mrf.mxu0
      %v5638 = vadd.f32 0.0, %v5637
      %v5639 = vpop.f32.mrf.mxu0
      %5640 = vmatprep.mubr.f32.mxu0 0.0
      %5641 = vmatmul.mubr.f32.gmra.mxu0 %v4872
      %v5642 = vpop.f32.mrf.mxu0
      %v5643 = vadd.f32 0.0, %v5642
      %v5644 = vpop.f32.mrf.mxu0
      %5645 = vmatprep.mubr.f32.mxu0 0.0
      %5646 = vmatmul.mubr.f32.gmra.mxu0 %v4874
      %v5647 = vpop.f32.mrf.mxu0
      %v5648 = vadd.f32 0.0, %v5647
      %v5649 = vpop.f32.mrf.mxu0
      %5650 = vmatprep.mubr.f32.mxu0 0.0
      %5651 = vmatmul.mubr.f32.gmra.mxu0 %v4876
      %v5652 = vpop.f32.mrf.mxu0
      %v5653 = vadd.f32 0.0, %v5652
      %v5654 = vpop.f32.mrf.mxu0
      %5655 = vmatprep.mubr.f32.mxu0 0.0
      %5656 = vmatmul.mubr.f32.gmra.mxu0 %v4878
      %v5657 = vpop.f32.mrf.mxu0
      %v5658 = vadd.f32 0.0, %v5657
      %v5659 = vpop.f32.mrf.mxu0
      %5660 = vmatprep.mubr.f32.mxu0 0.0
      %5661 = vmatmul.mubr.f32.gmra.mxu0 %v4880
      %v5662 = vpop.f32.mrf.mxu0
      %v5663 = vadd.f32 0.0, %v5662
      %v5664 = vpop.f32.mrf.mxu0
      %5665 = vmatprep.mubr.f32.mxu0 0.0
      %5666 = vmatmul.mubr.f32.gmra.mxu0 %v4882
      %v5667 = vpop.f32.mrf.mxu0
      %v5668 = vadd.f32 0.0, %v5667
      %v5669 = vpop.f32.mrf.mxu0
      %5670 = vmatprep.mubr.f32.mxu0 0.0
      %5671 = vmatmul.mubr.f32.gmra.mxu0 %v4884
      %v5672 = vpop.f32.mrf.mxu0
      %v5673 = vadd.f32 0.0, %v5672
      %v5674 = vpop.f32.mrf.mxu0
      %5675 = vmatprep.mubr.f32.mxu0 0.0
      %5676 = vmatmul.mubr.f32.gmra.mxu0 %v4886
      %v5677 = vpop.f32.mrf.mxu0
      %v5678 = vadd.f32 0.0, %v5677
      %v5679 = vpop.f32.mrf.mxu0
      %5680 = vmatprep.mubr.f32.mxu0 0.0
      %5681 = vmatmul.mubr.f32.gmra.mxu0 %v4888
      %v5682 = vpop.f32.mrf.mxu0
      %v5683 = vadd.f32 0.0, %v5682
      %v5684 = vpop.f32.mrf.mxu0
      %5685 = vmatprep.mubr.f32.mxu0 0.0
      %5686 = vmatmul.mubr.f32.gmra.mxu0 %v4890
      %v5687 = vpop.f32.mrf.mxu0
      %v5688 = vadd.f32 0.0, %v5687
      %v5689 = vpop.f32.mrf.mxu0
      %5690 = vmatprep.mubr.f32.mxu0 0.0
      %5691 = vmatmul.mubr.f32.gmra.mxu0 %v4892
      %v5692 = vpop.f32.mrf.mxu0
      %v5693 = vadd.f32 0.0, %v5692
      %v5694 = vpop.f32.mrf.mxu0
      %5695 = vmatprep.mubr.f32.mxu0 0.0
      %5696 = vmatmul.mubr.f32.gmra.mxu0 %v4894
      %v5697 = vpop.f32.mrf.mxu0
      %v5698 = vadd.f32 0.0, %v5697
      %v5699 = vpop.f32.mrf.mxu0
      %5700 = vmatprep.mubr.f32.mxu0 0.0
      %5701 = vmatmul.mubr.f32.gmra.mxu0 %v4896
      %v5702 = vpop.f32.mrf.mxu0
      %v5703 = vadd.f32 0.0, %v5702
      %v5704 = vpop.f32.mrf.mxu0
      %5705 = vmatprep.mubr.f32.mxu0 0.0
      %5706 = vmatmul.mubr.f32.gmra.mxu0 %v4898
      %v5707 = vpop.f32.mrf.mxu0
      %v5708 = vadd.f32 0.0, %v5707
      %v5709 = vpop.f32.mrf.mxu0
      %5710 = vmatprep.mubr.f32.mxu0 0.0
      %5711 = vmatmul.mubr.f32.gmra.mxu0 %v4900
      %v5712 = vpop.f32.mrf.mxu0
      %v5713 = vadd.f32 0.0, %v5712
      %v5714 = vpop.f32.mrf.mxu0
      %5715 = vmatprep.mubr.f32.mxu0 0.0
      %5716 = vmatmul.mubr.f32.gmra.mxu0 %v4902
      %v5717 = vpop.f32.mrf.mxu0
      %v5718 = vadd.f32 0.0, %v5717
      %v5719 = vpop.f32.mrf.mxu0
      %5720 = vmatprep.mubr.f32.mxu0 0.0
      %5721 = vmatmul.mubr.f32.gmra.mxu0 %v4904
      %v5722 = vpop.f32.mrf.mxu0
      %v5723 = vadd.f32 0.0, %v5722
      %v5724 = vpop.f32.mrf.mxu0
      %5725 = vmatprep.mubr.f32.mxu0 0.0
      %5726 = vmatmul.mubr.f32.gmra.mxu0 %v4906
      %v5727 = vpop.f32.mrf.mxu0
      %v5728 = vadd.f32 0.0, %v5727
      %v5729 = vpop.f32.mrf.mxu0
      %5730 = vmatprep.mubr.f32.mxu0 0.0
      %5731 = vmatmul.mubr.f32.gmra.mxu0 %v4908
      %v5732 = vpop.f32.mrf.mxu0
      %v5733 = vadd.f32 0.0, %v5732
      %v5734 = vpop.f32.mrf.mxu0
      %5735 = vmatprep.mubr.f32.mxu0 0.0
      %5736 = vmatmul.mubr.f32.gmra.mxu0 %v4910
      %v5737 = vpop.f32.mrf.mxu0
      %v5738 = vadd.f32 0.0, %v5737
      %v5739 = vpop.f32.mrf.mxu0
      %5740 = vmatprep.mubr.f32.mxu0 0.0
      %5741 = vmatmul.mubr.f32.gmra.mxu0 %v4912
      %v5742 = vpop.f32.mrf.mxu0
      %v5743 = vadd.f32 0.0, %v5742
      %v5744 = vpop.f32.mrf.mxu0
      %5745 = vmatprep.mubr.f32.mxu0 0.0
      %5746 = vmatmul.mubr.f32.gmra.mxu0 %v4914
      %v5747 = vpop.f32.mrf.mxu0
      %v5748 = vadd.f32 0.0, %v5747
      %v5749 = vpop.f32.mrf.mxu0
      %5750 = vmatprep.mubr.f32.mxu0 0.0
      %5751 = vmatmul.mubr.f32.gmra.mxu0 %v4916
      %v5752 = vpop.f32.mrf.mxu0
      %v5753 = vadd.f32 0.0, %v5752
      %v5754 = vpop.f32.mrf.mxu0
      %5755 = vmatprep.mubr.f32.mxu0 0.0
      %5756 = vmatmul.mubr.f32.gmra.mxu0 %v4918
      %v5757 = vpop.f32.mrf.mxu0
      %v5758 = vadd.f32 0.0, %v5757
      %v5759 = vpop.f32.mrf.mxu0
      %5760 = vmatprep.mubr.f32.mxu0 0.0
      %5761 = vmatmul.mubr.f32.gmra.mxu0 %v4920
      %v5762 = vpop.f32.mrf.mxu0
      %v5763 = vadd.f32 0.0, %v5762
      %v5764 = vpop.f32.mrf.mxu0
      %5765 = vmatprep.mubr.f32.mxu0 0.0
      %5766 = vmatmul.mubr.f32.gmra.mxu0 %v4922
      %v5767 = vpop.f32.mrf.mxu0
      %v5768 = vadd.f32 0.0, %v5767
      %v5769 = vpop.f32.mrf.mxu0
      %5770 = vmatprep.mubr.f32.mxu0 0.0
      %5771 = vmatmul.mubr.f32.gmra.mxu0 %v4924
      %v5772 = vpop.f32.mrf.mxu0
      %v5773 = vadd.f32 0.0, %v5772
      %v5774 = vpop.f32.mrf.mxu0
      %5775 = vmatprep.mubr.f32.mxu0 0.0
      %5776 = vmatmul.mubr.f32.gmra.mxu0 %v4926
      %v5777 = vpop.f32.mrf.mxu0
      %v5778 = vadd.f32 0.0, %v5777
      %v5779 = vpop.f32.mrf.mxu0
      %5780 = vmatprep.mubr.f32.mxu0 0.0
      %5781 = vmatmul.mubr.f32.gmra.mxu0 %v4928
      %v5782 = vpop.f32.mrf.mxu0
      %v5783 = vadd.f32 0.0, %v5782
      %v5784 = vpop.f32.mrf.mxu0
      %5785 = vmatprep.mubr.f32.mxu0 0.0
      %5786 = vmatmul.mubr.f32.gmra.mxu0 %v5563
      %v5787 = vpop.f32.mrf.mxu0
      %v5788 = vadd.f32 0.0, %v5787
      %v5789 = vpop.f32.mrf.mxu0
      %5790 = vmatprep.mubr.f32.mxu0 0.0
      %5791 = vmatmul.mubr.f32.gmra.mxu0 %v5566
      %v5792 = vpop.f32.mrf.mxu0
      %v5793 = vadd.f32 0.0, %v5792
      %v5794 = vpop.f32.mrf.mxu0
      %5795 = vdwg.mxu0
      %v5796 = vadd.f32 %v5530, %v5638
      %v5797 = vadd.f32 %v5531, %v5643
      %v5798 = vadd.f32 %v5532, %v5648
      %v5799 = vadd.f32 %v5533, %v5653
      %v5800 = vadd.f32 %v5534, %v5658
      %v5801 = vadd.f32 %v5535, %v5663
      %v5802 = vadd.f32 %v5536, %v5668
      %v5803 = vadd.f32 %v5537, %v5673
      %v5804 = vadd.f32 %v5538, %v5678
      %v5805 = vadd.f32 %v5539, %v5683
      %v5806 = vadd.f32 %v5540, %v5688
      %v5807 = vadd.f32 %v5541, %v5693
      %v5808 = vadd.f32 %v5542, %v5698
      %v5809 = vadd.f32 %v5543, %v5703
      %v5810 = vadd.f32 %v5544, %v5708
      %v5811 = vadd.f32 %v5545, %v5713
      %v5812 = vadd.f32 %v5546, %v5718
      %v5813 = vadd.f32 %v5547, %v5723
      %v5814 = vadd.f32 %v5548, %v5728
      %v5815 = vadd.f32 %v5549, %v5733
      %v5816 = vadd.f32 %v5550, %v5738
      %v5817 = vadd.f32 %v5551, %v5743
      %v5818 = vadd.f32 %v5552, %v5748
      %v5819 = vadd.f32 %v5553, %v5753
      %v5820 = vadd.f32 %v5554, %v5758
      %v5821 = vadd.f32 %v5555, %v5763
      %v5822 = vadd.f32 %v5556, %v5768
      %v5823 = vadd.f32 %v5557, %v5773
      %v5824 = vadd.f32 %v5558, %v5778
      %v5825 = vadd.f32 %v5559, %v5783
      %v5826 = vadd.f32 %v5560, %v5788
      %v5827 = vadd.f32 %v5561, %v5793
      %v5829 = vrot.slane %v4440, 1
      %v5830 = vrot.slane %v4441, 1
      %v5831 = vsel %vm1145, %v5829, %v5830
      %v5832 = vrot.slane %v4442, 1
      %v5833 = vsel %vm1145, %v5830, %v5832
      %v5834 = vsel %vm415, %v5831, 0
      %v5836 = vsel %vm415, %v5833, 0
      %v5839 = vsel %vm577, %v4323, 0
      %5841 = vmatprep.subr.mxu0 0.0
      %5842 = vmatpush1.msra.mxu0 0.0
      %5843 = vmatprep.subr.mxu0 0.0
      %5844 = vmatpush1.msra.mxu0 0.0
      %5845 = vmatprep.subr.mxu0 0.0
      %5846 = vmatpush1.msra.mxu0 0.0
      %5847 = vmatprep.subr.mxu0 0.0
      %5848 = vmatpush1.msra.mxu0 0.0
      %5849 = vmatprep.subr.mxu0 0.0
      %5850 = vmatpush1.msra.mxu0 0.0
      %5851 = vmatprep.subr.mxu0 0.0
      %5852 = vmatpush1.msra.mxu0 0.0
      %5853 = vmatprep.subr.mxu0 0.0
      %5854 = vmatpush1.msra.mxu0 0.0
      %5855 = vmatprep.subr.mxu0 0.0
      %5856 = vmatpush1.msra.mxu0 0.0
      %5857 = vmatprep.subr.mxu0 0.0
      %5858 = vmatpush1.msra.mxu0 0.0
      %5859 = vmatprep.subr.mxu0 0.0
      %5860 = vmatpush1.msra.mxu0 0.0
      %5861 = vmatprep.subr.mxu0 0.0
      %5862 = vmatpush1.msra.mxu0 0.0
      %5863 = vmatprep.subr.mxu0 0.0
      %5864 = vmatpush1.msra.mxu0 0.0
      %5865 = vmatprep.subr.mxu0 0.0
      %5866 = vmatpush1.msra.mxu0 0.0
      %5867 = vmatprep.subr.mxu0 0.0
      %5868 = vmatpush1.msra.mxu0 0.0
      %5869 = vmatprep.subr.mxu0 0.0
      %5870 = vmatpush1.msra.mxu0 0.0
      %5871 = vmatprep.subr.mxu0 0.0
      %5872 = vmatpush1.msra.mxu0 %v5839
      %5873 = vmatprep.subr.mxu0 0.0
      %5874 = vmatpush2.msra.mxu0 0.0
      %5875 = vmatprep.subr.mxu0 0.0
      %5876 = vmatpush2.msra.mxu0 0.0
      %5877 = vmatprep.subr.mxu0 0.0
      %5878 = vmatpush2.msra.mxu0 0.0
      %5879 = vmatprep.subr.mxu0 0.0
      %5880 = vmatpush2.msra.mxu0 0.0
      %5881 = vmatprep.subr.mxu0 0.0
      %5882 = vmatpush2.msra.mxu0 0.0
      %5883 = vmatprep.subr.mxu0 0.0
      %5884 = vmatpush2.msra.mxu0 0.0
      %5885 = vmatprep.subr.mxu0 0.0
      %5886 = vmatpush2.msra.mxu0 0.0
      %5887 = vmatprep.subr.mxu0 0.0
      %5888 = vmatpush2.msra.mxu0 0.0
      %5889 = vmatprep.subr.mxu0 0.0
      %5890 = vmatpush2.msra.mxu0 0.0
      %5891 = vmatprep.subr.mxu0 0.0
      %5892 = vmatpush2.msra.mxu0 0.0
      %5893 = vmatprep.subr.mxu0 0.0
      %5894 = vmatpush2.msra.mxu0 0.0
      %5895 = vmatprep.subr.mxu0 0.0
      %5896 = vmatpush2.msra.mxu0 0.0
      %5897 = vmatprep.subr.mxu0 0.0
      %5898 = vmatpush2.msra.mxu0 0.0
      %5899 = vmatprep.subr.mxu0 0.0
      %5900 = vmatpush2.msra.mxu0 0.0
      %5901 = vmatprep.subr.mxu0 0.0
      %5902 = vmatpush2.msra.mxu0 0.0
      %5903 = vmatprep.subr.mxu0 0.0
      %5904 = vmatpush2.msra.mxu0 0.0
      %5905 = vmatprep.mubr.f32.mxu0 0.0
      %5906 = vmatmul.mubr.f32.gmra.mxu0 %v4578
      %v5907 = vpop.f32.mrf.mxu0
      %v5908 = vadd.f32 0.0, %v5907
      %v5909 = vpop.f32.mrf.mxu0
      %5910 = vmatprep.mubr.f32.mxu0 0.0
      %5911 = vmatmul.mubr.f32.gmra.mxu0 %v4580
      %v5912 = vpop.f32.mrf.mxu0
      %v5913 = vadd.f32 0.0, %v5912
      %v5914 = vpop.f32.mrf.mxu0
      %5915 = vmatprep.mubr.f32.mxu0 0.0
      %5916 = vmatmul.mubr.f32.gmra.mxu0 %v4582
      %v5917 = vpop.f32.mrf.mxu0
      %v5918 = vadd.f32 0.0, %v5917
      %v5919 = vpop.f32.mrf.mxu0
      %5920 = vmatprep.mubr.f32.mxu0 0.0
      %5921 = vmatmul.mubr.f32.gmra.mxu0 %v4584
      %v5922 = vpop.f32.mrf.mxu0
      %v5923 = vadd.f32 0.0, %v5922
      %v5924 = vpop.f32.mrf.mxu0
      %5925 = vmatprep.mubr.f32.mxu0 0.0
      %5926 = vmatmul.mubr.f32.gmra.mxu0 %v4586
      %v5927 = vpop.f32.mrf.mxu0
      %v5928 = vadd.f32 0.0, %v5927
      %v5929 = vpop.f32.mrf.mxu0
      %5930 = vmatprep.mubr.f32.mxu0 0.0
      %5931 = vmatmul.mubr.f32.gmra.mxu0 %v4588
      %v5932 = vpop.f32.mrf.mxu0
      %v5933 = vadd.f32 0.0, %v5932
      %v5934 = vpop.f32.mrf.mxu0
      %5935 = vmatprep.mubr.f32.mxu0 0.0
      %5936 = vmatmul.mubr.f32.gmra.mxu0 %v4590
      %v5937 = vpop.f32.mrf.mxu0
      %v5938 = vadd.f32 0.0, %v5937
      %v5939 = vpop.f32.mrf.mxu0
      %5940 = vmatprep.mubr.f32.mxu0 0.0
      %5941 = vmatmul.mubr.f32.gmra.mxu0 %v4592
      %v5942 = vpop.f32.mrf.mxu0
      %v5943 = vadd.f32 0.0, %v5942
      %v5944 = vpop.f32.mrf.mxu0
      %5945 = vmatprep.mubr.f32.mxu0 0.0
      %5946 = vmatmul.mubr.f32.gmra.mxu0 %v4594
      %v5947 = vpop.f32.mrf.mxu0
      %v5948 = vadd.f32 0.0, %v5947
      %v5949 = vpop.f32.mrf.mxu0
      %5950 = vmatprep.mubr.f32.mxu0 0.0
      %5951 = vmatmul.mubr.f32.gmra.mxu0 %v4596
      %v5952 = vpop.f32.mrf.mxu0
      %v5953 = vadd.f32 0.0, %v5952
      %v5954 = vpop.f32.mrf.mxu0
      %5955 = vmatprep.mubr.f32.mxu0 0.0
      %5956 = vmatmul.mubr.f32.gmra.mxu0 %v4598
      %v5957 = vpop.f32.mrf.mxu0
      %v5958 = vadd.f32 0.0, %v5957
      %v5959 = vpop.f32.mrf.mxu0
      %5960 = vmatprep.mubr.f32.mxu0 0.0
      %5961 = vmatmul.mubr.f32.gmra.mxu0 %v4600
      %v5962 = vpop.f32.mrf.mxu0
      %v5963 = vadd.f32 0.0, %v5962
      %v5964 = vpop.f32.mrf.mxu0
      %5965 = vmatprep.mubr.f32.mxu0 0.0
      %5966 = vmatmul.mubr.f32.gmra.mxu0 %v4602
      %v5967 = vpop.f32.mrf.mxu0
      %v5968 = vadd.f32 0.0, %v5967
      %v5969 = vpop.f32.mrf.mxu0
      %5970 = vmatprep.mubr.f32.mxu0 0.0
      %5971 = vmatmul.mubr.f32.gmra.mxu0 %v4604
      %v5972 = vpop.f32.mrf.mxu0
      %v5973 = vadd.f32 0.0, %v5972
      %v5974 = vpop.f32.mrf.mxu0
      %5975 = vmatprep.mubr.f32.mxu0 0.0
      %5976 = vmatmul.mubr.f32.gmra.mxu0 %v4606
      %v5977 = vpop.f32.mrf.mxu0
      %v5978 = vadd.f32 0.0, %v5977
      %v5979 = vpop.f32.mrf.mxu0
      %5980 = vmatprep.mubr.f32.mxu0 0.0
      %5981 = vmatmul.mubr.f32.gmra.mxu0 %v4608
      %v5982 = vpop.f32.mrf.mxu0
      %v5983 = vadd.f32 0.0, %v5982
      %v5984 = vpop.f32.mrf.mxu0
      %5985 = vmatprep.mubr.f32.mxu0 0.0
      %5986 = vmatmul.mubr.f32.gmra.mxu0 %v4610
      %v5987 = vpop.f32.mrf.mxu0
      %v5988 = vadd.f32 0.0, %v5987
      %v5989 = vpop.f32.mrf.mxu0
      %5990 = vmatprep.mubr.f32.mxu0 0.0
      %5991 = vmatmul.mubr.f32.gmra.mxu0 %v4612
      %v5992 = vpop.f32.mrf.mxu0
      %v5993 = vadd.f32 0.0, %v5992
      %v5994 = vpop.f32.mrf.mxu0
      %5995 = vmatprep.mubr.f32.mxu0 0.0
      %5996 = vmatmul.mubr.f32.gmra.mxu0 %v4614
      %v5997 = vpop.f32.mrf.mxu0
      %v5998 = vadd.f32 0.0, %v5997
      %v5999 = vpop.f32.mrf.mxu0
      %6000 = vmatprep.mubr.f32.mxu0 0.0
      %6001 = vmatmul.mubr.f32.gmra.mxu0 %v4616
      %v6002 = vpop.f32.mrf.mxu0
      %v6003 = vadd.f32 0.0, %v6002
      %v6004 = vpop.f32.mrf.mxu0
      %6005 = vmatprep.mubr.f32.mxu0 0.0
      %6006 = vmatmul.mubr.f32.gmra.mxu0 %v4618
      %v6007 = vpop.f32.mrf.mxu0
      %v6008 = vadd.f32 0.0, %v6007
      %v6009 = vpop.f32.mrf.mxu0
      %6010 = vmatprep.mubr.f32.mxu0 0.0
      %6011 = vmatmul.mubr.f32.gmra.mxu0 %v4620
      %v6012 = vpop.f32.mrf.mxu0
      %v6013 = vadd.f32 0.0, %v6012
      %v6014 = vpop.f32.mrf.mxu0
      %6015 = vmatprep.mubr.f32.mxu0 0.0
      %6016 = vmatmul.mubr.f32.gmra.mxu0 %v4622
      %v6017 = vpop.f32.mrf.mxu0
      %v6018 = vadd.f32 0.0, %v6017
      %v6019 = vpop.f32.mrf.mxu0
      %6020 = vmatprep.mubr.f32.mxu0 0.0
      %6021 = vmatmul.mubr.f32.gmra.mxu0 %v4624
      %v6022 = vpop.f32.mrf.mxu0
      %v6023 = vadd.f32 0.0, %v6022
      %v6024 = vpop.f32.mrf.mxu0
      %6025 = vmatprep.mubr.f32.mxu0 0.0
      %6026 = vmatmul.mubr.f32.gmra.mxu0 %v4626
      %v6027 = vpop.f32.mrf.mxu0
      %v6028 = vadd.f32 0.0, %v6027
      %v6029 = vpop.f32.mrf.mxu0
      %6030 = vmatprep.mubr.f32.mxu0 0.0
      %6031 = vmatmul.mubr.f32.gmra.mxu0 %v4628
      %v6032 = vpop.f32.mrf.mxu0
      %v6033 = vadd.f32 0.0, %v6032
      %v6034 = vpop.f32.mrf.mxu0
      %6035 = vmatprep.mubr.f32.mxu0 0.0
      %6036 = vmatmul.mubr.f32.gmra.mxu0 %v4630
      %v6037 = vpop.f32.mrf.mxu0
      %v6038 = vadd.f32 0.0, %v6037
      %v6039 = vpop.f32.mrf.mxu0
      %6040 = vmatprep.mubr.f32.mxu0 0.0
      %6041 = vmatmul.mubr.f32.gmra.mxu0 %v4632
      %v6042 = vpop.f32.mrf.mxu0
      %v6043 = vadd.f32 0.0, %v6042
      %v6044 = vpop.f32.mrf.mxu0
      %6045 = vmatprep.mubr.f32.mxu0 0.0
      %6046 = vmatmul.mubr.f32.gmra.mxu0 %v4634
      %v6047 = vpop.f32.mrf.mxu0
      %v6048 = vadd.f32 0.0, %v6047
      %v6049 = vpop.f32.mrf.mxu0
      %6050 = vmatprep.mubr.f32.mxu0 0.0
      %6051 = vmatmul.mubr.f32.gmra.mxu0 %v4636
      %v6052 = vpop.f32.mrf.mxu0
      %v6053 = vadd.f32 0.0, %v6052
      %v6054 = vpop.f32.mrf.mxu0
      %6055 = vmatprep.mubr.f32.mxu0 0.0
      %6056 = vmatmul.mubr.f32.gmra.mxu0 %v5834
      %v6057 = vpop.f32.mrf.mxu0
      %v6058 = vadd.f32 0.0, %v6057
      %v6059 = vpop.f32.mrf.mxu0
      %6060 = vmatprep.mubr.f32.mxu0 0.0
      %6061 = vmatmul.mubr.f32.gmra.mxu0 %v5836
      %v6062 = vpop.f32.mrf.mxu0
      %v6063 = vadd.f32 0.0, %v6062
      %v6064 = vpop.f32.mrf.mxu0
      %6065 = vdwg.mxu0
      %v6066 = vadd.f32 %v5796, %v5908
      %v6067 = vadd.f32 %v5797, %v5913
      %v6068 = vadd.f32 %v5798, %v5918
      %v6069 = vadd.f32 %v5799, %v5923
      %v6070 = vadd.f32 %v5800, %v5928
      %v6071 = vadd.f32 %v5801, %v5933
      %v6072 = vadd.f32 %v5802, %v5938
      %v6073 = vadd.f32 %v5803, %v5943
      %v6074 = vadd.f32 %v5804, %v5948
      %v6075 = vadd.f32 %v5805, %v5953
      %v6076 = vadd.f32 %v5806, %v5958
      %v6077 = vadd.f32 %v5807, %v5963
      %v6078 = vadd.f32 %v5808, %v5968
      %v6079 = vadd.f32 %v5809, %v5973
      %v6080 = vadd.f32 %v5810, %v5978
      %v6081 = vadd.f32 %v5811, %v5983
      %v6082 = vadd.f32 %v5812, %v5988
      %v6083 = vadd.f32 %v5813, %v5993
      %v6084 = vadd.f32 %v5814, %v5998
      %v6085 = vadd.f32 %v5815, %v6003
      %v6086 = vadd.f32 %v5816, %v6008
      %v6087 = vadd.f32 %v5817, %v6013
      %v6088 = vadd.f32 %v5818, %v6018
      %v6089 = vadd.f32 %v5819, %v6023
      %v6090 = vadd.f32 %v5820, %v6028
      %v6091 = vadd.f32 %v5821, %v6033
      %v6092 = vadd.f32 %v5822, %v6038
      %v6093 = vadd.f32 %v5823, %v6043
      %v6094 = vadd.f32 %v5824, %v6048
      %v6095 = vadd.f32 %v5825, %v6053
      %v6096 = vadd.f32 %v5826, %v6058
      %v6097 = vadd.f32 %v5827, %v6063
      %v6098 = vrot.slane %v4440, 2
      %v6099 = vrot.slane %v4441, 2
      %v6100 = vsel %vm1810, %v6098, %v6099
      %v6101 = vrot.slane %v4442, 2
      %v6102 = vsel %vm1810, %v6099, %v6101
      %v6103 = vsel %vm415, %v6100, 0
      %v6105 = vsel %vm415, %v6102, 0
      %v6108 = vsel %vm577, %v4324, 0
      %6110 = vmatprep.subr.mxu0 0.0
      %6111 = vmatpush1.msra.mxu0 0.0
      %6112 = vmatprep.subr.mxu0 0.0
      %6113 = vmatpush1.msra.mxu0 0.0
      %6114 = vmatprep.subr.mxu0 0.0
      %6115 = vmatpush1.msra.mxu0 0.0
      %6116 = vmatprep.subr.mxu0 0.0
      %6117 = vmatpush1.msra.mxu0 0.0
      %6118 = vmatprep.subr.mxu0 0.0
      %6119 = vmatpush1.msra.mxu0 0.0
      %6120 = vmatprep.subr.mxu0 0.0
      %6121 = vmatpush1.msra.mxu0 0.0
      %6122 = vmatprep.subr.mxu0 0.0
      %6123 = vmatpush1.msra.mxu0 0.0
      %6124 = vmatprep.subr.mxu0 0.0
      %6125 = vmatpush1.msra.mxu0 0.0
      %6126 = vmatprep.subr.mxu0 0.0
      %6127 = vmatpush1.msra.mxu0 0.0
      %6128 = vmatprep.subr.mxu0 0.0
      %6129 = vmatpush1.msra.mxu0 0.0
      %6130 = vmatprep.subr.mxu0 0.0
      %6131 = vmatpush1.msra.mxu0 0.0
      %6132 = vmatprep.subr.mxu0 0.0
      %6133 = vmatpush1.msra.mxu0 0.0
      %6134 = vmatprep.subr.mxu0 0.0
      %6135 = vmatpush1.msra.mxu0 0.0
      %6136 = vmatprep.subr.mxu0 0.0
      %6137 = vmatpush1.msra.mxu0 0.0
      %6138 = vmatprep.subr.mxu0 0.0
      %6139 = vmatpush1.msra.mxu0 0.0
      %6140 = vmatprep.subr.mxu0 0.0
      %6141 = vmatpush1.msra.mxu0 %v6108
      %6142 = vmatprep.subr.mxu0 0.0
      %6143 = vmatpush2.msra.mxu0 0.0
      %6144 = vmatprep.subr.mxu0 0.0
      %6145 = vmatpush2.msra.mxu0 0.0
      %6146 = vmatprep.subr.mxu0 0.0
      %6147 = vmatpush2.msra.mxu0 0.0
      %6148 = vmatprep.subr.mxu0 0.0
      %6149 = vmatpush2.msra.mxu0 0.0
      %6150 = vmatprep.subr.mxu0 0.0
      %6151 = vmatpush2.msra.mxu0 0.0
      %6152 = vmatprep.subr.mxu0 0.0
      %6153 = vmatpush2.msra.mxu0 0.0
      %6154 = vmatprep.subr.mxu0 0.0
      %6155 = vmatpush2.msra.mxu0 0.0
      %6156 = vmatprep.subr.mxu0 0.0
      %6157 = vmatpush2.msra.mxu0 0.0
      %6158 = vmatprep.subr.mxu0 0.0
      %6159 = vmatpush2.msra.mxu0 0.0
      %6160 = vmatprep.subr.mxu0 0.0
      %6161 = vmatpush2.msra.mxu0 0.0
      %6162 = vmatprep.subr.mxu0 0.0
      %6163 = vmatpush2.msra.mxu0 0.0
      %6164 = vmatprep.subr.mxu0 0.0
      %6165 = vmatpush2.msra.mxu0 0.0
      %6166 = vmatprep.subr.mxu0 0.0
      %6167 = vmatpush2.msra.mxu0 0.0
      %6168 = vmatprep.subr.mxu0 0.0
      %6169 = vmatpush2.msra.mxu0 0.0
      %6170 = vmatprep.subr.mxu0 0.0
      %6171 = vmatpush2.msra.mxu0 0.0
      %6172 = vmatprep.subr.mxu0 0.0
      %6173 = vmatpush2.msra.mxu0 0.0
      %6174 = vmatprep.mubr.f32.mxu0 0.0
      %6175 = vmatmul.mubr.f32.gmra.mxu0 %v5242
      %v6176 = vpop.f32.mrf.mxu0
      %v6177 = vadd.f32 0.0, %v6176
      %v6178 = vpop.f32.mrf.mxu0
      %6179 = vmatprep.mubr.f32.mxu0 0.0
      %6180 = vmatmul.mubr.f32.gmra.mxu0 %v5244
      %v6181 = vpop.f32.mrf.mxu0
      %v6182 = vadd.f32 0.0, %v6181
      %v6183 = vpop.f32.mrf.mxu0
      %6184 = vmatprep.mubr.f32.mxu0 0.0
      %6185 = vmatmul.mubr.f32.gmra.mxu0 %v5246
      %v6186 = vpop.f32.mrf.mxu0
      %v6187 = vadd.f32 0.0, %v6186
      %v6188 = vpop.f32.mrf.mxu0
      %6189 = vmatprep.mubr.f32.mxu0 0.0
      %6190 = vmatmul.mubr.f32.gmra.mxu0 %v5248
      %v6191 = vpop.f32.mrf.mxu0
      %v6192 = vadd.f32 0.0, %v6191
      %v6193 = vpop.f32.mrf.mxu0
      %6194 = vmatprep.mubr.f32.mxu0 0.0
      %6195 = vmatmul.mubr.f32.gmra.mxu0 %v5250
      %v6196 = vpop.f32.mrf.mxu0
      %v6197 = vadd.f32 0.0, %v6196
      %v6198 = vpop.f32.mrf.mxu0
      %6199 = vmatprep.mubr.f32.mxu0 0.0
      %6200 = vmatmul.mubr.f32.gmra.mxu0 %v5252
      %v6201 = vpop.f32.mrf.mxu0
      %v6202 = vadd.f32 0.0, %v6201
      %v6203 = vpop.f32.mrf.mxu0
      %6204 = vmatprep.mubr.f32.mxu0 0.0
      %6205 = vmatmul.mubr.f32.gmra.mxu0 %v5254
      %v6206 = vpop.f32.mrf.mxu0
      %v6207 = vadd.f32 0.0, %v6206
      %v6208 = vpop.f32.mrf.mxu0
      %6209 = vmatprep.mubr.f32.mxu0 0.0
      %6210 = vmatmul.mubr.f32.gmra.mxu0 %v5256
      %v6211 = vpop.f32.mrf.mxu0
      %v6212 = vadd.f32 0.0, %v6211
      %v6213 = vpop.f32.mrf.mxu0
      %6214 = vmatprep.mubr.f32.mxu0 0.0
      %6215 = vmatmul.mubr.f32.gmra.mxu0 %v5258
      %v6216 = vpop.f32.mrf.mxu0
      %v6217 = vadd.f32 0.0, %v6216
      %v6218 = vpop.f32.mrf.mxu0
      %6219 = vmatprep.mubr.f32.mxu0 0.0
      %6220 = vmatmul.mubr.f32.gmra.mxu0 %v5260
      %v6221 = vpop.f32.mrf.mxu0
      %v6222 = vadd.f32 0.0, %v6221
      %v6223 = vpop.f32.mrf.mxu0
      %6224 = vmatprep.mubr.f32.mxu0 0.0
      %6225 = vmatmul.mubr.f32.gmra.mxu0 %v5262
      %v6226 = vpop.f32.mrf.mxu0
      %v6227 = vadd.f32 0.0, %v6226
      %v6228 = vpop.f32.mrf.mxu0
      %6229 = vmatprep.mubr.f32.mxu0 0.0
      %6230 = vmatmul.mubr.f32.gmra.mxu0 %v5264
      %v6231 = vpop.f32.mrf.mxu0
      %v6232 = vadd.f32 0.0, %v6231
      %v6233 = vpop.f32.mrf.mxu0
      %6234 = vmatprep.mubr.f32.mxu0 0.0
      %6235 = vmatmul.mubr.f32.gmra.mxu0 %v5266
      %v6236 = vpop.f32.mrf.mxu0
      %v6237 = vadd.f32 0.0, %v6236
      %v6238 = vpop.f32.mrf.mxu0
      %6239 = vmatprep.mubr.f32.mxu0 0.0
      %6240 = vmatmul.mubr.f32.gmra.mxu0 %v5268
      %v6241 = vpop.f32.mrf.mxu0
      %v6242 = vadd.f32 0.0, %v6241
      %v6243 = vpop.f32.mrf.mxu0
      %6244 = vmatprep.mubr.f32.mxu0 0.0
      %6245 = vmatmul.mubr.f32.gmra.mxu0 %v5270
      %v6246 = vpop.f32.mrf.mxu0
      %v6247 = vadd.f32 0.0, %v6246
      %v6248 = vpop.f32.mrf.mxu0
      %6249 = vmatprep.mubr.f32.mxu0 0.0
      %6250 = vmatmul.mubr.f32.gmra.mxu0 %v5272
      %v6251 = vpop.f32.mrf.mxu0
      %v6252 = vadd.f32 0.0, %v6251
      %v6253 = vpop.f32.mrf.mxu0
      %6254 = vmatprep.mubr.f32.mxu0 0.0
      %6255 = vmatmul.mubr.f32.gmra.mxu0 %v5274
      %v6256 = vpop.f32.mrf.mxu0
      %v6257 = vadd.f32 0.0, %v6256
      %v6258 = vpop.f32.mrf.mxu0
      %6259 = vmatprep.mubr.f32.mxu0 0.0
      %6260 = vmatmul.mubr.f32.gmra.mxu0 %v5276
      %v6261 = vpop.f32.mrf.mxu0
      %v6262 = vadd.f32 0.0, %v6261
      %v6263 = vpop.f32.mrf.mxu0
      %6264 = vmatprep.mubr.f32.mxu0 0.0
      %6265 = vmatmul.mubr.f32.gmra.mxu0 %v5278
      %v6266 = vpop.f32.mrf.mxu0
      %v6267 = vadd.f32 0.0, %v6266
      %v6268 = vpop.f32.mrf.mxu0
      %6269 = vmatprep.mubr.f32.mxu0 0.0
      %6270 = vmatmul.mubr.f32.gmra.mxu0 %v5280
      %v6271 = vpop.f32.mrf.mxu0
      %v6272 = vadd.f32 0.0, %v6271
      %v6273 = vpop.f32.mrf.mxu0
      %6274 = vmatprep.mubr.f32.mxu0 0.0
      %6275 = vmatmul.mubr.f32.gmra.mxu0 %v5282
      %v6276 = vpop.f32.mrf.mxu0
      %v6277 = vadd.f32 0.0, %v6276
      %v6278 = vpop.f32.mrf.mxu0
      %6279 = vmatprep.mubr.f32.mxu0 0.0
      %6280 = vmatmul.mubr.f32.gmra.mxu0 %v5284
      %v6281 = vpop.f32.mrf.mxu0
      %v6282 = vadd.f32 0.0, %v6281
      %v6283 = vpop.f32.mrf.mxu0
      %6284 = vmatprep.mubr.f32.mxu0 0.0
      %6285 = vmatmul.mubr.f32.gmra.mxu0 %v5286
      %v6286 = vpop.f32.mrf.mxu0
      %v6287 = vadd.f32 0.0, %v6286
      %v6288 = vpop.f32.mrf.mxu0
      %6289 = vmatprep.mubr.f32.mxu0 0.0
      %6290 = vmatmul.mubr.f32.gmra.mxu0 %v5288
      %v6291 = vpop.f32.mrf.mxu0
      %v6292 = vadd.f32 0.0, %v6291
      %v6293 = vpop.f32.mrf.mxu0
      %6294 = vmatprep.mubr.f32.mxu0 0.0
      %6295 = vmatmul.mubr.f32.gmra.mxu0 %v5290
      %v6296 = vpop.f32.mrf.mxu0
      %v6297 = vadd.f32 0.0, %v6296
      %v6298 = vpop.f32.mrf.mxu0
      %6299 = vmatprep.mubr.f32.mxu0 0.0
      %6300 = vmatmul.mubr.f32.gmra.mxu0 %v5292
      %v6301 = vpop.f32.mrf.mxu0
      %v6302 = vadd.f32 0.0, %v6301
      %v6303 = vpop.f32.mrf.mxu0
      %6304 = vmatprep.mubr.f32.mxu0 0.0
      %6305 = vmatmul.mubr.f32.gmra.mxu0 %v5294
      %v6306 = vpop.f32.mrf.mxu0
      %v6307 = vadd.f32 0.0, %v6306
      %v6308 = vpop.f32.mrf.mxu0
      %6309 = vmatprep.mubr.f32.mxu0 0.0
      %6310 = vmatmul.mubr.f32.gmra.mxu0 %v5296
      %v6311 = vpop.f32.mrf.mxu0
      %v6312 = vadd.f32 0.0, %v6311
      %v6313 = vpop.f32.mrf.mxu0
      %6314 = vmatprep.mubr.f32.mxu0 0.0
      %6315 = vmatmul.mubr.f32.gmra.mxu0 %v5298
      %v6316 = vpop.f32.mrf.mxu0
      %v6317 = vadd.f32 0.0, %v6316
      %v6318 = vpop.f32.mrf.mxu0
      %6319 = vmatprep.mubr.f32.mxu0 0.0
      %6320 = vmatmul.mubr.f32.gmra.mxu0 %v5300
      %v6321 = vpop.f32.mrf.mxu0
      %v6322 = vadd.f32 0.0, %v6321
      %v6323 = vpop.f32.mrf.mxu0
      %6324 = vmatprep.mubr.f32.mxu0 0.0
      %6325 = vmatmul.mubr.f32.gmra.mxu0 %v6103
      %v6326 = vpop.f32.mrf.mxu0
      %v6327 = vadd.f32 0.0, %v6326
      %v6328 = vpop.f32.mrf.mxu0
      %6329 = vmatprep.mubr.f32.mxu0 0.0
      %6330 = vmatmul.mubr.f32.gmra.mxu0 %v6105
      %v6331 = vpop.f32.mrf.mxu0
      %v6332 = vadd.f32 0.0, %v6331
      %v6333 = vpop.f32.mrf.mxu0
      %6334 = vdwg.mxu0
      %v6335 = vadd.f32 %v6066, %v6177
      %v6336 = vadd.f32 %v6067, %v6182
      %v6337 = vadd.f32 %v6068, %v6187
      %v6338 = vadd.f32 %v6069, %v6192
      %v6339 = vadd.f32 %v6070, %v6197
      %v6340 = vadd.f32 %v6071, %v6202
      %v6341 = vadd.f32 %v6072, %v6207
      %v6342 = vadd.f32 %v6073, %v6212
      %v6343 = vadd.f32 %v6074, %v6217
      %v6344 = vadd.f32 %v6075, %v6222
      %v6345 = vadd.f32 %v6076, %v6227
      %v6346 = vadd.f32 %v6077, %v6232
      %v6347 = vadd.f32 %v6078, %v6237
      %v6348 = vadd.f32 %v6079, %v6242
      %v6349 = vadd.f32 %v6080, %v6247
      %v6350 = vadd.f32 %v6081, %v6252
      %v6351 = vadd.f32 %v6082, %v6257
      %v6352 = vadd.f32 %v6083, %v6262
      %v6353 = vadd.f32 %v6084, %v6267
      %v6354 = vadd.f32 %v6085, %v6272
      %v6355 = vadd.f32 %v6086, %v6277
      %v6356 = vadd.f32 %v6087, %v6282
      %v6357 = vadd.f32 %v6088, %v6287
      %v6358 = vadd.f32 %v6089, %v6292
      %v6359 = vadd.f32 %v6090, %v6297
      %v6360 = vadd.f32 %v6091, %v6302
      %v6361 = vadd.f32 %v6092, %v6307
      %v6362 = vadd.f32 %v6093, %v6312
      %v6363 = vadd.f32 %v6094, %v6317
      %v6364 = vadd.f32 %v6095, %v6322
      %v6365 = vadd.f32 %v6096, %v6327
      %v6366 = vadd.f32 %v6097, %v6332
      %v6368 = vsel %vm415, %v4443, 0
      %v6371 = vsel %vm415, %v4444, 0
      %v6374 = vsel %vm577, %v4325, 0
      %6376 = vmatprep.subr.mxu0 0.0
      %6377 = vmatpush1.msra.mxu0 0.0
      %6378 = vmatprep.subr.mxu0 0.0
      %6379 = vmatpush1.msra.mxu0 0.0
      %6380 = vmatprep.subr.mxu0 0.0
      %6381 = vmatpush1.msra.mxu0 0.0
      %6382 = vmatprep.subr.mxu0 0.0
      %6383 = vmatpush1.msra.mxu0 0.0
      %6384 = vmatprep.subr.mxu0 0.0
      %6385 = vmatpush1.msra.mxu0 0.0
      %6386 = vmatprep.subr.mxu0 0.0
      %6387 = vmatpush1.msra.mxu0 0.0
      %6388 = vmatprep.subr.mxu0 0.0
      %6389 = vmatpush1.msra.mxu0 0.0
      %6390 = vmatprep.subr.mxu0 0.0
      %6391 = vmatpush1.msra.mxu0 0.0
      %6392 = vmatprep.subr.mxu0 0.0
      %6393 = vmatpush1.msra.mxu0 0.0
      %6394 = vmatprep.subr.mxu0 0.0
      %6395 = vmatpush1.msra.mxu0 0.0
      %6396 = vmatprep.subr.mxu0 0.0
      %6397 = vmatpush1.msra.mxu0 0.0
      %6398 = vmatprep.subr.mxu0 0.0
      %6399 = vmatpush1.msra.mxu0 0.0
      %6400 = vmatprep.subr.mxu0 0.0
      %6401 = vmatpush1.msra.mxu0 0.0
      %6402 = vmatprep.subr.mxu0 0.0
      %6403 = vmatpush1.msra.mxu0 0.0
      %6404 = vmatprep.subr.mxu0 0.0
      %6405 = vmatpush1.msra.mxu0 0.0
      %6406 = vmatprep.subr.mxu0 0.0
      %6407 = vmatpush1.msra.mxu0 %v6374
      %6408 = vmatprep.subr.mxu0 0.0
      %6409 = vmatpush2.msra.mxu0 0.0
      %6410 = vmatprep.subr.mxu0 0.0
      %6411 = vmatpush2.msra.mxu0 0.0
      %6412 = vmatprep.subr.mxu0 0.0
      %6413 = vmatpush2.msra.mxu0 0.0
      %6414 = vmatprep.subr.mxu0 0.0
      %6415 = vmatpush2.msra.mxu0 0.0
      %6416 = vmatprep.subr.mxu0 0.0
      %6417 = vmatpush2.msra.mxu0 0.0
      %6418 = vmatprep.subr.mxu0 0.0
      %6419 = vmatpush2.msra.mxu0 0.0
      %6420 = vmatprep.subr.mxu0 0.0
      %6421 = vmatpush2.msra.mxu0 0.0
      %6422 = vmatprep.subr.mxu0 0.0
      %6423 = vmatpush2.msra.mxu0 0.0
      %6424 = vmatprep.subr.mxu0 0.0
      %6425 = vmatpush2.msra.mxu0 0.0
      %6426 = vmatprep.subr.mxu0 0.0
      %6427 = vmatpush2.msra.mxu0 0.0
      %6428 = vmatprep.subr.mxu0 0.0
      %6429 = vmatpush2.msra.mxu0 0.0
      %6430 = vmatprep.subr.mxu0 0.0
      %6431 = vmatpush2.msra.mxu0 0.0
      %6432 = vmatprep.subr.mxu0 0.0
      %6433 = vmatpush2.msra.mxu0 0.0
      %6434 = vmatprep.subr.mxu0 0.0
      %6435 = vmatpush2.msra.mxu0 0.0
      %6436 = vmatprep.subr.mxu0 0.0
      %6437 = vmatpush2.msra.mxu0 0.0
      %6438 = vmatprep.subr.mxu0 0.0
      %6439 = vmatpush2.msra.mxu0 0.0
      %6440 = vmatprep.mubr.f32.mxu0 0.0
      %6441 = vmatmul.mubr.f32.gmra.mxu0 %v4874
      %v6442 = vpop.f32.mrf.mxu0
      %v6443 = vadd.f32 0.0, %v6442
      %v6444 = vpop.f32.mrf.mxu0
      %6445 = vmatprep.mubr.f32.mxu0 0.0
      %6446 = vmatmul.mubr.f32.gmra.mxu0 %v4876
      %v6447 = vpop.f32.mrf.mxu0
      %v6448 = vadd.f32 0.0, %v6447
      %v6449 = vpop.f32.mrf.mxu0
      %6450 = vmatprep.mubr.f32.mxu0 0.0
      %6451 = vmatmul.mubr.f32.gmra.mxu0 %v4878
      %v6452 = vpop.f32.mrf.mxu0
      %v6453 = vadd.f32 0.0, %v6452
      %v6454 = vpop.f32.mrf.mxu0
      %6455 = vmatprep.mubr.f32.mxu0 0.0
      %6456 = vmatmul.mubr.f32.gmra.mxu0 %v4880
      %v6457 = vpop.f32.mrf.mxu0
      %v6458 = vadd.f32 0.0, %v6457
      %v6459 = vpop.f32.mrf.mxu0
      %6460 = vmatprep.mubr.f32.mxu0 0.0
      %6461 = vmatmul.mubr.f32.gmra.mxu0 %v4882
      %v6462 = vpop.f32.mrf.mxu0
      %v6463 = vadd.f32 0.0, %v6462
      %v6464 = vpop.f32.mrf.mxu0
      %6465 = vmatprep.mubr.f32.mxu0 0.0
      %6466 = vmatmul.mubr.f32.gmra.mxu0 %v4884
      %v6467 = vpop.f32.mrf.mxu0
      %v6468 = vadd.f32 0.0, %v6467
      %v6469 = vpop.f32.mrf.mxu0
      %6470 = vmatprep.mubr.f32.mxu0 0.0
      %6471 = vmatmul.mubr.f32.gmra.mxu0 %v4886
      %v6472 = vpop.f32.mrf.mxu0
      %v6473 = vadd.f32 0.0, %v6472
      %v6474 = vpop.f32.mrf.mxu0
      %6475 = vmatprep.mubr.f32.mxu0 0.0
      %6476 = vmatmul.mubr.f32.gmra.mxu0 %v4888
      %v6477 = vpop.f32.mrf.mxu0
      %v6478 = vadd.f32 0.0, %v6477
      %v6479 = vpop.f32.mrf.mxu0
      %6480 = vmatprep.mubr.f32.mxu0 0.0
      %6481 = vmatmul.mubr.f32.gmra.mxu0 %v4890
      %v6482 = vpop.f32.mrf.mxu0
      %v6483 = vadd.f32 0.0, %v6482
      %v6484 = vpop.f32.mrf.mxu0
      %6485 = vmatprep.mubr.f32.mxu0 0.0
      %6486 = vmatmul.mubr.f32.gmra.mxu0 %v4892
      %v6487 = vpop.f32.mrf.mxu0
      %v6488 = vadd.f32 0.0, %v6487
      %v6489 = vpop.f32.mrf.mxu0
      %6490 = vmatprep.mubr.f32.mxu0 0.0
      %6491 = vmatmul.mubr.f32.gmra.mxu0 %v4894
      %v6492 = vpop.f32.mrf.mxu0
      %v6493 = vadd.f32 0.0, %v6492
      %v6494 = vpop.f32.mrf.mxu0
      %6495 = vmatprep.mubr.f32.mxu0 0.0
      %6496 = vmatmul.mubr.f32.gmra.mxu0 %v4896
      %v6497 = vpop.f32.mrf.mxu0
      %v6498 = vadd.f32 0.0, %v6497
      %v6499 = vpop.f32.mrf.mxu0
      %6500 = vmatprep.mubr.f32.mxu0 0.0
      %6501 = vmatmul.mubr.f32.gmra.mxu0 %v4898
      %v6502 = vpop.f32.mrf.mxu0
      %v6503 = vadd.f32 0.0, %v6502
      %v6504 = vpop.f32.mrf.mxu0
      %6505 = vmatprep.mubr.f32.mxu0 0.0
      %6506 = vmatmul.mubr.f32.gmra.mxu0 %v4900
      %v6507 = vpop.f32.mrf.mxu0
      %v6508 = vadd.f32 0.0, %v6507
      %v6509 = vpop.f32.mrf.mxu0
      %6510 = vmatprep.mubr.f32.mxu0 0.0
      %6511 = vmatmul.mubr.f32.gmra.mxu0 %v4902
      %v6512 = vpop.f32.mrf.mxu0
      %v6513 = vadd.f32 0.0, %v6512
      %v6514 = vpop.f32.mrf.mxu0
      %6515 = vmatprep.mubr.f32.mxu0 0.0
      %6516 = vmatmul.mubr.f32.gmra.mxu0 %v4904
      %v6517 = vpop.f32.mrf.mxu0
      %v6518 = vadd.f32 0.0, %v6517
      %v6519 = vpop.f32.mrf.mxu0
      %6520 = vmatprep.mubr.f32.mxu0 0.0
      %6521 = vmatmul.mubr.f32.gmra.mxu0 %v4906
      %v6522 = vpop.f32.mrf.mxu0
      %v6523 = vadd.f32 0.0, %v6522
      %v6524 = vpop.f32.mrf.mxu0
      %6525 = vmatprep.mubr.f32.mxu0 0.0
      %6526 = vmatmul.mubr.f32.gmra.mxu0 %v4908
      %v6527 = vpop.f32.mrf.mxu0
      %v6528 = vadd.f32 0.0, %v6527
      %v6529 = vpop.f32.mrf.mxu0
      %6530 = vmatprep.mubr.f32.mxu0 0.0
      %6531 = vmatmul.mubr.f32.gmra.mxu0 %v4910
      %v6532 = vpop.f32.mrf.mxu0
      %v6533 = vadd.f32 0.0, %v6532
      %v6534 = vpop.f32.mrf.mxu0
      %6535 = vmatprep.mubr.f32.mxu0 0.0
      %6536 = vmatmul.mubr.f32.gmra.mxu0 %v4912
      %v6537 = vpop.f32.mrf.mxu0
      %v6538 = vadd.f32 0.0, %v6537
      %v6539 = vpop.f32.mrf.mxu0
      %6540 = vmatprep.mubr.f32.mxu0 0.0
      %6541 = vmatmul.mubr.f32.gmra.mxu0 %v4914
      %v6542 = vpop.f32.mrf.mxu0
      %v6543 = vadd.f32 0.0, %v6542
      %v6544 = vpop.f32.mrf.mxu0
      %6545 = vmatprep.mubr.f32.mxu0 0.0
      %6546 = vmatmul.mubr.f32.gmra.mxu0 %v4916
      %v6547 = vpop.f32.mrf.mxu0
      %v6548 = vadd.f32 0.0, %v6547
      %v6549 = vpop.f32.mrf.mxu0
      %6550 = vmatprep.mubr.f32.mxu0 0.0
      %6551 = vmatmul.mubr.f32.gmra.mxu0 %v4918
      %v6552 = vpop.f32.mrf.mxu0
      %v6553 = vadd.f32 0.0, %v6552
      %v6554 = vpop.f32.mrf.mxu0
      %6555 = vmatprep.mubr.f32.mxu0 0.0
      %6556 = vmatmul.mubr.f32.gmra.mxu0 %v4920
      %v6557 = vpop.f32.mrf.mxu0
      %v6558 = vadd.f32 0.0, %v6557
      %v6559 = vpop.f32.mrf.mxu0
      %6560 = vmatprep.mubr.f32.mxu0 0.0
      %6561 = vmatmul.mubr.f32.gmra.mxu0 %v4922
      %v6562 = vpop.f32.mrf.mxu0
      %v6563 = vadd.f32 0.0, %v6562
      %v6564 = vpop.f32.mrf.mxu0
      %6565 = vmatprep.mubr.f32.mxu0 0.0
      %6566 = vmatmul.mubr.f32.gmra.mxu0 %v4924
      %v6567 = vpop.f32.mrf.mxu0
      %v6568 = vadd.f32 0.0, %v6567
      %v6569 = vpop.f32.mrf.mxu0
      %6570 = vmatprep.mubr.f32.mxu0 0.0
      %6571 = vmatmul.mubr.f32.gmra.mxu0 %v4926
      %v6572 = vpop.f32.mrf.mxu0
      %v6573 = vadd.f32 0.0, %v6572
      %v6574 = vpop.f32.mrf.mxu0
      %6575 = vmatprep.mubr.f32.mxu0 0.0
      %6576 = vmatmul.mubr.f32.gmra.mxu0 %v4928
      %v6577 = vpop.f32.mrf.mxu0
      %v6578 = vadd.f32 0.0, %v6577
      %v6579 = vpop.f32.mrf.mxu0
      %6580 = vmatprep.mubr.f32.mxu0 0.0
      %6581 = vmatmul.mubr.f32.gmra.mxu0 %v5563
      %v6582 = vpop.f32.mrf.mxu0
      %v6583 = vadd.f32 0.0, %v6582
      %v6584 = vpop.f32.mrf.mxu0
      %6585 = vmatprep.mubr.f32.mxu0 0.0
      %6586 = vmatmul.mubr.f32.gmra.mxu0 %v5566
      %v6587 = vpop.f32.mrf.mxu0
      %v6588 = vadd.f32 0.0, %v6587
      %v6589 = vpop.f32.mrf.mxu0
      %6590 = vmatprep.mubr.f32.mxu0 0.0
      %6591 = vmatmul.mubr.f32.gmra.mxu0 %v6368
      %v6592 = vpop.f32.mrf.mxu0
      %v6593 = vadd.f32 0.0, %v6592
      %v6594 = vpop.f32.mrf.mxu0
      %6595 = vmatprep.mubr.f32.mxu0 0.0
      %6596 = vmatmul.mubr.f32.gmra.mxu0 %v6371
      %v6597 = vpop.f32.mrf.mxu0
      %v6598 = vadd.f32 0.0, %v6597
      %v6599 = vpop.f32.mrf.mxu0
      %6600 = vdwg.mxu0
      %v6601 = vadd.f32 %v6335, %v6443
      %v6602 = vadd.f32 %v6336, %v6448
      %v6603 = vadd.f32 %v6337, %v6453
      %v6604 = vadd.f32 %v6338, %v6458
      %v6605 = vadd.f32 %v6339, %v6463
      %v6606 = vadd.f32 %v6340, %v6468
      %v6607 = vadd.f32 %v6341, %v6473
      %v6608 = vadd.f32 %v6342, %v6478
      %v6609 = vadd.f32 %v6343, %v6483
      %v6610 = vadd.f32 %v6344, %v6488
      %v6611 = vadd.f32 %v6345, %v6493
      %v6612 = vadd.f32 %v6346, %v6498
      %v6613 = vadd.f32 %v6347, %v6503
      %v6614 = vadd.f32 %v6348, %v6508
      %v6615 = vadd.f32 %v6349, %v6513
      %v6616 = vadd.f32 %v6350, %v6518
      %v6617 = vadd.f32 %v6351, %v6523
      %v6618 = vadd.f32 %v6352, %v6528
      %v6619 = vadd.f32 %v6353, %v6533
      %v6620 = vadd.f32 %v6354, %v6538
      %v6621 = vadd.f32 %v6355, %v6543
      %v6622 = vadd.f32 %v6356, %v6548
      %v6623 = vadd.f32 %v6357, %v6553
      %v6624 = vadd.f32 %v6358, %v6558
      %v6625 = vadd.f32 %v6359, %v6563
      %v6626 = vadd.f32 %v6360, %v6568
      %v6627 = vadd.f32 %v6361, %v6573
      %v6628 = vadd.f32 %v6362, %v6578
      %v6629 = vadd.f32 %v6363, %v6583
      %v6630 = vadd.f32 %v6364, %v6588
      %v6631 = vadd.f32 %v6365, %v6593
      %v6632 = vadd.f32 %v6366, %v6598
      %v6634 = vrot.slane %v4443, 1
      %v6635 = vrot.slane %v4444, 1
      %v6636 = vsel %vm1145, %v6634, %v6635
      %v6637 = vrot.slane %v4445, 1
      %v6638 = vsel %vm1145, %v6635, %v6637
      %v6639 = vsel %vm415, %v6636, 0
      %v6641 = vsel %vm415, %v6638, 0
      %v6644 = vsel %vm577, %v4326, 0
      %6646 = vmatprep.subr.mxu0 0.0
      %6647 = vmatpush1.msra.mxu0 0.0
      %6648 = vmatprep.subr.mxu0 0.0
      %6649 = vmatpush1.msra.mxu0 0.0
      %6650 = vmatprep.subr.mxu0 0.0
      %6651 = vmatpush1.msra.mxu0 0.0
      %6652 = vmatprep.subr.mxu0 0.0
      %6653 = vmatpush1.msra.mxu0 0.0
      %6654 = vmatprep.subr.mxu0 0.0
      %6655 = vmatpush1.msra.mxu0 0.0
      %6656 = vmatprep.subr.mxu0 0.0
      %6657 = vmatpush1.msra.mxu0 0.0
      %6658 = vmatprep.subr.mxu0 0.0
      %6659 = vmatpush1.msra.mxu0 0.0
      %6660 = vmatprep.subr.mxu0 0.0
      %6661 = vmatpush1.msra.mxu0 0.0
      %6662 = vmatprep.subr.mxu0 0.0
      %6663 = vmatpush1.msra.mxu0 0.0
      %6664 = vmatprep.subr.mxu0 0.0
      %6665 = vmatpush1.msra.mxu0 0.0
      %6666 = vmatprep.subr.mxu0 0.0
      %6667 = vmatpush1.msra.mxu0 0.0
      %6668 = vmatprep.subr.mxu0 0.0
      %6669 = vmatpush1.msra.mxu0 0.0
      %6670 = vmatprep.subr.mxu0 0.0
      %6671 = vmatpush1.msra.mxu0 0.0
      %6672 = vmatprep.subr.mxu0 0.0
      %6673 = vmatpush1.msra.mxu0 0.0
      %6674 = vmatprep.subr.mxu0 0.0
      %6675 = vmatpush1.msra.mxu0 0.0
      %6676 = vmatprep.subr.mxu0 0.0
      %6677 = vmatpush1.msra.mxu0 %v6644
      %6678 = vmatprep.subr.mxu0 0.0
      %6679 = vmatpush2.msra.mxu0 0.0
      %6680 = vmatprep.subr.mxu0 0.0
      %6681 = vmatpush2.msra.mxu0 0.0
      %6682 = vmatprep.subr.mxu0 0.0
      %6683 = vmatpush2.msra.mxu0 0.0
      %6684 = vmatprep.subr.mxu0 0.0
      %6685 = vmatpush2.msra.mxu0 0.0
      %6686 = vmatprep.subr.mxu0 0.0
      %6687 = vmatpush2.msra.mxu0 0.0
      %6688 = vmatprep.subr.mxu0 0.0
      %6689 = vmatpush2.msra.mxu0 0.0
      %6690 = vmatprep.subr.mxu0 0.0
      %6691 = vmatpush2.msra.mxu0 0.0
      %6692 = vmatprep.subr.mxu0 0.0
      %6693 = vmatpush2.msra.mxu0 0.0
      %6694 = vmatprep.subr.mxu0 0.0
      %6695 = vmatpush2.msra.mxu0 0.0
      %6696 = vmatprep.subr.mxu0 0.0
      %6697 = vmatpush2.msra.mxu0 0.0
      %6698 = vmatprep.subr.mxu0 0.0
      %6699 = vmatpush2.msra.mxu0 0.0
      %6700 = vmatprep.subr.mxu0 0.0
      %6701 = vmatpush2.msra.mxu0 0.0
      %6702 = vmatprep.subr.mxu0 0.0
      %6703 = vmatpush2.msra.mxu0 0.0
      %6704 = vmatprep.subr.mxu0 0.0
      %6705 = vmatpush2.msra.mxu0 0.0
      %6706 = vmatprep.subr.mxu0 0.0
      %6707 = vmatpush2.msra.mxu0 0.0
      %6708 = vmatprep.subr.mxu0 0.0
      %6709 = vmatpush2.msra.mxu0 0.0
      %6710 = vmatprep.mubr.f32.mxu0 0.0
      %6711 = vmatmul.mubr.f32.gmra.mxu0 %v4582
      %v6712 = vpop.f32.mrf.mxu0
      %v6713 = vadd.f32 0.0, %v6712
      %v6714 = vpop.f32.mrf.mxu0
      %6715 = vmatprep.mubr.f32.mxu0 0.0
      %6716 = vmatmul.mubr.f32.gmra.mxu0 %v4584
      %v6717 = vpop.f32.mrf.mxu0
      %v6718 = vadd.f32 0.0, %v6717
      %v6719 = vpop.f32.mrf.mxu0
      %6720 = vmatprep.mubr.f32.mxu0 0.0
      %6721 = vmatmul.mubr.f32.gmra.mxu0 %v4586
      %v6722 = vpop.f32.mrf.mxu0
      %v6723 = vadd.f32 0.0, %v6722
      %v6724 = vpop.f32.mrf.mxu0
      %6725 = vmatprep.mubr.f32.mxu0 0.0
      %6726 = vmatmul.mubr.f32.gmra.mxu0 %v4588
      %v6727 = vpop.f32.mrf.mxu0
      %v6728 = vadd.f32 0.0, %v6727
      %v6729 = vpop.f32.mrf.mxu0
      %6730 = vmatprep.mubr.f32.mxu0 0.0
      %6731 = vmatmul.mubr.f32.gmra.mxu0 %v4590
      %v6732 = vpop.f32.mrf.mxu0
      %v6733 = vadd.f32 0.0, %v6732
      %v6734 = vpop.f32.mrf.mxu0
      %6735 = vmatprep.mubr.f32.mxu0 0.0
      %6736 = vmatmul.mubr.f32.gmra.mxu0 %v4592
      %v6737 = vpop.f32.mrf.mxu0
      %v6738 = vadd.f32 0.0, %v6737
      %v6739 = vpop.f32.mrf.mxu0
      %6740 = vmatprep.mubr.f32.mxu0 0.0
      %6741 = vmatmul.mubr.f32.gmra.mxu0 %v4594
      %v6742 = vpop.f32.mrf.mxu0
      %v6743 = vadd.f32 0.0, %v6742
      %v6744 = vpop.f32.mrf.mxu0
      %6745 = vmatprep.mubr.f32.mxu0 0.0
      %6746 = vmatmul.mubr.f32.gmra.mxu0 %v4596
      %v6747 = vpop.f32.mrf.mxu0
      %v6748 = vadd.f32 0.0, %v6747
      %v6749 = vpop.f32.mrf.mxu0
      %6750 = vmatprep.mubr.f32.mxu0 0.0
      %6751 = vmatmul.mubr.f32.gmra.mxu0 %v4598
      %v6752 = vpop.f32.mrf.mxu0
      %v6753 = vadd.f32 0.0, %v6752
      %v6754 = vpop.f32.mrf.mxu0
      %6755 = vmatprep.mubr.f32.mxu0 0.0
      %6756 = vmatmul.mubr.f32.gmra.mxu0 %v4600
      %v6757 = vpop.f32.mrf.mxu0
      %v6758 = vadd.f32 0.0, %v6757
      %v6759 = vpop.f32.mrf.mxu0
      %6760 = vmatprep.mubr.f32.mxu0 0.0
      %6761 = vmatmul.mubr.f32.gmra.mxu0 %v4602
      %v6762 = vpop.f32.mrf.mxu0
      %v6763 = vadd.f32 0.0, %v6762
      %v6764 = vpop.f32.mrf.mxu0
      %6765 = vmatprep.mubr.f32.mxu0 0.0
      %6766 = vmatmul.mubr.f32.gmra.mxu0 %v4604
      %v6767 = vpop.f32.mrf.mxu0
      %v6768 = vadd.f32 0.0, %v6767
      %v6769 = vpop.f32.mrf.mxu0
      %6770 = vmatprep.mubr.f32.mxu0 0.0
      %6771 = vmatmul.mubr.f32.gmra.mxu0 %v4606
      %v6772 = vpop.f32.mrf.mxu0
      %v6773 = vadd.f32 0.0, %v6772
      %v6774 = vpop.f32.mrf.mxu0
      %6775 = vmatprep.mubr.f32.mxu0 0.0
      %6776 = vmatmul.mubr.f32.gmra.mxu0 %v4608
      %v6777 = vpop.f32.mrf.mxu0
      %v6778 = vadd.f32 0.0, %v6777
      %v6779 = vpop.f32.mrf.mxu0
      %6780 = vmatprep.mubr.f32.mxu0 0.0
      %6781 = vmatmul.mubr.f32.gmra.mxu0 %v4610
      %v6782 = vpop.f32.mrf.mxu0
      %v6783 = vadd.f32 0.0, %v6782
      %v6784 = vpop.f32.mrf.mxu0
      %6785 = vmatprep.mubr.f32.mxu0 0.0
      %6786 = vmatmul.mubr.f32.gmra.mxu0 %v4612
      %v6787 = vpop.f32.mrf.mxu0
      %v6788 = vadd.f32 0.0, %v6787
      %v6789 = vpop.f32.mrf.mxu0
      %6790 = vmatprep.mubr.f32.mxu0 0.0
      %6791 = vmatmul.mubr.f32.gmra.mxu0 %v4614
      %v6792 = vpop.f32.mrf.mxu0
      %v6793 = vadd.f32 0.0, %v6792
      %v6794 = vpop.f32.mrf.mxu0
      %6795 = vmatprep.mubr.f32.mxu0 0.0
      %6796 = vmatmul.mubr.f32.gmra.mxu0 %v4616
      %v6797 = vpop.f32.mrf.mxu0
      %v6798 = vadd.f32 0.0, %v6797
      %v6799 = vpop.f32.mrf.mxu0
      %6800 = vmatprep.mubr.f32.mxu0 0.0
      %6801 = vmatmul.mubr.f32.gmra.mxu0 %v4618
      %v6802 = vpop.f32.mrf.mxu0
      %v6803 = vadd.f32 0.0, %v6802
      %v6804 = vpop.f32.mrf.mxu0
      %6805 = vmatprep.mubr.f32.mxu0 0.0
      %6806 = vmatmul.mubr.f32.gmra.mxu0 %v4620
      %v6807 = vpop.f32.mrf.mxu0
      %v6808 = vadd.f32 0.0, %v6807
      %v6809 = vpop.f32.mrf.mxu0
      %6810 = vmatprep.mubr.f32.mxu0 0.0
      %6811 = vmatmul.mubr.f32.gmra.mxu0 %v4622
      %v6812 = vpop.f32.mrf.mxu0
      %v6813 = vadd.f32 0.0, %v6812
      %v6814 = vpop.f32.mrf.mxu0
      %6815 = vmatprep.mubr.f32.mxu0 0.0
      %6816 = vmatmul.mubr.f32.gmra.mxu0 %v4624
      %v6817 = vpop.f32.mrf.mxu0
      %v6818 = vadd.f32 0.0, %v6817
      %v6819 = vpop.f32.mrf.mxu0
      %6820 = vmatprep.mubr.f32.mxu0 0.0
      %6821 = vmatmul.mubr.f32.gmra.mxu0 %v4626
      %v6822 = vpop.f32.mrf.mxu0
      %v6823 = vadd.f32 0.0, %v6822
      %v6824 = vpop.f32.mrf.mxu0
      %6825 = vmatprep.mubr.f32.mxu0 0.0
      %6826 = vmatmul.mubr.f32.gmra.mxu0 %v4628
      %v6827 = vpop.f32.mrf.mxu0
      %v6828 = vadd.f32 0.0, %v6827
      %v6829 = vpop.f32.mrf.mxu0
      %6830 = vmatprep.mubr.f32.mxu0 0.0
      %6831 = vmatmul.mubr.f32.gmra.mxu0 %v4630
      %v6832 = vpop.f32.mrf.mxu0
      %v6833 = vadd.f32 0.0, %v6832
      %v6834 = vpop.f32.mrf.mxu0
      %6835 = vmatprep.mubr.f32.mxu0 0.0
      %6836 = vmatmul.mubr.f32.gmra.mxu0 %v4632
      %v6837 = vpop.f32.mrf.mxu0
      %v6838 = vadd.f32 0.0, %v6837
      %v6839 = vpop.f32.mrf.mxu0
      %6840 = vmatprep.mubr.f32.mxu0 0.0
      %6841 = vmatmul.mubr.f32.gmra.mxu0 %v4634
      %v6842 = vpop.f32.mrf.mxu0
      %v6843 = vadd.f32 0.0, %v6842
      %v6844 = vpop.f32.mrf.mxu0
      %6845 = vmatprep.mubr.f32.mxu0 0.0
      %6846 = vmatmul.mubr.f32.gmra.mxu0 %v4636
      %v6847 = vpop.f32.mrf.mxu0
      %v6848 = vadd.f32 0.0, %v6847
      %v6849 = vpop.f32.mrf.mxu0
      %6850 = vmatprep.mubr.f32.mxu0 0.0
      %6851 = vmatmul.mubr.f32.gmra.mxu0 %v5834
      %v6852 = vpop.f32.mrf.mxu0
      %v6853 = vadd.f32 0.0, %v6852
      %v6854 = vpop.f32.mrf.mxu0
      %6855 = vmatprep.mubr.f32.mxu0 0.0
      %6856 = vmatmul.mubr.f32.gmra.mxu0 %v5836
      %v6857 = vpop.f32.mrf.mxu0
      %v6858 = vadd.f32 0.0, %v6857
      %v6859 = vpop.f32.mrf.mxu0
      %6860 = vmatprep.mubr.f32.mxu0 0.0
      %6861 = vmatmul.mubr.f32.gmra.mxu0 %v6639
      %v6862 = vpop.f32.mrf.mxu0
      %v6863 = vadd.f32 0.0, %v6862
      %v6864 = vpop.f32.mrf.mxu0
      %6865 = vmatprep.mubr.f32.mxu0 0.0
      %6866 = vmatmul.mubr.f32.gmra.mxu0 %v6641
      %v6867 = vpop.f32.mrf.mxu0
      %v6868 = vadd.f32 0.0, %v6867
      %v6869 = vpop.f32.mrf.mxu0
      %6870 = vdwg.mxu0
      %v6871 = vadd.f32 %v6601, %v6713
      %v6872 = vadd.f32 %v6602, %v6718
      %v6873 = vadd.f32 %v6603, %v6723
      %v6874 = vadd.f32 %v6604, %v6728
      %v6875 = vadd.f32 %v6605, %v6733
      %v6876 = vadd.f32 %v6606, %v6738
      %v6877 = vadd.f32 %v6607, %v6743
      %v6878 = vadd.f32 %v6608, %v6748
      %v6879 = vadd.f32 %v6609, %v6753
      %v6880 = vadd.f32 %v6610, %v6758
      %v6881 = vadd.f32 %v6611, %v6763
      %v6882 = vadd.f32 %v6612, %v6768
      %v6883 = vadd.f32 %v6613, %v6773
      %v6884 = vadd.f32 %v6614, %v6778
      %v6885 = vadd.f32 %v6615, %v6783
      %v6886 = vadd.f32 %v6616, %v6788
      %v6887 = vadd.f32 %v6617, %v6793
      %v6888 = vadd.f32 %v6618, %v6798
      %v6889 = vadd.f32 %v6619, %v6803
      %v6890 = vadd.f32 %v6620, %v6808
      %v6891 = vadd.f32 %v6621, %v6813
      %v6892 = vadd.f32 %v6622, %v6818
      %v6893 = vadd.f32 %v6623, %v6823
      %v6894 = vadd.f32 %v6624, %v6828
      %v6895 = vadd.f32 %v6625, %v6833
      %v6896 = vadd.f32 %v6626, %v6838
      %v6897 = vadd.f32 %v6627, %v6843
      %v6898 = vadd.f32 %v6628, %v6848
      %v6899 = vadd.f32 %v6629, %v6853
      %v6900 = vadd.f32 %v6630, %v6858
      %v6901 = vadd.f32 %v6631, %v6863
      %v6902 = vadd.f32 %v6632, %v6868
      %v6903 = vrot.slane %v4443, 2
      %v6904 = vrot.slane %v4444, 2
      %v6905 = vsel %vm1810, %v6903, %v6904
      %v6906 = vrot.slane %v4445, 2
      %v6907 = vsel %vm1810, %v6904, %v6906
      %v6908 = vsel %vm415, %v6905, 0
      %v6910 = vsel %vm415, %v6907, 0
      %v6913 = vsel %vm577, %v4327, 0
      %6915 = vmatprep.subr.mxu0 0.0
      %6916 = vmatpush1.msra.mxu0 0.0
      %6917 = vmatprep.subr.mxu0 0.0
      %6918 = vmatpush1.msra.mxu0 0.0
      %6919 = vmatprep.subr.mxu0 0.0
      %6920 = vmatpush1.msra.mxu0 0.0
      %6921 = vmatprep.subr.mxu0 0.0
      %6922 = vmatpush1.msra.mxu0 0.0
      %6923 = vmatprep.subr.mxu0 0.0
      %6924 = vmatpush1.msra.mxu0 0.0
      %6925 = vmatprep.subr.mxu0 0.0
      %6926 = vmatpush1.msra.mxu0 0.0
      %6927 = vmatprep.subr.mxu0 0.0
      %6928 = vmatpush1.msra.mxu0 0.0
      %6929 = vmatprep.subr.mxu0 0.0
      %6930 = vmatpush1.msra.mxu0 0.0
      %6931 = vmatprep.subr.mxu0 0.0
      %6932 = vmatpush1.msra.mxu0 0.0
      %6933 = vmatprep.subr.mxu0 0.0
      %6934 = vmatpush1.msra.mxu0 0.0
      %6935 = vmatprep.subr.mxu0 0.0
      %6936 = vmatpush1.msra.mxu0 0.0
      %6937 = vmatprep.subr.mxu0 0.0
      %6938 = vmatpush1.msra.mxu0 0.0
      %6939 = vmatprep.subr.mxu0 0.0
      %6940 = vmatpush1.msra.mxu0 0.0
      %6941 = vmatprep.subr.mxu0 0.0
      %6942 = vmatpush1.msra.mxu0 0.0
      %6943 = vmatprep.subr.mxu0 0.0
      %6944 = vmatpush1.msra.mxu0 0.0
      %6945 = vmatprep.subr.mxu0 0.0
      %6946 = vmatpush1.msra.mxu0 %v6913
      %6947 = vmatprep.subr.mxu0 0.0
      %6948 = vmatpush2.msra.mxu0 0.0
      %6949 = vmatprep.subr.mxu0 0.0
      %6950 = vmatpush2.msra.mxu0 0.0
      %6951 = vmatprep.subr.mxu0 0.0
      %6952 = vmatpush2.msra.mxu0 0.0
      %6953 = vmatprep.subr.mxu0 0.0
      %6954 = vmatpush2.msra.mxu0 0.0
      %6955 = vmatprep.subr.mxu0 0.0
      %6956 = vmatpush2.msra.mxu0 0.0
      %6957 = vmatprep.subr.mxu0 0.0
      %6958 = vmatpush2.msra.mxu0 0.0
      %6959 = vmatprep.subr.mxu0 0.0
      %6960 = vmatpush2.msra.mxu0 0.0
      %6961 = vmatprep.subr.mxu0 0.0
      %6962 = vmatpush2.msra.mxu0 0.0
      %6963 = vmatprep.subr.mxu0 0.0
      %6964 = vmatpush2.msra.mxu0 0.0
      %6965 = vmatprep.subr.mxu0 0.0
      %6966 = vmatpush2.msra.mxu0 0.0
      %6967 = vmatprep.subr.mxu0 0.0
      %6968 = vmatpush2.msra.mxu0 0.0
      %6969 = vmatprep.subr.mxu0 0.0
      %6970 = vmatpush2.msra.mxu0 0.0
      %6971 = vmatprep.subr.mxu0 0.0
      %6972 = vmatpush2.msra.mxu0 0.0
      %6973 = vmatprep.subr.mxu0 0.0
      %6974 = vmatpush2.msra.mxu0 0.0
      %6975 = vmatprep.subr.mxu0 0.0
      %6976 = vmatpush2.msra.mxu0 0.0
      %6977 = vmatprep.subr.mxu0 0.0
      %6978 = vmatpush2.msra.mxu0 0.0
      %6979 = vmatprep.mubr.f32.mxu0 0.0
      %6980 = vmatmul.mubr.f32.gmra.mxu0 %v5246
      %v6981 = vpop.f32.mrf.mxu0
      %v6982 = vadd.f32 0.0, %v6981
      %v6983 = vpop.f32.mrf.mxu0
      %6984 = vmatprep.mubr.f32.mxu0 0.0
      %6985 = vmatmul.mubr.f32.gmra.mxu0 %v5248
      %v6986 = vpop.f32.mrf.mxu0
      %v6987 = vadd.f32 0.0, %v6986
      %v6988 = vpop.f32.mrf.mxu0
      %6989 = vmatprep.mubr.f32.mxu0 0.0
      %6990 = vmatmul.mubr.f32.gmra.mxu0 %v5250
      %v6991 = vpop.f32.mrf.mxu0
      %v6992 = vadd.f32 0.0, %v6991
      %v6993 = vpop.f32.mrf.mxu0
      %6994 = vmatprep.mubr.f32.mxu0 0.0
      %6995 = vmatmul.mubr.f32.gmra.mxu0 %v5252
      %v6996 = vpop.f32.mrf.mxu0
      %v6997 = vadd.f32 0.0, %v6996
      %v6998 = vpop.f32.mrf.mxu0
      %6999 = vmatprep.mubr.f32.mxu0 0.0
      %7000 = vmatmul.mubr.f32.gmra.mxu0 %v5254
      %v7001 = vpop.f32.mrf.mxu0
      %v7002 = vadd.f32 0.0, %v7001
      %v7003 = vpop.f32.mrf.mxu0
      %7004 = vmatprep.mubr.f32.mxu0 0.0
      %7005 = vmatmul.mubr.f32.gmra.mxu0 %v5256
      %v7006 = vpop.f32.mrf.mxu0
      %v7007 = vadd.f32 0.0, %v7006
      %v7008 = vpop.f32.mrf.mxu0
      %7009 = vmatprep.mubr.f32.mxu0 0.0
      %7010 = vmatmul.mubr.f32.gmra.mxu0 %v5258
      %v7011 = vpop.f32.mrf.mxu0
      %v7012 = vadd.f32 0.0, %v7011
      %v7013 = vpop.f32.mrf.mxu0
      %7014 = vmatprep.mubr.f32.mxu0 0.0
      %7015 = vmatmul.mubr.f32.gmra.mxu0 %v5260
      %v7016 = vpop.f32.mrf.mxu0
      %v7017 = vadd.f32 0.0, %v7016
      %v7018 = vpop.f32.mrf.mxu0
      %7019 = vmatprep.mubr.f32.mxu0 0.0
      %7020 = vmatmul.mubr.f32.gmra.mxu0 %v5262
      %v7021 = vpop.f32.mrf.mxu0
      %v7022 = vadd.f32 0.0, %v7021
      %v7023 = vpop.f32.mrf.mxu0
      %7024 = vmatprep.mubr.f32.mxu0 0.0
      %7025 = vmatmul.mubr.f32.gmra.mxu0 %v5264
      %v7026 = vpop.f32.mrf.mxu0
      %v7027 = vadd.f32 0.0, %v7026
      %v7028 = vpop.f32.mrf.mxu0
      %7029 = vmatprep.mubr.f32.mxu0 0.0
      %7030 = vmatmul.mubr.f32.gmra.mxu0 %v5266
      %v7031 = vpop.f32.mrf.mxu0
      %v7032 = vadd.f32 0.0, %v7031
      %v7033 = vpop.f32.mrf.mxu0
      %7034 = vmatprep.mubr.f32.mxu0 0.0
      %7035 = vmatmul.mubr.f32.gmra.mxu0 %v5268
      %v7036 = vpop.f32.mrf.mxu0
      %v7037 = vadd.f32 0.0, %v7036
      %v7038 = vpop.f32.mrf.mxu0
      %7039 = vmatprep.mubr.f32.mxu0 0.0
      %7040 = vmatmul.mubr.f32.gmra.mxu0 %v5270
      %v7041 = vpop.f32.mrf.mxu0
      %v7042 = vadd.f32 0.0, %v7041
      %v7043 = vpop.f32.mrf.mxu0
      %7044 = vmatprep.mubr.f32.mxu0 0.0
      %7045 = vmatmul.mubr.f32.gmra.mxu0 %v5272
      %v7046 = vpop.f32.mrf.mxu0
      %v7047 = vadd.f32 0.0, %v7046
      %v7048 = vpop.f32.mrf.mxu0
      %7049 = vmatprep.mubr.f32.mxu0 0.0
      %7050 = vmatmul.mubr.f32.gmra.mxu0 %v5274
      %v7051 = vpop.f32.mrf.mxu0
      %v7052 = vadd.f32 0.0, %v7051
      %v7053 = vpop.f32.mrf.mxu0
      %7054 = vmatprep.mubr.f32.mxu0 0.0
      %7055 = vmatmul.mubr.f32.gmra.mxu0 %v5276
      %v7056 = vpop.f32.mrf.mxu0
      %v7057 = vadd.f32 0.0, %v7056
      %v7058 = vpop.f32.mrf.mxu0
      %7059 = vmatprep.mubr.f32.mxu0 0.0
      %7060 = vmatmul.mubr.f32.gmra.mxu0 %v5278
      %v7061 = vpop.f32.mrf.mxu0
      %v7062 = vadd.f32 0.0, %v7061
      %v7063 = vpop.f32.mrf.mxu0
      %7064 = vmatprep.mubr.f32.mxu0 0.0
      %7065 = vmatmul.mubr.f32.gmra.mxu0 %v5280
      %v7066 = vpop.f32.mrf.mxu0
      %v7067 = vadd.f32 0.0, %v7066
      %v7068 = vpop.f32.mrf.mxu0
      %7069 = vmatprep.mubr.f32.mxu0 0.0
      %7070 = vmatmul.mubr.f32.gmra.mxu0 %v5282
      %v7071 = vpop.f32.mrf.mxu0
      %v7072 = vadd.f32 0.0, %v7071
      %v7073 = vpop.f32.mrf.mxu0
      %7074 = vmatprep.mubr.f32.mxu0 0.0
      %7075 = vmatmul.mubr.f32.gmra.mxu0 %v5284
      %v7076 = vpop.f32.mrf.mxu0
      %v7077 = vadd.f32 0.0, %v7076
      %v7078 = vpop.f32.mrf.mxu0
      %7079 = vmatprep.mubr.f32.mxu0 0.0
      %7080 = vmatmul.mubr.f32.gmra.mxu0 %v5286
      %v7081 = vpop.f32.mrf.mxu0
      %v7082 = vadd.f32 0.0, %v7081
      %v7083 = vpop.f32.mrf.mxu0
      %7084 = vmatprep.mubr.f32.mxu0 0.0
      %7085 = vmatmul.mubr.f32.gmra.mxu0 %v5288
      %v7086 = vpop.f32.mrf.mxu0
      %v7087 = vadd.f32 0.0, %v7086
      %v7088 = vpop.f32.mrf.mxu0
      %7089 = vmatprep.mubr.f32.mxu0 0.0
      %7090 = vmatmul.mubr.f32.gmra.mxu0 %v5290
      %v7091 = vpop.f32.mrf.mxu0
      %v7092 = vadd.f32 0.0, %v7091
      %v7093 = vpop.f32.mrf.mxu0
      %7094 = vmatprep.mubr.f32.mxu0 0.0
      %7095 = vmatmul.mubr.f32.gmra.mxu0 %v5292
      %v7096 = vpop.f32.mrf.mxu0
      %v7097 = vadd.f32 0.0, %v7096
      %v7098 = vpop.f32.mrf.mxu0
      %7099 = vmatprep.mubr.f32.mxu0 0.0
      %7100 = vmatmul.mubr.f32.gmra.mxu0 %v5294
      %v7101 = vpop.f32.mrf.mxu0
      %v7102 = vadd.f32 0.0, %v7101
      %v7103 = vpop.f32.mrf.mxu0
      %7104 = vmatprep.mubr.f32.mxu0 0.0
      %7105 = vmatmul.mubr.f32.gmra.mxu0 %v5296
      %v7106 = vpop.f32.mrf.mxu0
      %v7107 = vadd.f32 0.0, %v7106
      %v7108 = vpop.f32.mrf.mxu0
      %7109 = vmatprep.mubr.f32.mxu0 0.0
      %7110 = vmatmul.mubr.f32.gmra.mxu0 %v5298
      %v7111 = vpop.f32.mrf.mxu0
      %v7112 = vadd.f32 0.0, %v7111
      %v7113 = vpop.f32.mrf.mxu0
      %7114 = vmatprep.mubr.f32.mxu0 0.0
      %7115 = vmatmul.mubr.f32.gmra.mxu0 %v5300
      %v7116 = vpop.f32.mrf.mxu0
      %v7117 = vadd.f32 0.0, %v7116
      %v7118 = vpop.f32.mrf.mxu0
      %7119 = vmatprep.mubr.f32.mxu0 0.0
      %7120 = vmatmul.mubr.f32.gmra.mxu0 %v6103
      %v7121 = vpop.f32.mrf.mxu0
      %v7122 = vadd.f32 0.0, %v7121
      %v7123 = vpop.f32.mrf.mxu0
      %7124 = vmatprep.mubr.f32.mxu0 0.0
      %7125 = vmatmul.mubr.f32.gmra.mxu0 %v6105
      %v7126 = vpop.f32.mrf.mxu0
      %v7127 = vadd.f32 0.0, %v7126
      %v7128 = vpop.f32.mrf.mxu0
      %7129 = vmatprep.mubr.f32.mxu0 0.0
      %7130 = vmatmul.mubr.f32.gmra.mxu0 %v6908
      %v7131 = vpop.f32.mrf.mxu0
      %v7132 = vadd.f32 0.0, %v7131
      %v7133 = vpop.f32.mrf.mxu0
      %7134 = vmatprep.mubr.f32.mxu0 0.0
      %7135 = vmatmul.mubr.f32.gmra.mxu0 %v6910
      %v7136 = vpop.f32.mrf.mxu0
      %v7137 = vadd.f32 0.0, %v7136
      %v7138 = vpop.f32.mrf.mxu0
      %7139 = vdwg.mxu0
      %v7140 = vadd.f32 %v6871, %v6982
      %v7141 = vadd.f32 %v6872, %v6987
      %v7142 = vadd.f32 %v6873, %v6992
      %v7143 = vadd.f32 %v6874, %v6997
      %v7144 = vadd.f32 %v6875, %v7002
      %v7145 = vadd.f32 %v6876, %v7007
      %v7146 = vadd.f32 %v6877, %v7012
      %v7147 = vadd.f32 %v6878, %v7017
      %v7148 = vadd.f32 %v6879, %v7022
      %v7149 = vadd.f32 %v6880, %v7027
      %v7150 = vadd.f32 %v6881, %v7032
      %v7151 = vadd.f32 %v6882, %v7037
      %v7152 = vadd.f32 %v6883, %v7042
      %v7153 = vadd.f32 %v6884, %v7047
      %v7154 = vadd.f32 %v6885, %v7052
      %v7155 = vadd.f32 %v6886, %v7057
      %v7156 = vadd.f32 %v6887, %v7062
      %v7157 = vadd.f32 %v6888, %v7067
      %v7158 = vadd.f32 %v6889, %v7072
      %v7159 = vadd.f32 %v6890, %v7077
      %v7160 = vadd.f32 %v6891, %v7082
      %v7161 = vadd.f32 %v6892, %v7087
      %v7162 = vadd.f32 %v6893, %v7092
      %v7163 = vadd.f32 %v6894, %v7097
      %v7164 = vadd.f32 %v6895, %v7102
      %v7165 = vadd.f32 %v6896, %v7107
      %v7166 = vadd.f32 %v6897, %v7112
      %v7167 = vadd.f32 %v6898, %v7117
      %v7168 = vadd.f32 %v6899, %v7122
      %v7169 = vadd.f32 %v6900, %v7127
      %v7170 = vadd.f32 %v6901, %v7132
      %v7171 = vadd.f32 %v6902, %v7137
      %v7172 = vadd.f32 %v7140, %v4328
      %v7173 = vadd.f32 %v7141, %v4329
      %v7174 = vadd.f32 %v7142, %v4330
      %v7175 = vadd.f32 %v7143, %v4331
      %v7176 = vadd.f32 %v7144, %v4332
      %v7177 = vadd.f32 %v7145, %v4333
      %v7178 = vadd.f32 %v7146, %v4334
      %v7179 = vadd.f32 %v7147, %v4335
      %v7180 = vadd.f32 %v7148, %v4336
      %v7181 = vadd.f32 %v7149, %v4337
      %v7182 = vadd.f32 %v7150, %v4338
      %v7183 = vadd.f32 %v7151, %v4339
      %v7184 = vadd.f32 %v7152, %v4340
      %v7185 = vadd.f32 %v7153, %v4341
      %v7186 = vadd.f32 %v7154, %v4342
      %v7187 = vadd.f32 %v7155, %v4343
      %v7188 = vadd.f32 %v7156, %v4344
      %v7189 = vadd.f32 %v7157, %v4345
      %v7190 = vadd.f32 %v7158, %v4346
      %v7191 = vadd.f32 %v7159, %v4347
      %v7192 = vadd.f32 %v7160, %v4348
      %v7193 = vadd.f32 %v7161, %v4349
      %v7194 = vadd.f32 %v7162, %v4350
      %v7195 = vadd.f32 %v7163, %v4351
      %v7196 = vadd.f32 %v7164, %v4352
      %v7197 = vadd.f32 %v7165, %v4353
      %v7198 = vadd.f32 %v7166, %v4354
      %v7199 = vadd.f32 %v7167, %v4355
      %v7200 = vadd.f32 %v7168, %v4356
      %v7201 = vadd.f32 %v7169, %v4357
      %v7202 = vadd.f32 %v7170, %v4358
      %v7203 = vadd.f32 %v7171, %v4359
      %v7204 = vld [vmem:[%s10] sm:$0x1]
      %v7205 = vld [vmem:[%s11] sm:$0x1]
      %v7206 = vsel %vm415, %v7172, 0.0
      %v7207 = vsel %vm415, %v7173, 0.0
      %v7208 = vadd.f32 %v7206, %v7207
      %v7209 = vsel %vm415, %v7174, 0.0
      %v7210 = vadd.f32 %v7208, %v7209
      %v7211 = vsel %vm415, %v7175, 0.0
      %v7212 = vadd.f32 %v7210, %v7211
      %v7213 = vsel %vm415, %v7176, 0.0
      %v7214 = vadd.f32 %v7212, %v7213
      %v7215 = vsel %vm415, %v7177, 0.0
      %v7216 = vadd.f32 %v7214, %v7215
      %v7217 = vsel %vm415, %v7178, 0.0
      %v7218 = vadd.f32 %v7216, %v7217
      %v7219 = vsel %vm415, %v7179, 0.0
      %v7220 = vadd.f32 %v7218, %v7219
      %v7221 = vsel %vm415, %v7180, 0.0
      %v7222 = vadd.f32 %v7220, %v7221
      %v7223 = vsel %vm415, %v7181, 0.0
      %v7224 = vadd.f32 %v7222, %v7223
      %v7225 = vsel %vm415, %v7182, 0.0
      %v7226 = vadd.f32 %v7224, %v7225
      %v7227 = vsel %vm415, %v7183, 0.0
      %v7228 = vadd.f32 %v7226, %v7227
      %v7229 = vsel %vm415, %v7184, 0.0
      %v7230 = vadd.f32 %v7228, %v7229
      %v7231 = vsel %vm415, %v7185, 0.0
      %v7232 = vadd.f32 %v7230, %v7231
      %v7233 = vsel %vm415, %v7186, 0.0
      %v7234 = vadd.f32 %v7232, %v7233
      %v7235 = vsel %vm415, %v7187, 0.0
      %v7236 = vadd.f32 %v7234, %v7235
      %v7237 = vsel %vm415, %v7188, 0.0
      %v7238 = vadd.f32 %v7236, %v7237
      %v7239 = vsel %vm415, %v7189, 0.0
      %v7240 = vadd.f32 %v7238, %v7239
      %v7241 = vsel %vm415, %v7190, 0.0
      %v7242 = vadd.f32 %v7240, %v7241
      %v7243 = vsel %vm415, %v7191, 0.0
      %v7244 = vadd.f32 %v7242, %v7243
      %v7245 = vsel %vm415, %v7192, 0.0
      %v7246 = vadd.f32 %v7244, %v7245
      %v7247 = vsel %vm415, %v7193, 0.0
      %v7248 = vadd.f32 %v7246, %v7247
      %v7249 = vsel %vm415, %v7194, 0.0
      %v7250 = vadd.f32 %v7248, %v7249
      %v7251 = vsel %vm415, %v7195, 0.0
      %v7252 = vadd.f32 %v7250, %v7251
      %v7253 = vsel %vm415, %v7196, 0.0
      %v7254 = vadd.f32 %v7252, %v7253
      %v7255 = vsel %vm415, %v7197, 0.0
      %v7256 = vadd.f32 %v7254, %v7255
      %v7257 = vsel %vm415, %v7198, 0.0
      %v7258 = vadd.f32 %v7256, %v7257
      %v7259 = vsel %vm415, %v7199, 0.0
      %v7260 = vadd.f32 %v7258, %v7259
      %v7261 = vsel %vm415, %v7200, 0.0
      %v7262 = vadd.f32 %v7260, %v7261
      %v7263 = vsel %vm415, %v7201, 0.0
      %v7264 = vadd.f32 %v7262, %v7263
      %v7265 = vsel %vm415, %v7202, 0.0
      %v7266 = vadd.f32 %v7264, %v7265
      %v7267 = vsel %vm415, %v7203, 0.0
      %v7268 = vadd.f32 %v7266, %v7267
      %v7269 = vrot.slane %v7268, 4
      %v7270 = vadd.f32 %v7268, %v7269
      %v7271 = vrot.slane %v7270, 2
      %v7272 = vadd.f32 %v7270, %v7271
      %v7273 = vrot.slane %v7272, 1
      %v7274 = vadd.f32 %v7272, %v7273
      %v7276 = vsel %vm415, %v7274, 0
      %7278 = vmatprep.subr.mxu0 0.0
      %7279 = vmatpush1.msra.mxu0 0.0
      %7280 = vmatprep.subr.mxu0 0.0
      %7281 = vmatpush1.msra.mxu0 0.0
      %7282 = vmatprep.subr.mxu0 0.0
      %7283 = vmatpush1.msra.mxu0 0.0
      %7284 = vmatprep.subr.mxu0 0.0
      %7285 = vmatpush1.msra.mxu0 0.0
      %7286 = vmatprep.subr.mxu0 0.0
      %7287 = vmatpush1.msra.mxu0 0.0
      %7288 = vmatprep.subr.mxu0 0.0
      %7289 = vmatpush1.msra.mxu0 0.0
      %7290 = vmatprep.subr.mxu0 0.0
      %7291 = vmatpush1.msra.mxu0 0.0
      %7292 = vmatprep.subr.mxu0 0.0
      %7293 = vmatpush1.msra.mxu0 0.0
      %7294 = vmatprep.subr.mxu0 0.0
      %7295 = vmatpush1.msra.mxu0 0.0
      %7296 = vmatprep.subr.mxu0 0.0
      %7297 = vmatpush1.msra.mxu0 0.0
      %7298 = vmatprep.subr.mxu0 0.0
      %7299 = vmatpush1.msra.mxu0 0.0
      %7300 = vmatprep.subr.mxu0 0.0
      %7301 = vmatpush1.msra.mxu0 0.0
      %7302 = vmatprep.subr.mxu0 0.0
      %7303 = vmatpush1.msra.mxu0 0.0
      %7304 = vmatprep.subr.mxu0 0.0
      %7305 = vmatpush1.msra.mxu0 0.0
      %7306 = vmatprep.subr.mxu0 0.0
      %7307 = vmatpush1.msra.mxu0 0.0
      %7308 = vmatprep.subr.mxu0 0.0
      %7309 = vmatpush1.msra.mxu0 %v579
      %7310 = vmatprep.subr.mxu0 0.0
      %7311 = vmatpush2.msra.mxu0 0.0
      %7312 = vmatprep.subr.mxu0 0.0
      %7313 = vmatpush2.msra.mxu0 0.0
      %7314 = vmatprep.subr.mxu0 0.0
      %7315 = vmatpush2.msra.mxu0 0.0
      %7316 = vmatprep.subr.mxu0 0.0
      %7317 = vmatpush2.msra.mxu0 0.0
      %7318 = vmatprep.subr.mxu0 0.0
      %7319 = vmatpush2.msra.mxu0 0.0
      %7320 = vmatprep.subr.mxu0 0.0
      %7321 = vmatpush2.msra.mxu0 0.0
      %7322 = vmatprep.subr.mxu0 0.0
      %7323 = vmatpush2.msra.mxu0 0.0
      %7324 = vmatprep.subr.mxu0 0.0
      %7325 = vmatpush2.msra.mxu0 0.0
      %7326 = vmatprep.subr.mxu0 0.0
      %7327 = vmatpush2.msra.mxu0 0.0
      %7328 = vmatprep.subr.mxu0 0.0
      %7329 = vmatpush2.msra.mxu0 0.0
      %7330 = vmatprep.subr.mxu0 0.0
      %7331 = vmatpush2.msra.mxu0 0.0
      %7332 = vmatprep.subr.mxu0 0.0
      %7333 = vmatpush2.msra.mxu0 0.0
      %7334 = vmatprep.subr.mxu0 0.0
      %7335 = vmatpush2.msra.mxu0 0.0
      %7336 = vmatprep.subr.mxu0 0.0
      %7337 = vmatpush2.msra.mxu0 0.0
      %7338 = vmatprep.subr.mxu0 0.0
      %7339 = vmatpush2.msra.mxu0 0.0
      %7340 = vmatprep.subr.mxu0 0.0
      %7341 = vmatpush2.msra.mxu0 0.0
      %7342 = vmatprep.mubr.f32.mxu0 0.0
      %7343 = vmatmul.mubr.f32.gmra.mxu0 %v7276
      %v7344 = vpop.f32.mrf.mxu0
      %v7345 = vadd.f32 0.0, %v7344
      %v7346 = vpop.f32.mrf.mxu0
      %7347 = vdwg.mxu0
      %v7348 = vlaneseq
      %v7349 = vshrl.u32 %v7348, 7
      %v7350 = vsub.s32 0, %v7349
      %v7351 = vrot.slane %v7345, %v7350
      %v7352 = vsub.f32 %v7172, %v7351
      %v7353 = vsub.f32 %v7173, %v7351
      %v7354 = vsub.f32 %v7174, %v7351
      %v7355 = vsub.f32 %v7175, %v7351
      %v7356 = vsub.f32 %v7176, %v7351
      %v7357 = vsub.f32 %v7177, %v7351
      %v7358 = vsub.f32 %v7178, %v7351
      %v7359 = vsub.f32 %v7179, %v7351
      %v7360 = vsub.f32 %v7180, %v7351
      %v7361 = vsub.f32 %v7181, %v7351
      %v7362 = vsub.f32 %v7182, %v7351
      %v7363 = vsub.f32 %v7183, %v7351
      %v7364 = vsub.f32 %v7184, %v7351
      %v7365 = vsub.f32 %v7185, %v7351
      %v7366 = vsub.f32 %v7186, %v7351
      %v7367 = vsub.f32 %v7187, %v7351
      %v7368 = vsub.f32 %v7188, %v7351
      %v7369 = vsub.f32 %v7189, %v7351
      %v7370 = vsub.f32 %v7190, %v7351
      %v7371 = vsub.f32 %v7191, %v7351
      %v7372 = vsub.f32 %v7192, %v7351
      %v7373 = vsub.f32 %v7193, %v7351
      %v7374 = vsub.f32 %v7194, %v7351
      %v7375 = vsub.f32 %v7195, %v7351
      %v7376 = vsub.f32 %v7196, %v7351
      %v7377 = vsub.f32 %v7197, %v7351
      %v7378 = vsub.f32 %v7198, %v7351
      %v7379 = vsub.f32 %v7199, %v7351
      %v7380 = vsub.f32 %v7200, %v7351
      %v7381 = vsub.f32 %v7201, %v7351
      %v7382 = vsub.f32 %v7202, %v7351
      %v7383 = vsub.f32 %v7203, %v7351
      %v7384 = vmul.f32 %v7352, %v7352
      %v7385 = vmul.f32 %v7353, %v7353
      %v7386 = vmul.f32 %v7354, %v7354
      %v7387 = vmul.f32 %v7355, %v7355
      %v7388 = vmul.f32 %v7356, %v7356
      %v7389 = vmul.f32 %v7357, %v7357
      %v7390 = vmul.f32 %v7358, %v7358
      %v7391 = vmul.f32 %v7359, %v7359
      %v7392 = vmul.f32 %v7360, %v7360
      %v7393 = vmul.f32 %v7361, %v7361
      %v7394 = vmul.f32 %v7362, %v7362
      %v7395 = vmul.f32 %v7363, %v7363
      %v7396 = vmul.f32 %v7364, %v7364
      %v7397 = vmul.f32 %v7365, %v7365
      %v7398 = vmul.f32 %v7366, %v7366
      %v7399 = vmul.f32 %v7367, %v7367
      %v7400 = vmul.f32 %v7368, %v7368
      %v7401 = vmul.f32 %v7369, %v7369
      %v7402 = vmul.f32 %v7370, %v7370
      %v7403 = vmul.f32 %v7371, %v7371
      %v7404 = vmul.f32 %v7372, %v7372
      %v7405 = vmul.f32 %v7373, %v7373
      %v7406 = vmul.f32 %v7374, %v7374
      %v7407 = vmul.f32 %v7375, %v7375
      %v7408 = vmul.f32 %v7376, %v7376
      %v7409 = vmul.f32 %v7377, %v7377
      %v7410 = vmul.f32 %v7378, %v7378
      %v7411 = vmul.f32 %v7379, %v7379
      %v7412 = vmul.f32 %v7380, %v7380
      %v7413 = vmul.f32 %v7381, %v7381
      %v7414 = vmul.f32 %v7382, %v7382
      %v7415 = vmul.f32 %v7383, %v7383
      %v7416 = vsel %vm415, %v7384, 0.0
      %v7417 = vsel %vm415, %v7385, 0.0
      %v7418 = vadd.f32 %v7416, %v7417
      %v7419 = vsel %vm415, %v7386, 0.0
      %v7420 = vadd.f32 %v7418, %v7419
      %v7421 = vsel %vm415, %v7387, 0.0
      %v7422 = vadd.f32 %v7420, %v7421
      %v7423 = vsel %vm415, %v7388, 0.0
      %v7424 = vadd.f32 %v7422, %v7423
      %v7425 = vsel %vm415, %v7389, 0.0
      %v7426 = vadd.f32 %v7424, %v7425
      %v7427 = vsel %vm415, %v7390, 0.0
      %v7428 = vadd.f32 %v7426, %v7427
      %v7429 = vsel %vm415, %v7391, 0.0
      %v7430 = vadd.f32 %v7428, %v7429
      %v7431 = vsel %vm415, %v7392, 0.0
      %v7432 = vadd.f32 %v7430, %v7431
      %v7433 = vsel %vm415, %v7393, 0.0
      %v7434 = vadd.f32 %v7432, %v7433
      %v7435 = vsel %vm415, %v7394, 0.0
      %v7436 = vadd.f32 %v7434, %v7435
      %v7437 = vsel %vm415, %v7395, 0.0
      %v7438 = vadd.f32 %v7436, %v7437
      %v7439 = vsel %vm415, %v7396, 0.0
      %v7440 = vadd.f32 %v7438, %v7439
      %v7441 = vsel %vm415, %v7397, 0.0
      %v7442 = vadd.f32 %v7440, %v7441
      %v7443 = vsel %vm415, %v7398, 0.0
      %v7444 = vadd.f32 %v7442, %v7443
      %v7445 = vsel %vm415, %v7399, 0.0
      %v7446 = vadd.f32 %v7444, %v7445
      %v7447 = vsel %vm415, %v7400, 0.0
      %v7448 = vadd.f32 %v7446, %v7447
      %v7449 = vsel %vm415, %v7401, 0.0
      %v7450 = vadd.f32 %v7448, %v7449
      %v7451 = vsel %vm415, %v7402, 0.0
      %v7452 = vadd.f32 %v7450, %v7451
      %v7453 = vsel %vm415, %v7403, 0.0
      %v7454 = vadd.f32 %v7452, %v7453
      %v7455 = vsel %vm415, %v7404, 0.0
      %v7456 = vadd.f32 %v7454, %v7455
      %v7457 = vsel %vm415, %v7405, 0.0
      %v7458 = vadd.f32 %v7456, %v7457
      %v7459 = vsel %vm415, %v7406, 0.0
      %v7460 = vadd.f32 %v7458, %v7459
      %v7461 = vsel %vm415, %v7407, 0.0
      %v7462 = vadd.f32 %v7460, %v7461
      %v7463 = vsel %vm415, %v7408, 0.0
      %v7464 = vadd.f32 %v7462, %v7463
      %v7465 = vsel %vm415, %v7409, 0.0
      %v7466 = vadd.f32 %v7464, %v7465
      %v7467 = vsel %vm415, %v7410, 0.0
      %v7468 = vadd.f32 %v7466, %v7467
      %v7469 = vsel %vm415, %v7411, 0.0
      %v7470 = vadd.f32 %v7468, %v7469
      %v7471 = vsel %vm415, %v7412, 0.0
      %v7472 = vadd.f32 %v7470, %v7471
      %v7473 = vsel %vm415, %v7413, 0.0
      %v7474 = vadd.f32 %v7472, %v7473
      %v7475 = vsel %vm415, %v7414, 0.0
      %v7476 = vadd.f32 %v7474, %v7475
      %v7477 = vsel %vm415, %v7415, 0.0
      %v7478 = vadd.f32 %v7476, %v7477
      %v7479 = vrot.slane %v7478, 4
      %v7480 = vadd.f32 %v7478, %v7479
      %v7481 = vrot.slane %v7480, 2
      %v7482 = vadd.f32 %v7480, %v7481
      %v7483 = vrot.slane %v7482, 1
      %v7484 = vadd.f32 %v7482, %v7483
      %v7486 = vsel %vm415, %v7484, 0
      %7488 = vmatprep.subr.mxu0 0.0
      %7489 = vmatpush1.msra.mxu0 0.0
      %7490 = vmatprep.subr.mxu0 0.0
      %7491 = vmatpush1.msra.mxu0 0.0
      %7492 = vmatprep.subr.mxu0 0.0
      %7493 = vmatpush1.msra.mxu0 0.0
      %7494 = vmatprep.subr.mxu0 0.0
      %7495 = vmatpush1.msra.mxu0 0.0
      %7496 = vmatprep.subr.mxu0 0.0
      %7497 = vmatpush1.msra.mxu0 0.0
      %7498 = vmatprep.subr.mxu0 0.0
      %7499 = vmatpush1.msra.mxu0 0.0
      %7500 = vmatprep.subr.mxu0 0.0
      %7501 = vmatpush1.msra.mxu0 0.0
      %7502 = vmatprep.subr.mxu0 0.0
      %7503 = vmatpush1.msra.mxu0 0.0
      %7504 = vmatprep.subr.mxu0 0.0
      %7505 = vmatpush1.msra.mxu0 0.0
      %7506 = vmatprep.subr.mxu0 0.0
      %7507 = vmatpush1.msra.mxu0 0.0
      %7508 = vmatprep.subr.mxu0 0.0
      %7509 = vmatpush1.msra.mxu0 0.0
      %7510 = vmatprep.subr.mxu0 0.0
      %7511 = vmatpush1.msra.mxu0 0.0
      %7512 = vmatprep.subr.mxu0 0.0
      %7513 = vmatpush1.msra.mxu0 0.0
      %7514 = vmatprep.subr.mxu0 0.0
      %7515 = vmatpush1.msra.mxu0 0.0
      %7516 = vmatprep.subr.mxu0 0.0
      %7517 = vmatpush1.msra.mxu0 0.0
      %7518 = vmatprep.subr.mxu0 0.0
      %7519 = vmatpush1.msra.mxu0 %v579
      %7520 = vmatprep.subr.mxu0 0.0
      %7521 = vmatpush2.msra.mxu0 0.0
      %7522 = vmatprep.subr.mxu0 0.0
      %7523 = vmatpush2.msra.mxu0 0.0
      %7524 = vmatprep.subr.mxu0 0.0
      %7525 = vmatpush2.msra.mxu0 0.0
      %7526 = vmatprep.subr.mxu0 0.0
      %7527 = vmatpush2.msra.mxu0 0.0
      %7528 = vmatprep.subr.mxu0 0.0
      %7529 = vmatpush2.msra.mxu0 0.0
      %7530 = vmatprep.subr.mxu0 0.0
      %7531 = vmatpush2.msra.mxu0 0.0
      %7532 = vmatprep.subr.mxu0 0.0
      %7533 = vmatpush2.msra.mxu0 0.0
      %7534 = vmatprep.subr.mxu0 0.0
      %7535 = vmatpush2.msra.mxu0 0.0
      %7536 = vmatprep.subr.mxu0 0.0
      %7537 = vmatpush2.msra.mxu0 0.0
      %7538 = vmatprep.subr.mxu0 0.0
      %7539 = vmatpush2.msra.mxu0 0.0
      %7540 = vmatprep.subr.mxu0 0.0
      %7541 = vmatpush2.msra.mxu0 0.0
      %7542 = vmatprep.subr.mxu0 0.0
      %7543 = vmatpush2.msra.mxu0 0.0
      %7544 = vmatprep.subr.mxu0 0.0
      %7545 = vmatpush2.msra.mxu0 0.0
      %7546 = vmatprep.subr.mxu0 0.0
      %7547 = vmatpush2.msra.mxu0 0.0
      %7548 = vmatprep.subr.mxu0 0.0
      %7549 = vmatpush2.msra.mxu0 0.0
      %7550 = vmatprep.subr.mxu0 0.0
      %7551 = vmatpush2.msra.mxu0 0.0
      %7552 = vmatprep.mubr.f32.mxu0 0.0
      %7553 = vmatmul.mubr.f32.gmra.mxu0 %v7486
      %v7554 = vpop.f32.mrf.mxu0
      %v7555 = vadd.f32 1e-05, %v7554
      %v7556 = vpop.f32.mrf.mxu0
      %7557 = vdwg.mxu0
      %v7558 = vrsqrt.pop %v7555
      %v7559 = vmul.f32 %v7558, %v7204
      %v7560 = vlaneseq
      %v7561 = vshrl.u32 %v7560, 7
      %v7562 = vsub.s32 0, %v7561
      %v7563 = vrot.slane %v7559, %v7562
      %v7564 = vmul.f32 %v7352, %v7563
      %v7565 = vmul.f32 %v7353, %v7563
      %v7566 = vmul.f32 %v7354, %v7563
      %v7567 = vmul.f32 %v7355, %v7563
      %v7568 = vmul.f32 %v7356, %v7563
      %v7569 = vmul.f32 %v7357, %v7563
      %v7570 = vmul.f32 %v7358, %v7563
      %v7571 = vmul.f32 %v7359, %v7563
      %v7572 = vmul.f32 %v7360, %v7563
      %v7573 = vmul.f32 %v7361, %v7563
      %v7574 = vmul.f32 %v7362, %v7563
      %v7575 = vmul.f32 %v7363, %v7563
      %v7576 = vmul.f32 %v7364, %v7563
      %v7577 = vmul.f32 %v7365, %v7563
      %v7578 = vmul.f32 %v7366, %v7563
      %v7579 = vmul.f32 %v7367, %v7563
      %v7580 = vmul.f32 %v7368, %v7563
      %v7581 = vmul.f32 %v7369, %v7563
      %v7582 = vmul.f32 %v7370, %v7563
      %v7583 = vmul.f32 %v7371, %v7563
      %v7584 = vmul.f32 %v7372, %v7563
      %v7585 = vmul.f32 %v7373, %v7563
      %v7586 = vmul.f32 %v7374, %v7563
      %v7587 = vmul.f32 %v7375, %v7563
      %v7588 = vmul.f32 %v7376, %v7563
      %v7589 = vmul.f32 %v7377, %v7563
      %v7590 = vmul.f32 %v7378, %v7563
      %v7591 = vmul.f32 %v7379, %v7563
      %v7592 = vmul.f32 %v7380, %v7563
      %v7593 = vmul.f32 %v7381, %v7563
      %v7594 = vmul.f32 %v7382, %v7563
      %v7595 = vmul.f32 %v7383, %v7563
      %v7597 = vlaneseq
      %v7598 = vshrl.u32 %v7597, 7
      %v7599 = vsub.s32 0, %v7598
      %v7600 = vrot.slane %v7205, %v7599
      %v7602 = vadd.f32 %v7564, %v7600
      %v7603 = vadd.f32 %v7565, %v7600
      %v7604 = vadd.f32 %v7566, %v7600
      %v7605 = vadd.f32 %v7567, %v7600
      %v7606 = vadd.f32 %v7568, %v7600
      %v7607 = vadd.f32 %v7569, %v7600
      %v7608 = vadd.f32 %v7570, %v7600
      %v7609 = vadd.f32 %v7571, %v7600
      %v7610 = vadd.f32 %v7572, %v7600
      %v7611 = vadd.f32 %v7573, %v7600
      %v7612 = vadd.f32 %v7574, %v7600
      %v7613 = vadd.f32 %v7575, %v7600
      %v7614 = vadd.f32 %v7576, %v7600
      %v7615 = vadd.f32 %v7577, %v7600
      %v7616 = vadd.f32 %v7578, %v7600
      %v7617 = vadd.f32 %v7579, %v7600
      %v7618 = vadd.f32 %v7580, %v7600
      %v7619 = vadd.f32 %v7581, %v7600
      %v7620 = vadd.f32 %v7582, %v7600
      %v7621 = vadd.f32 %v7583, %v7600
      %v7622 = vadd.f32 %v7584, %v7600
      %v7623 = vadd.f32 %v7585, %v7600
      %v7624 = vadd.f32 %v7586, %v7600
      %v7625 = vadd.f32 %v7587, %v7600
      %v7626 = vadd.f32 %v7588, %v7600
      %v7627 = vadd.f32 %v7589, %v7600
      %v7628 = vadd.f32 %v7590, %v7600
      %v7629 = vadd.f32 %v7591, %v7600
      %v7630 = vadd.f32 %v7592, %v7600
      %v7631 = vadd.f32 %v7593, %v7600
      %v7632 = vadd.f32 %v7594, %v7600
      %v7633 = vadd.f32 %v7595, %v7600
      %7634 = vst.msk [vmem:[%s413] sm:$0xff] %vm415, %v7602
      %7635 = vst.msk [vmem:[%s413 + $0x8] sm:$0xff] %vm415, %v7603
      %7636 = vst.msk [vmem:[%s413 + $0x10] sm:$0xff] %vm415, %v7604
      %7637 = vst.msk [vmem:[%s413 + $0x18] sm:$0xff] %vm415, %v7605
      %7638 = vst.msk [vmem:[%s413 + $0x20] sm:$0xff] %vm415, %v7606
      %7639 = vst.msk [vmem:[%s413 + $0x28] sm:$0xff] %vm415, %v7607
      %7640 = vst.msk [vmem:[%s413 + $0x30] sm:$0xff] %vm415, %v7608
      %7641 = vst.msk [vmem:[%s413 + $0x38] sm:$0xff] %vm415, %v7609
      %7642 = vst.msk [vmem:[%s413 + $0x40] sm:$0xff] %vm415, %v7610
      %7643 = vst.msk [vmem:[%s413 + $0x48] sm:$0xff] %vm415, %v7611
      %7644 = vst.msk [vmem:[%s413 + $0x50] sm:$0xff] %vm415, %v7612
      %7645 = vst.msk [vmem:[%s413 + $0x58] sm:$0xff] %vm415, %v7613
      %7646 = vst.msk [vmem:[%s413 + $0x60] sm:$0xff] %vm415, %v7614
      %7647 = vst.msk [vmem:[%s413 + $0x68] sm:$0xff] %vm415, %v7615
      %7648 = vst.msk [vmem:[%s413 + $0x70] sm:$0xff] %vm415, %v7616
      %7649 = vst.msk [vmem:[%s413 + $0x78] sm:$0xff] %vm415, %v7617
      %7650 = vst.msk [vmem:[%s413 + $0x80] sm:$0xff] %vm415, %v7618
      %7651 = vst.msk [vmem:[%s413 + $0x88] sm:$0xff] %vm415, %v7619
      %7652 = vst.msk [vmem:[%s413 + $0x90] sm:$0xff] %vm415, %v7620
      %7653 = vst.msk [vmem:[%s413 + $0x98] sm:$0xff] %vm415, %v7621
      %7654 = vst.msk [vmem:[%s413 + $0xa0] sm:$0xff] %vm415, %v7622
      %7655 = vst.msk [vmem:[%s413 + $0xa8] sm:$0xff] %vm415, %v7623
      %7656 = vst.msk [vmem:[%s413 + $0xb0] sm:$0xff] %vm415, %v7624
      %7657 = vst.msk [vmem:[%s413 + $0xb8] sm:$0xff] %vm415, %v7625
      %7658 = vst.msk [vmem:[%s413 + $0xc0] sm:$0xff] %vm415, %v7626
      %7659 = vst.msk [vmem:[%s413 + $0xc8] sm:$0xff] %vm415, %v7627
      %7660 = vst.msk [vmem:[%s413 + $0xd0] sm:$0xff] %vm415, %v7628
      %7661 = vst.msk [vmem:[%s413 + $0xd8] sm:$0xff] %vm415, %v7629
      %7662 = vst.msk [vmem:[%s413 + $0xe0] sm:$0xff] %vm415, %v7630
      %7663 = vst.msk [vmem:[%s413 + $0xe8] sm:$0xff] %vm415, %v7631
      %7664 = vst.msk [vmem:[%s413 + $0xf0] sm:$0xff] %vm415, %v7632
      %7665 = vst.msk [vmem:[%s413 + $0xf8] sm:$0xff] %vm415, %v7633
      %p7666 = scmp.lt.s32.totalorder %s23, 1
      %s7667 = scalar_select %p7666, %s23, 1
      %s7668 = smul.addr %s7667, 32
      %s7669 = smul.addr %s7668, 8
      %s7670 = scalar_lea.vmem %s12, %s7669
      // Predicated region
      $region69: #{tpu_custom_call.1} parent=67 // pred_check
        %p7671 = pneg %p298
      $region70: #{tpu_custom_call.1} parent=67 // pred_check_branch
        %7673 = sbr.rel (%p7671) target = $region72
      $region71: #{tpu_custom_call.1} parent=67 // pred_region
        _
      $region72: #{tpu_custom_call.1} parent=67 // pred_fallthru
        _
    $region68: #{tpu_custom_call.1} parent=5 // pred_fallthru
      _
    %p7674 = scmp.le.s32.totalorder 2, %s18
    // Predicated region
    $region73: #{tpu_custom_call.1} parent=5 // pred_check
      %p7675 = pneg %p7674
    $region74: #{tpu_custom_call.1} parent=5 // pred_check_branch
      %7677 = sbr.rel (%p7675) target = $region76
    $region75: #{tpu_custom_call.1} parent=5 // pred_region
      %s7678 = ssub.s32 %s18, 2
      // Predicated region
      $region77: #{tpu_custom_call.1} parent=75 // pred_check
        %p7679 = pneg %p304
      $region78: #{tpu_custom_call.1} parent=75 // pred_check_branch
        %7681 = sbr.rel (%p7679) target = $region80
      $region79: #{tpu_custom_call.1} parent=75 // pred_region
        %p7682 = scmp.lt.s32.totalorder %s24, 1
        %s7683 = scalar_select %p7682, %s24, 1
        %s7684 = smul.addr %s7683, 32
        %s7685 = smul.addr %s7684, 8
        %s7686 = scalar_lea.vmem %s12, %s7685
      $region80: #{tpu_custom_call.1} parent=75 // pred_fallthru
        _
    $region76: #{tpu_custom_call.1} parent=5 // pred_fallthru
      _
  $region6: #{tpu_custom_call.1} parent=0 // loop_footer
    %s22 = sadd.s32 1, %s18
  $region7: #{tpu_custom_call.1} parent=0 // loop_footer_branch
    %17 = sbr.rel target = $region3
  $region8: #{tpu_custom_call.1} parent=0 // loop_exit
    _

</llo_original>
